<compile_context>
chip_gen: v5e
topology: v5e:2x2
jax: 0.10.0
libtpu: 0.0.40
codegen_flags: <defaults>
</compile_context>

<pallas_src>
import numpy as np

import jax
import jax.numpy as jnp
from jax.experimental import pallas as pl
from jax.experimental.pallas import tpu as pltpu


_NUM_CLASSES = 10


def _vmem_limit_bytes():
    """~32 MiB on v7x (64 MiB physical), 64 MiB on v5e/v6e (128 MiB physical)."""
    try:
        cap = pltpu.get_tpu_info().vmem_capacity_bytes
        return int(max(32 * 1024 * 1024, min(cap // 2, 64 * 1024 * 1024)))
    except Exception:
        return 32 * 1024 * 1024


_COMPILER_PARAMS = pltpu.CompilerParams(
    dimension_semantics=("parallel",),     # shard the M/batch grid across TCs
    vmem_limit_bytes=_vmem_limit_bytes(),
)


# ----------------------------------------------------------------------------
# Pallas kernels
# ----------------------------------------------------------------------------
def _conv1_pool_kernel(p0_ref, p1_ref, p2_ref, p3_ref, w_ref, b_ref, o_ref):
    """conv1 as im2col matmul over the 4 pool-corner patches, fused ReLU+pool.

    p*_ref: (TM, 9) bf16, w_ref: (9, 32) bf16, b_ref: (1, 32) f32,
    o_ref:  (TM, 32) -- one row per pooled output position.
    """
    w = w_ref[...]
    a0 = jnp.dot(p0_ref[...], w, preferred_element_type=jnp.float32)
    a1 = jnp.dot(p1_ref[...], w, preferred_element_type=jnp.float32)
    a2 = jnp.dot(p2_ref[...], w, preferred_element_type=jnp.float32)
    a3 = jnp.dot(p3_ref[...], w, preferred_element_type=jnp.float32)
    # Max of the raw accumulators first, then bias + ReLU once (exact: shared
    # bias, monotone ReLU).  Saves 3 broadcast-adds + 3 clamps per tile.
    m = jnp.maximum(jnp.maximum(a0, a1), jnp.maximum(a2, a3))
    o_ref[...] = jnp.maximum(m + b_ref[...], 0.0).astype(o_ref.dtype)


def _conv2_fc_kernel(x_ref, w2p_ref, b2_ref, w1_ref, b1_ref, w2_ref, b2fc_ref,
                     o_ref, hid_ref):
    """conv2 (implicit GEMM) + ReLU + 2x2 pool + flatten + fc1 + ReLU + fc2.

    x_ref  : (TB, 1568) bf16  conv1 pooled map, column = (h*7 + w)*32 + cin
    w2p_ref: (8, 128, 256) bf16 packed conv2 weights (see _pack_conv2_weights)
    hid_ref: (TB, 576) bf16 VMEM scratch -- flattened features, (h,w,c) order
    o_ref  : (TB, 128) f32    fc2 logits padded to 128 lanes
    """
    for ph in range(3):
        for pw in range(3):
            cb = max(2 * pw - 1, 0)        # leftmost input column of the slice
            edge = 1 if pw == 0 else 0     # left-edge weight variant
            acc = None
            for ro in (-1, 0, 1, 2):       # input rows 2*ph-1 .. 2*ph+2
                r = 2 * ph + ro
                if r < 0:                  # top zero-padding row: contributes 0
                    continue
                col0 = (r * 7 + cb) * 32
                xs = x_ref[:, col0:col0 + 128]            # (TB, 128) bf16
                wv = w2p_ref[(ro + 1) * 2 + edge]         # (128, 256) bf16
                t = jnp.dot(xs, wv, preferred_element_type=jnp.float32)
                acc = t if acc is None else acc + t
            # acc column block (dh*2+dw)*64 holds the pre-bias conv2 output of
            # pool-window corner (dh, dw): max first, then bias + ReLU (exact).
            m = jnp.maximum(jnp.maximum(acc[:, 0:64], acc[:, 64:128]),
                            jnp.maximum(acc[:, 128:192], acc[:, 192:256]))
            pooled = jnp.maximum(m + b2_ref[...], 0.0)          # (TB, 64) f32
            p = ph * 3 + pw
            hid_ref[:, p * 64:(p + 1) * 64] = pooled.astype(hid_ref.dtype)

    h = jnp.dot(hid_ref[...], w1_ref[...], preferred_element_type=jnp.float32)
    h = jnp.maximum(h + b1_ref[...], 0.0).astype(jnp.bfloat16)
    out = jnp.dot(h, w2_ref[...], preferred_element_type=jnp.float32)
    o_ref[...] = (out + b2fc_ref[...]).astype(o_ref.dtype)


# ----------------------------------------------------------------------------
# pallas_call wrappers
# ----------------------------------------------------------------------------
def _row_tile(m, desired):
    """Pick the M tile: full extent when small; otherwise a multiple of 8
    capped at `desired`, keeping >=2 grid steps (v7x megacore needs >=2)."""
    if m <= max(desired // 2, 8):
        return m
    half = ((-(-m // 2)) + 7) // 8 * 8
    return max(8, min(desired, half))


def conv1_relu_pool(p4, w, b, *, tm=2048):
    """p4: 4 corner patch arrays (M, 9) bf16; w: (9,32) bf16; b: (1,32) f32."""
    M, K = p4[0].shape
    C = w.shape[1]
    TM = _row_tile(M, tm)
    row_spec = pl.BlockSpec((TM, K), lambda i: (i, 0))
    return pl.pallas_call(
        _conv1_pool_kernel,
        out_shape=jax.ShapeDtypeStruct((M, C), jnp.bfloat16),
        grid=(pl.cdiv(M, TM),),
        in_specs=[row_spec, row_spec, row_spec, row_spec,
                  pl.BlockSpec((K, C), lambda i: (0, 0)),
                  pl.BlockSpec((1, C), lambda i: (0, 0))],
        out_specs=pl.BlockSpec((TM, C), lambda i: (i, 0)),
        compiler_params=_COMPILER_PARAMS,
    )(*p4, w, b)


def conv2_fc_fused(x2, w2p, b2, w1, b1, w2, b2fc, *, tb=256):
    """x2: (N, 1568) bf16 conv1 pooled map -> (N, 128) f32 padded logits."""
    N, D = x2.shape
    assert D == 7 * 7 * 32, D
    NP = w2.shape[1]
    TB = _row_tile(N, tb)

    def full(a):
        return pl.BlockSpec(a.shape, lambda i: (0,) * a.ndim)

    return pl.pallas_call(
        _conv2_fc_kernel,
        out_shape=jax.ShapeDtypeStruct((N, NP), jnp.float32),
        grid=(pl.cdiv(N, TB),),
        in_specs=[pl.BlockSpec((TB, D), lambda i: (i, 0)),
                  full(w2p), full(b2), full(w1), full(b1), full(w2), full(b2fc)],
        out_specs=pl.BlockSpec((TB, NP), lambda i: (i, 0)),
        scratch_shapes=[pltpu.VMEM((TB, 576), jnp.bfloat16)],
        compiler_params=_COMPILER_PARAMS,
    )(x2, w2p, b2, w1, b1, w2, b2fc)


# ----------------------------------------------------------------------------
# conv1 im2col glue (XLA, corner-direct, no full-patch intermediate)
# ----------------------------------------------------------------------------
def _conv1_corner_patches(x_nhwc):
    """x: (N, 28, 28, 1) bf16 -> 4 arrays (N*49, 9), one per 2x2 pool corner.

    Corner (dh, dw), tap (kh, kw) reads padded row kh + 2*dh + 4*ph and padded
    column kw + 2*dw + 4*pw (conv stride 2 folded with pool stride 2), so each
    corner array is built directly with strided slices.  Column order is
    (kh, kw, cin), matching the conv1 weight matrix.
    """
    n, h, w, c = x_nhwc.shape
    xp = jnp.pad(x_nhwc, ((0, 0), (1, 1), (1, 1), (0, 0)))
    hp = wp = ((h + 2 - 3) // 2 + 1) // 2          # 7 (floor-mode pooling)
    step = 4                                        # conv stride 2 * pool 2
    corners = []
    for dh in range(2):
        for dw in range(2):
            cols = []
            for kh in range(3):
                for kw in range(3):
                    r0, c0 = kh + 2 * dh, kw + 2 * dw
                    cols.append(xp[:, r0:r0 + step * hp:step,
                                   c0:c0 + step * wp:step, :])   # (N,7,7,1)
            patch = jnp.concatenate(cols, axis=-1)               # (N,7,7,9)
            corners.append(patch.reshape(n * hp * wp, 3 * 3 * c))
    return corners, hp, wp


# ----------------------------------------------------------------------------
# Parameters (PyTorch layout) and one-time kernel-layout preparation
# ----------------------------------------------------------------------------
def init_params(key):
    ks = jax.random.split(key, 8)
    p = {}
    p["conv1_w"] = 0.1 * jax.random.normal(ks[0], (32, 1, 3, 3), jnp.float32)
    p["conv1_b"] = 0.1 * jax.random.normal(ks[1], (32,), jnp.float32)
    p["conv2_w"] = 0.05 * jax.random.normal(ks[2], (64, 32, 3, 3), jnp.float32)
    p["conv2_b"] = 0.05 * jax.random.normal(ks[3], (64,), jnp.float32)
    p["fc1_w"] = 0.03 * jax.random.normal(ks[4], (512, 64 * 3 * 3), jnp.float32)
    p["fc1_b"] = 0.03 * jax.random.normal(ks[5], (512,), jnp.float32)
    p["fc2_w"] = 0.03 * jax.random.normal(ks[6], (10, 512), jnp.float32)
    p["fc2_b"] = 0.03 * jax.random.normal(ks[7], (10,), jnp.float32)
    return p


def _pack_conv2_weights(w_oihw):
    """Pack the (64,32,3,3) conv2 weight into 8 (128,256) implicit-GEMM blocks.

    Variant v = (ro+1)*2 + edge where ro = input row minus 2*ph in [-1,2] and
    edge = 1 iff pw == 0.  Row block rc (relative input column 0..3, 32
    channels each) x column block (dh*2+dw) (pool corner, 64 outputs each)
    holds W[kh=ro-dh+1, kw=co+rc-dw+1] (co = 0 at the left edge, else -1) when
    that tap exists, else zeros -- the zeros encode the conv zero padding.
    """
    w = np.asarray(w_oihw, dtype=np.float32)           # (O, I, kh, kw)
    w_hwio = np.transpose(w, (2, 3, 1, 0))             # (kh, kw, I, O)
    i_ch, o_ch = w_hwio.shape[2], w_hwio.shape[3]
    packs = np.zeros((8, 4 * i_ch, 4 * o_ch), np.float32)
    for ro in (-1, 0, 1, 2):
        for edge in (0, 1):
            v = (ro + 1) * 2 + edge
            co = 0 if edge else -1
            for rc in range(4):
                for dh in range(2):
                    for dw in range(2):
                        kh = ro - dh + 1
                        kw = co + rc - dw + 1
                        if 0 <= kh <= 2 and 0 <= kw <= 2:
                            packs[v,
                                  rc * i_ch:(rc + 1) * i_ch,
                                  (dh * 2 + dw) * o_ch:(dh * 2 + dw + 1) * o_ch
                                  ] = w_hwio[kh, kw]
    return jnp.asarray(packs, dtype=jnp.bfloat16)       # (8, 128, 256)


def prepare_params(p, fc2_pad=128):
    """One-time conversion to kernel-ready layouts/dtypes (outside the fwd)."""
    kp = {}
    # conv1: (O,I,kh,kw) -> (kh*kw*I, O) matrix matching the patch column order
    kp["conv1_w"] = jnp.transpose(p["conv1_w"], (2, 3, 1, 0)).reshape(
        9, 32).astype(jnp.bfloat16)
    kp["conv1_b"] = p["conv1_b"].reshape(1, -1).astype(jnp.float32)
    kp["conv2_wp"] = _pack_conv2_weights(p["conv2_w"])          # (8,128,256)
    kp["conv2_b"] = p["conv2_b"].reshape(1, -1).astype(jnp.float32)
    # fc1 rows permuted from PyTorch's (c,h,w) flatten order to the kernel's
    # (h,w,c) order, so the forward never transposes the activation.
    w1 = p["fc1_w"].reshape(-1, 64, 3, 3)
    kp["fc1_w"] = jnp.transpose(w1, (2, 3, 1, 0)).reshape(
        576, -1).astype(jnp.bfloat16)
    kp["fc1_b"] = p["fc1_b"].reshape(1, -1).astype(jnp.float32)
    n_out = p["fc2_w"].shape[0]
    kp["fc2_w"] = jnp.pad(p["fc2_w"].T,
                          ((0, 0), (0, fc2_pad - n_out))).astype(jnp.bfloat16)
    kp["fc2_b"] = jnp.pad(p["fc2_b"], (0, fc2_pad - n_out)).reshape(
        1, -1).astype(jnp.float32)
    return kp


# ----------------------------------------------------------------------------
# Model forward
# ----------------------------------------------------------------------------
def classifier_forward(kp, x_nchw):
    """x_nchw: (N, 1, 28, 28) float32 -> logits (N, 10)."""
    n, c, h, w = x_nchw.shape
    assert (c, h, w) == (1, 28, 28), "flatten size 64*3*3 requires 1x28x28 input"
    # NCHW -> NHWC, single upstream bf16 cast (all patches inherit the dtype).
    x = jnp.transpose(x_nchw, (0, 2, 3, 1)).astype(jnp.bfloat16)

    # conv1 (k3,s2,p1) + ReLU + maxpool(2,2), fused: 28x28x1 -> 7x7x32
    # TODO(synk): conv1 patch extraction is still XLA strided-slice glue; the
    # arrays are tiny (18 B per output row) so an in-kernel gather is not worth it.
    p4, hp, wp = _conv1_corner_patches(x)
    y = conv1_relu_pool(p4, kp["conv1_w"], kp["conv1_b"])        # (N*49, 32)
    x2 = y.reshape(n, hp * wp * 32)                               # (N, 1568)

    # conv2 + ReLU + pool + flatten + fc1 + ReLU + fc2, fully fused in VMEM.
    logits = conv2_fc_fused(x2, kp["conv2_wp"], kp["conv2_b"],
                            kp["fc1_w"], kp["fc1_b"],
                            kp["fc2_w"], kp["fc2_b"])             # (N, 128)
    return logits[:, :_NUM_CLASSES]


# ----------------------------------------------------------------------------
# Pure-JAX f32 reference (matches the PyTorch module) for a tolerance check
# ----------------------------------------------------------------------------
def reference_forward(p, x_nchw):
    dn = ("NHWC", "HWIO", "NHWC")
    x = jnp.transpose(x_nchw, (0, 2, 3, 1))
    y = jax.lax.conv_general_dilated(
        x, jnp.transpose(p["conv1_w"], (2, 3, 1, 0)), (2, 2),
        ((1, 1), (1, 1)), dimension_numbers=dn)
    y = jax.nn.relu(y + p["conv1_b"])
    y = jax.lax.reduce_window(y, -jnp.inf, jax.lax.max,
                              (1, 2, 2, 1), (1, 2, 2, 1), "VALID")
    y = jax.lax.conv_general_dilated(
        y, jnp.transpose(p["conv2_w"], (2, 3, 1, 0)), (1, 1),
        ((1, 1), (1, 1)), dimension_numbers=dn)
    y = jax.nn.relu(y + p["conv2_b"])
    y = jax.lax.reduce_window(y, -jnp.inf, jax.lax.max,
                              (1, 2, 2, 1), (1, 2, 2, 1), "VALID")
    y = jnp.transpose(y, (0, 3, 1, 2)).reshape(x.shape[0], -1)    # (N, 576)
    hdd = jax.nn.relu(y @ p["fc1_w"].T + p["fc1_b"])
    return hdd @ p["fc2_w"].T + p["fc2_b"]


if __name__ == "__main__":
    key = jax.random.PRNGKey(0)
    kparam, kx = jax.random.split(key)
    params = init_params(kparam)
    kernel_params = prepare_params(params)   # one-time weight layout prep

    # Spatial size must be 28x28 / 1 channel so the flatten matches 64*3*3.
    x = jax.random.normal(kx, (2, 1, 28, 28), jnp.float32)

    fwd = jax.jit(classifier_forward)
    logits = jax.block_until_ready(fwd(kernel_params, x))

    assert logits.shape == (2, _NUM_CLASSES), logits.shape
    assert bool(jnp.all(jnp.isfinite(logits)))

    # bf16 operands with f32 MXU accumulation: expect <~1% relative deviation
    # from the f32 reference; 5% tolerance (scale-free) is comfortable.
    ref = reference_forward(params, x)
    rel = float(jnp.max(jnp.abs(logits - ref)) / (jnp.max(jnp.abs(ref)) + 1e-6))
    assert rel < 5e-2, f"mismatch vs f32 reference: rel={rel}"

    print("KERNEL_OK")
</pallas_src>

<mosaic_0001>
module attributes {stable_mosaic.version = 11 : i64} {
  func.func @_conv1_pool_kernel(%arg0: i32, %arg1: memref<98x9xbf16, #tpu.memory_space<vmem>>, %arg2: memref<98x9xbf16, #tpu.memory_space<vmem>>, %arg3: memref<98x9xbf16, #tpu.memory_space<vmem>>, %arg4: memref<98x9xbf16, #tpu.memory_space<vmem>>, %arg5: memref<9x32xbf16, #tpu.memory_space<vmem>>, %arg6: memref<1x32xf32, #tpu.memory_space<vmem>>, %arg7: memref<98x32xbf16, #tpu.memory_space<vmem>>) attributes {dimension_semantics = [#tpu.dimension_semantics<parallel>], iteration_bounds = array<i64: 1>, scalar_prefetch = 0 : i64, scratch_operands = 0 : i64, tpu.core_type = #tpu.core_type<tc>, window_params = [{transform_indices = @transform_0, window_bounds = array<i64: 98, 9>}, {transform_indices = @transform_1, window_bounds = array<i64: 98, 9>}, {transform_indices = @transform_2, window_bounds = array<i64: 98, 9>}, {transform_indices = @transform_3, window_bounds = array<i64: 98, 9>}, {pipeline_mode = #tpu.pipeline_mode<synchronous>, transform_indices = @transform_4, window_bounds = array<i64: 9, 32>}, {pipeline_mode = #tpu.pipeline_mode<synchronous>, transform_indices = @transform_5, window_bounds = array<i64: 1, 32>}, {transform_indices = @transform_6, window_bounds = array<i64: 98, 32>}]} {
    %c0 = arith.constant 0 : index
    %c0_0 = arith.constant 0 : index
    %0 = vector.load %arg5[%c0, %c0_0] : memref<9x32xbf16, #tpu.memory_space<vmem>>, vector<9x32xbf16>
    %c0_1 = arith.constant 0 : index
    %c0_2 = arith.constant 0 : index
    %1 = vector.load %arg1[%c0_1, %c0_2] : memref<98x9xbf16, #tpu.memory_space<vmem>>, vector<98x9xbf16>
    %cst = arith.constant dense<0.000000e+00> : vector<98x32xf32>
    %2 = tpu.matmul %1, %0, %cst {dimension_numbers = #tpu.dot_dimension_numbers<[1], [0], [0], [1], [0, 0, 1, 1], [], []>} : vector<98x9xbf16>, vector<9x32xbf16>, vector<98x32xf32> -> vector<98x32xf32>
    %c0_3 = arith.constant 0 : index
    %c0_4 = arith.constant 0 : index
    %3 = vector.load %arg2[%c0_3, %c0_4] : memref<98x9xbf16, #tpu.memory_space<vmem>>, vector<98x9xbf16>
    %cst_5 = arith.constant dense<0.000000e+00> : vector<98x32xf32>
    %4 = tpu.matmul %3, %0, %cst_5 {dimension_numbers = #tpu.dot_dimension_numbers<[1], [0], [0], [1], [0, 0, 1, 1], [], []>} : vector<98x9xbf16>, vector<9x32xbf16>, vector<98x32xf32> -> vector<98x32xf32>
    %c0_6 = arith.constant 0 : index
    %c0_7 = arith.constant 0 : index
    %5 = vector.load %arg3[%c0_6, %c0_7] : memref<98x9xbf16, #tpu.memory_space<vmem>>, vector<98x9xbf16>
    %cst_8 = arith.constant dense<0.000000e+00> : vector<98x32xf32>
    %6 = tpu.matmul %5, %0, %cst_8 {dimension_numbers = #tpu.dot_dimension_numbers<[1], [0], [0], [1], [0, 0, 1, 1], [], []>} : vector<98x9xbf16>, vector<9x32xbf16>, vector<98x32xf32> -> vector<98x32xf32>
    %c0_9 = arith.constant 0 : index
    %c0_10 = arith.constant 0 : index
    %7 = vector.load %arg4[%c0_9, %c0_10] : memref<98x9xbf16, #tpu.memory_space<vmem>>, vector<98x9xbf16>
    %cst_11 = arith.constant dense<0.000000e+00> : vector<98x32xf32>
    %8 = tpu.matmul %7, %0, %cst_11 {dimension_numbers = #tpu.dot_dimension_numbers<[1], [0], [0], [1], [0, 0, 1, 1], [], []>} : vector<98x9xbf16>, vector<9x32xbf16>, vector<98x32xf32> -> vector<98x32xf32>
    %9 = arith.maximumf %2, %4 : vector<98x32xf32>
    %10 = arith.maximumf %6, %8 : vector<98x32xf32>
    %11 = arith.maximumf %9, %10 : vector<98x32xf32>
    %c0_12 = arith.constant 0 : index
    %c0_13 = arith.constant 0 : index
    %12 = vector.load %arg6[%c0_12, %c0_13] : memref<1x32xf32, #tpu.memory_space<vmem>>, vector<1x32xf32>
    %13 = vector.broadcast %12 : vector<1x32xf32> to vector<98x32xf32>
    %14 = arith.addf %11, %13 : vector<98x32xf32>
    %cst_14 = arith.constant 0.000000e+00 : f32
    %15 = vector.broadcast %cst_14 : f32 to vector<98x32xf32>
    %16 = arith.maximumf %14, %15 : vector<98x32xf32>
    %17 = arith.truncf %16 : vector<98x32xf32> to vector<98x32xbf16>
    %c0_15 = arith.constant 0 : index
    %c0_16 = arith.constant 0 : index
    %18 = vector.load %arg7[%c0_15, %c0_16] : memref<98x32xbf16, #tpu.memory_space<vmem>>, vector<98x32xbf16>
    tpu.vector_store %arg7[%c0_15, %c0_16], %17 {strides = array<i32>} : memref<98x32xbf16, #tpu.memory_space<vmem>>, vector<98x32xbf16>,
    return
  }
  func.func @transform_0(%arg0: i32) -> (i32, i32) {
    %c0_i32 = arith.constant 0 : i32
    %c0_i32_0 = arith.constant 0 : i32
    return %arg0, %c0_i32 : i32, i32
  }
  func.func @transform_1(%arg0: i32) -> (i32, i32) {
    %c0_i32 = arith.constant 0 : i32
    %c0_i32_0 = arith.constant 0 : i32
    return %arg0, %c0_i32 : i32, i32
  }
  func.func @transform_2(%arg0: i32) -> (i32, i32) {
    %c0_i32 = arith.constant 0 : i32
    %c0_i32_0 = arith.constant 0 : i32
    return %arg0, %c0_i32 : i32, i32
  }
  func.func @transform_3(%arg0: i32) -> (i32, i32) {
    %c0_i32 = arith.constant 0 : i32
    %c0_i32_0 = arith.constant 0 : i32
    return %arg0, %c0_i32 : i32, i32
  }
  func.func @transform_4(%arg0: i32) -> (i32, i32) {
    %c0_i32 = arith.constant 0 : i32
    %c0_i32_0 = arith.constant 0 : i32
    %c0_i32_1 = arith.constant 0 : i32
    return %c0_i32, %c0_i32_0 : i32, i32
  }
  func.func @transform_5(%arg0: i32) -> (i32, i32) {
    %c0_i32 = arith.constant 0 : i32
    %c0_i32_0 = arith.constant 0 : i32
    %c0_i32_1 = arith.constant 0 : i32
    return %c0_i32, %c0_i32_0 : i32, i32
  }
  func.func @transform_6(%arg0: i32) -> (i32, i32) {
    %c0_i32 = arith.constant 0 : i32
    %c0_i32_0 = arith.constant 0 : i32
    return %arg0, %c0_i32 : i32, i32
  }
}

module attributes {stable_mosaic.version = 11 : i64} {
  func.func @_conv2_fc_kernel(%arg0: i32, %arg1: memref<2x1568xbf16, #tpu.memory_space<vmem>>, %arg2: memref<8x128x256xbf16, #tpu.memory_space<vmem>>, %arg3: memref<1x64xf32, #tpu.memory_space<vmem>>, %arg4: memref<576x512xbf16, #tpu.memory_space<vmem>>, %arg5: memref<1x512xf32, #tpu.memory_space<vmem>>, %arg6: memref<512x128xbf16, #tpu.memory_space<vmem>>, %arg7: memref<1x128xf32, #tpu.memory_space<vmem>>, %arg8: memref<2x128xf32, #tpu.memory_space<vmem>>, %arg9: memref<2x576xbf16, #tpu.memory_space<vmem>>) attributes {dimension_semantics = [#tpu.dimension_semantics<parallel>], iteration_bounds = array<i64: 1>, scalar_prefetch = 0 : i64, scratch_operands = 1 : i64, tpu.core_type = #tpu.core_type<tc>, window_params = [{transform_indices = @transform_0, window_bounds = array<i64: 2, 1568>}, {pipeline_mode = #tpu.pipeline_mode<synchronous>, transform_indices = @transform_1, window_bounds = array<i64: 8, 128, 256>}, {pipeline_mode = #tpu.pipeline_mode<synchronous>, transform_indices = @transform_2, window_bounds = array<i64: 1, 64>}, {pipeline_mode = #tpu.pipeline_mode<synchronous>, transform_indices = @transform_3, window_bounds = array<i64: 576, 512>}, {pipeline_mode = #tpu.pipeline_mode<synchronous>, transform_indices = @transform_4, window_bounds = array<i64: 1, 512>}, {pipeline_mode = #tpu.pipeline_mode<synchronous>, transform_indices = @transform_5, window_bounds = array<i64: 512, 128>}, {pipeline_mode = #tpu.pipeline_mode<synchronous>, transform_indices = @transform_6, window_bounds = array<i64: 1, 128>}, {transform_indices = @transform_7, window_bounds = array<i64: 2, 128>}]} {
    %c0 = arith.constant 0 : index
    %c0_0 = arith.constant 0 : index
    %0 = vector.load %arg1[%c0, %c0_0] : memref<2x1568xbf16, #tpu.memory_space<vmem>>, vector<2x128xbf16>
    %c3 = arith.constant 3 : index
    %c0_1 = arith.constant 0 : index
    %c0_2 = arith.constant 0 : index
    %1 = vector.load %arg2[%c3, %c0_1, %c0_2] : memref<8x128x256xbf16, #tpu.memory_space<vmem>>, vector<1x128x256xbf16>
    %2 = vector.shape_cast %1 : vector<1x128x256xbf16> to vector<128x256xbf16>
    %cst = arith.constant dense<0.000000e+00> : vector<2x256xf32>
    %3 = tpu.matmul %0, %2, %cst {dimension_numbers = #tpu.dot_dimension_numbers<[1], [0], [0], [1], [0, 0, 1, 1], [], []>} : vector<2x128xbf16>, vector<128x256xbf16>, vector<2x256xf32> -> vector<2x256xf32>
    %c0_3 = arith.constant 0 : index
    %c224 = arith.constant 224 : index
    %4 = vector.load %arg1[%c0_3, %c224] : memref<2x1568xbf16, #tpu.memory_space<vmem>>, vector<2x128xbf16>
    %c5 = arith.constant 5 : index
    %c0_4 = arith.constant 0 : index
    %c0_5 = arith.constant 0 : index
    %5 = vector.load %arg2[%c5, %c0_4, %c0_5] : memref<8x128x256xbf16, #tpu.memory_space<vmem>>, vector<1x128x256xbf16>
    %6 = vector.shape_cast %5 : vector<1x128x256xbf16> to vector<128x256xbf16>
    %cst_6 = arith.constant dense<0.000000e+00> : vector<2x256xf32>
    %7 = tpu.matmul %4, %6, %cst_6 {dimension_numbers = #tpu.dot_dimension_numbers<[1], [0], [0], [1], [0, 0, 1, 1], [], []>} : vector<2x128xbf16>, vector<128x256xbf16>, vector<2x256xf32> -> vector<2x256xf32>
    %8 = arith.addf %3, %7 : vector<2x256xf32>
    %c0_7 = arith.constant 0 : index
    %c448 = arith.constant 448 : index
    %9 = vector.load %arg1[%c0_7, %c448] : memref<2x1568xbf16, #tpu.memory_space<vmem>>, vector<2x128xbf16>
    %c7 = arith.constant 7 : index
    %c0_8 = arith.constant 0 : index
    %c0_9 = arith.constant 0 : index
    %10 = vector.load %arg2[%c7, %c0_8, %c0_9] : memref<8x128x256xbf16, #tpu.memory_space<vmem>>, vector<1x128x256xbf16>
    %11 = vector.shape_cast %10 : vector<1x128x256xbf16> to vector<128x256xbf16>
    %cst_10 = arith.constant dense<0.000000e+00> : vector<2x256xf32>
    %12 = tpu.matmul %9, %11, %cst_10 {dimension_numbers = #tpu.dot_dimension_numbers<[1], [0], [0], [1], [0, 0, 1, 1], [], []>} : vector<2x128xbf16>, vector<128x256xbf16>, vector<2x256xf32> -> vector<2x256xf32>
    %13 = arith.addf %8, %12 : vector<2x256xf32>
    %14 = vector.extract_strided_slice %13 {offsets = [0, 0], sizes = [2, 64], strides = [1, 1]} : vector<2x256xf32> to vector<2x64xf32>
    %15 = vector.extract_strided_slice %13 {offsets = [0, 64], sizes = [2, 64], strides = [1, 1]} : vector<2x256xf32> to vector<2x64xf32>
    %16 = arith.maximumf %14, %15 : vector<2x64xf32>
    %17 = vector.extract_strided_slice %13 {offsets = [0, 128], sizes = [2, 64], strides = [1, 1]} : vector<2x256xf32> to vector<2x64xf32>
    %18 = vector.extract_strided_slice %13 {offsets = [0, 192], sizes = [2, 64], strides = [1, 1]} : vector<2x256xf32> to vector<2x64xf32>
    %19 = arith.maximumf %17, %18 : vector<2x64xf32>
    %20 = arith.maximumf %16, %19 : vector<2x64xf32>
    %c0_11 = arith.constant 0 : index
    %c0_12 = arith.constant 0 : index
    %21 = vector.load %arg3[%c0_11, %c0_12] : memref<1x64xf32, #tpu.memory_space<vmem>>, vector<1x64xf32>
    %22 = vector.broadcast %21 : vector<1x64xf32> to vector<2x64xf32>
    %23 = arith.addf %20, %22 : vector<2x64xf32>
    %cst_13 = arith.constant 0.000000e+00 : f32
    %24 = vector.broadcast %cst_13 : f32 to vector<2x64xf32>
    %25 = arith.maximumf %23, %24 : vector<2x64xf32>
    %26 = arith.truncf %25 : vector<2x64xf32> to vector<2x64xbf16>
    %c0_14 = arith.constant 0 : index
    %c0_15 = arith.constant 0 : index
    %27 = vector.load %arg9[%c0_14, %c0_15] : memref<2x576xbf16, #tpu.memory_space<vmem>>, vector<2x64xbf16>
    tpu.vector_store %arg9[%c0_14, %c0_15], %26 {strides = array<i32>} : memref<2x576xbf16, #tpu.memory_space<vmem>>, vector<2x64xbf16>,
    %c0_16 = arith.constant 0 : index
    %c32 = arith.constant 32 : index
    %28 = vector.load %arg1[%c0_16, %c32] : memref<2x1568xbf16, #tpu.memory_space<vmem>>, vector<2x128xbf16>
    %c2 = arith.constant 2 : index
    %c0_17 = arith.constant 0 : index
    %c0_18 = arith.constant 0 : index
    %29 = vector.load %arg2[%c2, %c0_17, %c0_18] : memref<8x128x256xbf16, #tpu.memory_space<vmem>>, vector<1x128x256xbf16>
    %30 = vector.shape_cast %29 : vector<1x128x256xbf16> to vector<128x256xbf16>
    %cst_19 = arith.constant dense<0.000000e+00> : vector<2x256xf32>
    %31 = tpu.matmul %28, %30, %cst_19 {dimension_numbers = #tpu.dot_dimension_numbers<[1], [0], [0], [1], [0, 0, 1, 1], [], []>} : vector<2x128xbf16>, vector<128x256xbf16>, vector<2x256xf32> -> vector<2x256xf32>
    %c0_20 = arith.constant 0 : index
    %c256 = arith.constant 256 : index
    %32 = vector.load %arg1[%c0_20, %c256] : memref<2x1568xbf16, #tpu.memory_space<vmem>>, vector<2x128xbf16>
    %c4 = arith.constant 4 : index
    %c0_21 = arith.constant 0 : index
    %c0_22 = arith.constant 0 : index
    %33 = vector.load %arg2[%c4, %c0_21, %c0_22] : memref<8x128x256xbf16, #tpu.memory_space<vmem>>, vector<1x128x256xbf16>
    %34 = vector.shape_cast %33 : vector<1x128x256xbf16> to vector<128x256xbf16>
    %cst_23 = arith.constant dense<0.000000e+00> : vector<2x256xf32>
    %35 = tpu.matmul %32, %34, %cst_23 {dimension_numbers = #tpu.dot_dimension_numbers<[1], [0], [0], [1], [0, 0, 1, 1], [], []>} : vector<2x128xbf16>, vector<128x256xbf16>, vector<2x256xf32> -> vector<2x256xf32>
    %36 = arith.addf %31, %35 : vector<2x256xf32>
    %c0_24 = arith.constant 0 : index
    %c480 = arith.constant 480 : index
    %37 = vector.load %arg1[%c0_24, %c480] : memref<2x1568xbf16, #tpu.memory_space<vmem>>, vector<2x128xbf16>
    %c6 = arith.constant 6 : index
    %c0_25 = arith.constant 0 : index
    %c0_26 = arith.constant 0 : index
    %38 = vector.load %arg2[%c6, %c0_25, %c0_26] : memref<8x128x256xbf16, #tpu.memory_space<vmem>>, vector<1x128x256xbf16>
    %39 = vector.shape_cast %38 : vector<1x128x256xbf16> to vector<128x256xbf16>
    %cst_27 = arith.constant dense<0.000000e+00> : vector<2x256xf32>
    %40 = tpu.matmul %37, %39, %cst_27 {dimension_numbers = #tpu.dot_dimension_numbers<[1], [0], [0], [1], [0, 0, 1, 1], [], []>} : vector<2x128xbf16>, vector<128x256xbf16>, vector<2x256xf32> -> vector<2x256xf32>
    %41 = arith.addf %36, %40 : vector<2x256xf32>
    %42 = vector.extract_strided_slice %41 {offsets = [0, 0], sizes = [2, 64], strides = [1, 1]} : vector<2x256xf32> to vector<2x64xf32>
    %43 = vector.extract_strided_slice %41 {offsets = [0, 64], sizes = [2, 64], strides = [1, 1]} : vector<2x256xf32> to vector<2x64xf32>
    %44 = arith.maximumf %42, %43 : vector<2x64xf32>
    %45 = vector.extract_strided_slice %41 {offsets = [0, 128], sizes = [2, 64], strides = [1, 1]} : vector<2x256xf32> to vector<2x64xf32>
    %46 = vector.extract_strided_slice %41 {offsets = [0, 192], sizes = [2, 64], strides = [1, 1]} : vector<2x256xf32> to vector<2x64xf32>
    %47 = arith.maximumf %45, %46 : vector<2x64xf32>
    %48 = arith.maximumf %44, %47 : vector<2x64xf32>
    %c0_28 = arith.constant 0 : index
    %c0_29 = arith.constant 0 : index
    %49 = vector.load %arg3[%c0_28, %c0_29] : memref<1x64xf32, #tpu.memory_space<vmem>>, vector<1x64xf32>
    %50 = vector.broadcast %49 : vector<1x64xf32> to vector<2x64xf32>
    %51 = arith.addf %48, %50 : vector<2x64xf32>
    %cst_30 = arith.constant 0.000000e+00 : f32
    %52 = vector.broadcast %cst_30 : f32 to vector<2x64xf32>
    %53 = arith.maximumf %51, %52 : vector<2x64xf32>
    %54 = arith.truncf %53 : vector<2x64xf32> to vector<2x64xbf16>
    %c0_31 = arith.constant 0 : index
    %c64 = arith.constant 64 : index
    %55 = vector.load %arg9[%c0_31, %c64] : memref<2x576xbf16, #tpu.memory_space<vmem>>, vector<2x64xbf16>
    tpu.vector_store %arg9[%c0_31, %c64], %54 {strides = array<i32>} : memref<2x576xbf16, #tpu.memory_space<vmem>>, vector<2x64xbf16>,
    %c0_32 = arith.constant 0 : index
    %c96 = arith.constant 96 : index
    %56 = vector.load %arg1[%c0_32, %c96] : memref<2x1568xbf16, #tpu.memory_space<vmem>>, vector<2x128xbf16>
    %c2_33 = arith.constant 2 : index
    %c0_34 = arith.constant 0 : index
    %c0_35 = arith.constant 0 : index
    %57 = vector.load %arg2[%c2_33, %c0_34, %c0_35] : memref<8x128x256xbf16, #tpu.memory_space<vmem>>, vector<1x128x256xbf16>
    %58 = vector.shape_cast %57 : vector<1x128x256xbf16> to vector<128x256xbf16>
    %cst_36 = arith.constant dense<0.000000e+00> : vector<2x256xf32>
    %59 = tpu.matmul %56, %58, %cst_36 {dimension_numbers = #tpu.dot_dimension_numbers<[1], [0], [0], [1], [0, 0, 1, 1], [], []>} : vector<2x128xbf16>, vector<128x256xbf16>, vector<2x256xf32> -> vector<2x256xf32>
    %c0_37 = arith.constant 0 : index
    %c320 = arith.constant 320 : index
    %60 = vector.load %arg1[%c0_37, %c320] : memref<2x1568xbf16, #tpu.memory_space<vmem>>, vector<2x128xbf16>
    %c4_38 = arith.constant 4 : index
    %c0_39 = arith.constant 0 : index
    %c0_40 = arith.constant 0 : index
    %61 = vector.load %arg2[%c4_38, %c0_39, %c0_40] : memref<8x128x256xbf16, #tpu.memory_space<vmem>>, vector<1x128x256xbf16>
    %62 = vector.shape_cast %61 : vector<1x128x256xbf16> to vector<128x256xbf16>
    %cst_41 = arith.constant dense<0.000000e+00> : vector<2x256xf32>
    %63 = tpu.matmul %60, %62, %cst_41 {dimension_numbers = #tpu.dot_dimension_numbers<[1], [0], [0], [1], [0, 0, 1, 1], [], []>} : vector<2x128xbf16>, vector<128x256xbf16>, vector<2x256xf32> -> vector<2x256xf32>
    %64 = arith.addf %59, %63 : vector<2x256xf32>
    %c0_42 = arith.constant 0 : index
    %c544 = arith.constant 544 : index
    %65 = vector.load %arg1[%c0_42, %c544] : memref<2x1568xbf16, #tpu.memory_space<vmem>>, vector<2x128xbf16>
    %c6_43 = arith.constant 6 : index
    %c0_44 = arith.constant 0 : index
    %c0_45 = arith.constant 0 : index
    %66 = vector.load %arg2[%c6_43, %c0_44, %c0_45] : memref<8x128x256xbf16, #tpu.memory_space<vmem>>, vector<1x128x256xbf16>
    %67 = vector.shape_cast %66 : vector<1x128x256xbf16> to vector<128x256xbf16>
    %cst_46 = arith.constant dense<0.000000e+00> : vector<2x256xf32>
    %68 = tpu.matmul %65, %67, %cst_46 {dimension_numbers = #tpu.dot_dimension_numbers<[1], [0], [0], [1], [0, 0, 1, 1], [], []>} : vector<2x128xbf16>, vector<128x256xbf16>, vector<2x256xf32> -> vector<2x256xf32>
    %69 = arith.addf %64, %68 : vector<2x256xf32>
    %70 = vector.extract_strided_slice %69 {offsets = [0, 0], sizes = [2, 64], strides = [1, 1]} : vector<2x256xf32> to vector<2x64xf32>
    %71 = vector.extract_strided_slice %69 {offsets = [0, 64], sizes = [2, 64], strides = [1, 1]} : vector<2x256xf32> to vector<2x64xf32>
    %72 = arith.maximumf %70, %71 : vector<2x64xf32>
    %73 = vector.extract_strided_slice %69 {offsets = [0, 128], sizes = [2, 64], strides = [1, 1]} : vector<2x256xf32> to vector<2x64xf32>
    %74 = vector.extract_strided_slice %69 {offsets = [0, 192], sizes = [2, 64], strides = [1, 1]} : vector<2x256xf32> to vector<2x64xf32>
    %75 = arith.maximumf %73, %74 : vector<2x64xf32>
    %76 = arith.maximumf %72, %75 : vector<2x64xf32>
    %c0_47 = arith.constant 0 : index
    %c0_48 = arith.constant 0 : index
    %77 = vector.load %arg3[%c0_47, %c0_48] : memref<1x64xf32, #tpu.memory_space<vmem>>, vector<1x64xf32>
    %78 = vector.broadcast %77 : vector<1x64xf32> to vector<2x64xf32>
    %79 = arith.addf %76, %78 : vector<2x64xf32>
    %cst_49 = arith.constant 0.000000e+00 : f32
    %80 = vector.broadcast %cst_49 : f32 to vector<2x64xf32>
    %81 = arith.maximumf %79, %80 : vector<2x64xf32>
    %82 = arith.truncf %81 : vector<2x64xf32> to vector<2x64xbf16>
    %c0_50 = arith.constant 0 : index
    %c128 = arith.constant 128 : index
    %83 = vector.load %arg9[%c0_50, %c128] : memref<2x576xbf16, #tpu.memory_space<vmem>>, vector<2x64xbf16>
    tpu.vector_store %arg9[%c0_50, %c128], %82 {strides = array<i32>} : memref<2x576xbf16, #tpu.memory_space<vmem>>, vector<2x64xbf16>,
    %c0_51 = arith.constant 0 : index
    %c224_52 = arith.constant 224 : index
    %84 = vector.load %arg1[%c0_51, %c224_52] : memref<2x1568xbf16, #tpu.memory_space<vmem>>, vector<2x128xbf16>
    %c1 = arith.constant 1 : index
    %c0_53 = arith.constant 0 : index
    %c0_54 = arith.constant 0 : index
    %85 = vector.load %arg2[%c1, %c0_53, %c0_54] : memref<8x128x256xbf16, #tpu.memory_space<vmem>>, vector<1x128x256xbf16>
    %86 = vector.shape_cast %85 : vector<1x128x256xbf16> to vector<128x256xbf16>
    %cst_55 = arith.constant dense<0.000000e+00> : vector<2x256xf32>
    %87 = tpu.matmul %84, %86, %cst_55 {dimension_numbers = #tpu.dot_dimension_numbers<[1], [0], [0], [1], [0, 0, 1, 1], [], []>} : vector<2x128xbf16>, vector<128x256xbf16>, vector<2x256xf32> -> vector<2x256xf32>
    %c0_56 = arith.constant 0 : index
    %c448_57 = arith.constant 448 : index
    %88 = vector.load %arg1[%c0_56, %c448_57] : memref<2x1568xbf16, #tpu.memory_space<vmem>>, vector<2x128xbf16>
    %c3_58 = arith.constant 3 : index
    %c0_59 = arith.constant 0 : index
    %c0_60 = arith.constant 0 : index
    %89 = vector.load %arg2[%c3_58, %c0_59, %c0_60] : memref<8x128x256xbf16, #tpu.memory_space<vmem>>, vector<1x128x256xbf16>
    %90 = vector.shape_cast %89 : vector<1x128x256xbf16> to vector<128x256xbf16>
    %cst_61 = arith.constant dense<0.000000e+00> : vector<2x256xf32>
    %91 = tpu.matmul %88, %90, %cst_61 {dimension_numbers = #tpu.dot_dimension_numbers<[1], [0], [0], [1], [0, 0, 1, 1], [], []>} : vector<2x128xbf16>, vector<128x256xbf16>, vector<2x256xf32> -> vector<2x256xf32>
    %92 = arith.addf %87, %91 : vector<2x256xf32>
    %c0_62 = arith.constant 0 : index
    %c672 = arith.constant 672 : index
    %93 = vector.load %arg1[%c0_62, %c672] : memref<2x1568xbf16, #tpu.memory_space<vmem>>, vector<2x128xbf16>
    %c5_63 = arith.constant 5 : index
    %c0_64 = arith.constant 0 : index
    %c0_65 = arith.constant 0 : index
    %94 = vector.load %arg2[%c5_63, %c0_64, %c0_65] : memref<8x128x256xbf16, #tpu.memory_space<vmem>>, vector<1x128x256xbf16>
    %95 = vector.shape_cast %94 : vector<1x128x256xbf16> to vector<128x256xbf16>
    %cst_66 = arith.constant dense<0.000000e+00> : vector<2x256xf32>
    %96 = tpu.matmul %93, %95, %cst_66 {dimension_numbers = #tpu.dot_dimension_numbers<[1], [0], [0], [1], [0, 0, 1, 1], [], []>} : vector<2x128xbf16>, vector<128x256xbf16>, vector<2x256xf32> -> vector<2x256xf32>
    %97 = arith.addf %92, %96 : vector<2x256xf32>
    %c0_67 = arith.constant 0 : index
    %c896 = arith.constant 896 : index
    %98 = vector.load %arg1[%c0_67, %c896] : memref<2x1568xbf16, #tpu.memory_space<vmem>>, vector<2x128xbf16>
    %c7_68 = arith.constant 7 : index
    %c0_69 = arith.constant 0 : index
    %c0_70 = arith.constant 0 : index
    %99 = vector.load %arg2[%c7_68, %c0_69, %c0_70] : memref<8x128x256xbf16, #tpu.memory_space<vmem>>, vector<1x128x256xbf16>
    %100 = vector.shape_cast %99 : vector<1x128x256xbf16> to vector<128x256xbf16>
    %cst_71 = arith.constant dense<0.000000e+00> : vector<2x256xf32>
    %101 = tpu.matmul %98, %100, %cst_71 {dimension_numbers = #tpu.dot_dimension_numbers<[1], [0], [0], [1], [0, 0, 1, 1], [], []>} : vector<2x128xbf16>, vector<128x256xbf16>, vector<2x256xf32> -> vector<2x256xf32>
    %102 = arith.addf %97, %101 : vector<2x256xf32>
    %103 = vector.extract_strided_slice %102 {offsets = [0, 0], sizes = [2, 64], strides = [1, 1]} : vector<2x256xf32> to vector<2x64xf32>
    %104 = vector.extract_strided_slice %102 {offsets = [0, 64], sizes = [2, 64], strides = [1, 1]} : vector<2x256xf32> to vector<2x64xf32>
    %105 = arith.maximumf %103, %104 : vector<2x64xf32>
    %106 = vector.extract_strided_slice %102 {offsets = [0, 128], sizes = [2, 64], strides = [1, 1]} : vector<2x256xf32> to vector<2x64xf32>
    %107 = vector.extract_strided_slice %102 {offsets = [0, 192], sizes = [2, 64], strides = [1, 1]} : vector<2x256xf32> to vector<2x64xf32>
    %108 = arith.maximumf %106, %107 : vector<2x64xf32>
    %109 = arith.maximumf %105, %108 : vector<2x64xf32>
    %c0_72 = arith.constant 0 : index
    %c0_73 = arith.constant 0 : index
    %110 = vector.load %arg3[%c0_72, %c0_73] : memref<1x64xf32, #tpu.memory_space<vmem>>, vector<1x64xf32>
    %111 = vector.broadcast %110 : vector<1x64xf32> to vector<2x64xf32>
    %112 = arith.addf %109, %111 : vector<2x64xf32>
    %cst_74 = arith.constant 0.000000e+00 : f32
    %113 = vector.broadcast %cst_74 : f32 to vector<2x64xf32>
    %114 = arith.maximumf %112, %113 : vector<2x64xf32>
    %115 = arith.truncf %114 : vector<2x64xf32> to vector<2x64xbf16>
    %c0_75 = arith.constant 0 : index
    %c192 = arith.constant 192 : index
    %116 = vector.load %arg9[%c0_75, %c192] : memref<2x576xbf16, #tpu.memory_space<vmem>>, vector<2x64xbf16>
    tpu.vector_store %arg9[%c0_75, %c192], %115 {strides = array<i32>} : memref<2x576xbf16, #tpu.memory_space<vmem>>, vector<2x64xbf16>,
    %c0_76 = arith.constant 0 : index
    %c256_77 = arith.constant 256 : index
    %117 = vector.load %arg1[%c0_76, %c256_77] : memref<2x1568xbf16, #tpu.memory_space<vmem>>, vector<2x128xbf16>
    %c0_78 = arith.constant 0 : index
    %c0_79 = arith.constant 0 : index
    %c0_80 = arith.constant 0 : index
    %118 = vector.load %arg2[%c0_78, %c0_79, %c0_80] : memref<8x128x256xbf16, #tpu.memory_space<vmem>>, vector<1x128x256xbf16>
    %119 = vector.shape_cast %118 : vector<1x128x256xbf16> to vector<128x256xbf16>
    %cst_81 = arith.constant dense<0.000000e+00> : vector<2x256xf32>
    %120 = tpu.matmul %117, %119, %cst_81 {dimension_numbers = #tpu.dot_dimension_numbers<[1], [0], [0], [1], [0, 0, 1, 1], [], []>} : vector<2x128xbf16>, vector<128x256xbf16>, vector<2x256xf32> -> vector<2x256xf32>
    %c0_82 = arith.constant 0 : index
    %c480_83 = arith.constant 480 : index
    %121 = vector.load %arg1[%c0_82, %c480_83] : memref<2x1568xbf16, #tpu.memory_space<vmem>>, vector<2x128xbf16>
    %c2_84 = arith.constant 2 : index
    %c0_85 = arith.constant 0 : index
    %c0_86 = arith.constant 0 : index
    %122 = vector.load %arg2[%c2_84, %c0_85, %c0_86] : memref<8x128x256xbf16, #tpu.memory_space<vmem>>, vector<1x128x256xbf16>
    %123 = vector.shape_cast %122 : vector<1x128x256xbf16> to vector<128x256xbf16>
    %cst_87 = arith.constant dense<0.000000e+00> : vector<2x256xf32>
    %124 = tpu.matmul %121, %123, %cst_87 {dimension_numbers = #tpu.dot_dimension_numbers<[1], [0], [0], [1], [0, 0, 1, 1], [], []>} : vector<2x128xbf16>, vector<128x256xbf16>, vector<2x256xf32> -> vector<2x256xf32>
    %125 = arith.addf %120, %124 : vector<2x256xf32>
    %c0_88 = arith.constant 0 : index
    %c704 = arith.constant 704 : index
    %126 = vector.load %arg1[%c0_88, %c704] : memref<2x1568xbf16, #tpu.memory_space<vmem>>, vector<2x128xbf16>
    %c4_89 = arith.constant 4 : index
    %c0_90 = arith.constant 0 : index
    %c0_91 = arith.constant 0 : index
    %127 = vector.load %arg2[%c4_89, %c0_90, %c0_91] : memref<8x128x256xbf16, #tpu.memory_space<vmem>>, vector<1x128x256xbf16>
    %128 = vector.shape_cast %127 : vector<1x128x256xbf16> to vector<128x256xbf16>
    %cst_92 = arith.constant dense<0.000000e+00> : vector<2x256xf32>
    %129 = tpu.matmul %126, %128, %cst_92 {dimension_numbers = #tpu.dot_dimension_numbers<[1], [0], [0], [1], [0, 0, 1, 1], [], []>} : vector<2x128xbf16>, vector<128x256xbf16>, vector<2x256xf32> -> vector<2x256xf32>
    %130 = arith.addf %125, %129 : vector<2x256xf32>
    %c0_93 = arith.constant 0 : index
    %c928 = arith.constant 928 : index
    %131 = vector.load %arg1[%c0_93, %c928] : memref<2x1568xbf16, #tpu.memory_space<vmem>>, vector<2x128xbf16>
    %c6_94 = arith.constant 6 : index
    %c0_95 = arith.constant 0 : index
    %c0_96 = arith.constant 0 : index
    %132 = vector.load %arg2[%c6_94, %c0_95, %c0_96] : memref<8x128x256xbf16, #tpu.memory_space<vmem>>, vector<1x128x256xbf16>
    %133 = vector.shape_cast %132 : vector<1x128x256xbf16> to vector<128x256xbf16>
    %cst_97 = arith.constant dense<0.000000e+00> : vector<2x256xf32>
    %134 = tpu.matmul %131, %133, %cst_97 {dimension_numbers = #tpu.dot_dimension_numbers<[1], [0], [0], [1], [0, 0, 1, 1], [], []>} : vector<2x128xbf16>, vector<128x256xbf16>, vector<2x256xf32> -> vector<2x256xf32>
    %135 = arith.addf %130, %134 : vector<2x256xf32>
    %136 = vector.extract_strided_slice %135 {offsets = [0, 0], sizes = [2, 64], strides = [1, 1]} : vector<2x256xf32> to vector<2x64xf32>
    %137 = vector.extract_strided_slice %135 {offsets = [0, 64], sizes = [2, 64], strides = [1, 1]} : vector<2x256xf32> to vector<2x64xf32>
    %138 = arith.maximumf %136, %137 : vector<2x64xf32>
    %139 = vector.extract_strided_slice %135 {offsets = [0, 128], sizes = [2, 64], strides = [1, 1]} : vector<2x256xf32> to vector<2x64xf32>
    %140 = vector.extract_strided_slice %135 {offsets = [0, 192], sizes = [2, 64], strides = [1, 1]} : vector<2x256xf32> to vector<2x64xf32>
    %141 = arith.maximumf %139, %140 : vector<2x64xf32>
    %142 = arith.maximumf %138, %141 : vector<2x64xf32>
    %c0_98 = arith.constant 0 : index
    %c0_99 = arith.constant 0 : index
    %143 = vector.load %arg3[%c0_98, %c0_99] : memref<1x64xf32, #tpu.memory_space<vmem>>, vector<1x64xf32>
    %144 = vector.broadcast %143 : vector<1x64xf32> to vector<2x64xf32>
    %145 = arith.addf %142, %144 : vector<2x64xf32>
    %cst_100 = arith.constant 0.000000e+00 : f32
    %146 = vector.broadcast %cst_100 : f32 to vector<2x64xf32>
    %147 = arith.maximumf %145, %146 : vector<2x64xf32>
    %148 = arith.truncf %147 : vector<2x64xf32> to vector<2x64xbf16>
    %c0_101 = arith.constant 0 : index
    %c256_102 = arith.constant 256 : index
    %149 = vector.load %arg9[%c0_101, %c256_102] : memref<2x576xbf16, #tpu.memory_space<vmem>>, vector<2x64xbf16>
    tpu.vector_store %arg9[%c0_101, %c256_102], %148 {strides = array<i32>} : memref<2x576xbf16, #tpu.memory_space<vmem>>, vector<2x64xbf16>,
    %c0_103 = arith.constant 0 : index
    %c320_104 = arith.constant 320 : index
    %150 = vector.load %arg1[%c0_103, %c320_104] : memref<2x1568xbf16, #tpu.memory_space<vmem>>, vector<2x128xbf16>
    %c0_105 = arith.constant 0 : index
    %c0_106 = arith.constant 0 : index
    %c0_107 = arith.constant 0 : index
    %151 = vector.load %arg2[%c0_105, %c0_106, %c0_107] : memref<8x128x256xbf16, #tpu.memory_space<vmem>>, vector<1x128x256xbf16>
    %152 = vector.shape_cast %151 : vector<1x128x256xbf16> to vector<128x256xbf16>
    %cst_108 = arith.constant dense<0.000000e+00> : vector<2x256xf32>
    %153 = tpu.matmul %150, %152, %cst_108 {dimension_numbers = #tpu.dot_dimension_numbers<[1], [0], [0], [1], [0, 0, 1, 1], [], []>} : vector<2x128xbf16>, vector<128x256xbf16>, vector<2x256xf32> -> vector<2x256xf32>
    %c0_109 = arith.constant 0 : index
    %c544_110 = arith.constant 544 : index
    %154 = vector.load %arg1[%c0_109, %c544_110] : memref<2x1568xbf16, #tpu.memory_space<vmem>>, vector<2x128xbf16>
    %c2_111 = arith.constant 2 : index
    %c0_112 = arith.constant 0 : index
    %c0_113 = arith.constant 0 : index
    %155 = vector.load %arg2[%c2_111, %c0_112, %c0_113] : memref<8x128x256xbf16, #tpu.memory_space<vmem>>, vector<1x128x256xbf16>
    %156 = vector.shape_cast %155 : vector<1x128x256xbf16> to vector<128x256xbf16>
    %cst_114 = arith.constant dense<0.000000e+00> : vector<2x256xf32>
    %157 = tpu.matmul %154, %156, %cst_114 {dimension_numbers = #tpu.dot_dimension_numbers<[1], [0], [0], [1], [0, 0, 1, 1], [], []>} : vector<2x128xbf16>, vector<128x256xbf16>, vector<2x256xf32> -> vector<2x256xf32>
    %158 = arith.addf %153, %157 : vector<2x256xf32>
    %c0_115 = arith.constant 0 : index
    %c768 = arith.constant 768 : index
    %159 = vector.load %arg1[%c0_115, %c768] : memref<2x1568xbf16, #tpu.memory_space<vmem>>, vector<2x128xbf16>
    %c4_116 = arith.constant 4 : index
    %c0_117 = arith.constant 0 : index
    %c0_118 = arith.constant 0 : index
    %160 = vector.load %arg2[%c4_116, %c0_117, %c0_118] : memref<8x128x256xbf16, #tpu.memory_space<vmem>>, vector<1x128x256xbf16>
    %161 = vector.shape_cast %160 : vector<1x128x256xbf16> to vector<128x256xbf16>
    %cst_119 = arith.constant dense<0.000000e+00> : vector<2x256xf32>
    %162 = tpu.matmul %159, %161, %cst_119 {dimension_numbers = #tpu.dot_dimension_numbers<[1], [0], [0], [1], [0, 0, 1, 1], [], []>} : vector<2x128xbf16>, vector<128x256xbf16>, vector<2x256xf32> -> vector<2x256xf32>
    %163 = arith.addf %158, %162 : vector<2x256xf32>
    %c0_120 = arith.constant 0 : index
    %c992 = arith.constant 992 : index
    %164 = vector.load %arg1[%c0_120, %c992] : memref<2x1568xbf16, #tpu.memory_space<vmem>>, vector<2x128xbf16>
    %c6_121 = arith.constant 6 : index
    %c0_122 = arith.constant 0 : index
    %c0_123 = arith.constant 0 : index
    %165 = vector.load %arg2[%c6_121, %c0_122, %c0_123] : memref<8x128x256xbf16, #tpu.memory_space<vmem>>, vector<1x128x256xbf16>
    %166 = vector.shape_cast %165 : vector<1x128x256xbf16> to vector<128x256xbf16>
    %cst_124 = arith.constant dense<0.000000e+00> : vector<2x256xf32>
    %167 = tpu.matmul %164, %166, %cst_124 {dimension_numbers = #tpu.dot_dimension_numbers<[1], [0], [0], [1], [0, 0, 1, 1], [], []>} : vector<2x128xbf16>, vector<128x256xbf16>, vector<2x256xf32> -> vector<2x256xf32>
    %168 = arith.addf %163, %167 : vector<2x256xf32>
    %169 = vector.extract_strided_slice %168 {offsets = [0, 0], sizes = [2, 64], strides = [1, 1]} : vector<2x256xf32> to vector<2x64xf32>
    %170 = vector.extract_strided_slice %168 {offsets = [0, 64], sizes = [2, 64], strides = [1, 1]} : vector<2x256xf32> to vector<2x64xf32>
    %171 = arith.maximumf %169, %170 : vector<2x64xf32>
    %172 = vector.extract_strided_slice %168 {offsets = [0, 128], sizes = [2, 64], strides = [1, 1]} : vector<2x256xf32> to vector<2x64xf32>
    %173 = vector.extract_strided_slice %168 {offsets = [0, 192], sizes = [2, 64], strides = [1, 1]} : vector<2x256xf32> to vector<2x64xf32>
    %174 = arith.maximumf %172, %173 : vector<2x64xf32>
    %175 = arith.maximumf %171, %174 : vector<2x64xf32>
    %c0_125 = arith.constant 0 : index
    %c0_126 = arith.constant 0 : index
    %176 = vector.load %arg3[%c0_125, %c0_126] : memref<1x64xf32, #tpu.memory_space<vmem>>, vector<1x64xf32>
    %177 = vector.broadcast %176 : vector<1x64xf32> to vector<2x64xf32>
    %178 = arith.addf %175, %177 : vector<2x64xf32>
    %cst_127 = arith.constant 0.000000e+00 : f32
    %179 = vector.broadcast %cst_127 : f32 to vector<2x64xf32>
    %180 = arith.maximumf %178, %179 : vector<2x64xf32>
    %181 = arith.truncf %180 : vector<2x64xf32> to vector<2x64xbf16>
    %c0_128 = arith.constant 0 : index
    %c320_129 = arith.constant 320 : index
    %182 = vector.load %arg9[%c0_128, %c320_129] : memref<2x576xbf16, #tpu.memory_space<vmem>>, vector<2x64xbf16>
    tpu.vector_store %arg9[%c0_128, %c320_129], %181 {strides = array<i32>} : memref<2x576xbf16, #tpu.memory_space<vmem>>, vector<2x64xbf16>,
    %c0_130 = arith.constant 0 : index
    %c672_131 = arith.constant 672 : index
    %183 = vector.load %arg1[%c0_130, %c672_131] : memref<2x1568xbf16, #tpu.memory_space<vmem>>, vector<2x128xbf16>
    %c1_132 = arith.constant 1 : index
    %c0_133 = arith.constant 0 : index
    %c0_134 = arith.constant 0 : index
    %184 = vector.load %arg2[%c1_132, %c0_133, %c0_134] : memref<8x128x256xbf16, #tpu.memory_space<vmem>>, vector<1x128x256xbf16>
    %185 = vector.shape_cast %184 : vector<1x128x256xbf16> to vector<128x256xbf16>
    %cst_135 = arith.constant dense<0.000000e+00> : vector<2x256xf32>
    %186 = tpu.matmul %183, %185, %cst_135 {dimension_numbers = #tpu.dot_dimension_numbers<[1], [0], [0], [1], [0, 0, 1, 1], [], []>} : vector<2x128xbf16>, vector<128x256xbf16>, vector<2x256xf32> -> vector<2x256xf32>
    %c0_136 = arith.constant 0 : index
    %c896_137 = arith.constant 896 : index
    %187 = vector.load %arg1[%c0_136, %c896_137] : memref<2x1568xbf16, #tpu.memory_space<vmem>>, vector<2x128xbf16>
    %c3_138 = arith.constant 3 : index
    %c0_139 = arith.constant 0 : index
    %c0_140 = arith.constant 0 : index
    %188 = vector.load %arg2[%c3_138, %c0_139, %c0_140] : memref<8x128x256xbf16, #tpu.memory_space<vmem>>, vector<1x128x256xbf16>
    %189 = vector.shape_cast %188 : vector<1x128x256xbf16> to vector<128x256xbf16>
    %cst_141 = arith.constant dense<0.000000e+00> : vector<2x256xf32>
    %190 = tpu.matmul %187, %189, %cst_141 {dimension_numbers = #tpu.dot_dimension_numbers<[1], [0], [0], [1], [0, 0, 1, 1], [], []>} : vector<2x128xbf16>, vector<128x256xbf16>, vector<2x256xf32> -> vector<2x256xf32>
    %191 = arith.addf %186, %190 : vector<2x256xf32>
    %c0_142 = arith.constant 0 : index
    %c1120 = arith.constant 1120 : index
    %192 = vector.load %arg1[%c0_142, %c1120] : memref<2x1568xbf16, #tpu.memory_space<vmem>>, vector<2x128xbf16>
    %c5_143 = arith.constant 5 : index
    %c0_144 = arith.constant 0 : index
    %c0_145 = arith.constant 0 : index
    %193 = vector.load %arg2[%c5_143, %c0_144, %c0_145] : memref<8x128x256xbf16, #tpu.memory_space<vmem>>, vector<1x128x256xbf16>
    %194 = vector.shape_cast %193 : vector<1x128x256xbf16> to vector<128x256xbf16>
    %cst_146 = arith.constant dense<0.000000e+00> : vector<2x256xf32>
    %195 = tpu.matmul %192, %194, %cst_146 {dimension_numbers = #tpu.dot_dimension_numbers<[1], [0], [0], [1], [0, 0, 1, 1], [], []>} : vector<2x128xbf16>, vector<128x256xbf16>, vector<2x256xf32> -> vector<2x256xf32>
    %196 = arith.addf %191, %195 : vector<2x256xf32>
    %c0_147 = arith.constant 0 : index
    %c1344 = arith.constant 1344 : index
    %197 = vector.load %arg1[%c0_147, %c1344] : memref<2x1568xbf16, #tpu.memory_space<vmem>>, vector<2x128xbf16>
    %c7_148 = arith.constant 7 : index
    %c0_149 = arith.constant 0 : index
    %c0_150 = arith.constant 0 : index
    %198 = vector.load %arg2[%c7_148, %c0_149, %c0_150] : memref<8x128x256xbf16, #tpu.memory_space<vmem>>, vector<1x128x256xbf16>
    %199 = vector.shape_cast %198 : vector<1x128x256xbf16> to vector<128x256xbf16>
    %cst_151 = arith.constant dense<0.000000e+00> : vector<2x256xf32>
    %200 = tpu.matmul %197, %199, %cst_151 {dimension_numbers = #tpu.dot_dimension_numbers<[1], [0], [0], [1], [0, 0, 1, 1], [], []>} : vector<2x128xbf16>, vector<128x256xbf16>, vector<2x256xf32> -> vector<2x256xf32>
    %201 = arith.addf %196, %200 : vector<2x256xf32>
    %202 = vector.extract_strided_slice %201 {offsets = [0, 0], sizes = [2, 64], strides = [1, 1]} : vector<2x256xf32> to vector<2x64xf32>
    %203 = vector.extract_strided_slice %201 {offsets = [0, 64], sizes = [2, 64], strides = [1, 1]} : vector<2x256xf32> to vector<2x64xf32>
    %204 = arith.maximumf %202, %203 : vector<2x64xf32>
    %205 = vector.extract_strided_slice %201 {offsets = [0, 128], sizes = [2, 64], strides = [1, 1]} : vector<2x256xf32> to vector<2x64xf32>
    %206 = vector.extract_strided_slice %201 {offsets = [0, 192], sizes = [2, 64], strides = [1, 1]} : vector<2x256xf32> to vector<2x64xf32>
    %207 = arith.maximumf %205, %206 : vector<2x64xf32>
    %208 = arith.maximumf %204, %207 : vector<2x64xf32>
    %c0_152 = arith.constant 0 : index
    %c0_153 = arith.constant 0 : index
    %209 = vector.load %arg3[%c0_152, %c0_153] : memref<1x64xf32, #tpu.memory_space<vmem>>, vector<1x64xf32>
    %210 = vector.broadcast %209 : vector<1x64xf32> to vector<2x64xf32>
    %211 = arith.addf %208, %210 : vector<2x64xf32>
    %cst_154 = arith.constant 0.000000e+00 : f32
    %212 = vector.broadcast %cst_154 : f32 to vector<2x64xf32>
    %213 = arith.maximumf %211, %212 : vector<2x64xf32>
    %214 = arith.truncf %213 : vector<2x64xf32> to vector<2x64xbf16>
    %c0_155 = arith.constant 0 : index
    %c384 = arith.constant 384 : index
    %215 = vector.load %arg9[%c0_155, %c384] : memref<2x576xbf16, #tpu.memory_space<vmem>>, vector<2x64xbf16>
    tpu.vector_store %arg9[%c0_155, %c384], %214 {strides = array<i32>} : memref<2x576xbf16, #tpu.memory_space<vmem>>, vector<2x64xbf16>,
    %c0_156 = arith.constant 0 : index
    %c704_157 = arith.constant 704 : index
    %216 = vector.load %arg1[%c0_156, %c704_157] : memref<2x1568xbf16, #tpu.memory_space<vmem>>, vector<2x128xbf16>
    %c0_158 = arith.constant 0 : index
    %c0_159 = arith.constant 0 : index
    %c0_160 = arith.constant 0 : index
    %217 = vector.load %arg2[%c0_158, %c0_159, %c0_160] : memref<8x128x256xbf16, #tpu.memory_space<vmem>>, vector<1x128x256xbf16>
    %218 = vector.shape_cast %217 : vector<1x128x256xbf16> to vector<128x256xbf16>
    %cst_161 = arith.constant dense<0.000000e+00> : vector<2x256xf32>
    %219 = tpu.matmul %216, %218, %cst_161 {dimension_numbers = #tpu.dot_dimension_numbers<[1], [0], [0], [1], [0, 0, 1, 1], [], []>} : vector<2x128xbf16>, vector<128x256xbf16>, vector<2x256xf32> -> vector<2x256xf32>
    %c0_162 = arith.constant 0 : index
    %c928_163 = arith.constant 928 : index
    %220 = vector.load %arg1[%c0_162, %c928_163] : memref<2x1568xbf16, #tpu.memory_space<vmem>>, vector<2x128xbf16>
    %c2_164 = arith.constant 2 : index
    %c0_165 = arith.constant 0 : index
    %c0_166 = arith.constant 0 : index
    %221 = vector.load %arg2[%c2_164, %c0_165, %c0_166] : memref<8x128x256xbf16, #tpu.memory_space<vmem>>, vector<1x128x256xbf16>
    %222 = vector.shape_cast %221 : vector<1x128x256xbf16> to vector<128x256xbf16>
    %cst_167 = arith.constant dense<0.000000e+00> : vector<2x256xf32>
    %223 = tpu.matmul %220, %222, %cst_167 {dimension_numbers = #tpu.dot_dimension_numbers<[1], [0], [0], [1], [0, 0, 1, 1], [], []>} : vector<2x128xbf16>, vector<128x256xbf16>, vector<2x256xf32> -> vector<2x256xf32>
    %224 = arith.addf %219, %223 : vector<2x256xf32>
    %c0_168 = arith.constant 0 : index
    %c1152 = arith.constant 1152 : index
    %225 = vector.load %arg1[%c0_168, %c1152] : memref<2x1568xbf16, #tpu.memory_space<vmem>>, vector<2x128xbf16>
    %c4_169 = arith.constant 4 : index
    %c0_170 = arith.constant 0 : index
    %c0_171 = arith.constant 0 : index
    %226 = vector.load %arg2[%c4_169, %c0_170, %c0_171] : memref<8x128x256xbf16, #tpu.memory_space<vmem>>, vector<1x128x256xbf16>
    %227 = vector.shape_cast %226 : vector<1x128x256xbf16> to vector<128x256xbf16>
    %cst_172 = arith.constant dense<0.000000e+00> : vector<2x256xf32>
    %228 = tpu.matmul %225, %227, %cst_172 {dimension_numbers = #tpu.dot_dimension_numbers<[1], [0], [0], [1], [0, 0, 1, 1], [], []>} : vector<2x128xbf16>, vector<128x256xbf16>, vector<2x256xf32> -> vector<2x256xf32>
    %229 = arith.addf %224, %228 : vector<2x256xf32>
    %c0_173 = arith.constant 0 : index
    %c1376 = arith.constant 1376 : index
    %230 = vector.load %arg1[%c0_173, %c1376] : memref<2x1568xbf16, #tpu.memory_space<vmem>>, vector<2x128xbf16>
    %c6_174 = arith.constant 6 : index
    %c0_175 = arith.constant 0 : index
    %c0_176 = arith.constant 0 : index
    %231 = vector.load %arg2[%c6_174, %c0_175, %c0_176] : memref<8x128x256xbf16, #tpu.memory_space<vmem>>, vector<1x128x256xbf16>
    %232 = vector.shape_cast %231 : vector<1x128x256xbf16> to vector<128x256xbf16>
    %cst_177 = arith.constant dense<0.000000e+00> : vector<2x256xf32>
    %233 = tpu.matmul %230, %232, %cst_177 {dimension_numbers = #tpu.dot_dimension_numbers<[1], [0], [0], [1], [0, 0, 1, 1], [], []>} : vector<2x128xbf16>, vector<128x256xbf16>, vector<2x256xf32> -> vector<2x256xf32>
    %234 = arith.addf %229, %233 : vector<2x256xf32>
    %235 = vector.extract_strided_slice %234 {offsets = [0, 0], sizes = [2, 64], strides = [1, 1]} : vector<2x256xf32> to vector<2x64xf32>
    %236 = vector.extract_strided_slice %234 {offsets = [0, 64], sizes = [2, 64], strides = [1, 1]} : vector<2x256xf32> to vector<2x64xf32>
    %237 = arith.maximumf %235, %236 : vector<2x64xf32>
    %238 = vector.extract_strided_slice %234 {offsets = [0, 128], sizes = [2, 64], strides = [1, 1]} : vector<2x256xf32> to vector<2x64xf32>
    %239 = vector.extract_strided_slice %234 {offsets = [0, 192], sizes = [2, 64], strides = [1, 1]} : vector<2x256xf32> to vector<2x64xf32>
    %240 = arith.maximumf %238, %239 : vector<2x64xf32>
    %241 = arith.maximumf %237, %240 : vector<2x64xf32>
    %c0_178 = arith.constant 0 : index
    %c0_179 = arith.constant 0 : index
    %242 = vector.load %arg3[%c0_178, %c0_179] : memref<1x64xf32, #tpu.memory_space<vmem>>, vector<1x64xf32>
    %243 = vector.broadcast %242 : vector<1x64xf32> to vector<2x64xf32>
    %244 = arith.addf %241, %243 : vector<2x64xf32>
    %cst_180 = arith.constant 0.000000e+00 : f32
    %245 = vector.broadcast %cst_180 : f32 to vector<2x64xf32>
    %246 = arith.maximumf %244, %245 : vector<2x64xf32>
    %247 = arith.truncf %246 : vector<2x64xf32> to vector<2x64xbf16>
    %c0_181 = arith.constant 0 : index
    %c448_182 = arith.constant 448 : index
    %248 = vector.load %arg9[%c0_181, %c448_182] : memref<2x576xbf16, #tpu.memory_space<vmem>>, vector<2x64xbf16>
    tpu.vector_store %arg9[%c0_181, %c448_182], %247 {strides = array<i32>} : memref<2x576xbf16, #tpu.memory_space<vmem>>, vector<2x64xbf16>,
    %c0_183 = arith.constant 0 : index
    %c768_184 = arith.constant 768 : index
    %249 = vector.load %arg1[%c0_183, %c768_184] : memref<2x1568xbf16, #tpu.memory_space<vmem>>, vector<2x128xbf16>
    %c0_185 = arith.constant 0 : index
    %c0_186 = arith.constant 0 : index
    %c0_187 = arith.constant 0 : index
    %250 = vector.load %arg2[%c0_185, %c0_186, %c0_187] : memref<8x128x256xbf16, #tpu.memory_space<vmem>>, vector<1x128x256xbf16>
    %251 = vector.shape_cast %250 : vector<1x128x256xbf16> to vector<128x256xbf16>
    %cst_188 = arith.constant dense<0.000000e+00> : vector<2x256xf32>
    %252 = tpu.matmul %249, %251, %cst_188 {dimension_numbers = #tpu.dot_dimension_numbers<[1], [0], [0], [1], [0, 0, 1, 1], [], []>} : vector<2x128xbf16>, vector<128x256xbf16>, vector<2x256xf32> -> vector<2x256xf32>
    %c0_189 = arith.constant 0 : index
    %c992_190 = arith.constant 992 : index
    %253 = vector.load %arg1[%c0_189, %c992_190] : memref<2x1568xbf16, #tpu.memory_space<vmem>>, vector<2x128xbf16>
    %c2_191 = arith.constant 2 : index
    %c0_192 = arith.constant 0 : index
    %c0_193 = arith.constant 0 : index
    %254 = vector.load %arg2[%c2_191, %c0_192, %c0_193] : memref<8x128x256xbf16, #tpu.memory_space<vmem>>, vector<1x128x256xbf16>
    %255 = vector.shape_cast %254 : vector<1x128x256xbf16> to vector<128x256xbf16>
    %cst_194 = arith.constant dense<0.000000e+00> : vector<2x256xf32>
    %256 = tpu.matmul %253, %255, %cst_194 {dimension_numbers = #tpu.dot_dimension_numbers<[1], [0], [0], [1], [0, 0, 1, 1], [], []>} : vector<2x128xbf16>, vector<128x256xbf16>, vector<2x256xf32> -> vector<2x256xf32>
    %257 = arith.addf %252, %256 : vector<2x256xf32>
    %c0_195 = arith.constant 0 : index
    %c1216 = arith.constant 1216 : index
    %258 = vector.load %arg1[%c0_195, %c1216] : memref<2x1568xbf16, #tpu.memory_space<vmem>>, vector<2x128xbf16>
    %c4_196 = arith.constant 4 : index
    %c0_197 = arith.constant 0 : index
    %c0_198 = arith.constant 0 : index
    %259 = vector.load %arg2[%c4_196, %c0_197, %c0_198] : memref<8x128x256xbf16, #tpu.memory_space<vmem>>, vector<1x128x256xbf16>
    %260 = vector.shape_cast %259 : vector<1x128x256xbf16> to vector<128x256xbf16>
    %cst_199 = arith.constant dense<0.000000e+00> : vector<2x256xf32>
    %261 = tpu.matmul %258, %260, %cst_199 {dimension_numbers = #tpu.dot_dimension_numbers<[1], [0], [0], [1], [0, 0, 1, 1], [], []>} : vector<2x128xbf16>, vector<128x256xbf16>, vector<2x256xf32> -> vector<2x256xf32>
    %262 = arith.addf %257, %261 : vector<2x256xf32>
    %c0_200 = arith.constant 0 : index
    %c1440 = arith.constant 1440 : index
    %263 = vector.load %arg1[%c0_200, %c1440] : memref<2x1568xbf16, #tpu.memory_space<vmem>>, vector<2x128xbf16>
    %c6_201 = arith.constant 6 : index
    %c0_202 = arith.constant 0 : index
    %c0_203 = arith.constant 0 : index
    %264 = vector.load %arg2[%c6_201, %c0_202, %c0_203] : memref<8x128x256xbf16, #tpu.memory_space<vmem>>, vector<1x128x256xbf16>
    %265 = vector.shape_cast %264 : vector<1x128x256xbf16> to vector<128x256xbf16>
    %cst_204 = arith.constant dense<0.000000e+00> : vector<2x256xf32>
    %266 = tpu.matmul %263, %265, %cst_204 {dimension_numbers = #tpu.dot_dimension_numbers<[1], [0], [0], [1], [0, 0, 1, 1], [], []>} : vector<2x128xbf16>, vector<128x256xbf16>, vector<2x256xf32> -> vector<2x256xf32>
    %267 = arith.addf %262, %266 : vector<2x256xf32>
    %268 = vector.extract_strided_slice %267 {offsets = [0, 0], sizes = [2, 64], strides = [1, 1]} : vector<2x256xf32> to vector<2x64xf32>
    %269 = vector.extract_strided_slice %267 {offsets = [0, 64], sizes = [2, 64], strides = [1, 1]} : vector<2x256xf32> to vector<2x64xf32>
    %270 = arith.maximumf %268, %269 : vector<2x64xf32>
    %271 = vector.extract_strided_slice %267 {offsets = [0, 128], sizes = [2, 64], strides = [1, 1]} : vector<2x256xf32> to vector<2x64xf32>
    %272 = vector.extract_strided_slice %267 {offsets = [0, 192], sizes = [2, 64], strides = [1, 1]} : vector<2x256xf32> to vector<2x64xf32>
    %273 = arith.maximumf %271, %272 : vector<2x64xf32>
    %274 = arith.maximumf %270, %273 : vector<2x64xf32>
    %c0_205 = arith.constant 0 : index
    %c0_206 = arith.constant 0 : index
    %275 = vector.load %arg3[%c0_205, %c0_206] : memref<1x64xf32, #tpu.memory_space<vmem>>, vector<1x64xf32>
    %276 = vector.broadcast %275 : vector<1x64xf32> to vector<2x64xf32>
    %277 = arith.addf %274, %276 : vector<2x64xf32>
    %cst_207 = arith.constant 0.000000e+00 : f32
    %278 = vector.broadcast %cst_207 : f32 to vector<2x64xf32>
    %279 = arith.maximumf %277, %278 : vector<2x64xf32>
    %280 = arith.truncf %279 : vector<2x64xf32> to vector<2x64xbf16>
    %c0_208 = arith.constant 0 : index
    %c512 = arith.constant 512 : index
    %281 = vector.load %arg9[%c0_208, %c512] : memref<2x576xbf16, #tpu.memory_space<vmem>>, vector<2x64xbf16>
    tpu.vector_store %arg9[%c0_208, %c512], %280 {strides = array<i32>} : memref<2x576xbf16, #tpu.memory_space<vmem>>, vector<2x64xbf16>,
    %c0_209 = arith.constant 0 : index
    %c0_210 = arith.constant 0 : index
    %282 = vector.load %arg9[%c0_209, %c0_210] : memref<2x576xbf16, #tpu.memory_space<vmem>>, vector<2x576xbf16>
    %c0_211 = arith.constant 0 : index
    %c0_212 = arith.constant 0 : index
    %283 = vector.load %arg4[%c0_211, %c0_212] : memref<576x512xbf16, #tpu.memory_space<vmem>>, vector<576x512xbf16>
    %cst_213 = arith.constant dense<0.000000e+00> : vector<2x512xf32>
    %284 = tpu.matmul %282, %283, %cst_213 {dimension_numbers = #tpu.dot_dimension_numbers<[1], [0], [0], [1], [0, 0, 1, 1], [], []>} : vector<2x576xbf16>, vector<576x512xbf16>, vector<2x512xf32> -> vector<2x512xf32>
    %c0_214 = arith.constant 0 : index
    %c0_215 = arith.constant 0 : index
    %285 = vector.load %arg5[%c0_214, %c0_215] : memref<1x512xf32, #tpu.memory_space<vmem>>, vector<1x512xf32>
    %286 = vector.broadcast %285 : vector<1x512xf32> to vector<2x512xf32>
    %287 = arith.addf %284, %286 : vector<2x512xf32>
    %cst_216 = arith.constant 0.000000e+00 : f32
    %288 = vector.broadcast %cst_216 : f32 to vector<2x512xf32>
    %289 = arith.maximumf %287, %288 : vector<2x512xf32>
    %290 = arith.truncf %289 : vector<2x512xf32> to vector<2x512xbf16>
    %c0_217 = arith.constant 0 : index
    %c0_218 = arith.constant 0 : index
    %291 = vector.load %arg6[%c0_217, %c0_218] : memref<512x128xbf16, #tpu.memory_space<vmem>>, vector<512x128xbf16>
    %cst_219 = arith.constant dense<0.000000e+00> : vector<2x128xf32>
    %292 = tpu.matmul %290, %291, %cst_219 {dimension_numbers = #tpu.dot_dimension_numbers<[1], [0], [0], [1], [0, 0, 1, 1], [], []>} : vector<2x512xbf16>, vector<512x128xbf16>, vector<2x128xf32> -> vector<2x128xf32>
    %c0_220 = arith.constant 0 : index
    %c0_221 = arith.constant 0 : index
    %293 = vector.load %arg7[%c0_220, %c0_221] : memref<1x128xf32, #tpu.memory_space<vmem>>, vector<1x128xf32>
    %294 = vector.broadcast %293 : vector<1x128xf32> to vector<2x128xf32>
    %295 = arith.addf %292, %294 : vector<2x128xf32>
    %c0_222 = arith.constant 0 : index
    %c0_223 = arith.constant 0 : index
    %296 = vector.load %arg8[%c0_222, %c0_223] : memref<2x128xf32, #tpu.memory_space<vmem>>, vector<2x128xf32>
    tpu.vector_store %arg8[%c0_222, %c0_223], %295 {strides = array<i32>} : memref<2x128xf32, #tpu.memory_space<vmem>>, vector<2x128xf32>,
    return
  }
  func.func @transform_0(%arg0: i32) -> (i32, i32) {
    %c0_i32 = arith.constant 0 : i32
    %c0_i32_0 = arith.constant 0 : i32
    return %arg0, %c0_i32 : i32, i32
  }
  func.func @transform_1(%arg0: i32) -> (i32, i32, i32) {
    %c0_i32 = arith.constant 0 : i32
    %c0_i32_0 = arith.constant 0 : i32
    %c0_i32_1 = arith.constant 0 : i32
    %c0_i32_2 = arith.constant 0 : i32
    return %c0_i32, %c0_i32_0, %c0_i32_1 : i32, i32, i32
  }
  func.func @transform_2(%arg0: i32) -> (i32, i32) {
    %c0_i32 = arith.constant 0 : i32
    %c0_i32_0 = arith.constant 0 : i32
    %c0_i32_1 = arith.constant 0 : i32
    return %c0_i32, %c0_i32_0 : i32, i32
  }
  func.func @transform_3(%arg0: i32) -> (i32, i32) {
    %c0_i32 = arith.constant 0 : i32
    %c0_i32_0 = arith.constant 0 : i32
    %c0_i32_1 = arith.constant 0 : i32
    return %c0_i32, %c0_i32_0 : i32, i32
  }
  func.func @transform_4(%arg0: i32) -> (i32, i32) {
    %c0_i32 = arith.constant 0 : i32
    %c0_i32_0 = arith.constant 0 : i32
    %c0_i32_1 = arith.constant 0 : i32
    return %c0_i32, %c0_i32_0 : i32, i32
  }
  func.func @transform_5(%arg0: i32) -> (i32, i32) {
    %c0_i32 = arith.constant 0 : i32
    %c0_i32_0 = arith.constant 0 : i32
    %c0_i32_1 = arith.constant 0 : i32
    return %c0_i32, %c0_i32_0 : i32, i32
  }
  func.func @transform_6(%arg0: i32) -> (i32, i32) {
    %c0_i32 = arith.constant 0 : i32
    %c0_i32_0 = arith.constant 0 : i32
    %c0_i32_1 = arith.constant 0 : i32
    return %c0_i32, %c0_i32_0 : i32, i32
  }
  func.func @transform_7(%arg0: i32) -> (i32, i32) {
    %c0_i32 = arith.constant 0 : i32
    %c0_i32_0 = arith.constant 0 : i32
    return %arg0, %c0_i32 : i32, i32
  }
}

</mosaic_0001>

<llo_original>
// kernel: classifier_forward.2
$region0: #{classifier_forward.2}
  #allocation0 [shape = 'u32[]', space=smem, size = 0x4, offset = 0x4, fixed_abs, tag = 'smem constant byte address 0x4 - core index']
  #allocation1 [shape = 'u32[72,128]{1,0:T(1,128)}', space=vmem, size = 0x9000, scoped, tag = 'internal scratch']
  %s0 = inlined_call_operand.vmem [shape: bf16[98,9], index: 0, kind: input, shape index: {}]
  %s1 = inlined_call_operand.vmem [shape: bf16[98,9], index: 1, kind: input, shape index: {}]
  %s2 = inlined_call_operand.vmem [shape: bf16[98,9], index: 2, kind: input, shape index: {}]
  %s3 = inlined_call_operand.vmem [shape: bf16[98,9], index: 3, kind: input, shape index: {}]
  %s4 = inlined_call_operand.vmem [shape: bf16[9,32], index: 4, kind: input, shape index: {}]
  %s5 = inlined_call_operand.vmem [shape: f32[1,32], index: 5, kind: input, shape index: {}]
  %s6 = inlined_call_operand.vmem [shape: bf16[98,32], index: 6, kind: output, shape index: {}]
  %s7 = sld [smem:[#allocation0]]
  $region34: #{classifier_forward.2} parent=0
    _
  %s9 = ssub.s32 1, %s7
  %s10 = scalar_select 0, %s9, %s7
  // Predicated region
  $region2: #{classifier_forward.2} parent=0 // pred_check
    _
  $region3: #{classifier_forward.2} parent=0 // pred_check_branch
    %12 = sbr.rel (0) target = $region5
  $region4: #{classifier_forward.2} parent=0 // pred_region
    _
  $region5: #{classifier_forward.2} parent=0 // pred_fallthru
    _
  // Predicated region
  $region6: #{classifier_forward.2} parent=0 // pred_check
    _
  $region7: #{classifier_forward.2} parent=0 // pred_check_branch
    %14 = sbr.rel (0) target = $region9
  $region8: #{classifier_forward.2} parent=0 // pred_region
    _
  $region9: #{classifier_forward.2} parent=0 // pred_fallthru
    _
  // Predicated region
  $region10: #{classifier_forward.2} parent=0 // pred_check
    _
  $region11: #{classifier_forward.2} parent=0 // pred_check_branch
    %16 = sbr.rel (0) target = $region13
  $region12: #{classifier_forward.2} parent=0 // pred_region
    _
  $region13: #{classifier_forward.2} parent=0 // pred_fallthru
    _
  // Predicated region
  $region14: #{classifier_forward.2} parent=0 // pred_check
    _
  $region15: #{classifier_forward.2} parent=0 // pred_check_branch
    %18 = sbr.rel (0) target = $region17
  $region16: #{classifier_forward.2} parent=0 // pred_region
    _
  $region17: #{classifier_forward.2} parent=0 // pred_fallthru
    _
  // Predicated region
  $region18: #{classifier_forward.2} parent=0 // pred_check
    _
  $region19: #{classifier_forward.2} parent=0 // pred_check_branch
    %20 = sbr.rel (0) target = $region21
  $region20: #{classifier_forward.2} parent=0 // pred_region
    _
  $region21: #{classifier_forward.2} parent=0 // pred_fallthru
    _
  // Predicated region
  $region22: #{classifier_forward.2} parent=0 // pred_check
    _
  $region23: #{classifier_forward.2} parent=0 // pred_check_branch
    %22 = sbr.rel (0) target = $region25
  $region24: #{classifier_forward.2} parent=0 // pred_region
    _
  $region25: #{classifier_forward.2} parent=0 // pred_fallthru
    _
  %v24 = vld [vmem:[%s4] sm:$0xf]
  %v25 = vld [vmem:[%s4 + $0x4] sm:$0x1]
  %v26 = vld [vmem:[%s0] sm:$0xf]
  %v27 = vld [vmem:[%s0 + $0x4] sm:$0xf]
  %v28 = vld [vmem:[%s0 + $0x8] sm:$0xf]
  %v29 = vld [vmem:[%s0 + $0xc] sm:$0xf]
  %v30 = vld [vmem:[%s0 + $0x10] sm:$0xf]
  %v31 = vld [vmem:[%s0 + $0x14] sm:$0xf]
  %v32 = vld [vmem:[%s0 + $0x18] sm:$0xf]
  %v33 = vld [vmem:[%s0 + $0x1c] sm:$0xf]
  %v34 = vld [vmem:[%s0 + $0x20] sm:$0xf]
  %v35 = vld [vmem:[%s0 + $0x24] sm:$0xf]
  %v36 = vld [vmem:[%s0 + $0x28] sm:$0xf]
  %v37 = vld [vmem:[%s0 + $0x2c] sm:$0xf]
  %v38 = vld [vmem:[%s0 + $0x30] sm:$0x1]
  %v52 = vunpack.c.l.b16 %v26
  %v53 = vunpack.c.l.b16 %v27
  %v54 = vunpack.c.l.b16 %v28
  %v55 = vunpack.c.l.b16 %v29
  %v56 = vunpack.c.l.b16 %v30
  %v57 = vunpack.c.l.b16 %v31
  %v58 = vunpack.c.l.b16 %v32
  %v59 = vunpack.c.l.b16 %v33
  %v60 = vunpack.c.l.b16 %v34
  %v61 = vunpack.c.l.b16 %v35
  %v62 = vunpack.c.l.b16 %v36
  %v63 = vunpack.c.l.b16 %v37
  %v64 = vunpack.c.l.b16 %v38
  %v65 = vpack.c.b16 %v53, %v52
  %v66 = vpack.c.b16 %v55, %v54
  %v67 = vpack.c.b16 %v57, %v56
  %v68 = vpack.c.b16 %v59, %v58
  %v69 = vpack.c.b16 %v61, %v60
  %v70 = vpack.c.b16 %v63, %v62
  %v71 = vpack.c.b16 %v64, %v64
  %v74 = vunpack.c.l.b16 %v24
  %v75 = vunpack.c.l.b16 %v25
  %v76 = vpack.c.b16 %v75, %v74
  %vm77 = vcmask 72704
  %v79 = vsel %vm77, %v65, 0
  %v82 = vsel %vm77, %v66, 0
  %v85 = vsel %vm77, %v67, 0
  %v88 = vsel %vm77, %v68, 0
  %v91 = vsel %vm77, %v69, 0
  %v94 = vsel %vm77, %v70, 0
  %v97 = vsel %vm77, %v71, 0
  %vm99 = vcmask 1043456
  %vm100 = vcmask 1044480
  %v101 = vsel %vm99, 4294967295, 65535
  %v102 = vsel %vm100, %v101, 0
  %v104 = vand.u32 %v76, %v102
  %106 = vmatpush.bf16.msra.mxu0 0
  %107 = vmatpush.bf16.msra.mxu0 0
  %108 = vmatpush.bf16.msra.mxu0 0
  %109 = vmatpush.bf16.msra.mxu0 0
  %110 = vmatpush.bf16.msra.mxu0 0
  %111 = vmatpush.bf16.msra.mxu0 0
  %112 = vmatpush.bf16.msra.mxu0 0
  %113 = vmatpush.bf16.msra.mxu0 %v104
  %114 = vmatmul.bf16.gmra.mxu0 %v79
  %v115 = vpop.f32.mrf.mxu0
  %v116 = vadd.f32 0.0, %v115
  %v117 = vpop.f32.mrf.mxu0
  %v118 = vadd.f32 0.0, %v117
  %119 = vmatmul.bf16.gmra.mxu0 %v82
  %v120 = vpop.f32.mrf.mxu0
  %v121 = vadd.f32 0.0, %v120
  %v122 = vpop.f32.mrf.mxu0
  %v123 = vadd.f32 0.0, %v122
  %124 = vmatmul.bf16.gmra.mxu0 %v85
  %v125 = vpop.f32.mrf.mxu0
  %v126 = vadd.f32 0.0, %v125
  %v127 = vpop.f32.mrf.mxu0
  %v128 = vadd.f32 0.0, %v127
  %129 = vmatmul.bf16.gmra.mxu0 %v88
  %v130 = vpop.f32.mrf.mxu0
  %v131 = vadd.f32 0.0, %v130
  %v132 = vpop.f32.mrf.mxu0
  %v133 = vadd.f32 0.0, %v132
  %134 = vmatmul.bf16.gmra.mxu0 %v91
  %v135 = vpop.f32.mrf.mxu0
  %v136 = vadd.f32 0.0, %v135
  %v137 = vpop.f32.mrf.mxu0
  %v138 = vadd.f32 0.0, %v137
  %139 = vmatmul.bf16.gmra.mxu0 %v94
  %v140 = vpop.f32.mrf.mxu0
  %v141 = vadd.f32 0.0, %v140
  %v142 = vpop.f32.mrf.mxu0
  %v143 = vadd.f32 0.0, %v142
  %144 = vmatmul.bf16.gmra.mxu0 %v97
  %v145 = vpop.f32.mrf.mxu0
  %v146 = vadd.f32 0.0, %v145
  %v147 = vpop.f32.mrf.mxu0
  %148 = vdwg.mxu0
  %v149 = vld [vmem:[%s1] sm:$0xf]
  %v150 = vld [vmem:[%s1 + $0x4] sm:$0xf]
  %v151 = vld [vmem:[%s1 + $0x8] sm:$0xf]
  %v152 = vld [vmem:[%s1 + $0xc] sm:$0xf]
  %v153 = vld [vmem:[%s1 + $0x10] sm:$0xf]
  %v154 = vld [vmem:[%s1 + $0x14] sm:$0xf]
  %v155 = vld [vmem:[%s1 + $0x18] sm:$0xf]
  %v156 = vld [vmem:[%s1 + $0x1c] sm:$0xf]
  %v157 = vld [vmem:[%s1 + $0x20] sm:$0xf]
  %v158 = vld [vmem:[%s1 + $0x24] sm:$0xf]
  %v159 = vld [vmem:[%s1 + $0x28] sm:$0xf]
  %v160 = vld [vmem:[%s1 + $0x2c] sm:$0xf]
  %v161 = vld [vmem:[%s1 + $0x30] sm:$0x1]
  %v175 = vunpack.c.l.b16 %v149
  %v176 = vunpack.c.l.b16 %v150
  %v177 = vunpack.c.l.b16 %v151
  %v178 = vunpack.c.l.b16 %v152
  %v179 = vunpack.c.l.b16 %v153
  %v180 = vunpack.c.l.b16 %v154
  %v181 = vunpack.c.l.b16 %v155
  %v182 = vunpack.c.l.b16 %v156
  %v183 = vunpack.c.l.b16 %v157
  %v184 = vunpack.c.l.b16 %v158
  %v185 = vunpack.c.l.b16 %v159
  %v186 = vunpack.c.l.b16 %v160
  %v187 = vunpack.c.l.b16 %v161
  %v188 = vpack.c.b16 %v176, %v175
  %v189 = vpack.c.b16 %v178, %v177
  %v190 = vpack.c.b16 %v180, %v179
  %v191 = vpack.c.b16 %v182, %v181
  %v192 = vpack.c.b16 %v184, %v183
  %v193 = vpack.c.b16 %v186, %v185
  %v194 = vpack.c.b16 %v187, %v187
  %v196 = vsel %vm77, %v188, 0
  %v199 = vsel %vm77, %v189, 0
  %v202 = vsel %vm77, %v190, 0
  %v205 = vsel %vm77, %v191, 0
  %v208 = vsel %vm77, %v192, 0
  %v211 = vsel %vm77, %v193, 0
  %v214 = vsel %vm77, %v194, 0
  %216 = vmatpush.bf16.msra.mxu0 0
  %217 = vmatpush.bf16.msra.mxu0 0
  %218 = vmatpush.bf16.msra.mxu0 0
  %219 = vmatpush.bf16.msra.mxu0 0
  %220 = vmatpush.bf16.msra.mxu0 0
  %221 = vmatpush.bf16.msra.mxu0 0
  %222 = vmatpush.bf16.msra.mxu0 0
  %223 = vmatpush.bf16.msra.mxu0 %v104
  %224 = vmatmul.bf16.gmra.mxu0 %v196
  %v225 = vpop.f32.mrf.mxu0
  %v226 = vadd.f32 0.0, %v225
  %v227 = vpop.f32.mrf.mxu0
  %v228 = vadd.f32 0.0, %v227
  %229 = vmatmul.bf16.gmra.mxu0 %v199
  %v230 = vpop.f32.mrf.mxu0
  %v231 = vadd.f32 0.0, %v230
  %v232 = vpop.f32.mrf.mxu0
  %v233 = vadd.f32 0.0, %v232
  %234 = vmatmul.bf16.gmra.mxu0 %v202
  %v235 = vpop.f32.mrf.mxu0
  %v236 = vadd.f32 0.0, %v235
  %v237 = vpop.f32.mrf.mxu0
  %v238 = vadd.f32 0.0, %v237
  %239 = vmatmul.bf16.gmra.mxu0 %v205
  %v240 = vpop.f32.mrf.mxu0
  %v241 = vadd.f32 0.0, %v240
  %v242 = vpop.f32.mrf.mxu0
  %v243 = vadd.f32 0.0, %v242
  %244 = vmatmul.bf16.gmra.mxu0 %v208
  %v245 = vpop.f32.mrf.mxu0
  %v246 = vadd.f32 0.0, %v245
  %v247 = vpop.f32.mrf.mxu0
  %v248 = vadd.f32 0.0, %v247
  %249 = vmatmul.bf16.gmra.mxu0 %v211
  %v250 = vpop.f32.mrf.mxu0
  %v251 = vadd.f32 0.0, %v250
  %v252 = vpop.f32.mrf.mxu0
  %v253 = vadd.f32 0.0, %v252
  %254 = vmatmul.bf16.gmra.mxu0 %v214
  %v255 = vpop.f32.mrf.mxu0
  %v256 = vadd.f32 0.0, %v255
  %v257 = vpop.f32.mrf.mxu0
  %258 = vdwg.mxu0
  %v259 = vld [vmem:[%s2] sm:$0xf]
  %v260 = vld [vmem:[%s2 + $0x4] sm:$0xf]
  %v261 = vld [vmem:[%s2 + $0x8] sm:$0xf]
  %v262 = vld [vmem:[%s2 + $0xc] sm:$0xf]
  %v263 = vld [vmem:[%s2 + $0x10] sm:$0xf]
  %v264 = vld [vmem:[%s2 + $0x14] sm:$0xf]
  %v265 = vld [vmem:[%s2 + $0x18] sm:$0xf]
  %v266 = vld [vmem:[%s2 + $0x1c] sm:$0xf]
  %v267 = vld [vmem:[%s2 + $0x20] sm:$0xf]
  %v268 = vld [vmem:[%s2 + $0x24] sm:$0xf]
  %v269 = vld [vmem:[%s2 + $0x28] sm:$0xf]
  %v270 = vld [vmem:[%s2 + $0x2c] sm:$0xf]
  %v271 = vld [vmem:[%s2 + $0x30] sm:$0x1]
  %v285 = vunpack.c.l.b16 %v259
  %v286 = vunpack.c.l.b16 %v260
  %v287 = vunpack.c.l.b16 %v261
  %v288 = vunpack.c.l.b16 %v262
  %v289 = vunpack.c.l.b16 %v263
  %v290 = vunpack.c.l.b16 %v264
  %v291 = vunpack.c.l.b16 %v265
  %v292 = vunpack.c.l.b16 %v266
  %v293 = vunpack.c.l.b16 %v267
  %v294 = vunpack.c.l.b16 %v268
  %v295 = vunpack.c.l.b16 %v269
  %v296 = vunpack.c.l.b16 %v270
  %v297 = vunpack.c.l.b16 %v271
  %v298 = vpack.c.b16 %v286, %v285
  %v299 = vpack.c.b16 %v288, %v287
  %v300 = vpack.c.b16 %v290, %v289
  %v301 = vpack.c.b16 %v292, %v291
  %v302 = vpack.c.b16 %v294, %v293
  %v303 = vpack.c.b16 %v296, %v295
  %v304 = vpack.c.b16 %v297, %v297
  %v306 = vsel %vm77, %v298, 0
  %v309 = vsel %vm77, %v299, 0
  %v312 = vsel %vm77, %v300, 0
  %v315 = vsel %vm77, %v301, 0
  %v318 = vsel %vm77, %v302, 0
  %v321 = vsel %vm77, %v303, 0
  %v324 = vsel %vm77, %v304, 0
  %326 = vmatpush.bf16.msra.mxu0 0
  %327 = vmatpush.bf16.msra.mxu0 0
  %328 = vmatpush.bf16.msra.mxu0 0
  %329 = vmatpush.bf16.msra.mxu0 0
  %330 = vmatpush.bf16.msra.mxu0 0
  %331 = vmatpush.bf16.msra.mxu0 0
  %332 = vmatpush.bf16.msra.mxu0 0
  %333 = vmatpush.bf16.msra.mxu0 %v104
  %334 = vmatmul.bf16.gmra.mxu0 %v306
  %v335 = vpop.f32.mrf.mxu0
  %v336 = vadd.f32 0.0, %v335
  %v337 = vpop.f32.mrf.mxu0
  %v338 = vadd.f32 0.0, %v337
  %339 = vmatmul.bf16.gmra.mxu0 %v309
  %v340 = vpop.f32.mrf.mxu0
  %v341 = vadd.f32 0.0, %v340
  %v342 = vpop.f32.mrf.mxu0
  %v343 = vadd.f32 0.0, %v342
  %344 = vmatmul.bf16.gmra.mxu0 %v312
  %v345 = vpop.f32.mrf.mxu0
  %v346 = vadd.f32 0.0, %v345
  %v347 = vpop.f32.mrf.mxu0
  %v348 = vadd.f32 0.0, %v347
  %349 = vmatmul.bf16.gmra.mxu0 %v315
  %v350 = vpop.f32.mrf.mxu0
  %v351 = vadd.f32 0.0, %v350
  %v352 = vpop.f32.mrf.mxu0
  %v353 = vadd.f32 0.0, %v352
  %354 = vmatmul.bf16.gmra.mxu0 %v318
  %v355 = vpop.f32.mrf.mxu0
  %v356 = vadd.f32 0.0, %v355
  %v357 = vpop.f32.mrf.mxu0
  %v358 = vadd.f32 0.0, %v357
  %359 = vmatmul.bf16.gmra.mxu0 %v321
  %v360 = vpop.f32.mrf.mxu0
  %v361 = vadd.f32 0.0, %v360
  %v362 = vpop.f32.mrf.mxu0
  %v363 = vadd.f32 0.0, %v362
  %364 = vmatmul.bf16.gmra.mxu0 %v324
  %v365 = vpop.f32.mrf.mxu0
  %v366 = vadd.f32 0.0, %v365
  %v367 = vpop.f32.mrf.mxu0
  %368 = vdwg.mxu0
  %v369 = vld [vmem:[%s3] sm:$0xf]
  %v370 = vld [vmem:[%s3 + $0x4] sm:$0xf]
  %v371 = vld [vmem:[%s3 + $0x8] sm:$0xf]
  %v372 = vld [vmem:[%s3 + $0xc] sm:$0xf]
  %v373 = vld [vmem:[%s3 + $0x10] sm:$0xf]
  %v374 = vld [vmem:[%s3 + $0x14] sm:$0xf]
  %v375 = vld [vmem:[%s3 + $0x18] sm:$0xf]
  %v376 = vld [vmem:[%s3 + $0x1c] sm:$0xf]
  %v377 = vld [vmem:[%s3 + $0x20] sm:$0xf]
  %v378 = vld [vmem:[%s3 + $0x24] sm:$0xf]
  %v379 = vld [vmem:[%s3 + $0x28] sm:$0xf]
  %v380 = vld [vmem:[%s3 + $0x2c] sm:$0xf]
  %v381 = vld [vmem:[%s3 + $0x30] sm:$0x1]
  %v395 = vunpack.c.l.b16 %v369
  %v396 = vunpack.c.l.b16 %v370
  %v397 = vunpack.c.l.b16 %v371
  %v398 = vunpack.c.l.b16 %v372
  %v399 = vunpack.c.l.b16 %v373
  %v400 = vunpack.c.l.b16 %v374
  %v401 = vunpack.c.l.b16 %v375
  %v402 = vunpack.c.l.b16 %v376
  %v403 = vunpack.c.l.b16 %v377
  %v404 = vunpack.c.l.b16 %v378
  %v405 = vunpack.c.l.b16 %v379
  %v406 = vunpack.c.l.b16 %v380
  %v407 = vunpack.c.l.b16 %v381
  %v408 = vpack.c.b16 %v396, %v395
  %v409 = vpack.c.b16 %v398, %v397
  %v410 = vpack.c.b16 %v400, %v399
  %v411 = vpack.c.b16 %v402, %v401
  %v412 = vpack.c.b16 %v404, %v403
  %v413 = vpack.c.b16 %v406, %v405
  %v414 = vpack.c.b16 %v407, %v407
  %v416 = vsel %vm77, %v408, 0
  %v419 = vsel %vm77, %v409, 0
  %v422 = vsel %vm77, %v410, 0
  %v425 = vsel %vm77, %v411, 0
  %v428 = vsel %vm77, %v412, 0
  %v431 = vsel %vm77, %v413, 0
  %v434 = vsel %vm77, %v414, 0
  %436 = vmatpush.bf16.msra.mxu0 0
  %437 = vmatpush.bf16.msra.mxu0 0
  %438 = vmatpush.bf16.msra.mxu0 0
  %439 = vmatpush.bf16.msra.mxu0 0
  %440 = vmatpush.bf16.msra.mxu0 0
  %441 = vmatpush.bf16.msra.mxu0 0
  %442 = vmatpush.bf16.msra.mxu0 0
  %443 = vmatpush.bf16.msra.mxu0 %v104
  %444 = vmatmul.bf16.gmra.mxu0 %v416
  %v445 = vpop.f32.mrf.mxu0
  %v446 = vadd.f32 0.0, %v445
  %v447 = vpop.f32.mrf.mxu0
  %v448 = vadd.f32 0.0, %v447
  %449 = vmatmul.bf16.gmra.mxu0 %v419
  %v450 = vpop.f32.mrf.mxu0
  %v451 = vadd.f32 0.0, %v450
  %v452 = vpop.f32.mrf.mxu0
  %v453 = vadd.f32 0.0, %v452
  %454 = vmatmul.bf16.gmra.mxu0 %v422
  %v455 = vpop.f32.mrf.mxu0
  %v456 = vadd.f32 0.0, %v455
  %v457 = vpop.f32.mrf.mxu0
  %v458 = vadd.f32 0.0, %v457
  %459 = vmatmul.bf16.gmra.mxu0 %v425
  %v460 = vpop.f32.mrf.mxu0
  %v461 = vadd.f32 0.0, %v460
  %v462 = vpop.f32.mrf.mxu0
  %v463 = vadd.f32 0.0, %v462
  %464 = vmatmul.bf16.gmra.mxu0 %v428
  %v465 = vpop.f32.mrf.mxu0
  %v466 = vadd.f32 0.0, %v465
  %v467 = vpop.f32.mrf.mxu0
  %v468 = vadd.f32 0.0, %v467
  %469 = vmatmul.bf16.gmra.mxu0 %v431
  %v470 = vpop.f32.mrf.mxu0
  %v471 = vadd.f32 0.0, %v470
  %v472 = vpop.f32.mrf.mxu0
  %v473 = vadd.f32 0.0, %v472
  %474 = vmatmul.bf16.gmra.mxu0 %v434
  %v475 = vpop.f32.mrf.mxu0
  %v476 = vadd.f32 0.0, %v475
  %v477 = vpop.f32.mrf.mxu0
  %478 = vdwg.mxu0
  %v479 = vmax.f32 %v116, %v226
  %v480 = vmax.f32 %v118, %v228
  %v481 = vmax.f32 %v121, %v231
  %v482 = vmax.f32 %v123, %v233
  %v483 = vmax.f32 %v126, %v236
  %v484 = vmax.f32 %v128, %v238
  %v485 = vmax.f32 %v131, %v241
  %v486 = vmax.f32 %v133, %v243
  %v487 = vmax.f32 %v136, %v246
  %v488 = vmax.f32 %v138, %v248
  %v489 = vmax.f32 %v141, %v251
  %v490 = vmax.f32 %v143, %v253
  %v491 = vmax.f32 %v146, %v256
  %v492 = vmax.f32 %v336, %v446
  %v493 = vmax.f32 %v338, %v448
  %v494 = vmax.f32 %v341, %v451
  %v495 = vmax.f32 %v343, %v453
  %v496 = vmax.f32 %v346, %v456
  %v497 = vmax.f32 %v348, %v458
  %v498 = vmax.f32 %v351, %v461
  %v499 = vmax.f32 %v353, %v463
  %v500 = vmax.f32 %v356, %v466
  %v501 = vmax.f32 %v358, %v468
  %v502 = vmax.f32 %v361, %v471
  %v503 = vmax.f32 %v363, %v473
  %v504 = vmax.f32 %v366, %v476
  %v505 = vmax.f32 %v479, %v492
  %v506 = vmax.f32 %v480, %v493
  %v507 = vmax.f32 %v481, %v494
  %v508 = vmax.f32 %v482, %v495
  %v509 = vmax.f32 %v483, %v496
  %v510 = vmax.f32 %v484, %v497
  %v511 = vmax.f32 %v485, %v498
  %v512 = vmax.f32 %v486, %v499
  %v513 = vmax.f32 %v487, %v500
  %v514 = vmax.f32 %v488, %v501
  %v515 = vmax.f32 %v489, %v502
  %v516 = vmax.f32 %v490, %v503
  %v517 = vmax.f32 %v491, %v504
  %v518 = vld [vmem:[%s5] sm:$0x1]
  %v520 = vperm.slane %v518, 0
  %v522 = vadd.f32 %v505, %v520
  %v523 = vadd.f32 %v506, %v520
  %v524 = vadd.f32 %v507, %v520
  %v525 = vadd.f32 %v508, %v520
  %v526 = vadd.f32 %v509, %v520
  %v527 = vadd.f32 %v510, %v520
  %v528 = vadd.f32 %v511, %v520
  %v529 = vadd.f32 %v512, %v520
  %v530 = vadd.f32 %v513, %v520
  %v531 = vadd.f32 %v514, %v520
  %v532 = vadd.f32 %v515, %v520
  %v533 = vadd.f32 %v516, %v520
  %v534 = vadd.f32 %v517, %v520
  %v535 = vmax.f32 %v522, 0.0
  %v536 = vmax.f32 %v523, 0.0
  %v537 = vmax.f32 %v524, 0.0
  %v538 = vmax.f32 %v525, 0.0
  %v539 = vmax.f32 %v526, 0.0
  %v540 = vmax.f32 %v527, 0.0
  %v541 = vmax.f32 %v528, 0.0
  %v542 = vmax.f32 %v529, 0.0
  %v543 = vmax.f32 %v530, 0.0
  %v544 = vmax.f32 %v531, 0.0
  %v545 = vmax.f32 %v532, 0.0
  %v546 = vmax.f32 %v533, 0.0
  %v547 = vmax.f32 %v534, 0.0
  %v548 = vpack.c.bf16 %v535, %v535
  %v549 = vpack.c.bf16 %v536, %v536
  %v550 = vpack.c.bf16 %v537, %v537
  %v551 = vpack.c.bf16 %v538, %v538
  %v552 = vpack.c.bf16 %v539, %v539
  %v553 = vpack.c.bf16 %v540, %v540
  %v554 = vpack.c.bf16 %v541, %v541
  %v555 = vpack.c.bf16 %v542, %v542
  %v556 = vpack.c.bf16 %v543, %v543
  %v557 = vpack.c.bf16 %v544, %v544
  %v558 = vpack.c.bf16 %v545, %v545
  %v559 = vpack.c.bf16 %v546, %v546
  %v560 = vpack.c.bf16 %v547, %v547
  %vm561 = vcmask 257024
  %562 = vst.msk [vmem:[%s6] sm:$0xf] %vm561, %v548
  %563 = vst.msk [vmem:[%s6 + $0x4] sm:$0xf] %vm561, %v549
  %564 = vst.msk [vmem:[%s6 + $0x8] sm:$0xf] %vm561, %v550
  %565 = vst.msk [vmem:[%s6 + $0xc] sm:$0xf] %vm561, %v551
  %566 = vst.msk [vmem:[%s6 + $0x10] sm:$0xf] %vm561, %v552
  %567 = vst.msk [vmem:[%s6 + $0x14] sm:$0xf] %vm561, %v553
  %568 = vst.msk [vmem:[%s6 + $0x18] sm:$0xf] %vm561, %v554
  %569 = vst.msk [vmem:[%s6 + $0x1c] sm:$0xf] %vm561, %v555
  %570 = vst.msk [vmem:[%s6 + $0x20] sm:$0xf] %vm561, %v556
  %571 = vst.msk [vmem:[%s6 + $0x24] sm:$0xf] %vm561, %v557
  %572 = vst.msk [vmem:[%s6 + $0x28] sm:$0xf] %vm561, %v558
  %573 = vst.msk [vmem:[%s6 + $0x2c] sm:$0xf] %vm561, %v559
  %vm574 = vcmask 253952
  %575 = vst.msk [vmem:[%s6 + $0x30] sm:$0x1] %vm574, %v560
  // Predicated region
  $region26: #{classifier_forward.2} parent=0 // pred_check
    _
  $region27: #{classifier_forward.2} parent=0 // pred_check_branch
    %577 = sbr.rel (0) target = $region29
  $region28: #{classifier_forward.2} parent=0 // pred_region
    _
  $region29: #{classifier_forward.2} parent=0 // pred_fallthru
    _
  // Predicated region
  $region30: #{classifier_forward.2} parent=0 // pred_check
    _
  $region31: #{classifier_forward.2} parent=0 // pred_check_branch
    %579 = sbr.rel (0) target = $region33
  $region32: #{classifier_forward.2} parent=0 // pred_region
    _
  $region33: #{classifier_forward.2} parent=0 // pred_fallthru
    _

// kernel: classifier_forward.3
$region0: #{classifier_forward.3}
  #allocation0 [shape = 'u32[]', space=smem, size = 0x4, offset = 0x4, fixed_abs, tag = 'smem constant byte address 0x4 - core index']
  #allocation1 [shape = 'u32[72,128]{1,0:T(1,128)}', space=vmem, size = 0x9000, scoped, tag = 'internal scratch']
  #allocation2 [shape = 'bf16[2,576]{1,0:T(2,128)(2,1)}', space=vmem, size = 0xa00, scoped, tag = 'scratch operand']
  %s0 = inlined_call_operand.vmem [shape: bf16[2,1568], index: 0, kind: input, shape index: {}]
  %s1 = inlined_call_operand.hbm [shape: bf16[8,128,256], index: 1, kind: input, shape index: {}]
  %s2 = inlined_call_operand.vmem [shape: f32[1,64], index: 2, kind: input, shape index: {}]
  %s3 = inlined_call_operand.vmem [shape: bf16[576,512], index: 3, kind: input, shape index: {}]
  %s4 = inlined_call_operand.vmem [shape: f32[1,512], index: 4, kind: input, shape index: {}]
  %s5 = inlined_call_operand.vmem [shape: bf16[512,128], index: 5, kind: input, shape index: {}]
  %s6 = inlined_call_operand.vmem [shape: f32[1,128], index: 6, kind: input, shape index: {}]
  %s7 = inlined_call_operand.hbm [shape: f32[2,128], index: 7, kind: output, shape index: {}]
  %s8 = sld [smem:[#allocation0]]
  $region42: #{classifier_forward.3} parent=0
    _
  %s10 = ssub.s32 1, %s8
  %s11 = scalar_select 0, %s10, %s8
  $region1: #{classifier_forward.3} parent=0
    #allocation3 [shape = 'u8[524288]{0}', space=vmem, size = 0x80000, scoped, tag = 'input window, operand 1, single buffered']
    #allocation4 [shape = 's32[1]{0}', space=sflag, size = 0x4, scoped, tag = 'scoped memory for classifier_forward.3']
    #allocation5 [shape = 's32[1]{0}', space=sflag, size = 0x4, scoped, tag = 'scoped memory for classifier_forward.3']
    #allocation6 [shape = 'u8[1024]{0}', space=vmem, size = 0x400, scoped, tag = 'output window, operand 0, single buffered']
    %12 = vsyncpa [#allocation4], 0
    %13 = vsyncpa [#allocation5], 0
    // Predicated region
    $region2: #{classifier_forward.3} parent=1 // pred_check
      _
    $region3: #{classifier_forward.3} parent=1 // pred_check_branch
      %15 = sbr.rel (0) target = $region5
    $region4: #{classifier_forward.3} parent=1 // pred_region
      _
    $region5: #{classifier_forward.3} parent=1 // pred_fallthru
      _
    // Predicated region
    $region6: #{classifier_forward.3} parent=1 // pred_check
      _
    $region7: #{classifier_forward.3} parent=1 // pred_check_branch
      %17 = sbr.rel (0) target = $region9
    $region8: #{classifier_forward.3} parent=1 // pred_region
      %19 = vsyncadd [#allocation4], 0
      %s20 = sshll.u32 %s1, 4
      %s21 = int_to_ptr.hbm [resolvable:$true] %s20
      %s22 = sshll.u32 [#allocation3], 4
      %s23 = int_to_ptr.vmem [resolvable:$true] %s22
      %28 = dma.hbm_to_vmem [thread:$0]  %s21, 16384, %s23, [#allocation4], 128, 128, 8
    $region9: #{classifier_forward.3} parent=1 // pred_fallthru
      _
    // Predicated region
    $region10: #{classifier_forward.3} parent=1 // pred_check
      _
    $region11: #{classifier_forward.3} parent=1 // pred_check_branch
      %30 = sbr.rel (0) target = $region13
    $region12: #{classifier_forward.3} parent=1 // pred_region
      _
    $region13: #{classifier_forward.3} parent=1 // pred_fallthru
      _
    // Predicated region
    $region14: #{classifier_forward.3} parent=1 // pred_check
      _
    $region15: #{classifier_forward.3} parent=1 // pred_check_branch
      %32 = sbr.rel (0) target = $region17
    $region16: #{classifier_forward.3} parent=1 // pred_region
      _
    $region17: #{classifier_forward.3} parent=1 // pred_fallthru
      _
    // Predicated region
    $region18: #{classifier_forward.3} parent=1 // pred_check
      _
    $region19: #{classifier_forward.3} parent=1 // pred_check_branch
      %34 = sbr.rel (0) target = $region21
    $region20: #{classifier_forward.3} parent=1 // pred_region
      _
    $region21: #{classifier_forward.3} parent=1 // pred_fallthru
      _
    // Predicated region
    $region22: #{classifier_forward.3} parent=1 // pred_check
      _
    $region23: #{classifier_forward.3} parent=1 // pred_check_branch
      %36 = sbr.rel (0) target = $region25
    $region24: #{classifier_forward.3} parent=1 // pred_region
      _
    $region25: #{classifier_forward.3} parent=1 // pred_fallthru
      _
    // Predicated region
    $region26: #{classifier_forward.3} parent=1 // pred_check
      _
    $region27: #{classifier_forward.3} parent=1 // pred_check_branch
      %38 = sbr.rel (0) target = $region29
    $region28: #{classifier_forward.3} parent=1 // pred_region
      _
    $region29: #{classifier_forward.3} parent=1 // pred_fallthru
      _
    // Predicated region
    $region30: #{classifier_forward.3} parent=1 // pred_check
      _
    $region31: #{classifier_forward.3} parent=1 // pred_check_branch
      %40 = sbr.rel (0) target = $region33
    $region32: #{classifier_forward.3} parent=1 // pred_region
      %42 = dma.done [#allocation4], 16384
    $region33: #{classifier_forward.3} parent=1 // pred_fallthru
      _
    %v44 = vld [vmem:[%s0] sm:$0x1]
    %s45 = scalar_lea.vmem [#allocation3], 384
    %v46 = vld [vmem:[%s45] sm:$0xff]
    %v47 = vld [vmem:[%s45 + $0x8] sm:$0xff]
    %v48 = vld [vmem:[%s45 + $0x10] sm:$0xff]
    %v49 = vld [vmem:[%s45 + $0x18] sm:$0xff]
    %v50 = vld [vmem:[%s45 + $0x20] sm:$0xff]
    %v51 = vld [vmem:[%s45 + $0x28] sm:$0xff]
    %v52 = vld [vmem:[%s45 + $0x30] sm:$0xff]
    %v53 = vld [vmem:[%s45 + $0x38] sm:$0xff]
    %v54 = vld [vmem:[%s45 + $0x40] sm:$0xff]
    %v55 = vld [vmem:[%s45 + $0x48] sm:$0xff]
    %v56 = vld [vmem:[%s45 + $0x50] sm:$0xff]
    %v57 = vld [vmem:[%s45 + $0x58] sm:$0xff]
    %v58 = vld [vmem:[%s45 + $0x60] sm:$0xff]
    %v59 = vld [vmem:[%s45 + $0x68] sm:$0xff]
    %v60 = vld [vmem:[%s45 + $0x70] sm:$0xff]
    %v61 = vld [vmem:[%s45 + $0x78] sm:$0xff]
    %v62 = vld [vmem:[%s0 + $0x1] sm:$0x3]
    %s63 = scalar_lea.vmem [#allocation3], 640
    %v64 = vld [vmem:[%s63] sm:$0xff]
    %v65 = vld [vmem:[%s63 + $0x8] sm:$0xff]
    %v66 = vld [vmem:[%s63 + $0x10] sm:$0xff]
    %v67 = vld [vmem:[%s63 + $0x18] sm:$0xff]
    %v68 = vld [vmem:[%s63 + $0x20] sm:$0xff]
    %v69 = vld [vmem:[%s63 + $0x28] sm:$0xff]
    %v70 = vld [vmem:[%s63 + $0x30] sm:$0xff]
    %v71 = vld [vmem:[%s63 + $0x38] sm:$0xff]
    %v72 = vld [vmem:[%s63 + $0x40] sm:$0xff]
    %v73 = vld [vmem:[%s63 + $0x48] sm:$0xff]
    %v74 = vld [vmem:[%s63 + $0x50] sm:$0xff]
    %v75 = vld [vmem:[%s63 + $0x58] sm:$0xff]
    %v76 = vld [vmem:[%s63 + $0x60] sm:$0xff]
    %v77 = vld [vmem:[%s63 + $0x68] sm:$0xff]
    %v78 = vld [vmem:[%s63 + $0x70] sm:$0xff]
    %v79 = vld [vmem:[%s63 + $0x78] sm:$0xff]
    %81 = vst [vmem:[#allocation1] ss:$9 sm:$0xff] %v62
    %v82 = vld [vmem:[#allocation1] sm:$0xff]
    %v84 = vld [vmem:[#allocation1 + $0x9] sm:$0xff]
    %86 = vrot.lane.b32.xlu0 %v82, 32
    %v87 = vpop.permute.xlu0 %86
    %88 = vrot.lane.b32.xlu0 %v84, 32
    %v89 = vpop.permute.xlu0 %88
    %vm90 = vcmask 261120
    %v91 = vsel %vm90, %v87, %v89
    %v109 = vunpack.c.l.b16 %v64
    %v110 = vunpack.c.h.b16 %v64
    %v111 = vunpack.c.l.b16 %v65
    %v112 = vunpack.c.h.b16 %v65
    %v113 = vunpack.c.l.b16 %v66
    %v114 = vunpack.c.h.b16 %v66
    %v115 = vunpack.c.l.b16 %v67
    %v116 = vunpack.c.h.b16 %v67
    %v117 = vunpack.c.l.b16 %v68
    %v118 = vunpack.c.h.b16 %v68
    %v119 = vunpack.c.l.b16 %v69
    %v120 = vunpack.c.h.b16 %v69
    %v121 = vunpack.c.l.b16 %v70
    %v122 = vunpack.c.h.b16 %v70
    %v123 = vunpack.c.l.b16 %v71
    %v124 = vunpack.c.h.b16 %v71
    %v125 = vunpack.c.l.b16 %v72
    %v126 = vunpack.c.h.b16 %v72
    %v127 = vunpack.c.l.b16 %v73
    %v128 = vunpack.c.h.b16 %v73
    %v129 = vunpack.c.l.b16 %v74
    %v130 = vunpack.c.h.b16 %v74
    %v131 = vunpack.c.l.b16 %v75
    %v132 = vunpack.c.h.b16 %v75
    %v133 = vunpack.c.l.b16 %v76
    %v134 = vunpack.c.h.b16 %v76
    %v135 = vunpack.c.l.b16 %v77
    %v136 = vunpack.c.h.b16 %v77
    %v137 = vunpack.c.l.b16 %v78
    %v138 = vunpack.c.h.b16 %v78
    %v139 = vunpack.c.l.b16 %v79
    %v140 = vunpack.c.h.b16 %v79
    %v141 = vpack.c.b16 %v111, %v109
    %v142 = vpack.c.b16 %v112, %v110
    %v143 = vpack.c.b16 %v115, %v113
    %v144 = vpack.c.b16 %v116, %v114
    %v145 = vpack.c.b16 %v119, %v117
    %v146 = vpack.c.b16 %v120, %v118
    %v147 = vpack.c.b16 %v123, %v121
    %v148 = vpack.c.b16 %v124, %v122
    %v149 = vpack.c.b16 %v127, %v125
    %v150 = vpack.c.b16 %v128, %v126
    %v151 = vpack.c.b16 %v131, %v129
    %v152 = vpack.c.b16 %v132, %v130
    %v153 = vpack.c.b16 %v135, %v133
    %v154 = vpack.c.b16 %v136, %v134
    %v155 = vpack.c.b16 %v139, %v137
    %v156 = vpack.c.b16 %v140, %v138
    %173 = vmatpush.bf16.msra.mxu0 %v155
    %174 = vmatpush.bf16.msra.mxu0 %v153
    %175 = vmatpush.bf16.msra.mxu0 %v151
    %176 = vmatpush.bf16.msra.mxu0 %v149
    %177 = vmatpush.bf16.msra.mxu0 %v147
    %178 = vmatpush.bf16.msra.mxu0 %v145
    %179 = vmatpush.bf16.msra.mxu0 %v143
    %180 = vmatpush.bf16.msra.mxu0 %v141
    %181 = vmatmul.bf16.gmra.mxu0 %v91
    %v182 = vpop.f32.mrf.mxu0
    %v183 = vadd.f32 0.0, %v182
    %v184 = vpop.f32.mrf.mxu0
    %185 = vdwg.mxu0
    %186 = vmatpush.bf16.msra.mxu0 %v156
    %187 = vmatpush.bf16.msra.mxu0 %v154
    %188 = vmatpush.bf16.msra.mxu0 %v152
    %189 = vmatpush.bf16.msra.mxu0 %v150
    %190 = vmatpush.bf16.msra.mxu0 %v148
    %191 = vmatpush.bf16.msra.mxu0 %v146
    %192 = vmatpush.bf16.msra.mxu0 %v144
    %193 = vmatpush.bf16.msra.mxu0 %v142
    %194 = vmatmul.bf16.gmra.mxu0 %v91
    %v195 = vpop.f32.mrf.mxu0
    %v196 = vadd.f32 0.0, %v195
    %v197 = vpop.f32.mrf.mxu0
    %198 = vdwg.mxu0
    %v215 = vunpack.c.l.b16 %v46
    %v216 = vunpack.c.h.b16 %v46
    %v217 = vunpack.c.l.b16 %v47
    %v218 = vunpack.c.h.b16 %v47
    %v219 = vunpack.c.l.b16 %v48
    %v220 = vunpack.c.h.b16 %v48
    %v221 = vunpack.c.l.b16 %v49
    %v222 = vunpack.c.h.b16 %v49
    %v223 = vunpack.c.l.b16 %v50
    %v224 = vunpack.c.h.b16 %v50
    %v225 = vunpack.c.l.b16 %v51
    %v226 = vunpack.c.h.b16 %v51
    %v227 = vunpack.c.l.b16 %v52
    %v228 = vunpack.c.h.b16 %v52
    %v229 = vunpack.c.l.b16 %v53
    %v230 = vunpack.c.h.b16 %v53
    %v231 = vunpack.c.l.b16 %v54
    %v232 = vunpack.c.h.b16 %v54
    %v233 = vunpack.c.l.b16 %v55
    %v234 = vunpack.c.h.b16 %v55
    %v235 = vunpack.c.l.b16 %v56
    %v236 = vunpack.c.h.b16 %v56
    %v237 = vunpack.c.l.b16 %v57
    %v238 = vunpack.c.h.b16 %v57
    %v239 = vunpack.c.l.b16 %v58
    %v240 = vunpack.c.h.b16 %v58
    %v241 = vunpack.c.l.b16 %v59
    %v242 = vunpack.c.h.b16 %v59
    %v243 = vunpack.c.l.b16 %v60
    %v244 = vunpack.c.h.b16 %v60
    %v245 = vunpack.c.l.b16 %v61
    %v246 = vunpack.c.h.b16 %v61
    %v247 = vpack.c.b16 %v217, %v215
    %v248 = vpack.c.b16 %v218, %v216
    %v249 = vpack.c.b16 %v221, %v219
    %v250 = vpack.c.b16 %v222, %v220
    %v251 = vpack.c.b16 %v225, %v223
    %v252 = vpack.c.b16 %v226, %v224
    %v253 = vpack.c.b16 %v229, %v227
    %v254 = vpack.c.b16 %v230, %v228
    %v255 = vpack.c.b16 %v233, %v231
    %v256 = vpack.c.b16 %v234, %v232
    %v257 = vpack.c.b16 %v237, %v235
    %v258 = vpack.c.b16 %v238, %v236
    %v259 = vpack.c.b16 %v241, %v239
    %v260 = vpack.c.b16 %v242, %v240
    %v261 = vpack.c.b16 %v245, %v243
    %v262 = vpack.c.b16 %v246, %v244
    %279 = vmatpush.bf16.msra.mxu0 %v261
    %280 = vmatpush.bf16.msra.mxu0 %v259
    %281 = vmatpush.bf16.msra.mxu0 %v257
    %282 = vmatpush.bf16.msra.mxu0 %v255
    %283 = vmatpush.bf16.msra.mxu0 %v253
    %284 = vmatpush.bf16.msra.mxu0 %v251
    %285 = vmatpush.bf16.msra.mxu0 %v249
    %286 = vmatpush.bf16.msra.mxu0 %v247
    %287 = vmatmul.bf16.gmra.mxu0 %v44
    %v288 = vpop.f32.mrf.mxu0
    %v289 = vadd.f32 %v183, %v288
    %v290 = vpop.f32.mrf.mxu0
    %291 = vdwg.mxu0
    %292 = vmatpush.bf16.msra.mxu0 %v262
    %293 = vmatpush.bf16.msra.mxu0 %v260
    %294 = vmatpush.bf16.msra.mxu0 %v258
    %295 = vmatpush.bf16.msra.mxu0 %v256
    %296 = vmatpush.bf16.msra.mxu0 %v254
    %297 = vmatpush.bf16.msra.mxu0 %v252
    %298 = vmatpush.bf16.msra.mxu0 %v250
    %299 = vmatpush.bf16.msra.mxu0 %v248
    %300 = vmatmul.bf16.gmra.mxu0 %v44
    %v301 = vpop.f32.mrf.mxu0
    %v302 = vadd.f32 %v196, %v301
    %v303 = vpop.f32.mrf.mxu0
    %304 = vdwg.mxu0
    %v305 = vld [vmem:[%s0 + $0x3] sm:$0x3]
    %s306 = scalar_lea.vmem [#allocation3], 896
    %v307 = vld [vmem:[%s306] sm:$0xff]
    %v308 = vld [vmem:[%s306 + $0x8] sm:$0xff]
    %v309 = vld [vmem:[%s306 + $0x10] sm:$0xff]
    %v310 = vld [vmem:[%s306 + $0x18] sm:$0xff]
    %v311 = vld [vmem:[%s306 + $0x20] sm:$0xff]
    %v312 = vld [vmem:[%s306 + $0x28] sm:$0xff]
    %v313 = vld [vmem:[%s306 + $0x30] sm:$0xff]
    %v314 = vld [vmem:[%s306 + $0x38] sm:$0xff]
    %v315 = vld [vmem:[%s306 + $0x40] sm:$0xff]
    %v316 = vld [vmem:[%s306 + $0x48] sm:$0xff]
    %v317 = vld [vmem:[%s306 + $0x50] sm:$0xff]
    %v318 = vld [vmem:[%s306 + $0x58] sm:$0xff]
    %v319 = vld [vmem:[%s306 + $0x60] sm:$0xff]
    %v320 = vld [vmem:[%s306 + $0x68] sm:$0xff]
    %v321 = vld [vmem:[%s306 + $0x70] sm:$0xff]
    %v322 = vld [vmem:[%s306 + $0x78] sm:$0xff]
    %324 = vst [vmem:[#allocation1] ss:$9 sm:$0xff] %v305
    %v325 = vld [vmem:[#allocation1] sm:$0xff]
    %v327 = vld [vmem:[#allocation1 + $0x9] sm:$0xff]
    %329 = vrot.lane.b32.xlu0 %v325, 64
    %v330 = vpop.permute.xlu0 %329
    %331 = vrot.lane.b32.xlu0 %v327, 64
    %v332 = vpop.permute.xlu0 %331
    %vm333 = vcmask 523264
    %v334 = vsel %vm333, %v330, %v332
    %v352 = vunpack.c.l.b16 %v307
    %v353 = vunpack.c.h.b16 %v307
    %v354 = vunpack.c.l.b16 %v308
    %v355 = vunpack.c.h.b16 %v308
    %v356 = vunpack.c.l.b16 %v309
    %v357 = vunpack.c.h.b16 %v309
    %v358 = vunpack.c.l.b16 %v310
    %v359 = vunpack.c.h.b16 %v310
    %v360 = vunpack.c.l.b16 %v311
    %v361 = vunpack.c.h.b16 %v311
    %v362 = vunpack.c.l.b16 %v312
    %v363 = vunpack.c.h.b16 %v312
    %v364 = vunpack.c.l.b16 %v313
    %v365 = vunpack.c.h.b16 %v313
    %v366 = vunpack.c.l.b16 %v314
    %v367 = vunpack.c.h.b16 %v314
    %v368 = vunpack.c.l.b16 %v315
    %v369 = vunpack.c.h.b16 %v315
    %v370 = vunpack.c.l.b16 %v316
    %v371 = vunpack.c.h.b16 %v316
    %v372 = vunpack.c.l.b16 %v317
    %v373 = vunpack.c.h.b16 %v317
    %v374 = vunpack.c.l.b16 %v318
    %v375 = vunpack.c.h.b16 %v318
    %v376 = vunpack.c.l.b16 %v319
    %v377 = vunpack.c.h.b16 %v319
    %v378 = vunpack.c.l.b16 %v320
    %v379 = vunpack.c.h.b16 %v320
    %v380 = vunpack.c.l.b16 %v321
    %v381 = vunpack.c.h.b16 %v321
    %v382 = vunpack.c.l.b16 %v322
    %v383 = vunpack.c.h.b16 %v322
    %v384 = vpack.c.b16 %v354, %v352
    %v385 = vpack.c.b16 %v355, %v353
    %v386 = vpack.c.b16 %v358, %v356
    %v387 = vpack.c.b16 %v359, %v357
    %v388 = vpack.c.b16 %v362, %v360
    %v389 = vpack.c.b16 %v363, %v361
    %v390 = vpack.c.b16 %v366, %v364
    %v391 = vpack.c.b16 %v367, %v365
    %v392 = vpack.c.b16 %v370, %v368
    %v393 = vpack.c.b16 %v371, %v369
    %v394 = vpack.c.b16 %v374, %v372
    %v395 = vpack.c.b16 %v375, %v373
    %v396 = vpack.c.b16 %v378, %v376
    %v397 = vpack.c.b16 %v379, %v377
    %v398 = vpack.c.b16 %v382, %v380
    %v399 = vpack.c.b16 %v383, %v381
    %416 = vmatpush.bf16.msra.mxu0 %v398
    %417 = vmatpush.bf16.msra.mxu0 %v396
    %418 = vmatpush.bf16.msra.mxu0 %v394
    %419 = vmatpush.bf16.msra.mxu0 %v392
    %420 = vmatpush.bf16.msra.mxu0 %v390
    %421 = vmatpush.bf16.msra.mxu0 %v388
    %422 = vmatpush.bf16.msra.mxu0 %v386
    %423 = vmatpush.bf16.msra.mxu0 %v384
    %424 = vmatmul.bf16.gmra.mxu0 %v334
    %v425 = vpop.f32.mrf.mxu0
    %v426 = vadd.f32 0.0, %v425
    %v427 = vpop.f32.mrf.mxu0
    %428 = vdwg.mxu0
    %429 = vmatpush.bf16.msra.mxu0 %v399
    %430 = vmatpush.bf16.msra.mxu0 %v397
    %431 = vmatpush.bf16.msra.mxu0 %v395
    %432 = vmatpush.bf16.msra.mxu0 %v393
    %433 = vmatpush.bf16.msra.mxu0 %v391
    %434 = vmatpush.bf16.msra.mxu0 %v389
    %435 = vmatpush.bf16.msra.mxu0 %v387
    %436 = vmatpush.bf16.msra.mxu0 %v385
    %437 = vmatmul.bf16.gmra.mxu0 %v334
    %v438 = vpop.f32.mrf.mxu0
    %v439 = vadd.f32 0.0, %v438
    %v440 = vpop.f32.mrf.mxu0
    %441 = vdwg.mxu0
    %v442 = vadd.f32 %v289, %v426
    %v443 = vadd.f32 %v302, %v439
    %445 = vrot.lane.b32.xlu0 %v442, 64
    %v446 = vpop.permute.xlu0 %445
    %v448 = vmax.f32 %v442, %v446
    %450 = vrot.lane.b32.xlu0 %v443, 64
    %v451 = vpop.permute.xlu0 %450
    %v453 = vmax.f32 %v443, %v451
    %v454 = vmax.f32 %v448, %v453
    %v455 = vld [vmem:[%s2] sm:$0x1]
    %v457 = vperm.slane %v455, 0
    %v459 = vadd.f32 %v454, %v457
    %v460 = vmax.f32 %v459, 0.0
    %v461 = vpack.c.bf16 %v460, %v460
    %vm462 = vcmask 516096
    %463 = vst.msk [vmem:[#allocation2] sm:$0x1] %vm462, %v461
    %v464 = vld [vmem:[%s0] sm:$0x3]
    %s465 = scalar_lea.vmem [#allocation3], 256
    %v466 = vld [vmem:[%s465] sm:$0xff]
    %v467 = vld [vmem:[%s465 + $0x8] sm:$0xff]
    %v468 = vld [vmem:[%s465 + $0x10] sm:$0xff]
    %v469 = vld [vmem:[%s465 + $0x18] sm:$0xff]
    %v470 = vld [vmem:[%s465 + $0x20] sm:$0xff]
    %v471 = vld [vmem:[%s465 + $0x28] sm:$0xff]
    %v472 = vld [vmem:[%s465 + $0x30] sm:$0xff]
    %v473 = vld [vmem:[%s465 + $0x38] sm:$0xff]
    %v474 = vld [vmem:[%s465 + $0x40] sm:$0xff]
    %v475 = vld [vmem:[%s465 + $0x48] sm:$0xff]
    %v476 = vld [vmem:[%s465 + $0x50] sm:$0xff]
    %v477 = vld [vmem:[%s465 + $0x58] sm:$0xff]
    %v478 = vld [vmem:[%s465 + $0x60] sm:$0xff]
    %v479 = vld [vmem:[%s465 + $0x68] sm:$0xff]
    %v480 = vld [vmem:[%s465 + $0x70] sm:$0xff]
    %v481 = vld [vmem:[%s465 + $0x78] sm:$0xff]
    %v482 = vld [vmem:[%s0 + $0x2] sm:$0x1]
    %s483 = scalar_lea.vmem [#allocation3], 512
    %v484 = vld [vmem:[%s483] sm:$0xff]
    %v485 = vld [vmem:[%s483 + $0x8] sm:$0xff]
    %v486 = vld [vmem:[%s483 + $0x10] sm:$0xff]
    %v487 = vld [vmem:[%s483 + $0x18] sm:$0xff]
    %v488 = vld [vmem:[%s483 + $0x20] sm:$0xff]
    %v489 = vld [vmem:[%s483 + $0x28] sm:$0xff]
    %v490 = vld [vmem:[%s483 + $0x30] sm:$0xff]
    %v491 = vld [vmem:[%s483 + $0x38] sm:$0xff]
    %v492 = vld [vmem:[%s483 + $0x40] sm:$0xff]
    %v493 = vld [vmem:[%s483 + $0x48] sm:$0xff]
    %v494 = vld [vmem:[%s483 + $0x50] sm:$0xff]
    %v495 = vld [vmem:[%s483 + $0x58] sm:$0xff]
    %v496 = vld [vmem:[%s483 + $0x60] sm:$0xff]
    %v497 = vld [vmem:[%s483 + $0x68] sm:$0xff]
    %v498 = vld [vmem:[%s483 + $0x70] sm:$0xff]
    %v499 = vld [vmem:[%s483 + $0x78] sm:$0xff]
    %v516 = vunpack.c.l.b16 %v484
    %v517 = vunpack.c.h.b16 %v484
    %v518 = vunpack.c.l.b16 %v485
    %v519 = vunpack.c.h.b16 %v485
    %v520 = vunpack.c.l.b16 %v486
    %v521 = vunpack.c.h.b16 %v486
    %v522 = vunpack.c.l.b16 %v487
    %v523 = vunpack.c.h.b16 %v487
    %v524 = vunpack.c.l.b16 %v488
    %v525 = vunpack.c.h.b16 %v488
    %v526 = vunpack.c.l.b16 %v489
    %v527 = vunpack.c.h.b16 %v489
    %v528 = vunpack.c.l.b16 %v490
    %v529 = vunpack.c.h.b16 %v490
    %v530 = vunpack.c.l.b16 %v491
    %v531 = vunpack.c.h.b16 %v491
    %v532 = vunpack.c.l.b16 %v492
    %v533 = vunpack.c.h.b16 %v492
    %v534 = vunpack.c.l.b16 %v493
    %v535 = vunpack.c.h.b16 %v493
    %v536 = vunpack.c.l.b16 %v494
    %v537 = vunpack.c.h.b16 %v494
    %v538 = vunpack.c.l.b16 %v495
    %v539 = vunpack.c.h.b16 %v495
    %v540 = vunpack.c.l.b16 %v496
    %v541 = vunpack.c.h.b16 %v496
    %v542 = vunpack.c.l.b16 %v497
    %v543 = vunpack.c.h.b16 %v497
    %v544 = vunpack.c.l.b16 %v498
    %v545 = vunpack.c.h.b16 %v498
    %v546 = vunpack.c.l.b16 %v499
    %v547 = vunpack.c.h.b16 %v499
    %v548 = vpack.c.b16 %v518, %v516
    %v549 = vpack.c.b16 %v519, %v517
    %v550 = vpack.c.b16 %v522, %v520
    %v551 = vpack.c.b16 %v523, %v521
    %v552 = vpack.c.b16 %v526, %v524
    %v553 = vpack.c.b16 %v527, %v525
    %v554 = vpack.c.b16 %v530, %v528
    %v555 = vpack.c.b16 %v531, %v529
    %v556 = vpack.c.b16 %v534, %v532
    %v557 = vpack.c.b16 %v535, %v533
    %v558 = vpack.c.b16 %v538, %v536
    %v559 = vpack.c.b16 %v539, %v537
    %v560 = vpack.c.b16 %v542, %v540
    %v561 = vpack.c.b16 %v543, %v541
    %v562 = vpack.c.b16 %v546, %v544
    %v563 = vpack.c.b16 %v547, %v545
    %580 = vmatpush.bf16.msra.mxu0 %v562
    %581 = vmatpush.bf16.msra.mxu0 %v560
    %582 = vmatpush.bf16.msra.mxu0 %v558
    %583 = vmatpush.bf16.msra.mxu0 %v556
    %584 = vmatpush.bf16.msra.mxu0 %v554
    %585 = vmatpush.bf16.msra.mxu0 %v552
    %586 = vmatpush.bf16.msra.mxu0 %v550
    %587 = vmatpush.bf16.msra.mxu0 %v548
    %588 = vmatmul.bf16.gmra.mxu0 %v482
    %v589 = vpop.f32.mrf.mxu0
    %v590 = vadd.f32 0.0, %v589
    %v591 = vpop.f32.mrf.mxu0
    %592 = vdwg.mxu0
    %593 = vmatpush.bf16.msra.mxu0 %v563
    %594 = vmatpush.bf16.msra.mxu0 %v561
    %595 = vmatpush.bf16.msra.mxu0 %v559
    %596 = vmatpush.bf16.msra.mxu0 %v557
    %597 = vmatpush.bf16.msra.mxu0 %v555
    %598 = vmatpush.bf16.msra.mxu0 %v553
    %599 = vmatpush.bf16.msra.mxu0 %v551
    %600 = vmatpush.bf16.msra.mxu0 %v549
    %601 = vmatmul.bf16.gmra.mxu0 %v482
    %v602 = vpop.f32.mrf.mxu0
    %v603 = vadd.f32 0.0, %v602
    %v604 = vpop.f32.mrf.mxu0
    %605 = vdwg.mxu0
    %607 = vst [vmem:[#allocation1] ss:$9 sm:$0xff] %v464
    %v608 = vld [vmem:[#allocation1] sm:$0xff]
    %v610 = vld [vmem:[#allocation1 + $0x9] sm:$0xff]
    %612 = vrot.lane.b32.xlu0 %v608, 96
    %v613 = vpop.permute.xlu0 %612
    %614 = vrot.lane.b32.xlu0 %v610, 96
    %v615 = vpop.permute.xlu0 %614
    %vm616 = vcmask 785408
    %v617 = vsel %vm616, %v613, %v615
    %v635 = vunpack.c.l.b16 %v466
    %v636 = vunpack.c.h.b16 %v466
    %v637 = vunpack.c.l.b16 %v467
    %v638 = vunpack.c.h.b16 %v467
    %v639 = vunpack.c.l.b16 %v468
    %v640 = vunpack.c.h.b16 %v468
    %v641 = vunpack.c.l.b16 %v469
    %v642 = vunpack.c.h.b16 %v469
    %v643 = vunpack.c.l.b16 %v470
    %v644 = vunpack.c.h.b16 %v470
    %v645 = vunpack.c.l.b16 %v471
    %v646 = vunpack.c.h.b16 %v471
    %v647 = vunpack.c.l.b16 %v472
    %v648 = vunpack.c.h.b16 %v472
    %v649 = vunpack.c.l.b16 %v473
    %v650 = vunpack.c.h.b16 %v473
    %v651 = vunpack.c.l.b16 %v474
    %v652 = vunpack.c.h.b16 %v474
    %v653 = vunpack.c.l.b16 %v475
    %v654 = vunpack.c.h.b16 %v475
    %v655 = vunpack.c.l.b16 %v476
    %v656 = vunpack.c.h.b16 %v476
    %v657 = vunpack.c.l.b16 %v477
    %v658 = vunpack.c.h.b16 %v477
    %v659 = vunpack.c.l.b16 %v478
    %v660 = vunpack.c.h.b16 %v478
    %v661 = vunpack.c.l.b16 %v479
    %v662 = vunpack.c.h.b16 %v479
    %v663 = vunpack.c.l.b16 %v480
    %v664 = vunpack.c.h.b16 %v480
    %v665 = vunpack.c.l.b16 %v481
    %v666 = vunpack.c.h.b16 %v481
    %v667 = vpack.c.b16 %v637, %v635
    %v668 = vpack.c.b16 %v638, %v636
    %v669 = vpack.c.b16 %v641, %v639
    %v670 = vpack.c.b16 %v642, %v640
    %v671 = vpack.c.b16 %v645, %v643
    %v672 = vpack.c.b16 %v646, %v644
    %v673 = vpack.c.b16 %v649, %v647
    %v674 = vpack.c.b16 %v650, %v648
    %v675 = vpack.c.b16 %v653, %v651
    %v676 = vpack.c.b16 %v654, %v652
    %v677 = vpack.c.b16 %v657, %v655
    %v678 = vpack.c.b16 %v658, %v656
    %v679 = vpack.c.b16 %v661, %v659
    %v680 = vpack.c.b16 %v662, %v660
    %v681 = vpack.c.b16 %v665, %v663
    %v682 = vpack.c.b16 %v666, %v664
    %699 = vmatpush.bf16.msra.mxu0 %v681
    %700 = vmatpush.bf16.msra.mxu0 %v679
    %701 = vmatpush.bf16.msra.mxu0 %v677
    %702 = vmatpush.bf16.msra.mxu0 %v675
    %703 = vmatpush.bf16.msra.mxu0 %v673
    %704 = vmatpush.bf16.msra.mxu0 %v671
    %705 = vmatpush.bf16.msra.mxu0 %v669
    %706 = vmatpush.bf16.msra.mxu0 %v667
    %707 = vmatmul.bf16.gmra.mxu0 %v617
    %v708 = vpop.f32.mrf.mxu0
    %v709 = vadd.f32 %v590, %v708
    %v710 = vpop.f32.mrf.mxu0
    %711 = vdwg.mxu0
    %712 = vmatpush.bf16.msra.mxu0 %v682
    %713 = vmatpush.bf16.msra.mxu0 %v680
    %714 = vmatpush.bf16.msra.mxu0 %v678
    %715 = vmatpush.bf16.msra.mxu0 %v676
    %716 = vmatpush.bf16.msra.mxu0 %v674
    %717 = vmatpush.bf16.msra.mxu0 %v672
    %718 = vmatpush.bf16.msra.mxu0 %v670
    %719 = vmatpush.bf16.msra.mxu0 %v668
    %720 = vmatmul.bf16.gmra.mxu0 %v617
    %v721 = vpop.f32.mrf.mxu0
    %v722 = vadd.f32 %v603, %v721
    %v723 = vpop.f32.mrf.mxu0
    %724 = vdwg.mxu0
    %v725 = vld [vmem:[%s0 + $0x3] sm:$0x3]
    %s726 = scalar_lea.vmem [#allocation3], 768
    %v727 = vld [vmem:[%s726] sm:$0xff]
    %v728 = vld [vmem:[%s726 + $0x8] sm:$0xff]
    %v729 = vld [vmem:[%s726 + $0x10] sm:$0xff]
    %v730 = vld [vmem:[%s726 + $0x18] sm:$0xff]
    %v731 = vld [vmem:[%s726 + $0x20] sm:$0xff]
    %v732 = vld [vmem:[%s726 + $0x28] sm:$0xff]
    %v733 = vld [vmem:[%s726 + $0x30] sm:$0xff]
    %v734 = vld [vmem:[%s726 + $0x38] sm:$0xff]
    %v735 = vld [vmem:[%s726 + $0x40] sm:$0xff]
    %v736 = vld [vmem:[%s726 + $0x48] sm:$0xff]
    %v737 = vld [vmem:[%s726 + $0x50] sm:$0xff]
    %v738 = vld [vmem:[%s726 + $0x58] sm:$0xff]
    %v739 = vld [vmem:[%s726 + $0x60] sm:$0xff]
    %v740 = vld [vmem:[%s726 + $0x68] sm:$0xff]
    %v741 = vld [vmem:[%s726 + $0x70] sm:$0xff]
    %v742 = vld [vmem:[%s726 + $0x78] sm:$0xff]
    %744 = vst [vmem:[#allocation1] ss:$9 sm:$0xff] %v725
    %v745 = vld [vmem:[#allocation1] sm:$0xff]
    %v747 = vld [vmem:[#allocation1 + $0x9] sm:$0xff]
    %749 = vrot.lane.b32.xlu0 %v745, 32
    %v750 = vpop.permute.xlu0 %749
    %751 = vrot.lane.b32.xlu0 %v747, 32
    %v752 = vpop.permute.xlu0 %751
    %v753 = vsel %vm90, %v750, %v752
    %v771 = vunpack.c.l.b16 %v727
    %v772 = vunpack.c.h.b16 %v727
    %v773 = vunpack.c.l.b16 %v728
    %v774 = vunpack.c.h.b16 %v728
    %v775 = vunpack.c.l.b16 %v729
    %v776 = vunpack.c.h.b16 %v729
    %v777 = vunpack.c.l.b16 %v730
    %v778 = vunpack.c.h.b16 %v730
    %v779 = vunpack.c.l.b16 %v731
    %v780 = vunpack.c.h.b16 %v731
    %v781 = vunpack.c.l.b16 %v732
    %v782 = vunpack.c.h.b16 %v732
    %v783 = vunpack.c.l.b16 %v733
    %v784 = vunpack.c.h.b16 %v733
    %v785 = vunpack.c.l.b16 %v734
    %v786 = vunpack.c.h.b16 %v734
    %v787 = vunpack.c.l.b16 %v735
    %v788 = vunpack.c.h.b16 %v735
    %v789 = vunpack.c.l.b16 %v736
    %v790 = vunpack.c.h.b16 %v736
    %v791 = vunpack.c.l.b16 %v737
    %v792 = vunpack.c.h.b16 %v737
    %v793 = vunpack.c.l.b16 %v738
    %v794 = vunpack.c.h.b16 %v738
    %v795 = vunpack.c.l.b16 %v739
    %v796 = vunpack.c.h.b16 %v739
    %v797 = vunpack.c.l.b16 %v740
    %v798 = vunpack.c.h.b16 %v740
    %v799 = vunpack.c.l.b16 %v741
    %v800 = vunpack.c.h.b16 %v741
    %v801 = vunpack.c.l.b16 %v742
    %v802 = vunpack.c.h.b16 %v742
    %v803 = vpack.c.b16 %v773, %v771
    %v804 = vpack.c.b16 %v774, %v772
    %v805 = vpack.c.b16 %v777, %v775
    %v806 = vpack.c.b16 %v778, %v776
    %v807 = vpack.c.b16 %v781, %v779
    %v808 = vpack.c.b16 %v782, %v780
    %v809 = vpack.c.b16 %v785, %v783
    %v810 = vpack.c.b16 %v786, %v784
    %v811 = vpack.c.b16 %v789, %v787
    %v812 = vpack.c.b16 %v790, %v788
    %v813 = vpack.c.b16 %v793, %v791
    %v814 = vpack.c.b16 %v794, %v792
    %v815 = vpack.c.b16 %v797, %v795
    %v816 = vpack.c.b16 %v798, %v796
    %v817 = vpack.c.b16 %v801, %v799
    %v818 = vpack.c.b16 %v802, %v800
    %835 = vmatpush.bf16.msra.mxu0 %v817
    %836 = vmatpush.bf16.msra.mxu0 %v815
    %837 = vmatpush.bf16.msra.mxu0 %v813
    %838 = vmatpush.bf16.msra.mxu0 %v811
    %839 = vmatpush.bf16.msra.mxu0 %v809
    %840 = vmatpush.bf16.msra.mxu0 %v807
    %841 = vmatpush.bf16.msra.mxu0 %v805
    %842 = vmatpush.bf16.msra.mxu0 %v803
    %843 = vmatmul.bf16.gmra.mxu0 %v753
    %v844 = vpop.f32.mrf.mxu0
    %v845 = vadd.f32 0.0, %v844
    %v846 = vpop.f32.mrf.mxu0
    %847 = vdwg.mxu0
    %848 = vmatpush.bf16.msra.mxu0 %v818
    %849 = vmatpush.bf16.msra.mxu0 %v816
    %850 = vmatpush.bf16.msra.mxu0 %v814
    %851 = vmatpush.bf16.msra.mxu0 %v812
    %852 = vmatpush.bf16.msra.mxu0 %v810
    %853 = vmatpush.bf16.msra.mxu0 %v808
    %854 = vmatpush.bf16.msra.mxu0 %v806
    %855 = vmatpush.bf16.msra.mxu0 %v804
    %856 = vmatmul.bf16.gmra.mxu0 %v753
    %v857 = vpop.f32.mrf.mxu0
    %v858 = vadd.f32 0.0, %v857
    %v859 = vpop.f32.mrf.mxu0
    %860 = vdwg.mxu0
    %v861 = vadd.f32 %v709, %v845
    %v862 = vadd.f32 %v722, %v858
    %864 = vrot.lane.b32.xlu0 %v861, 64
    %v865 = vpop.permute.xlu0 %864
    %v867 = vmax.f32 %v861, %v865
    %869 = vrot.lane.b32.xlu0 %v862, 64
    %v870 = vpop.permute.xlu0 %869
    %v872 = vmax.f32 %v862, %v870
    %v873 = vmax.f32 %v867, %v872
    %v874 = vld [vmem:[%s2] sm:$0x1]
    %v876 = vperm.slane %v874, 0
    %v878 = vadd.f32 %v873, %v876
    %v879 = vmax.f32 %v878, 0.0
    %v880 = vpack.c.bf16 %v879, %v879
    %v882 = vrot.slane %v880, 3
    %vm883 = vcmask 1040384
    %v886 = vsel %vm883, %v880, %v882
    %888 = vrot.lane.b32.xlu0 %v886, 64
    %v889 = vpop.permute.xlu0 %888
    %vm891 = vcmask 1040896
    %892 = vst.msk [vmem:[#allocation2] sm:$0x1] %vm891, %v889
    %v893 = vld [vmem:[%s0] sm:$0x3]
    %v894 = vld [vmem:[%s465] sm:$0xff]
    %v895 = vld [vmem:[%s465 + $0x8] sm:$0xff]
    %v896 = vld [vmem:[%s465 + $0x10] sm:$0xff]
    %v897 = vld [vmem:[%s465 + $0x18] sm:$0xff]
    %v898 = vld [vmem:[%s465 + $0x20] sm:$0xff]
    %v899 = vld [vmem:[%s465 + $0x28] sm:$0xff]
    %v900 = vld [vmem:[%s465 + $0x30] sm:$0xff]
    %v901 = vld [vmem:[%s465 + $0x38] sm:$0xff]
    %v902 = vld [vmem:[%s465 + $0x40] sm:$0xff]
    %v903 = vld [vmem:[%s465 + $0x48] sm:$0xff]
    %v904 = vld [vmem:[%s465 + $0x50] sm:$0xff]
    %v905 = vld [vmem:[%s465 + $0x58] sm:$0xff]
    %v906 = vld [vmem:[%s465 + $0x60] sm:$0xff]
    %v907 = vld [vmem:[%s465 + $0x68] sm:$0xff]
    %v908 = vld [vmem:[%s465 + $0x70] sm:$0xff]
    %v909 = vld [vmem:[%s465 + $0x78] sm:$0xff]
    %v910 = vld [vmem:[%s0 + $0x2] sm:$0x3]
    %v911 = vld [vmem:[%s483] sm:$0xff]
    %v912 = vld [vmem:[%s483 + $0x8] sm:$0xff]
    %v913 = vld [vmem:[%s483 + $0x10] sm:$0xff]
    %v914 = vld [vmem:[%s483 + $0x18] sm:$0xff]
    %v915 = vld [vmem:[%s483 + $0x20] sm:$0xff]
    %v916 = vld [vmem:[%s483 + $0x28] sm:$0xff]
    %v917 = vld [vmem:[%s483 + $0x30] sm:$0xff]
    %v918 = vld [vmem:[%s483 + $0x38] sm:$0xff]
    %v919 = vld [vmem:[%s483 + $0x40] sm:$0xff]
    %v920 = vld [vmem:[%s483 + $0x48] sm:$0xff]
    %v921 = vld [vmem:[%s483 + $0x50] sm:$0xff]
    %v922 = vld [vmem:[%s483 + $0x58] sm:$0xff]
    %v923 = vld [vmem:[%s483 + $0x60] sm:$0xff]
    %v924 = vld [vmem:[%s483 + $0x68] sm:$0xff]
    %v925 = vld [vmem:[%s483 + $0x70] sm:$0xff]
    %v926 = vld [vmem:[%s483 + $0x78] sm:$0xff]
    %928 = vst [vmem:[#allocation1] ss:$9 sm:$0xff] %v910
    %v929 = vld [vmem:[#allocation1] sm:$0xff]
    %v931 = vld [vmem:[#allocation1 + $0x9] sm:$0xff]
    %933 = vrot.lane.b32.xlu0 %v929, 64
    %v934 = vpop.permute.xlu0 %933
    %935 = vrot.lane.b32.xlu0 %v931, 64
    %v936 = vpop.permute.xlu0 %935
    %v937 = vsel %vm333, %v934, %v936
    %v955 = vunpack.c.l.b16 %v911
    %v956 = vunpack.c.h.b16 %v911
    %v957 = vunpack.c.l.b16 %v912
    %v958 = vunpack.c.h.b16 %v912
    %v959 = vunpack.c.l.b16 %v913
    %v960 = vunpack.c.h.b16 %v913
    %v961 = vunpack.c.l.b16 %v914
    %v962 = vunpack.c.h.b16 %v914
    %v963 = vunpack.c.l.b16 %v915
    %v964 = vunpack.c.h.b16 %v915
    %v965 = vunpack.c.l.b16 %v916
    %v966 = vunpack.c.h.b16 %v916
    %v967 = vunpack.c.l.b16 %v917
    %v968 = vunpack.c.h.b16 %v917
    %v969 = vunpack.c.l.b16 %v918
    %v970 = vunpack.c.h.b16 %v918
    %v971 = vunpack.c.l.b16 %v919
    %v972 = vunpack.c.h.b16 %v919
    %v973 = vunpack.c.l.b16 %v920
    %v974 = vunpack.c.h.b16 %v920
    %v975 = vunpack.c.l.b16 %v921
    %v976 = vunpack.c.h.b16 %v921
    %v977 = vunpack.c.l.b16 %v922
    %v978 = vunpack.c.h.b16 %v922
    %v979 = vunpack.c.l.b16 %v923
    %v980 = vunpack.c.h.b16 %v923
    %v981 = vunpack.c.l.b16 %v924
    %v982 = vunpack.c.h.b16 %v924
    %v983 = vunpack.c.l.b16 %v925
    %v984 = vunpack.c.h.b16 %v925
    %v985 = vunpack.c.l.b16 %v926
    %v986 = vunpack.c.h.b16 %v926
    %v987 = vpack.c.b16 %v957, %v955
    %v988 = vpack.c.b16 %v958, %v956
    %v989 = vpack.c.b16 %v961, %v959
    %v990 = vpack.c.b16 %v962, %v960
    %v991 = vpack.c.b16 %v965, %v963
    %v992 = vpack.c.b16 %v966, %v964
    %v993 = vpack.c.b16 %v969, %v967
    %v994 = vpack.c.b16 %v970, %v968
    %v995 = vpack.c.b16 %v973, %v971
    %v996 = vpack.c.b16 %v974, %v972
    %v997 = vpack.c.b16 %v977, %v975
    %v998 = vpack.c.b16 %v978, %v976
    %v999 = vpack.c.b16 %v981, %v979
    %v1000 = vpack.c.b16 %v982, %v980
    %v1001 = vpack.c.b16 %v985, %v983
    %v1002 = vpack.c.b16 %v986, %v984
    %1019 = vmatpush.bf16.msra.mxu0 %v1001
    %1020 = vmatpush.bf16.msra.mxu0 %v999
    %1021 = vmatpush.bf16.msra.mxu0 %v997
    %1022 = vmatpush.bf16.msra.mxu0 %v995
    %1023 = vmatpush.bf16.msra.mxu0 %v993
    %1024 = vmatpush.bf16.msra.mxu0 %v991
    %1025 = vmatpush.bf16.msra.mxu0 %v989
    %1026 = vmatpush.bf16.msra.mxu0 %v987
    %1027 = vmatmul.bf16.gmra.mxu0 %v937
    %v1028 = vpop.f32.mrf.mxu0
    %v1029 = vadd.f32 0.0, %v1028
    %v1030 = vpop.f32.mrf.mxu0
    %1031 = vdwg.mxu0
    %1032 = vmatpush.bf16.msra.mxu0 %v1002
    %1033 = vmatpush.bf16.msra.mxu0 %v1000
    %1034 = vmatpush.bf16.msra.mxu0 %v998
    %1035 = vmatpush.bf16.msra.mxu0 %v996
    %1036 = vmatpush.bf16.msra.mxu0 %v994
    %1037 = vmatpush.bf16.msra.mxu0 %v992
    %1038 = vmatpush.bf16.msra.mxu0 %v990
    %1039 = vmatpush.bf16.msra.mxu0 %v988
    %1040 = vmatmul.bf16.gmra.mxu0 %v937
    %v1041 = vpop.f32.mrf.mxu0
    %v1042 = vadd.f32 0.0, %v1041
    %v1043 = vpop.f32.mrf.mxu0
    %1044 = vdwg.mxu0
    %1046 = vst [vmem:[#allocation1] ss:$9 sm:$0xff] %v893
    %v1047 = vld [vmem:[#allocation1] sm:$0xff]
    %v1049 = vld [vmem:[#allocation1 + $0x9] sm:$0xff]
    %1051 = vrot.lane.b32.xlu0 %v1047, 32
    %v1052 = vpop.permute.xlu0 %1051
    %1053 = vrot.lane.b32.xlu0 %v1049, 32
    %v1054 = vpop.permute.xlu0 %1053
    %v1055 = vsel %vm90, %v1052, %v1054
    %v1073 = vunpack.c.l.b16 %v894
    %v1074 = vunpack.c.h.b16 %v894
    %v1075 = vunpack.c.l.b16 %v895
    %v1076 = vunpack.c.h.b16 %v895
    %v1077 = vunpack.c.l.b16 %v896
    %v1078 = vunpack.c.h.b16 %v896
    %v1079 = vunpack.c.l.b16 %v897
    %v1080 = vunpack.c.h.b16 %v897
    %v1081 = vunpack.c.l.b16 %v898
    %v1082 = vunpack.c.h.b16 %v898
    %v1083 = vunpack.c.l.b16 %v899
    %v1084 = vunpack.c.h.b16 %v899
    %v1085 = vunpack.c.l.b16 %v900
    %v1086 = vunpack.c.h.b16 %v900
    %v1087 = vunpack.c.l.b16 %v901
    %v1088 = vunpack.c.h.b16 %v901
    %v1089 = vunpack.c.l.b16 %v902
    %v1090 = vunpack.c.h.b16 %v902
    %v1091 = vunpack.c.l.b16 %v903
    %v1092 = vunpack.c.h.b16 %v903
    %v1093 = vunpack.c.l.b16 %v904
    %v1094 = vunpack.c.h.b16 %v904
    %v1095 = vunpack.c.l.b16 %v905
    %v1096 = vunpack.c.h.b16 %v905
    %v1097 = vunpack.c.l.b16 %v906
    %v1098 = vunpack.c.h.b16 %v906
    %v1099 = vunpack.c.l.b16 %v907
    %v1100 = vunpack.c.h.b16 %v907
    %v1101 = vunpack.c.l.b16 %v908
    %v1102 = vunpack.c.h.b16 %v908
    %v1103 = vunpack.c.l.b16 %v909
    %v1104 = vunpack.c.h.b16 %v909
    %v1105 = vpack.c.b16 %v1075, %v1073
    %v1106 = vpack.c.b16 %v1076, %v1074
    %v1107 = vpack.c.b16 %v1079, %v1077
    %v1108 = vpack.c.b16 %v1080, %v1078
    %v1109 = vpack.c.b16 %v1083, %v1081
    %v1110 = vpack.c.b16 %v1084, %v1082
    %v1111 = vpack.c.b16 %v1087, %v1085
    %v1112 = vpack.c.b16 %v1088, %v1086
    %v1113 = vpack.c.b16 %v1091, %v1089
    %v1114 = vpack.c.b16 %v1092, %v1090
    %v1115 = vpack.c.b16 %v1095, %v1093
    %v1116 = vpack.c.b16 %v1096, %v1094
    %v1117 = vpack.c.b16 %v1099, %v1097
    %v1118 = vpack.c.b16 %v1100, %v1098
    %v1119 = vpack.c.b16 %v1103, %v1101
    %v1120 = vpack.c.b16 %v1104, %v1102
    %1137 = vmatpush.bf16.msra.mxu0 %v1119
    %1138 = vmatpush.bf16.msra.mxu0 %v1117
    %1139 = vmatpush.bf16.msra.mxu0 %v1115
    %1140 = vmatpush.bf16.msra.mxu0 %v1113
    %1141 = vmatpush.bf16.msra.mxu0 %v1111
    %1142 = vmatpush.bf16.msra.mxu0 %v1109
    %1143 = vmatpush.bf16.msra.mxu0 %v1107
    %1144 = vmatpush.bf16.msra.mxu0 %v1105
    %1145 = vmatmul.bf16.gmra.mxu0 %v1055
    %v1146 = vpop.f32.mrf.mxu0
    %v1147 = vadd.f32 %v1029, %v1146
    %v1148 = vpop.f32.mrf.mxu0
    %1149 = vdwg.mxu0
    %1150 = vmatpush.bf16.msra.mxu0 %v1120
    %1151 = vmatpush.bf16.msra.mxu0 %v1118
    %1152 = vmatpush.bf16.msra.mxu0 %v1116
    %1153 = vmatpush.bf16.msra.mxu0 %v1114
    %1154 = vmatpush.bf16.msra.mxu0 %v1112
    %1155 = vmatpush.bf16.msra.mxu0 %v1110
    %1156 = vmatpush.bf16.msra.mxu0 %v1108
    %1157 = vmatpush.bf16.msra.mxu0 %v1106
    %1158 = vmatmul.bf16.gmra.mxu0 %v1055
    %v1159 = vpop.f32.mrf.mxu0
    %v1160 = vadd.f32 %v1042, %v1159
    %v1161 = vpop.f32.mrf.mxu0
    %1162 = vdwg.mxu0
    %v1163 = vld [vmem:[%s0 + $0x4] sm:$0x3]
    %v1164 = vld [vmem:[%s726] sm:$0xff]
    %v1165 = vld [vmem:[%s726 + $0x8] sm:$0xff]
    %v1166 = vld [vmem:[%s726 + $0x10] sm:$0xff]
    %v1167 = vld [vmem:[%s726 + $0x18] sm:$0xff]
    %v1168 = vld [vmem:[%s726 + $0x20] sm:$0xff]
    %v1169 = vld [vmem:[%s726 + $0x28] sm:$0xff]
    %v1170 = vld [vmem:[%s726 + $0x30] sm:$0xff]
    %v1171 = vld [vmem:[%s726 + $0x38] sm:$0xff]
    %v1172 = vld [vmem:[%s726 + $0x40] sm:$0xff]
    %v1173 = vld [vmem:[%s726 + $0x48] sm:$0xff]
    %v1174 = vld [vmem:[%s726 + $0x50] sm:$0xff]
    %v1175 = vld [vmem:[%s726 + $0x58] sm:$0xff]
    %v1176 = vld [vmem:[%s726 + $0x60] sm:$0xff]
    %v1177 = vld [vmem:[%s726 + $0x68] sm:$0xff]
    %v1178 = vld [vmem:[%s726 + $0x70] sm:$0xff]
    %v1179 = vld [vmem:[%s726 + $0x78] sm:$0xff]
    %1181 = vst [vmem:[#allocation1] ss:$9 sm:$0xff] %v1163
    %v1182 = vld [vmem:[#allocation1] sm:$0xff]
    %v1184 = vld [vmem:[#allocation1 + $0x9] sm:$0xff]
    %1186 = vrot.lane.b32.xlu0 %v1182, 96
    %v1187 = vpop.permute.xlu0 %1186
    %1188 = vrot.lane.b32.xlu0 %v1184, 96
    %v1189 = vpop.permute.xlu0 %1188
    %v1190 = vsel %vm616, %v1187, %v1189
    %v1208 = vunpack.c.l.b16 %v1164
    %v1209 = vunpack.c.h.b16 %v1164
    %v1210 = vunpack.c.l.b16 %v1165
    %v1211 = vunpack.c.h.b16 %v1165
    %v1212 = vunpack.c.l.b16 %v1166
    %v1213 = vunpack.c.h.b16 %v1166
    %v1214 = vunpack.c.l.b16 %v1167
    %v1215 = vunpack.c.h.b16 %v1167
    %v1216 = vunpack.c.l.b16 %v1168
    %v1217 = vunpack.c.h.b16 %v1168
    %v1218 = vunpack.c.l.b16 %v1169
    %v1219 = vunpack.c.h.b16 %v1169
    %v1220 = vunpack.c.l.b16 %v1170
    %v1221 = vunpack.c.h.b16 %v1170
    %v1222 = vunpack.c.l.b16 %v1171
    %v1223 = vunpack.c.h.b16 %v1171
    %v1224 = vunpack.c.l.b16 %v1172
    %v1225 = vunpack.c.h.b16 %v1172
    %v1226 = vunpack.c.l.b16 %v1173
    %v1227 = vunpack.c.h.b16 %v1173
    %v1228 = vunpack.c.l.b16 %v1174
    %v1229 = vunpack.c.h.b16 %v1174
    %v1230 = vunpack.c.l.b16 %v1175
    %v1231 = vunpack.c.h.b16 %v1175
    %v1232 = vunpack.c.l.b16 %v1176
    %v1233 = vunpack.c.h.b16 %v1176
    %v1234 = vunpack.c.l.b16 %v1177
    %v1235 = vunpack.c.h.b16 %v1177
    %v1236 = vunpack.c.l.b16 %v1178
    %v1237 = vunpack.c.h.b16 %v1178
    %v1238 = vunpack.c.l.b16 %v1179
    %v1239 = vunpack.c.h.b16 %v1179
    %v1240 = vpack.c.b16 %v1210, %v1208
    %v1241 = vpack.c.b16 %v1211, %v1209
    %v1242 = vpack.c.b16 %v1214, %v1212
    %v1243 = vpack.c.b16 %v1215, %v1213
    %v1244 = vpack.c.b16 %v1218, %v1216
    %v1245 = vpack.c.b16 %v1219, %v1217
    %v1246 = vpack.c.b16 %v1222, %v1220
    %v1247 = vpack.c.b16 %v1223, %v1221
    %v1248 = vpack.c.b16 %v1226, %v1224
    %v1249 = vpack.c.b16 %v1227, %v1225
    %v1250 = vpack.c.b16 %v1230, %v1228
    %v1251 = vpack.c.b16 %v1231, %v1229
    %v1252 = vpack.c.b16 %v1234, %v1232
    %v1253 = vpack.c.b16 %v1235, %v1233
    %v1254 = vpack.c.b16 %v1238, %v1236
    %v1255 = vpack.c.b16 %v1239, %v1237
    %1272 = vmatpush.bf16.msra.mxu0 %v1254
    %1273 = vmatpush.bf16.msra.mxu0 %v1252
    %1274 = vmatpush.bf16.msra.mxu0 %v1250
    %1275 = vmatpush.bf16.msra.mxu0 %v1248
    %1276 = vmatpush.bf16.msra.mxu0 %v1246
    %1277 = vmatpush.bf16.msra.mxu0 %v1244
    %1278 = vmatpush.bf16.msra.mxu0 %v1242
    %1279 = vmatpush.bf16.msra.mxu0 %v1240
    %1280 = vmatmul.bf16.gmra.mxu0 %v1190
    %v1281 = vpop.f32.mrf.mxu0
    %v1282 = vadd.f32 0.0, %v1281
    %v1283 = vpop.f32.mrf.mxu0
    %1284 = vdwg.mxu0
    %1285 = vmatpush.bf16.msra.mxu0 %v1255
    %1286 = vmatpush.bf16.msra.mxu0 %v1253
    %1287 = vmatpush.bf16.msra.mxu0 %v1251
    %1288 = vmatpush.bf16.msra.mxu0 %v1249
    %1289 = vmatpush.bf16.msra.mxu0 %v1247
    %1290 = vmatpush.bf16.msra.mxu0 %v1245
    %1291 = vmatpush.bf16.msra.mxu0 %v1243
    %1292 = vmatpush.bf16.msra.mxu0 %v1241
    %1293 = vmatmul.bf16.gmra.mxu0 %v1190
    %v1294 = vpop.f32.mrf.mxu0
    %v1295 = vadd.f32 0.0, %v1294
    %v1296 = vpop.f32.mrf.mxu0
    %1297 = vdwg.mxu0
    %v1298 = vadd.f32 %v1147, %v1282
    %v1299 = vadd.f32 %v1160, %v1295
    %1301 = vrot.lane.b32.xlu0 %v1298, 64
    %v1302 = vpop.permute.xlu0 %1301
    %v1304 = vmax.f32 %v1298, %v1302
    %1306 = vrot.lane.b32.xlu0 %v1299, 64
    %v1307 = vpop.permute.xlu0 %1306
    %v1309 = vmax.f32 %v1299, %v1307
    %v1310 = vmax.f32 %v1304, %v1309
    %v1311 = vld [vmem:[%s2] sm:$0x1]
    %v1313 = vperm.slane %v1311, 0
    %v1315 = vadd.f32 %v1310, %v1313
    %v1316 = vmax.f32 %v1315, 0.0
    %v1317 = vpack.c.bf16 %v1316, %v1316
    %1318 = vst.msk [vmem:[#allocation2 + $0x1] sm:$0x1] %vm462, %v1317
    %v1319 = vld [vmem:[%s0 + $0x1] sm:$0x3]
    %s1320 = scalar_lea.vmem [#allocation3], 128
    %v1321 = vld [vmem:[%s1320] sm:$0xff]
    %v1322 = vld [vmem:[%s1320 + $0x8] sm:$0xff]
    %v1323 = vld [vmem:[%s1320 + $0x10] sm:$0xff]
    %v1324 = vld [vmem:[%s1320 + $0x18] sm:$0xff]
    %v1325 = vld [vmem:[%s1320 + $0x20] sm:$0xff]
    %v1326 = vld [vmem:[%s1320 + $0x28] sm:$0xff]
    %v1327 = vld [vmem:[%s1320 + $0x30] sm:$0xff]
    %v1328 = vld [vmem:[%s1320 + $0x38] sm:$0xff]
    %v1329 = vld [vmem:[%s1320 + $0x40] sm:$0xff]
    %v1330 = vld [vmem:[%s1320 + $0x48] sm:$0xff]
    %v1331 = vld [vmem:[%s1320 + $0x50] sm:$0xff]
    %v1332 = vld [vmem:[%s1320 + $0x58] sm:$0xff]
    %v1333 = vld [vmem:[%s1320 + $0x60] sm:$0xff]
    %v1334 = vld [vmem:[%s1320 + $0x68] sm:$0xff]
    %v1335 = vld [vmem:[%s1320 + $0x70] sm:$0xff]
    %v1336 = vld [vmem:[%s1320 + $0x78] sm:$0xff]
    %v1337 = vld [vmem:[%s0 + $0x3] sm:$0x3]
    %v1338 = vld [vmem:[%s45] sm:$0xff]
    %v1339 = vld [vmem:[%s45 + $0x8] sm:$0xff]
    %v1340 = vld [vmem:[%s45 + $0x10] sm:$0xff]
    %v1341 = vld [vmem:[%s45 + $0x18] sm:$0xff]
    %v1342 = vld [vmem:[%s45 + $0x20] sm:$0xff]
    %v1343 = vld [vmem:[%s45 + $0x28] sm:$0xff]
    %v1344 = vld [vmem:[%s45 + $0x30] sm:$0xff]
    %v1345 = vld [vmem:[%s45 + $0x38] sm:$0xff]
    %v1346 = vld [vmem:[%s45 + $0x40] sm:$0xff]
    %v1347 = vld [vmem:[%s45 + $0x48] sm:$0xff]
    %v1348 = vld [vmem:[%s45 + $0x50] sm:$0xff]
    %v1349 = vld [vmem:[%s45 + $0x58] sm:$0xff]
    %v1350 = vld [vmem:[%s45 + $0x60] sm:$0xff]
    %v1351 = vld [vmem:[%s45 + $0x68] sm:$0xff]
    %v1352 = vld [vmem:[%s45 + $0x70] sm:$0xff]
    %v1353 = vld [vmem:[%s45 + $0x78] sm:$0xff]
    %1355 = vst [vmem:[#allocation1] ss:$9 sm:$0xff] %v1337
    %v1356 = vld [vmem:[#allocation1] sm:$0xff]
    %v1358 = vld [vmem:[#allocation1 + $0x9] sm:$0xff]
    %1360 = vrot.lane.b32.xlu0 %v1356, 64
    %v1361 = vpop.permute.xlu0 %1360
    %1362 = vrot.lane.b32.xlu0 %v1358, 64
    %v1363 = vpop.permute.xlu0 %1362
    %v1364 = vsel %vm333, %v1361, %v1363
    %v1382 = vunpack.c.l.b16 %v1338
    %v1383 = vunpack.c.h.b16 %v1338
    %v1384 = vunpack.c.l.b16 %v1339
    %v1385 = vunpack.c.h.b16 %v1339
    %v1386 = vunpack.c.l.b16 %v1340
    %v1387 = vunpack.c.h.b16 %v1340
    %v1388 = vunpack.c.l.b16 %v1341
    %v1389 = vunpack.c.h.b16 %v1341
    %v1390 = vunpack.c.l.b16 %v1342
    %v1391 = vunpack.c.h.b16 %v1342
    %v1392 = vunpack.c.l.b16 %v1343
    %v1393 = vunpack.c.h.b16 %v1343
    %v1394 = vunpack.c.l.b16 %v1344
    %v1395 = vunpack.c.h.b16 %v1344
    %v1396 = vunpack.c.l.b16 %v1345
    %v1397 = vunpack.c.h.b16 %v1345
    %v1398 = vunpack.c.l.b16 %v1346
    %v1399 = vunpack.c.h.b16 %v1346
    %v1400 = vunpack.c.l.b16 %v1347
    %v1401 = vunpack.c.h.b16 %v1347
    %v1402 = vunpack.c.l.b16 %v1348
    %v1403 = vunpack.c.h.b16 %v1348
    %v1404 = vunpack.c.l.b16 %v1349
    %v1405 = vunpack.c.h.b16 %v1349
    %v1406 = vunpack.c.l.b16 %v1350
    %v1407 = vunpack.c.h.b16 %v1350
    %v1408 = vunpack.c.l.b16 %v1351
    %v1409 = vunpack.c.h.b16 %v1351
    %v1410 = vunpack.c.l.b16 %v1352
    %v1411 = vunpack.c.h.b16 %v1352
    %v1412 = vunpack.c.l.b16 %v1353
    %v1413 = vunpack.c.h.b16 %v1353
    %v1414 = vpack.c.b16 %v1384, %v1382
    %v1415 = vpack.c.b16 %v1385, %v1383
    %v1416 = vpack.c.b16 %v1388, %v1386
    %v1417 = vpack.c.b16 %v1389, %v1387
    %v1418 = vpack.c.b16 %v1392, %v1390
    %v1419 = vpack.c.b16 %v1393, %v1391
    %v1420 = vpack.c.b16 %v1396, %v1394
    %v1421 = vpack.c.b16 %v1397, %v1395
    %v1422 = vpack.c.b16 %v1400, %v1398
    %v1423 = vpack.c.b16 %v1401, %v1399
    %v1424 = vpack.c.b16 %v1404, %v1402
    %v1425 = vpack.c.b16 %v1405, %v1403
    %v1426 = vpack.c.b16 %v1408, %v1406
    %v1427 = vpack.c.b16 %v1409, %v1407
    %v1428 = vpack.c.b16 %v1412, %v1410
    %v1429 = vpack.c.b16 %v1413, %v1411
    %1446 = vmatpush.bf16.msra.mxu0 %v1428
    %1447 = vmatpush.bf16.msra.mxu0 %v1426
    %1448 = vmatpush.bf16.msra.mxu0 %v1424
    %1449 = vmatpush.bf16.msra.mxu0 %v1422
    %1450 = vmatpush.bf16.msra.mxu0 %v1420
    %1451 = vmatpush.bf16.msra.mxu0 %v1418
    %1452 = vmatpush.bf16.msra.mxu0 %v1416
    %1453 = vmatpush.bf16.msra.mxu0 %v1414
    %1454 = vmatmul.bf16.gmra.mxu0 %v1364
    %v1455 = vpop.f32.mrf.mxu0
    %v1456 = vadd.f32 0.0, %v1455
    %v1457 = vpop.f32.mrf.mxu0
    %1458 = vdwg.mxu0
    %1459 = vmatpush.bf16.msra.mxu0 %v1429
    %1460 = vmatpush.bf16.msra.mxu0 %v1427
    %1461 = vmatpush.bf16.msra.mxu0 %v1425
    %1462 = vmatpush.bf16.msra.mxu0 %v1423
    %1463 = vmatpush.bf16.msra.mxu0 %v1421
    %1464 = vmatpush.bf16.msra.mxu0 %v1419
    %1465 = vmatpush.bf16.msra.mxu0 %v1417
    %1466 = vmatpush.bf16.msra.mxu0 %v1415
    %1467 = vmatmul.bf16.gmra.mxu0 %v1364
    %v1468 = vpop.f32.mrf.mxu0
    %v1469 = vadd.f32 0.0, %v1468
    %v1470 = vpop.f32.mrf.mxu0
    %1471 = vdwg.mxu0
    %1473 = vst [vmem:[#allocation1] ss:$9 sm:$0xff] %v1319
    %v1474 = vld [vmem:[#allocation1] sm:$0xff]
    %v1476 = vld [vmem:[#allocation1 + $0x9] sm:$0xff]
    %1478 = vrot.lane.b32.xlu0 %v1474, 32
    %v1479 = vpop.permute.xlu0 %1478
    %1480 = vrot.lane.b32.xlu0 %v1476, 32
    %v1481 = vpop.permute.xlu0 %1480
    %v1482 = vsel %vm90, %v1479, %v1481
    %v1500 = vunpack.c.l.b16 %v1321
    %v1501 = vunpack.c.h.b16 %v1321
    %v1502 = vunpack.c.l.b16 %v1322
    %v1503 = vunpack.c.h.b16 %v1322
    %v1504 = vunpack.c.l.b16 %v1323
    %v1505 = vunpack.c.h.b16 %v1323
    %v1506 = vunpack.c.l.b16 %v1324
    %v1507 = vunpack.c.h.b16 %v1324
    %v1508 = vunpack.c.l.b16 %v1325
    %v1509 = vunpack.c.h.b16 %v1325
    %v1510 = vunpack.c.l.b16 %v1326
    %v1511 = vunpack.c.h.b16 %v1326
    %v1512 = vunpack.c.l.b16 %v1327
    %v1513 = vunpack.c.h.b16 %v1327
    %v1514 = vunpack.c.l.b16 %v1328
    %v1515 = vunpack.c.h.b16 %v1328
    %v1516 = vunpack.c.l.b16 %v1329
    %v1517 = vunpack.c.h.b16 %v1329
    %v1518 = vunpack.c.l.b16 %v1330
    %v1519 = vunpack.c.h.b16 %v1330
    %v1520 = vunpack.c.l.b16 %v1331
    %v1521 = vunpack.c.h.b16 %v1331
    %v1522 = vunpack.c.l.b16 %v1332
    %v1523 = vunpack.c.h.b16 %v1332
    %v1524 = vunpack.c.l.b16 %v1333
    %v1525 = vunpack.c.h.b16 %v1333
    %v1526 = vunpack.c.l.b16 %v1334
    %v1527 = vunpack.c.h.b16 %v1334
    %v1528 = vunpack.c.l.b16 %v1335
    %v1529 = vunpack.c.h.b16 %v1335
    %v1530 = vunpack.c.l.b16 %v1336
    %v1531 = vunpack.c.h.b16 %v1336
    %v1532 = vpack.c.b16 %v1502, %v1500
    %v1533 = vpack.c.b16 %v1503, %v1501
    %v1534 = vpack.c.b16 %v1506, %v1504
    %v1535 = vpack.c.b16 %v1507, %v1505
    %v1536 = vpack.c.b16 %v1510, %v1508
    %v1537 = vpack.c.b16 %v1511, %v1509
    %v1538 = vpack.c.b16 %v1514, %v1512
    %v1539 = vpack.c.b16 %v1515, %v1513
    %v1540 = vpack.c.b16 %v1518, %v1516
    %v1541 = vpack.c.b16 %v1519, %v1517
    %v1542 = vpack.c.b16 %v1522, %v1520
    %v1543 = vpack.c.b16 %v1523, %v1521
    %v1544 = vpack.c.b16 %v1526, %v1524
    %v1545 = vpack.c.b16 %v1527, %v1525
    %v1546 = vpack.c.b16 %v1530, %v1528
    %v1547 = vpack.c.b16 %v1531, %v1529
    %1564 = vmatpush.bf16.msra.mxu0 %v1546
    %1565 = vmatpush.bf16.msra.mxu0 %v1544
    %1566 = vmatpush.bf16.msra.mxu0 %v1542
    %1567 = vmatpush.bf16.msra.mxu0 %v1540
    %1568 = vmatpush.bf16.msra.mxu0 %v1538
    %1569 = vmatpush.bf16.msra.mxu0 %v1536
    %1570 = vmatpush.bf16.msra.mxu0 %v1534
    %1571 = vmatpush.bf16.msra.mxu0 %v1532
    %1572 = vmatmul.bf16.gmra.mxu0 %v1482
    %v1573 = vpop.f32.mrf.mxu0
    %v1574 = vadd.f32 %v1456, %v1573
    %v1575 = vpop.f32.mrf.mxu0
    %1576 = vdwg.mxu0
    %1577 = vmatpush.bf16.msra.mxu0 %v1547
    %1578 = vmatpush.bf16.msra.mxu0 %v1545
    %1579 = vmatpush.bf16.msra.mxu0 %v1543
    %1580 = vmatpush.bf16.msra.mxu0 %v1541
    %1581 = vmatpush.bf16.msra.mxu0 %v1539
    %1582 = vmatpush.bf16.msra.mxu0 %v1537
    %1583 = vmatpush.bf16.msra.mxu0 %v1535
    %1584 = vmatpush.bf16.msra.mxu0 %v1533
    %1585 = vmatmul.bf16.gmra.mxu0 %v1482
    %v1586 = vpop.f32.mrf.mxu0
    %v1587 = vadd.f32 %v1469, %v1586
    %v1588 = vpop.f32.mrf.mxu0
    %1589 = vdwg.mxu0
    %v1590 = vld [vmem:[%s0 + $0x5] sm:$0x3]
    %v1591 = vld [vmem:[%s63] sm:$0xff]
    %v1592 = vld [vmem:[%s63 + $0x8] sm:$0xff]
    %v1593 = vld [vmem:[%s63 + $0x10] sm:$0xff]
    %v1594 = vld [vmem:[%s63 + $0x18] sm:$0xff]
    %v1595 = vld [vmem:[%s63 + $0x20] sm:$0xff]
    %v1596 = vld [vmem:[%s63 + $0x28] sm:$0xff]
    %v1597 = vld [vmem:[%s63 + $0x30] sm:$0xff]
    %v1598 = vld [vmem:[%s63 + $0x38] sm:$0xff]
    %v1599 = vld [vmem:[%s63 + $0x40] sm:$0xff]
    %v1600 = vld [vmem:[%s63 + $0x48] sm:$0xff]
    %v1601 = vld [vmem:[%s63 + $0x50] sm:$0xff]
    %v1602 = vld [vmem:[%s63 + $0x58] sm:$0xff]
    %v1603 = vld [vmem:[%s63 + $0x60] sm:$0xff]
    %v1604 = vld [vmem:[%s63 + $0x68] sm:$0xff]
    %v1605 = vld [vmem:[%s63 + $0x70] sm:$0xff]
    %v1606 = vld [vmem:[%s63 + $0x78] sm:$0xff]
    %1608 = vst [vmem:[#allocation1] ss:$9 sm:$0xff] %v1590
    %v1609 = vld [vmem:[#allocation1] sm:$0xff]
    %v1611 = vld [vmem:[#allocation1 + $0x9] sm:$0xff]
    %1613 = vrot.lane.b32.xlu0 %v1609, 96
    %v1614 = vpop.permute.xlu0 %1613
    %1615 = vrot.lane.b32.xlu0 %v1611, 96
    %v1616 = vpop.permute.xlu0 %1615
    %v1617 = vsel %vm616, %v1614, %v1616
    %v1635 = vunpack.c.l.b16 %v1591
    %v1636 = vunpack.c.h.b16 %v1591
    %v1637 = vunpack.c.l.b16 %v1592
    %v1638 = vunpack.c.h.b16 %v1592
    %v1639 = vunpack.c.l.b16 %v1593
    %v1640 = vunpack.c.h.b16 %v1593
    %v1641 = vunpack.c.l.b16 %v1594
    %v1642 = vunpack.c.h.b16 %v1594
    %v1643 = vunpack.c.l.b16 %v1595
    %v1644 = vunpack.c.h.b16 %v1595
    %v1645 = vunpack.c.l.b16 %v1596
    %v1646 = vunpack.c.h.b16 %v1596
    %v1647 = vunpack.c.l.b16 %v1597
    %v1648 = vunpack.c.h.b16 %v1597
    %v1649 = vunpack.c.l.b16 %v1598
    %v1650 = vunpack.c.h.b16 %v1598
    %v1651 = vunpack.c.l.b16 %v1599
    %v1652 = vunpack.c.h.b16 %v1599
    %v1653 = vunpack.c.l.b16 %v1600
    %v1654 = vunpack.c.h.b16 %v1600
    %v1655 = vunpack.c.l.b16 %v1601
    %v1656 = vunpack.c.h.b16 %v1601
    %v1657 = vunpack.c.l.b16 %v1602
    %v1658 = vunpack.c.h.b16 %v1602
    %v1659 = vunpack.c.l.b16 %v1603
    %v1660 = vunpack.c.h.b16 %v1603
    %v1661 = vunpack.c.l.b16 %v1604
    %v1662 = vunpack.c.h.b16 %v1604
    %v1663 = vunpack.c.l.b16 %v1605
    %v1664 = vunpack.c.h.b16 %v1605
    %v1665 = vunpack.c.l.b16 %v1606
    %v1666 = vunpack.c.h.b16 %v1606
    %v1667 = vpack.c.b16 %v1637, %v1635
    %v1668 = vpack.c.b16 %v1638, %v1636
    %v1669 = vpack.c.b16 %v1641, %v1639
    %v1670 = vpack.c.b16 %v1642, %v1640
    %v1671 = vpack.c.b16 %v1645, %v1643
    %v1672 = vpack.c.b16 %v1646, %v1644
    %v1673 = vpack.c.b16 %v1649, %v1647
    %v1674 = vpack.c.b16 %v1650, %v1648
    %v1675 = vpack.c.b16 %v1653, %v1651
    %v1676 = vpack.c.b16 %v1654, %v1652
    %v1677 = vpack.c.b16 %v1657, %v1655
    %v1678 = vpack.c.b16 %v1658, %v1656
    %v1679 = vpack.c.b16 %v1661, %v1659
    %v1680 = vpack.c.b16 %v1662, %v1660
    %v1681 = vpack.c.b16 %v1665, %v1663
    %v1682 = vpack.c.b16 %v1666, %v1664
    %1699 = vmatpush.bf16.msra.mxu0 %v1681
    %1700 = vmatpush.bf16.msra.mxu0 %v1679
    %1701 = vmatpush.bf16.msra.mxu0 %v1677
    %1702 = vmatpush.bf16.msra.mxu0 %v1675
    %1703 = vmatpush.bf16.msra.mxu0 %v1673
    %1704 = vmatpush.bf16.msra.mxu0 %v1671
    %1705 = vmatpush.bf16.msra.mxu0 %v1669
    %1706 = vmatpush.bf16.msra.mxu0 %v1667
    %1707 = vmatmul.bf16.gmra.mxu0 %v1617
    %v1708 = vpop.f32.mrf.mxu0
    %v1709 = vadd.f32 0.0, %v1708
    %v1710 = vpop.f32.mrf.mxu0
    %1711 = vdwg.mxu0
    %1712 = vmatpush.bf16.msra.mxu0 %v1682
    %1713 = vmatpush.bf16.msra.mxu0 %v1680
    %1714 = vmatpush.bf16.msra.mxu0 %v1678
    %1715 = vmatpush.bf16.msra.mxu0 %v1676
    %1716 = vmatpush.bf16.msra.mxu0 %v1674
    %1717 = vmatpush.bf16.msra.mxu0 %v1672
    %1718 = vmatpush.bf16.msra.mxu0 %v1670
    %1719 = vmatpush.bf16.msra.mxu0 %v1668
    %1720 = vmatmul.bf16.gmra.mxu0 %v1617
    %v1721 = vpop.f32.mrf.mxu0
    %v1722 = vadd.f32 0.0, %v1721
    %v1723 = vpop.f32.mrf.mxu0
    %1724 = vdwg.mxu0
    %v1725 = vadd.f32 %v1574, %v1709
    %v1726 = vadd.f32 %v1587, %v1722
    %v1727 = vld [vmem:[%s0 + $0x7] sm:$0x1]
    %v1728 = vld [vmem:[%s306] sm:$0xff]
    %v1729 = vld [vmem:[%s306 + $0x8] sm:$0xff]
    %v1730 = vld [vmem:[%s306 + $0x10] sm:$0xff]
    %v1731 = vld [vmem:[%s306 + $0x18] sm:$0xff]
    %v1732 = vld [vmem:[%s306 + $0x20] sm:$0xff]
    %v1733 = vld [vmem:[%s306 + $0x28] sm:$0xff]
    %v1734 = vld [vmem:[%s306 + $0x30] sm:$0xff]
    %v1735 = vld [vmem:[%s306 + $0x38] sm:$0xff]
    %v1736 = vld [vmem:[%s306 + $0x40] sm:$0xff]
    %v1737 = vld [vmem:[%s306 + $0x48] sm:$0xff]
    %v1738 = vld [vmem:[%s306 + $0x50] sm:$0xff]
    %v1739 = vld [vmem:[%s306 + $0x58] sm:$0xff]
    %v1740 = vld [vmem:[%s306 + $0x60] sm:$0xff]
    %v1741 = vld [vmem:[%s306 + $0x68] sm:$0xff]
    %v1742 = vld [vmem:[%s306 + $0x70] sm:$0xff]
    %v1743 = vld [vmem:[%s306 + $0x78] sm:$0xff]
    %v1760 = vunpack.c.l.b16 %v1728
    %v1761 = vunpack.c.h.b16 %v1728
    %v1762 = vunpack.c.l.b16 %v1729
    %v1763 = vunpack.c.h.b16 %v1729
    %v1764 = vunpack.c.l.b16 %v1730
    %v1765 = vunpack.c.h.b16 %v1730
    %v1766 = vunpack.c.l.b16 %v1731
    %v1767 = vunpack.c.h.b16 %v1731
    %v1768 = vunpack.c.l.b16 %v1732
    %v1769 = vunpack.c.h.b16 %v1732
    %v1770 = vunpack.c.l.b16 %v1733
    %v1771 = vunpack.c.h.b16 %v1733
    %v1772 = vunpack.c.l.b16 %v1734
    %v1773 = vunpack.c.h.b16 %v1734
    %v1774 = vunpack.c.l.b16 %v1735
    %v1775 = vunpack.c.h.b16 %v1735
    %v1776 = vunpack.c.l.b16 %v1736
    %v1777 = vunpack.c.h.b16 %v1736
    %v1778 = vunpack.c.l.b16 %v1737
    %v1779 = vunpack.c.h.b16 %v1737
    %v1780 = vunpack.c.l.b16 %v1738
    %v1781 = vunpack.c.h.b16 %v1738
    %v1782 = vunpack.c.l.b16 %v1739
    %v1783 = vunpack.c.h.b16 %v1739
    %v1784 = vunpack.c.l.b16 %v1740
    %v1785 = vunpack.c.h.b16 %v1740
    %v1786 = vunpack.c.l.b16 %v1741
    %v1787 = vunpack.c.h.b16 %v1741
    %v1788 = vunpack.c.l.b16 %v1742
    %v1789 = vunpack.c.h.b16 %v1742
    %v1790 = vunpack.c.l.b16 %v1743
    %v1791 = vunpack.c.h.b16 %v1743
    %v1792 = vpack.c.b16 %v1762, %v1760
    %v1793 = vpack.c.b16 %v1763, %v1761
    %v1794 = vpack.c.b16 %v1766, %v1764
    %v1795 = vpack.c.b16 %v1767, %v1765
    %v1796 = vpack.c.b16 %v1770, %v1768
    %v1797 = vpack.c.b16 %v1771, %v1769
    %v1798 = vpack.c.b16 %v1774, %v1772
    %v1799 = vpack.c.b16 %v1775, %v1773
    %v1800 = vpack.c.b16 %v1778, %v1776
    %v1801 = vpack.c.b16 %v1779, %v1777
    %v1802 = vpack.c.b16 %v1782, %v1780
    %v1803 = vpack.c.b16 %v1783, %v1781
    %v1804 = vpack.c.b16 %v1786, %v1784
    %v1805 = vpack.c.b16 %v1787, %v1785
    %v1806 = vpack.c.b16 %v1790, %v1788
    %v1807 = vpack.c.b16 %v1791, %v1789
    %1824 = vmatpush.bf16.msra.mxu0 %v1806
    %1825 = vmatpush.bf16.msra.mxu0 %v1804
    %1826 = vmatpush.bf16.msra.mxu0 %v1802
    %1827 = vmatpush.bf16.msra.mxu0 %v1800
    %1828 = vmatpush.bf16.msra.mxu0 %v1798
    %1829 = vmatpush.bf16.msra.mxu0 %v1796
    %1830 = vmatpush.bf16.msra.mxu0 %v1794
    %1831 = vmatpush.bf16.msra.mxu0 %v1792
    %1832 = vmatmul.bf16.gmra.mxu0 %v1727
    %v1833 = vpop.f32.mrf.mxu0
    %v1834 = vadd.f32 0.0, %v1833
    %v1835 = vpop.f32.mrf.mxu0
    %1836 = vdwg.mxu0
    %1837 = vmatpush.bf16.msra.mxu0 %v1807
    %1838 = vmatpush.bf16.msra.mxu0 %v1805
    %1839 = vmatpush.bf16.msra.mxu0 %v1803
    %1840 = vmatpush.bf16.msra.mxu0 %v1801
    %1841 = vmatpush.bf16.msra.mxu0 %v1799
    %1842 = vmatpush.bf16.msra.mxu0 %v1797
    %1843 = vmatpush.bf16.msra.mxu0 %v1795
    %1844 = vmatpush.bf16.msra.mxu0 %v1793
    %1845 = vmatmul.bf16.gmra.mxu0 %v1727
    %v1846 = vpop.f32.mrf.mxu0
    %v1847 = vadd.f32 0.0, %v1846
    %v1848 = vpop.f32.mrf.mxu0
    %1849 = vdwg.mxu0
    %v1850 = vadd.f32 %v1725, %v1834
    %v1851 = vadd.f32 %v1726, %v1847
    %1853 = vrot.lane.b32.xlu0 %v1850, 64
    %v1854 = vpop.permute.xlu0 %1853
    %v1856 = vmax.f32 %v1850, %v1854
    %1858 = vrot.lane.b32.xlu0 %v1851, 64
    %v1859 = vpop.permute.xlu0 %1858
    %v1861 = vmax.f32 %v1851, %v1859
    %v1862 = vmax.f32 %v1856, %v1861
    %v1863 = vld [vmem:[%s2] sm:$0x1]
    %v1865 = vperm.slane %v1863, 0
    %v1867 = vadd.f32 %v1862, %v1865
    %v1868 = vmax.f32 %v1867, 0.0
    %v1869 = vpack.c.bf16 %v1868, %v1868
    %v1871 = vrot.slane %v1869, 3
    %v1874 = vsel %vm883, %v1869, %v1871
    %1876 = vrot.lane.b32.xlu0 %v1874, 64
    %v1877 = vpop.permute.xlu0 %1876
    %1879 = vst.msk [vmem:[#allocation2 + $0x1] sm:$0x1] %vm891, %v1877
    %v1880 = vld [vmem:[%s0 + $0x2] sm:$0x1]
    %v1881 = vld [vmem:[#allocation3] sm:$0xff]
    %v1882 = vld [vmem:[#allocation3 + $0x8] sm:$0xff]
    %v1883 = vld [vmem:[#allocation3 + $0x10] sm:$0xff]
    %v1884 = vld [vmem:[#allocation3 + $0x18] sm:$0xff]
    %v1885 = vld [vmem:[#allocation3 + $0x20] sm:$0xff]
    %v1886 = vld [vmem:[#allocation3 + $0x28] sm:$0xff]
    %v1887 = vld [vmem:[#allocation3 + $0x30] sm:$0xff]
    %v1888 = vld [vmem:[#allocation3 + $0x38] sm:$0xff]
    %v1889 = vld [vmem:[#allocation3 + $0x40] sm:$0xff]
    %v1890 = vld [vmem:[#allocation3 + $0x48] sm:$0xff]
    %v1891 = vld [vmem:[#allocation3 + $0x50] sm:$0xff]
    %v1892 = vld [vmem:[#allocation3 + $0x58] sm:$0xff]
    %v1893 = vld [vmem:[#allocation3 + $0x60] sm:$0xff]
    %v1894 = vld [vmem:[#allocation3 + $0x68] sm:$0xff]
    %v1895 = vld [vmem:[#allocation3 + $0x70] sm:$0xff]
    %v1896 = vld [vmem:[#allocation3 + $0x78] sm:$0xff]
    %v1897 = vld [vmem:[%s0 + $0x3] sm:$0x3]
    %v1898 = vld [vmem:[%s465] sm:$0xff]
    %v1899 = vld [vmem:[%s465 + $0x8] sm:$0xff]
    %v1900 = vld [vmem:[%s465 + $0x10] sm:$0xff]
    %v1901 = vld [vmem:[%s465 + $0x18] sm:$0xff]
    %v1902 = vld [vmem:[%s465 + $0x20] sm:$0xff]
    %v1903 = vld [vmem:[%s465 + $0x28] sm:$0xff]
    %v1904 = vld [vmem:[%s465 + $0x30] sm:$0xff]
    %v1905 = vld [vmem:[%s465 + $0x38] sm:$0xff]
    %v1906 = vld [vmem:[%s465 + $0x40] sm:$0xff]
    %v1907 = vld [vmem:[%s465 + $0x48] sm:$0xff]
    %v1908 = vld [vmem:[%s465 + $0x50] sm:$0xff]
    %v1909 = vld [vmem:[%s465 + $0x58] sm:$0xff]
    %v1910 = vld [vmem:[%s465 + $0x60] sm:$0xff]
    %v1911 = vld [vmem:[%s465 + $0x68] sm:$0xff]
    %v1912 = vld [vmem:[%s465 + $0x70] sm:$0xff]
    %v1913 = vld [vmem:[%s465 + $0x78] sm:$0xff]
    %1915 = vst [vmem:[#allocation1] ss:$9 sm:$0xff] %v1897
    %v1916 = vld [vmem:[#allocation1] sm:$0xff]
    %v1918 = vld [vmem:[#allocation1 + $0x9] sm:$0xff]
    %1920 = vrot.lane.b32.xlu0 %v1916, 32
    %v1921 = vpop.permute.xlu0 %1920
    %1922 = vrot.lane.b32.xlu0 %v1918, 32
    %v1923 = vpop.permute.xlu0 %1922
    %v1924 = vsel %vm90, %v1921, %v1923
    %v1942 = vunpack.c.l.b16 %v1898
    %v1943 = vunpack.c.h.b16 %v1898
    %v1944 = vunpack.c.l.b16 %v1899
    %v1945 = vunpack.c.h.b16 %v1899
    %v1946 = vunpack.c.l.b16 %v1900
    %v1947 = vunpack.c.h.b16 %v1900
    %v1948 = vunpack.c.l.b16 %v1901
    %v1949 = vunpack.c.h.b16 %v1901
    %v1950 = vunpack.c.l.b16 %v1902
    %v1951 = vunpack.c.h.b16 %v1902
    %v1952 = vunpack.c.l.b16 %v1903
    %v1953 = vunpack.c.h.b16 %v1903
    %v1954 = vunpack.c.l.b16 %v1904
    %v1955 = vunpack.c.h.b16 %v1904
    %v1956 = vunpack.c.l.b16 %v1905
    %v1957 = vunpack.c.h.b16 %v1905
    %v1958 = vunpack.c.l.b16 %v1906
    %v1959 = vunpack.c.h.b16 %v1906
    %v1960 = vunpack.c.l.b16 %v1907
    %v1961 = vunpack.c.h.b16 %v1907
    %v1962 = vunpack.c.l.b16 %v1908
    %v1963 = vunpack.c.h.b16 %v1908
    %v1964 = vunpack.c.l.b16 %v1909
    %v1965 = vunpack.c.h.b16 %v1909
    %v1966 = vunpack.c.l.b16 %v1910
    %v1967 = vunpack.c.h.b16 %v1910
    %v1968 = vunpack.c.l.b16 %v1911
    %v1969 = vunpack.c.h.b16 %v1911
    %v1970 = vunpack.c.l.b16 %v1912
    %v1971 = vunpack.c.h.b16 %v1912
    %v1972 = vunpack.c.l.b16 %v1913
    %v1973 = vunpack.c.h.b16 %v1913
    %v1974 = vpack.c.b16 %v1944, %v1942
    %v1975 = vpack.c.b16 %v1945, %v1943
    %v1976 = vpack.c.b16 %v1948, %v1946
    %v1977 = vpack.c.b16 %v1949, %v1947
    %v1978 = vpack.c.b16 %v1952, %v1950
    %v1979 = vpack.c.b16 %v1953, %v1951
    %v1980 = vpack.c.b16 %v1956, %v1954
    %v1981 = vpack.c.b16 %v1957, %v1955
    %v1982 = vpack.c.b16 %v1960, %v1958
    %v1983 = vpack.c.b16 %v1961, %v1959
    %v1984 = vpack.c.b16 %v1964, %v1962
    %v1985 = vpack.c.b16 %v1965, %v1963
    %v1986 = vpack.c.b16 %v1968, %v1966
    %v1987 = vpack.c.b16 %v1969, %v1967
    %v1988 = vpack.c.b16 %v1972, %v1970
    %v1989 = vpack.c.b16 %v1973, %v1971
    %2006 = vmatpush.bf16.msra.mxu0 %v1988
    %2007 = vmatpush.bf16.msra.mxu0 %v1986
    %2008 = vmatpush.bf16.msra.mxu0 %v1984
    %2009 = vmatpush.bf16.msra.mxu0 %v1982
    %2010 = vmatpush.bf16.msra.mxu0 %v1980
    %2011 = vmatpush.bf16.msra.mxu0 %v1978
    %2012 = vmatpush.bf16.msra.mxu0 %v1976
    %2013 = vmatpush.bf16.msra.mxu0 %v1974
    %2014 = vmatmul.bf16.gmra.mxu0 %v1924
    %v2015 = vpop.f32.mrf.mxu0
    %v2016 = vadd.f32 0.0, %v2015
    %v2017 = vpop.f32.mrf.mxu0
    %2018 = vdwg.mxu0
    %2019 = vmatpush.bf16.msra.mxu0 %v1989
    %2020 = vmatpush.bf16.msra.mxu0 %v1987
    %2021 = vmatpush.bf16.msra.mxu0 %v1985
    %2022 = vmatpush.bf16.msra.mxu0 %v1983
    %2023 = vmatpush.bf16.msra.mxu0 %v1981
    %2024 = vmatpush.bf16.msra.mxu0 %v1979
    %2025 = vmatpush.bf16.msra.mxu0 %v1977
    %2026 = vmatpush.bf16.msra.mxu0 %v1975
    %2027 = vmatmul.bf16.gmra.mxu0 %v1924
    %v2028 = vpop.f32.mrf.mxu0
    %v2029 = vadd.f32 0.0, %v2028
    %v2030 = vpop.f32.mrf.mxu0
    %2031 = vdwg.mxu0
    %v2048 = vunpack.c.l.b16 %v1881
    %v2049 = vunpack.c.h.b16 %v1881
    %v2050 = vunpack.c.l.b16 %v1882
    %v2051 = vunpack.c.h.b16 %v1882
    %v2052 = vunpack.c.l.b16 %v1883
    %v2053 = vunpack.c.h.b16 %v1883
    %v2054 = vunpack.c.l.b16 %v1884
    %v2055 = vunpack.c.h.b16 %v1884
    %v2056 = vunpack.c.l.b16 %v1885
    %v2057 = vunpack.c.h.b16 %v1885
    %v2058 = vunpack.c.l.b16 %v1886
    %v2059 = vunpack.c.h.b16 %v1886
    %v2060 = vunpack.c.l.b16 %v1887
    %v2061 = vunpack.c.h.b16 %v1887
    %v2062 = vunpack.c.l.b16 %v1888
    %v2063 = vunpack.c.h.b16 %v1888
    %v2064 = vunpack.c.l.b16 %v1889
    %v2065 = vunpack.c.h.b16 %v1889
    %v2066 = vunpack.c.l.b16 %v1890
    %v2067 = vunpack.c.h.b16 %v1890
    %v2068 = vunpack.c.l.b16 %v1891
    %v2069 = vunpack.c.h.b16 %v1891
    %v2070 = vunpack.c.l.b16 %v1892
    %v2071 = vunpack.c.h.b16 %v1892
    %v2072 = vunpack.c.l.b16 %v1893
    %v2073 = vunpack.c.h.b16 %v1893
    %v2074 = vunpack.c.l.b16 %v1894
    %v2075 = vunpack.c.h.b16 %v1894
    %v2076 = vunpack.c.l.b16 %v1895
    %v2077 = vunpack.c.h.b16 %v1895
    %v2078 = vunpack.c.l.b16 %v1896
    %v2079 = vunpack.c.h.b16 %v1896
    %v2080 = vpack.c.b16 %v2050, %v2048
    %v2081 = vpack.c.b16 %v2051, %v2049
    %v2082 = vpack.c.b16 %v2054, %v2052
    %v2083 = vpack.c.b16 %v2055, %v2053
    %v2084 = vpack.c.b16 %v2058, %v2056
    %v2085 = vpack.c.b16 %v2059, %v2057
    %v2086 = vpack.c.b16 %v2062, %v2060
    %v2087 = vpack.c.b16 %v2063, %v2061
    %v2088 = vpack.c.b16 %v2066, %v2064
    %v2089 = vpack.c.b16 %v2067, %v2065
    %v2090 = vpack.c.b16 %v2070, %v2068
    %v2091 = vpack.c.b16 %v2071, %v2069
    %v2092 = vpack.c.b16 %v2074, %v2072
    %v2093 = vpack.c.b16 %v2075, %v2073
    %v2094 = vpack.c.b16 %v2078, %v2076
    %v2095 = vpack.c.b16 %v2079, %v2077
    %2112 = vmatpush.bf16.msra.mxu0 %v2094
    %2113 = vmatpush.bf16.msra.mxu0 %v2092
    %2114 = vmatpush.bf16.msra.mxu0 %v2090
    %2115 = vmatpush.bf16.msra.mxu0 %v2088
    %2116 = vmatpush.bf16.msra.mxu0 %v2086
    %2117 = vmatpush.bf16.msra.mxu0 %v2084
    %2118 = vmatpush.bf16.msra.mxu0 %v2082
    %2119 = vmatpush.bf16.msra.mxu0 %v2080
    %2120 = vmatmul.bf16.gmra.mxu0 %v1880
    %v2121 = vpop.f32.mrf.mxu0
    %v2122 = vadd.f32 %v2016, %v2121
    %v2123 = vpop.f32.mrf.mxu0
    %2124 = vdwg.mxu0
    %2125 = vmatpush.bf16.msra.mxu0 %v2095
    %2126 = vmatpush.bf16.msra.mxu0 %v2093
    %2127 = vmatpush.bf16.msra.mxu0 %v2091
    %2128 = vmatpush.bf16.msra.mxu0 %v2089
    %2129 = vmatpush.bf16.msra.mxu0 %v2087
    %2130 = vmatpush.bf16.msra.mxu0 %v2085
    %2131 = vmatpush.bf16.msra.mxu0 %v2083
    %2132 = vmatpush.bf16.msra.mxu0 %v2081
    %2133 = vmatmul.bf16.gmra.mxu0 %v1880
    %v2134 = vpop.f32.mrf.mxu0
    %v2135 = vadd.f32 %v2029, %v2134
    %v2136 = vpop.f32.mrf.mxu0
    %2137 = vdwg.mxu0
    %v2138 = vld [vmem:[%s0 + $0x5] sm:$0x3]
    %v2139 = vld [vmem:[%s483] sm:$0xff]
    %v2140 = vld [vmem:[%s483 + $0x8] sm:$0xff]
    %v2141 = vld [vmem:[%s483 + $0x10] sm:$0xff]
    %v2142 = vld [vmem:[%s483 + $0x18] sm:$0xff]
    %v2143 = vld [vmem:[%s483 + $0x20] sm:$0xff]
    %v2144 = vld [vmem:[%s483 + $0x28] sm:$0xff]
    %v2145 = vld [vmem:[%s483 + $0x30] sm:$0xff]
    %v2146 = vld [vmem:[%s483 + $0x38] sm:$0xff]
    %v2147 = vld [vmem:[%s483 + $0x40] sm:$0xff]
    %v2148 = vld [vmem:[%s483 + $0x48] sm:$0xff]
    %v2149 = vld [vmem:[%s483 + $0x50] sm:$0xff]
    %v2150 = vld [vmem:[%s483 + $0x58] sm:$0xff]
    %v2151 = vld [vmem:[%s483 + $0x60] sm:$0xff]
    %v2152 = vld [vmem:[%s483 + $0x68] sm:$0xff]
    %v2153 = vld [vmem:[%s483 + $0x70] sm:$0xff]
    %v2154 = vld [vmem:[%s483 + $0x78] sm:$0xff]
    %2156 = vst [vmem:[#allocation1] ss:$9 sm:$0xff] %v2138
    %v2157 = vld [vmem:[#allocation1] sm:$0xff]
    %v2159 = vld [vmem:[#allocation1 + $0x9] sm:$0xff]
    %2161 = vrot.lane.b32.xlu0 %v2157, 64
    %v2162 = vpop.permute.xlu0 %2161
    %2163 = vrot.lane.b32.xlu0 %v2159, 64
    %v2164 = vpop.permute.xlu0 %2163
    %v2165 = vsel %vm333, %v2162, %v2164
    %v2183 = vunpack.c.l.b16 %v2139
    %v2184 = vunpack.c.h.b16 %v2139
    %v2185 = vunpack.c.l.b16 %v2140
    %v2186 = vunpack.c.h.b16 %v2140
    %v2187 = vunpack.c.l.b16 %v2141
    %v2188 = vunpack.c.h.b16 %v2141
    %v2189 = vunpack.c.l.b16 %v2142
    %v2190 = vunpack.c.h.b16 %v2142
    %v2191 = vunpack.c.l.b16 %v2143
    %v2192 = vunpack.c.h.b16 %v2143
    %v2193 = vunpack.c.l.b16 %v2144
    %v2194 = vunpack.c.h.b16 %v2144
    %v2195 = vunpack.c.l.b16 %v2145
    %v2196 = vunpack.c.h.b16 %v2145
    %v2197 = vunpack.c.l.b16 %v2146
    %v2198 = vunpack.c.h.b16 %v2146
    %v2199 = vunpack.c.l.b16 %v2147
    %v2200 = vunpack.c.h.b16 %v2147
    %v2201 = vunpack.c.l.b16 %v2148
    %v2202 = vunpack.c.h.b16 %v2148
    %v2203 = vunpack.c.l.b16 %v2149
    %v2204 = vunpack.c.h.b16 %v2149
    %v2205 = vunpack.c.l.b16 %v2150
    %v2206 = vunpack.c.h.b16 %v2150
    %v2207 = vunpack.c.l.b16 %v2151
    %v2208 = vunpack.c.h.b16 %v2151
    %v2209 = vunpack.c.l.b16 %v2152
    %v2210 = vunpack.c.h.b16 %v2152
    %v2211 = vunpack.c.l.b16 %v2153
    %v2212 = vunpack.c.h.b16 %v2153
    %v2213 = vunpack.c.l.b16 %v2154
    %v2214 = vunpack.c.h.b16 %v2154
    %v2215 = vpack.c.b16 %v2185, %v2183
    %v2216 = vpack.c.b16 %v2186, %v2184
    %v2217 = vpack.c.b16 %v2189, %v2187
    %v2218 = vpack.c.b16 %v2190, %v2188
    %v2219 = vpack.c.b16 %v2193, %v2191
    %v2220 = vpack.c.b16 %v2194, %v2192
    %v2221 = vpack.c.b16 %v2197, %v2195
    %v2222 = vpack.c.b16 %v2198, %v2196
    %v2223 = vpack.c.b16 %v2201, %v2199
    %v2224 = vpack.c.b16 %v2202, %v2200
    %v2225 = vpack.c.b16 %v2205, %v2203
    %v2226 = vpack.c.b16 %v2206, %v2204
    %v2227 = vpack.c.b16 %v2209, %v2207
    %v2228 = vpack.c.b16 %v2210, %v2208
    %v2229 = vpack.c.b16 %v2213, %v2211
    %v2230 = vpack.c.b16 %v2214, %v2212
    %2247 = vmatpush.bf16.msra.mxu0 %v2229
    %2248 = vmatpush.bf16.msra.mxu0 %v2227
    %2249 = vmatpush.bf16.msra.mxu0 %v2225
    %2250 = vmatpush.bf16.msra.mxu0 %v2223
    %2251 = vmatpush.bf16.msra.mxu0 %v2221
    %2252 = vmatpush.bf16.msra.mxu0 %v2219
    %2253 = vmatpush.bf16.msra.mxu0 %v2217
    %2254 = vmatpush.bf16.msra.mxu0 %v2215
    %2255 = vmatmul.bf16.gmra.mxu0 %v2165
    %v2256 = vpop.f32.mrf.mxu0
    %v2257 = vadd.f32 0.0, %v2256
    %v2258 = vpop.f32.mrf.mxu0
    %2259 = vdwg.mxu0
    %2260 = vmatpush.bf16.msra.mxu0 %v2230
    %2261 = vmatpush.bf16.msra.mxu0 %v2228
    %2262 = vmatpush.bf16.msra.mxu0 %v2226
    %2263 = vmatpush.bf16.msra.mxu0 %v2224
    %2264 = vmatpush.bf16.msra.mxu0 %v2222
    %2265 = vmatpush.bf16.msra.mxu0 %v2220
    %2266 = vmatpush.bf16.msra.mxu0 %v2218
    %2267 = vmatpush.bf16.msra.mxu0 %v2216
    %2268 = vmatmul.bf16.gmra.mxu0 %v2165
    %v2269 = vpop.f32.mrf.mxu0
    %v2270 = vadd.f32 0.0, %v2269
    %v2271 = vpop.f32.mrf.mxu0
    %2272 = vdwg.mxu0
    %v2273 = vadd.f32 %v2122, %v2257
    %v2274 = vadd.f32 %v2135, %v2270
    %v2275 = vld [vmem:[%s0 + $0x7] sm:$0x3]
    %v2276 = vld [vmem:[%s726] sm:$0xff]
    %v2277 = vld [vmem:[%s726 + $0x8] sm:$0xff]
    %v2278 = vld [vmem:[%s726 + $0x10] sm:$0xff]
    %v2279 = vld [vmem:[%s726 + $0x18] sm:$0xff]
    %v2280 = vld [vmem:[%s726 + $0x20] sm:$0xff]
    %v2281 = vld [vmem:[%s726 + $0x28] sm:$0xff]
    %v2282 = vld [vmem:[%s726 + $0x30] sm:$0xff]
    %v2283 = vld [vmem:[%s726 + $0x38] sm:$0xff]
    %v2284 = vld [vmem:[%s726 + $0x40] sm:$0xff]
    %v2285 = vld [vmem:[%s726 + $0x48] sm:$0xff]
    %v2286 = vld [vmem:[%s726 + $0x50] sm:$0xff]
    %v2287 = vld [vmem:[%s726 + $0x58] sm:$0xff]
    %v2288 = vld [vmem:[%s726 + $0x60] sm:$0xff]
    %v2289 = vld [vmem:[%s726 + $0x68] sm:$0xff]
    %v2290 = vld [vmem:[%s726 + $0x70] sm:$0xff]
    %v2291 = vld [vmem:[%s726 + $0x78] sm:$0xff]
    %2293 = vst [vmem:[#allocation1] ss:$9 sm:$0xff] %v2275
    %v2294 = vld [vmem:[#allocation1] sm:$0xff]
    %v2296 = vld [vmem:[#allocation1 + $0x9] sm:$0xff]
    %2298 = vrot.lane.b32.xlu0 %v2294, 96
    %v2299 = vpop.permute.xlu0 %2298
    %2300 = vrot.lane.b32.xlu0 %v2296, 96
    %v2301 = vpop.permute.xlu0 %2300
    %v2302 = vsel %vm616, %v2299, %v2301
    %v2320 = vunpack.c.l.b16 %v2276
    %v2321 = vunpack.c.h.b16 %v2276
    %v2322 = vunpack.c.l.b16 %v2277
    %v2323 = vunpack.c.h.b16 %v2277
    %v2324 = vunpack.c.l.b16 %v2278
    %v2325 = vunpack.c.h.b16 %v2278
    %v2326 = vunpack.c.l.b16 %v2279
    %v2327 = vunpack.c.h.b16 %v2279
    %v2328 = vunpack.c.l.b16 %v2280
    %v2329 = vunpack.c.h.b16 %v2280
    %v2330 = vunpack.c.l.b16 %v2281
    %v2331 = vunpack.c.h.b16 %v2281
    %v2332 = vunpack.c.l.b16 %v2282
    %v2333 = vunpack.c.h.b16 %v2282
    %v2334 = vunpack.c.l.b16 %v2283
    %v2335 = vunpack.c.h.b16 %v2283
    %v2336 = vunpack.c.l.b16 %v2284
    %v2337 = vunpack.c.h.b16 %v2284
    %v2338 = vunpack.c.l.b16 %v2285
    %v2339 = vunpack.c.h.b16 %v2285
    %v2340 = vunpack.c.l.b16 %v2286
    %v2341 = vunpack.c.h.b16 %v2286
    %v2342 = vunpack.c.l.b16 %v2287
    %v2343 = vunpack.c.h.b16 %v2287
    %v2344 = vunpack.c.l.b16 %v2288
    %v2345 = vunpack.c.h.b16 %v2288
    %v2346 = vunpack.c.l.b16 %v2289
    %v2347 = vunpack.c.h.b16 %v2289
    %v2348 = vunpack.c.l.b16 %v2290
    %v2349 = vunpack.c.h.b16 %v2290
    %v2350 = vunpack.c.l.b16 %v2291
    %v2351 = vunpack.c.h.b16 %v2291
    %v2352 = vpack.c.b16 %v2322, %v2320
    %v2353 = vpack.c.b16 %v2323, %v2321
    %v2354 = vpack.c.b16 %v2326, %v2324
    %v2355 = vpack.c.b16 %v2327, %v2325
    %v2356 = vpack.c.b16 %v2330, %v2328
    %v2357 = vpack.c.b16 %v2331, %v2329
    %v2358 = vpack.c.b16 %v2334, %v2332
    %v2359 = vpack.c.b16 %v2335, %v2333
    %v2360 = vpack.c.b16 %v2338, %v2336
    %v2361 = vpack.c.b16 %v2339, %v2337
    %v2362 = vpack.c.b16 %v2342, %v2340
    %v2363 = vpack.c.b16 %v2343, %v2341
    %v2364 = vpack.c.b16 %v2346, %v2344
    %v2365 = vpack.c.b16 %v2347, %v2345
    %v2366 = vpack.c.b16 %v2350, %v2348
    %v2367 = vpack.c.b16 %v2351, %v2349
    %2384 = vmatpush.bf16.msra.mxu0 %v2366
    %2385 = vmatpush.bf16.msra.mxu0 %v2364
    %2386 = vmatpush.bf16.msra.mxu0 %v2362
    %2387 = vmatpush.bf16.msra.mxu0 %v2360
    %2388 = vmatpush.bf16.msra.mxu0 %v2358
    %2389 = vmatpush.bf16.msra.mxu0 %v2356
    %2390 = vmatpush.bf16.msra.mxu0 %v2354
    %2391 = vmatpush.bf16.msra.mxu0 %v2352
    %2392 = vmatmul.bf16.gmra.mxu0 %v2302
    %v2393 = vpop.f32.mrf.mxu0
    %v2394 = vadd.f32 0.0, %v2393
    %v2395 = vpop.f32.mrf.mxu0
    %2396 = vdwg.mxu0
    %2397 = vmatpush.bf16.msra.mxu0 %v2367
    %2398 = vmatpush.bf16.msra.mxu0 %v2365
    %2399 = vmatpush.bf16.msra.mxu0 %v2363
    %2400 = vmatpush.bf16.msra.mxu0 %v2361
    %2401 = vmatpush.bf16.msra.mxu0 %v2359
    %2402 = vmatpush.bf16.msra.mxu0 %v2357
    %2403 = vmatpush.bf16.msra.mxu0 %v2355
    %2404 = vmatpush.bf16.msra.mxu0 %v2353
    %2405 = vmatmul.bf16.gmra.mxu0 %v2302
    %v2406 = vpop.f32.mrf.mxu0
    %v2407 = vadd.f32 0.0, %v2406
    %v2408 = vpop.f32.mrf.mxu0
    %2409 = vdwg.mxu0
    %v2410 = vadd.f32 %v2273, %v2394
    %v2411 = vadd.f32 %v2274, %v2407
    %2413 = vrot.lane.b32.xlu0 %v2410, 64
    %v2414 = vpop.permute.xlu0 %2413
    %v2416 = vmax.f32 %v2410, %v2414
    %2418 = vrot.lane.b32.xlu0 %v2411, 64
    %v2419 = vpop.permute.xlu0 %2418
    %v2421 = vmax.f32 %v2411, %v2419
    %v2422 = vmax.f32 %v2416, %v2421
    %v2423 = vld [vmem:[%s2] sm:$0x1]
    %v2425 = vperm.slane %v2423, 0
    %v2427 = vadd.f32 %v2422, %v2425
    %v2428 = vmax.f32 %v2427, 0.0
    %v2429 = vpack.c.bf16 %v2428, %v2428
    %2430 = vst.msk [vmem:[#allocation2 + $0x2] sm:$0x1] %vm462, %v2429
    %v2431 = vld [vmem:[%s0 + $0x2] sm:$0x3]
    %v2432 = vld [vmem:[#allocation3] sm:$0xff]
    %v2433 = vld [vmem:[#allocation3 + $0x8] sm:$0xff]
    %v2434 = vld [vmem:[#allocation3 + $0x10] sm:$0xff]
    %v2435 = vld [vmem:[#allocation3 + $0x18] sm:$0xff]
    %v2436 = vld [vmem:[#allocation3 + $0x20] sm:$0xff]
    %v2437 = vld [vmem:[#allocation3 + $0x28] sm:$0xff]
    %v2438 = vld [vmem:[#allocation3 + $0x30] sm:$0xff]
    %v2439 = vld [vmem:[#allocation3 + $0x38] sm:$0xff]
    %v2440 = vld [vmem:[#allocation3 + $0x40] sm:$0xff]
    %v2441 = vld [vmem:[#allocation3 + $0x48] sm:$0xff]
    %v2442 = vld [vmem:[#allocation3 + $0x50] sm:$0xff]
    %v2443 = vld [vmem:[#allocation3 + $0x58] sm:$0xff]
    %v2444 = vld [vmem:[#allocation3 + $0x60] sm:$0xff]
    %v2445 = vld [vmem:[#allocation3 + $0x68] sm:$0xff]
    %v2446 = vld [vmem:[#allocation3 + $0x70] sm:$0xff]
    %v2447 = vld [vmem:[#allocation3 + $0x78] sm:$0xff]
    %v2448 = vld [vmem:[%s0 + $0x4] sm:$0x3]
    %v2449 = vld [vmem:[%s465] sm:$0xff]
    %v2450 = vld [vmem:[%s465 + $0x8] sm:$0xff]
    %v2451 = vld [vmem:[%s465 + $0x10] sm:$0xff]
    %v2452 = vld [vmem:[%s465 + $0x18] sm:$0xff]
    %v2453 = vld [vmem:[%s465 + $0x20] sm:$0xff]
    %v2454 = vld [vmem:[%s465 + $0x28] sm:$0xff]
    %v2455 = vld [vmem:[%s465 + $0x30] sm:$0xff]
    %v2456 = vld [vmem:[%s465 + $0x38] sm:$0xff]
    %v2457 = vld [vmem:[%s465 + $0x40] sm:$0xff]
    %v2458 = vld [vmem:[%s465 + $0x48] sm:$0xff]
    %v2459 = vld [vmem:[%s465 + $0x50] sm:$0xff]
    %v2460 = vld [vmem:[%s465 + $0x58] sm:$0xff]
    %v2461 = vld [vmem:[%s465 + $0x60] sm:$0xff]
    %v2462 = vld [vmem:[%s465 + $0x68] sm:$0xff]
    %v2463 = vld [vmem:[%s465 + $0x70] sm:$0xff]
    %v2464 = vld [vmem:[%s465 + $0x78] sm:$0xff]
    %2466 = vst [vmem:[#allocation1] ss:$9 sm:$0xff] %v2448
    %v2467 = vld [vmem:[#allocation1] sm:$0xff]
    %v2469 = vld [vmem:[#allocation1 + $0x9] sm:$0xff]
    %2471 = vrot.lane.b32.xlu0 %v2467, 96
    %v2472 = vpop.permute.xlu0 %2471
    %2473 = vrot.lane.b32.xlu0 %v2469, 96
    %v2474 = vpop.permute.xlu0 %2473
    %v2475 = vsel %vm616, %v2472, %v2474
    %v2493 = vunpack.c.l.b16 %v2449
    %v2494 = vunpack.c.h.b16 %v2449
    %v2495 = vunpack.c.l.b16 %v2450
    %v2496 = vunpack.c.h.b16 %v2450
    %v2497 = vunpack.c.l.b16 %v2451
    %v2498 = vunpack.c.h.b16 %v2451
    %v2499 = vunpack.c.l.b16 %v2452
    %v2500 = vunpack.c.h.b16 %v2452
    %v2501 = vunpack.c.l.b16 %v2453
    %v2502 = vunpack.c.h.b16 %v2453
    %v2503 = vunpack.c.l.b16 %v2454
    %v2504 = vunpack.c.h.b16 %v2454
    %v2505 = vunpack.c.l.b16 %v2455
    %v2506 = vunpack.c.h.b16 %v2455
    %v2507 = vunpack.c.l.b16 %v2456
    %v2508 = vunpack.c.h.b16 %v2456
    %v2509 = vunpack.c.l.b16 %v2457
    %v2510 = vunpack.c.h.b16 %v2457
    %v2511 = vunpack.c.l.b16 %v2458
    %v2512 = vunpack.c.h.b16 %v2458
    %v2513 = vunpack.c.l.b16 %v2459
    %v2514 = vunpack.c.h.b16 %v2459
    %v2515 = vunpack.c.l.b16 %v2460
    %v2516 = vunpack.c.h.b16 %v2460
    %v2517 = vunpack.c.l.b16 %v2461
    %v2518 = vunpack.c.h.b16 %v2461
    %v2519 = vunpack.c.l.b16 %v2462
    %v2520 = vunpack.c.h.b16 %v2462
    %v2521 = vunpack.c.l.b16 %v2463
    %v2522 = vunpack.c.h.b16 %v2463
    %v2523 = vunpack.c.l.b16 %v2464
    %v2524 = vunpack.c.h.b16 %v2464
    %v2525 = vpack.c.b16 %v2495, %v2493
    %v2526 = vpack.c.b16 %v2496, %v2494
    %v2527 = vpack.c.b16 %v2499, %v2497
    %v2528 = vpack.c.b16 %v2500, %v2498
    %v2529 = vpack.c.b16 %v2503, %v2501
    %v2530 = vpack.c.b16 %v2504, %v2502
    %v2531 = vpack.c.b16 %v2507, %v2505
    %v2532 = vpack.c.b16 %v2508, %v2506
    %v2533 = vpack.c.b16 %v2511, %v2509
    %v2534 = vpack.c.b16 %v2512, %v2510
    %v2535 = vpack.c.b16 %v2515, %v2513
    %v2536 = vpack.c.b16 %v2516, %v2514
    %v2537 = vpack.c.b16 %v2519, %v2517
    %v2538 = vpack.c.b16 %v2520, %v2518
    %v2539 = vpack.c.b16 %v2523, %v2521
    %v2540 = vpack.c.b16 %v2524, %v2522
    %2557 = vmatpush.bf16.msra.mxu0 %v2539
    %2558 = vmatpush.bf16.msra.mxu0 %v2537
    %2559 = vmatpush.bf16.msra.mxu0 %v2535
    %2560 = vmatpush.bf16.msra.mxu0 %v2533
    %2561 = vmatpush.bf16.msra.mxu0 %v2531
    %2562 = vmatpush.bf16.msra.mxu0 %v2529
    %2563 = vmatpush.bf16.msra.mxu0 %v2527
    %2564 = vmatpush.bf16.msra.mxu0 %v2525
    %2565 = vmatmul.bf16.gmra.mxu0 %v2475
    %v2566 = vpop.f32.mrf.mxu0
    %v2567 = vadd.f32 0.0, %v2566
    %v2568 = vpop.f32.mrf.mxu0
    %2569 = vdwg.mxu0
    %2570 = vmatpush.bf16.msra.mxu0 %v2540
    %2571 = vmatpush.bf16.msra.mxu0 %v2538
    %2572 = vmatpush.bf16.msra.mxu0 %v2536
    %2573 = vmatpush.bf16.msra.mxu0 %v2534
    %2574 = vmatpush.bf16.msra.mxu0 %v2532
    %2575 = vmatpush.bf16.msra.mxu0 %v2530
    %2576 = vmatpush.bf16.msra.mxu0 %v2528
    %2577 = vmatpush.bf16.msra.mxu0 %v2526
    %2578 = vmatmul.bf16.gmra.mxu0 %v2475
    %v2579 = vpop.f32.mrf.mxu0
    %v2580 = vadd.f32 0.0, %v2579
    %v2581 = vpop.f32.mrf.mxu0
    %2582 = vdwg.mxu0
    %2584 = vst [vmem:[#allocation1] ss:$9 sm:$0xff] %v2431
    %v2585 = vld [vmem:[#allocation1] sm:$0xff]
    %v2587 = vld [vmem:[#allocation1 + $0x9] sm:$0xff]
    %2589 = vrot.lane.b32.xlu0 %v2585, 64
    %v2590 = vpop.permute.xlu0 %2589
    %2591 = vrot.lane.b32.xlu0 %v2587, 64
    %v2592 = vpop.permute.xlu0 %2591
    %v2593 = vsel %vm333, %v2590, %v2592
    %v2611 = vunpack.c.l.b16 %v2432
    %v2612 = vunpack.c.h.b16 %v2432
    %v2613 = vunpack.c.l.b16 %v2433
    %v2614 = vunpack.c.h.b16 %v2433
    %v2615 = vunpack.c.l.b16 %v2434
    %v2616 = vunpack.c.h.b16 %v2434
    %v2617 = vunpack.c.l.b16 %v2435
    %v2618 = vunpack.c.h.b16 %v2435
    %v2619 = vunpack.c.l.b16 %v2436
    %v2620 = vunpack.c.h.b16 %v2436
    %v2621 = vunpack.c.l.b16 %v2437
    %v2622 = vunpack.c.h.b16 %v2437
    %v2623 = vunpack.c.l.b16 %v2438
    %v2624 = vunpack.c.h.b16 %v2438
    %v2625 = vunpack.c.l.b16 %v2439
    %v2626 = vunpack.c.h.b16 %v2439
    %v2627 = vunpack.c.l.b16 %v2440
    %v2628 = vunpack.c.h.b16 %v2440
    %v2629 = vunpack.c.l.b16 %v2441
    %v2630 = vunpack.c.h.b16 %v2441
    %v2631 = vunpack.c.l.b16 %v2442
    %v2632 = vunpack.c.h.b16 %v2442
    %v2633 = vunpack.c.l.b16 %v2443
    %v2634 = vunpack.c.h.b16 %v2443
    %v2635 = vunpack.c.l.b16 %v2444
    %v2636 = vunpack.c.h.b16 %v2444
    %v2637 = vunpack.c.l.b16 %v2445
    %v2638 = vunpack.c.h.b16 %v2445
    %v2639 = vunpack.c.l.b16 %v2446
    %v2640 = vunpack.c.h.b16 %v2446
    %v2641 = vunpack.c.l.b16 %v2447
    %v2642 = vunpack.c.h.b16 %v2447
    %v2643 = vpack.c.b16 %v2613, %v2611
    %v2644 = vpack.c.b16 %v2614, %v2612
    %v2645 = vpack.c.b16 %v2617, %v2615
    %v2646 = vpack.c.b16 %v2618, %v2616
    %v2647 = vpack.c.b16 %v2621, %v2619
    %v2648 = vpack.c.b16 %v2622, %v2620
    %v2649 = vpack.c.b16 %v2625, %v2623
    %v2650 = vpack.c.b16 %v2626, %v2624
    %v2651 = vpack.c.b16 %v2629, %v2627
    %v2652 = vpack.c.b16 %v2630, %v2628
    %v2653 = vpack.c.b16 %v2633, %v2631
    %v2654 = vpack.c.b16 %v2634, %v2632
    %v2655 = vpack.c.b16 %v2637, %v2635
    %v2656 = vpack.c.b16 %v2638, %v2636
    %v2657 = vpack.c.b16 %v2641, %v2639
    %v2658 = vpack.c.b16 %v2642, %v2640
    %2675 = vmatpush.bf16.msra.mxu0 %v2657
    %2676 = vmatpush.bf16.msra.mxu0 %v2655
    %2677 = vmatpush.bf16.msra.mxu0 %v2653
    %2678 = vmatpush.bf16.msra.mxu0 %v2651
    %2679 = vmatpush.bf16.msra.mxu0 %v2649
    %2680 = vmatpush.bf16.msra.mxu0 %v2647
    %2681 = vmatpush.bf16.msra.mxu0 %v2645
    %2682 = vmatpush.bf16.msra.mxu0 %v2643
    %2683 = vmatmul.bf16.gmra.mxu0 %v2593
    %v2684 = vpop.f32.mrf.mxu0
    %v2685 = vadd.f32 %v2567, %v2684
    %v2686 = vpop.f32.mrf.mxu0
    %2687 = vdwg.mxu0
    %2688 = vmatpush.bf16.msra.mxu0 %v2658
    %2689 = vmatpush.bf16.msra.mxu0 %v2656
    %2690 = vmatpush.bf16.msra.mxu0 %v2654
    %2691 = vmatpush.bf16.msra.mxu0 %v2652
    %2692 = vmatpush.bf16.msra.mxu0 %v2650
    %2693 = vmatpush.bf16.msra.mxu0 %v2648
    %2694 = vmatpush.bf16.msra.mxu0 %v2646
    %2695 = vmatpush.bf16.msra.mxu0 %v2644
    %2696 = vmatmul.bf16.gmra.mxu0 %v2593
    %v2697 = vpop.f32.mrf.mxu0
    %v2698 = vadd.f32 %v2580, %v2697
    %v2699 = vpop.f32.mrf.mxu0
    %2700 = vdwg.mxu0
    %v2701 = vld [vmem:[%s0 + $0x6] sm:$0x1]
    %v2702 = vld [vmem:[%s483] sm:$0xff]
    %v2703 = vld [vmem:[%s483 + $0x8] sm:$0xff]
    %v2704 = vld [vmem:[%s483 + $0x10] sm:$0xff]
    %v2705 = vld [vmem:[%s483 + $0x18] sm:$0xff]
    %v2706 = vld [vmem:[%s483 + $0x20] sm:$0xff]
    %v2707 = vld [vmem:[%s483 + $0x28] sm:$0xff]
    %v2708 = vld [vmem:[%s483 + $0x30] sm:$0xff]
    %v2709 = vld [vmem:[%s483 + $0x38] sm:$0xff]
    %v2710 = vld [vmem:[%s483 + $0x40] sm:$0xff]
    %v2711 = vld [vmem:[%s483 + $0x48] sm:$0xff]
    %v2712 = vld [vmem:[%s483 + $0x50] sm:$0xff]
    %v2713 = vld [vmem:[%s483 + $0x58] sm:$0xff]
    %v2714 = vld [vmem:[%s483 + $0x60] sm:$0xff]
    %v2715 = vld [vmem:[%s483 + $0x68] sm:$0xff]
    %v2716 = vld [vmem:[%s483 + $0x70] sm:$0xff]
    %v2717 = vld [vmem:[%s483 + $0x78] sm:$0xff]
    %v2734 = vunpack.c.l.b16 %v2702
    %v2735 = vunpack.c.h.b16 %v2702
    %v2736 = vunpack.c.l.b16 %v2703
    %v2737 = vunpack.c.h.b16 %v2703
    %v2738 = vunpack.c.l.b16 %v2704
    %v2739 = vunpack.c.h.b16 %v2704
    %v2740 = vunpack.c.l.b16 %v2705
    %v2741 = vunpack.c.h.b16 %v2705
    %v2742 = vunpack.c.l.b16 %v2706
    %v2743 = vunpack.c.h.b16 %v2706
    %v2744 = vunpack.c.l.b16 %v2707
    %v2745 = vunpack.c.h.b16 %v2707
    %v2746 = vunpack.c.l.b16 %v2708
    %v2747 = vunpack.c.h.b16 %v2708
    %v2748 = vunpack.c.l.b16 %v2709
    %v2749 = vunpack.c.h.b16 %v2709
    %v2750 = vunpack.c.l.b16 %v2710
    %v2751 = vunpack.c.h.b16 %v2710
    %v2752 = vunpack.c.l.b16 %v2711
    %v2753 = vunpack.c.h.b16 %v2711
    %v2754 = vunpack.c.l.b16 %v2712
    %v2755 = vunpack.c.h.b16 %v2712
    %v2756 = vunpack.c.l.b16 %v2713
    %v2757 = vunpack.c.h.b16 %v2713
    %v2758 = vunpack.c.l.b16 %v2714
    %v2759 = vunpack.c.h.b16 %v2714
    %v2760 = vunpack.c.l.b16 %v2715
    %v2761 = vunpack.c.h.b16 %v2715
    %v2762 = vunpack.c.l.b16 %v2716
    %v2763 = vunpack.c.h.b16 %v2716
    %v2764 = vunpack.c.l.b16 %v2717
    %v2765 = vunpack.c.h.b16 %v2717
    %v2766 = vpack.c.b16 %v2736, %v2734
    %v2767 = vpack.c.b16 %v2737, %v2735
    %v2768 = vpack.c.b16 %v2740, %v2738
    %v2769 = vpack.c.b16 %v2741, %v2739
    %v2770 = vpack.c.b16 %v2744, %v2742
    %v2771 = vpack.c.b16 %v2745, %v2743
    %v2772 = vpack.c.b16 %v2748, %v2746
    %v2773 = vpack.c.b16 %v2749, %v2747
    %v2774 = vpack.c.b16 %v2752, %v2750
    %v2775 = vpack.c.b16 %v2753, %v2751
    %v2776 = vpack.c.b16 %v2756, %v2754
    %v2777 = vpack.c.b16 %v2757, %v2755
    %v2778 = vpack.c.b16 %v2760, %v2758
    %v2779 = vpack.c.b16 %v2761, %v2759
    %v2780 = vpack.c.b16 %v2764, %v2762
    %v2781 = vpack.c.b16 %v2765, %v2763
    %2798 = vmatpush.bf16.msra.mxu0 %v2780
    %2799 = vmatpush.bf16.msra.mxu0 %v2778
    %2800 = vmatpush.bf16.msra.mxu0 %v2776
    %2801 = vmatpush.bf16.msra.mxu0 %v2774
    %2802 = vmatpush.bf16.msra.mxu0 %v2772
    %2803 = vmatpush.bf16.msra.mxu0 %v2770
    %2804 = vmatpush.bf16.msra.mxu0 %v2768
    %2805 = vmatpush.bf16.msra.mxu0 %v2766
    %2806 = vmatmul.bf16.gmra.mxu0 %v2701
    %v2807 = vpop.f32.mrf.mxu0
    %v2808 = vadd.f32 0.0, %v2807
    %v2809 = vpop.f32.mrf.mxu0
    %2810 = vdwg.mxu0
    %2811 = vmatpush.bf16.msra.mxu0 %v2781
    %2812 = vmatpush.bf16.msra.mxu0 %v2779
    %2813 = vmatpush.bf16.msra.mxu0 %v2777
    %2814 = vmatpush.bf16.msra.mxu0 %v2775
    %2815 = vmatpush.bf16.msra.mxu0 %v2773
    %2816 = vmatpush.bf16.msra.mxu0 %v2771
    %2817 = vmatpush.bf16.msra.mxu0 %v2769
    %2818 = vmatpush.bf16.msra.mxu0 %v2767
    %2819 = vmatmul.bf16.gmra.mxu0 %v2701
    %v2820 = vpop.f32.mrf.mxu0
    %v2821 = vadd.f32 0.0, %v2820
    %v2822 = vpop.f32.mrf.mxu0
    %2823 = vdwg.mxu0
    %v2824 = vadd.f32 %v2685, %v2808
    %v2825 = vadd.f32 %v2698, %v2821
    %v2826 = vld [vmem:[%s0 + $0x7] sm:$0x3]
    %v2827 = vld [vmem:[%s726] sm:$0xff]
    %v2828 = vld [vmem:[%s726 + $0x8] sm:$0xff]
    %v2829 = vld [vmem:[%s726 + $0x10] sm:$0xff]
    %v2830 = vld [vmem:[%s726 + $0x18] sm:$0xff]
    %v2831 = vld [vmem:[%s726 + $0x20] sm:$0xff]
    %v2832 = vld [vmem:[%s726 + $0x28] sm:$0xff]
    %v2833 = vld [vmem:[%s726 + $0x30] sm:$0xff]
    %v2834 = vld [vmem:[%s726 + $0x38] sm:$0xff]
    %v2835 = vld [vmem:[%s726 + $0x40] sm:$0xff]
    %v2836 = vld [vmem:[%s726 + $0x48] sm:$0xff]
    %v2837 = vld [vmem:[%s726 + $0x50] sm:$0xff]
    %v2838 = vld [vmem:[%s726 + $0x58] sm:$0xff]
    %v2839 = vld [vmem:[%s726 + $0x60] sm:$0xff]
    %v2840 = vld [vmem:[%s726 + $0x68] sm:$0xff]
    %v2841 = vld [vmem:[%s726 + $0x70] sm:$0xff]
    %v2842 = vld [vmem:[%s726 + $0x78] sm:$0xff]
    %2844 = vst [vmem:[#allocation1] ss:$9 sm:$0xff] %v2826
    %v2845 = vld [vmem:[#allocation1] sm:$0xff]
    %v2847 = vld [vmem:[#allocation1 + $0x9] sm:$0xff]
    %2849 = vrot.lane.b32.xlu0 %v2845, 32
    %v2850 = vpop.permute.xlu0 %2849
    %2851 = vrot.lane.b32.xlu0 %v2847, 32
    %v2852 = vpop.permute.xlu0 %2851
    %v2853 = vsel %vm90, %v2850, %v2852
    %v2871 = vunpack.c.l.b16 %v2827
    %v2872 = vunpack.c.h.b16 %v2827
    %v2873 = vunpack.c.l.b16 %v2828
    %v2874 = vunpack.c.h.b16 %v2828
    %v2875 = vunpack.c.l.b16 %v2829
    %v2876 = vunpack.c.h.b16 %v2829
    %v2877 = vunpack.c.l.b16 %v2830
    %v2878 = vunpack.c.h.b16 %v2830
    %v2879 = vunpack.c.l.b16 %v2831
    %v2880 = vunpack.c.h.b16 %v2831
    %v2881 = vunpack.c.l.b16 %v2832
    %v2882 = vunpack.c.h.b16 %v2832
    %v2883 = vunpack.c.l.b16 %v2833
    %v2884 = vunpack.c.h.b16 %v2833
    %v2885 = vunpack.c.l.b16 %v2834
    %v2886 = vunpack.c.h.b16 %v2834
    %v2887 = vunpack.c.l.b16 %v2835
    %v2888 = vunpack.c.h.b16 %v2835
    %v2889 = vunpack.c.l.b16 %v2836
    %v2890 = vunpack.c.h.b16 %v2836
    %v2891 = vunpack.c.l.b16 %v2837
    %v2892 = vunpack.c.h.b16 %v2837
    %v2893 = vunpack.c.l.b16 %v2838
    %v2894 = vunpack.c.h.b16 %v2838
    %v2895 = vunpack.c.l.b16 %v2839
    %v2896 = vunpack.c.h.b16 %v2839
    %v2897 = vunpack.c.l.b16 %v2840
    %v2898 = vunpack.c.h.b16 %v2840
    %v2899 = vunpack.c.l.b16 %v2841
    %v2900 = vunpack.c.h.b16 %v2841
    %v2901 = vunpack.c.l.b16 %v2842
    %v2902 = vunpack.c.h.b16 %v2842
    %v2903 = vpack.c.b16 %v2873, %v2871
    %v2904 = vpack.c.b16 %v2874, %v2872
    %v2905 = vpack.c.b16 %v2877, %v2875
    %v2906 = vpack.c.b16 %v2878, %v2876
    %v2907 = vpack.c.b16 %v2881, %v2879
    %v2908 = vpack.c.b16 %v2882, %v2880
    %v2909 = vpack.c.b16 %v2885, %v2883
    %v2910 = vpack.c.b16 %v2886, %v2884
    %v2911 = vpack.c.b16 %v2889, %v2887
    %v2912 = vpack.c.b16 %v2890, %v2888
    %v2913 = vpack.c.b16 %v2893, %v2891
    %v2914 = vpack.c.b16 %v2894, %v2892
    %v2915 = vpack.c.b16 %v2897, %v2895
    %v2916 = vpack.c.b16 %v2898, %v2896
    %v2917 = vpack.c.b16 %v2901, %v2899
    %v2918 = vpack.c.b16 %v2902, %v2900
    %2935 = vmatpush.bf16.msra.mxu0 %v2917
    %2936 = vmatpush.bf16.msra.mxu0 %v2915
    %2937 = vmatpush.bf16.msra.mxu0 %v2913
    %2938 = vmatpush.bf16.msra.mxu0 %v2911
    %2939 = vmatpush.bf16.msra.mxu0 %v2909
    %2940 = vmatpush.bf16.msra.mxu0 %v2907
    %2941 = vmatpush.bf16.msra.mxu0 %v2905
    %2942 = vmatpush.bf16.msra.mxu0 %v2903
    %2943 = vmatmul.bf16.gmra.mxu0 %v2853
    %v2944 = vpop.f32.mrf.mxu0
    %v2945 = vadd.f32 0.0, %v2944
    %v2946 = vpop.f32.mrf.mxu0
    %2947 = vdwg.mxu0
    %2948 = vmatpush.bf16.msra.mxu0 %v2918
    %2949 = vmatpush.bf16.msra.mxu0 %v2916
    %2950 = vmatpush.bf16.msra.mxu0 %v2914
    %2951 = vmatpush.bf16.msra.mxu0 %v2912
    %2952 = vmatpush.bf16.msra.mxu0 %v2910
    %2953 = vmatpush.bf16.msra.mxu0 %v2908
    %2954 = vmatpush.bf16.msra.mxu0 %v2906
    %2955 = vmatpush.bf16.msra.mxu0 %v2904
    %2956 = vmatmul.bf16.gmra.mxu0 %v2853
    %v2957 = vpop.f32.mrf.mxu0
    %v2958 = vadd.f32 0.0, %v2957
    %v2959 = vpop.f32.mrf.mxu0
    %2960 = vdwg.mxu0
    %v2961 = vadd.f32 %v2824, %v2945
    %v2962 = vadd.f32 %v2825, %v2958
    %2964 = vrot.lane.b32.xlu0 %v2961, 64
    %v2965 = vpop.permute.xlu0 %2964
    %v2967 = vmax.f32 %v2961, %v2965
    %2969 = vrot.lane.b32.xlu0 %v2962, 64
    %v2970 = vpop.permute.xlu0 %2969
    %v2972 = vmax.f32 %v2962, %v2970
    %v2973 = vmax.f32 %v2967, %v2972
    %v2974 = vld [vmem:[%s2] sm:$0x1]
    %v2976 = vperm.slane %v2974, 0
    %v2978 = vadd.f32 %v2973, %v2976
    %v2979 = vmax.f32 %v2978, 0.0
    %v2980 = vpack.c.bf16 %v2979, %v2979
    %v2982 = vrot.slane %v2980, 3
    %v2985 = vsel %vm883, %v2980, %v2982
    %2987 = vrot.lane.b32.xlu0 %v2985, 64
    %v2988 = vpop.permute.xlu0 %2987
    %2990 = vst.msk [vmem:[#allocation2 + $0x2] sm:$0x1] %vm891, %v2988
    %v2991 = vld [vmem:[%s0 + $0x5] sm:$0x3]
    %v2992 = vld [vmem:[%s1320] sm:$0xff]
    %v2993 = vld [vmem:[%s1320 + $0x8] sm:$0xff]
    %v2994 = vld [vmem:[%s1320 + $0x10] sm:$0xff]
    %v2995 = vld [vmem:[%s1320 + $0x18] sm:$0xff]
    %v2996 = vld [vmem:[%s1320 + $0x20] sm:$0xff]
    %v2997 = vld [vmem:[%s1320 + $0x28] sm:$0xff]
    %v2998 = vld [vmem:[%s1320 + $0x30] sm:$0xff]
    %v2999 = vld [vmem:[%s1320 + $0x38] sm:$0xff]
    %v3000 = vld [vmem:[%s1320 + $0x40] sm:$0xff]
    %v3001 = vld [vmem:[%s1320 + $0x48] sm:$0xff]
    %v3002 = vld [vmem:[%s1320 + $0x50] sm:$0xff]
    %v3003 = vld [vmem:[%s1320 + $0x58] sm:$0xff]
    %v3004 = vld [vmem:[%s1320 + $0x60] sm:$0xff]
    %v3005 = vld [vmem:[%s1320 + $0x68] sm:$0xff]
    %v3006 = vld [vmem:[%s1320 + $0x70] sm:$0xff]
    %v3007 = vld [vmem:[%s1320 + $0x78] sm:$0xff]
    %v3008 = vld [vmem:[%s0 + $0x7] sm:$0x1]
    %v3009 = vld [vmem:[%s45] sm:$0xff]
    %v3010 = vld [vmem:[%s45 + $0x8] sm:$0xff]
    %v3011 = vld [vmem:[%s45 + $0x10] sm:$0xff]
    %v3012 = vld [vmem:[%s45 + $0x18] sm:$0xff]
    %v3013 = vld [vmem:[%s45 + $0x20] sm:$0xff]
    %v3014 = vld [vmem:[%s45 + $0x28] sm:$0xff]
    %v3015 = vld [vmem:[%s45 + $0x30] sm:$0xff]
    %v3016 = vld [vmem:[%s45 + $0x38] sm:$0xff]
    %v3017 = vld [vmem:[%s45 + $0x40] sm:$0xff]
    %v3018 = vld [vmem:[%s45 + $0x48] sm:$0xff]
    %v3019 = vld [vmem:[%s45 + $0x50] sm:$0xff]
    %v3020 = vld [vmem:[%s45 + $0x58] sm:$0xff]
    %v3021 = vld [vmem:[%s45 + $0x60] sm:$0xff]
    %v3022 = vld [vmem:[%s45 + $0x68] sm:$0xff]
    %v3023 = vld [vmem:[%s45 + $0x70] sm:$0xff]
    %v3024 = vld [vmem:[%s45 + $0x78] sm:$0xff]
    %v3041 = vunpack.c.l.b16 %v3009
    %v3042 = vunpack.c.h.b16 %v3009
    %v3043 = vunpack.c.l.b16 %v3010
    %v3044 = vunpack.c.h.b16 %v3010
    %v3045 = vunpack.c.l.b16 %v3011
    %v3046 = vunpack.c.h.b16 %v3011
    %v3047 = vunpack.c.l.b16 %v3012
    %v3048 = vunpack.c.h.b16 %v3012
    %v3049 = vunpack.c.l.b16 %v3013
    %v3050 = vunpack.c.h.b16 %v3013
    %v3051 = vunpack.c.l.b16 %v3014
    %v3052 = vunpack.c.h.b16 %v3014
    %v3053 = vunpack.c.l.b16 %v3015
    %v3054 = vunpack.c.h.b16 %v3015
    %v3055 = vunpack.c.l.b16 %v3016
    %v3056 = vunpack.c.h.b16 %v3016
    %v3057 = vunpack.c.l.b16 %v3017
    %v3058 = vunpack.c.h.b16 %v3017
    %v3059 = vunpack.c.l.b16 %v3018
    %v3060 = vunpack.c.h.b16 %v3018
    %v3061 = vunpack.c.l.b16 %v3019
    %v3062 = vunpack.c.h.b16 %v3019
    %v3063 = vunpack.c.l.b16 %v3020
    %v3064 = vunpack.c.h.b16 %v3020
    %v3065 = vunpack.c.l.b16 %v3021
    %v3066 = vunpack.c.h.b16 %v3021
    %v3067 = vunpack.c.l.b16 %v3022
    %v3068 = vunpack.c.h.b16 %v3022
    %v3069 = vunpack.c.l.b16 %v3023
    %v3070 = vunpack.c.h.b16 %v3023
    %v3071 = vunpack.c.l.b16 %v3024
    %v3072 = vunpack.c.h.b16 %v3024
    %v3073 = vpack.c.b16 %v3043, %v3041
    %v3074 = vpack.c.b16 %v3044, %v3042
    %v3075 = vpack.c.b16 %v3047, %v3045
    %v3076 = vpack.c.b16 %v3048, %v3046
    %v3077 = vpack.c.b16 %v3051, %v3049
    %v3078 = vpack.c.b16 %v3052, %v3050
    %v3079 = vpack.c.b16 %v3055, %v3053
    %v3080 = vpack.c.b16 %v3056, %v3054
    %v3081 = vpack.c.b16 %v3059, %v3057
    %v3082 = vpack.c.b16 %v3060, %v3058
    %v3083 = vpack.c.b16 %v3063, %v3061
    %v3084 = vpack.c.b16 %v3064, %v3062
    %v3085 = vpack.c.b16 %v3067, %v3065
    %v3086 = vpack.c.b16 %v3068, %v3066
    %v3087 = vpack.c.b16 %v3071, %v3069
    %v3088 = vpack.c.b16 %v3072, %v3070
    %3105 = vmatpush.bf16.msra.mxu0 %v3087
    %3106 = vmatpush.bf16.msra.mxu0 %v3085
    %3107 = vmatpush.bf16.msra.mxu0 %v3083
    %3108 = vmatpush.bf16.msra.mxu0 %v3081
    %3109 = vmatpush.bf16.msra.mxu0 %v3079
    %3110 = vmatpush.bf16.msra.mxu0 %v3077
    %3111 = vmatpush.bf16.msra.mxu0 %v3075
    %3112 = vmatpush.bf16.msra.mxu0 %v3073
    %3113 = vmatmul.bf16.gmra.mxu0 %v3008
    %v3114 = vpop.f32.mrf.mxu0
    %v3115 = vadd.f32 0.0, %v3114
    %v3116 = vpop.f32.mrf.mxu0
    %3117 = vdwg.mxu0
    %3118 = vmatpush.bf16.msra.mxu0 %v3088
    %3119 = vmatpush.bf16.msra.mxu0 %v3086
    %3120 = vmatpush.bf16.msra.mxu0 %v3084
    %3121 = vmatpush.bf16.msra.mxu0 %v3082
    %3122 = vmatpush.bf16.msra.mxu0 %v3080
    %3123 = vmatpush.bf16.msra.mxu0 %v3078
    %3124 = vmatpush.bf16.msra.mxu0 %v3076
    %3125 = vmatpush.bf16.msra.mxu0 %v3074
    %3126 = vmatmul.bf16.gmra.mxu0 %v3008
    %v3127 = vpop.f32.mrf.mxu0
    %v3128 = vadd.f32 0.0, %v3127
    %v3129 = vpop.f32.mrf.mxu0
    %3130 = vdwg.mxu0
    %3132 = vst [vmem:[#allocation1] ss:$9 sm:$0xff] %v2991
    %v3133 = vld [vmem:[#allocation1] sm:$0xff]
    %v3135 = vld [vmem:[#allocation1 + $0x9] sm:$0xff]
    %3137 = vrot.lane.b32.xlu0 %v3133, 96
    %v3138 = vpop.permute.xlu0 %3137
    %3139 = vrot.lane.b32.xlu0 %v3135, 96
    %v3140 = vpop.permute.xlu0 %3139
    %v3141 = vsel %vm616, %v3138, %v3140
    %v3159 = vunpack.c.l.b16 %v2992
    %v3160 = vunpack.c.h.b16 %v2992
    %v3161 = vunpack.c.l.b16 %v2993
    %v3162 = vunpack.c.h.b16 %v2993
    %v3163 = vunpack.c.l.b16 %v2994
    %v3164 = vunpack.c.h.b16 %v2994
    %v3165 = vunpack.c.l.b16 %v2995
    %v3166 = vunpack.c.h.b16 %v2995
    %v3167 = vunpack.c.l.b16 %v2996
    %v3168 = vunpack.c.h.b16 %v2996
    %v3169 = vunpack.c.l.b16 %v2997
    %v3170 = vunpack.c.h.b16 %v2997
    %v3171 = vunpack.c.l.b16 %v2998
    %v3172 = vunpack.c.h.b16 %v2998
    %v3173 = vunpack.c.l.b16 %v2999
    %v3174 = vunpack.c.h.b16 %v2999
    %v3175 = vunpack.c.l.b16 %v3000
    %v3176 = vunpack.c.h.b16 %v3000
    %v3177 = vunpack.c.l.b16 %v3001
    %v3178 = vunpack.c.h.b16 %v3001
    %v3179 = vunpack.c.l.b16 %v3002
    %v3180 = vunpack.c.h.b16 %v3002
    %v3181 = vunpack.c.l.b16 %v3003
    %v3182 = vunpack.c.h.b16 %v3003
    %v3183 = vunpack.c.l.b16 %v3004
    %v3184 = vunpack.c.h.b16 %v3004
    %v3185 = vunpack.c.l.b16 %v3005
    %v3186 = vunpack.c.h.b16 %v3005
    %v3187 = vunpack.c.l.b16 %v3006
    %v3188 = vunpack.c.h.b16 %v3006
    %v3189 = vunpack.c.l.b16 %v3007
    %v3190 = vunpack.c.h.b16 %v3007
    %v3191 = vpack.c.b16 %v3161, %v3159
    %v3192 = vpack.c.b16 %v3162, %v3160
    %v3193 = vpack.c.b16 %v3165, %v3163
    %v3194 = vpack.c.b16 %v3166, %v3164
    %v3195 = vpack.c.b16 %v3169, %v3167
    %v3196 = vpack.c.b16 %v3170, %v3168
    %v3197 = vpack.c.b16 %v3173, %v3171
    %v3198 = vpack.c.b16 %v3174, %v3172
    %v3199 = vpack.c.b16 %v3177, %v3175
    %v3200 = vpack.c.b16 %v3178, %v3176
    %v3201 = vpack.c.b16 %v3181, %v3179
    %v3202 = vpack.c.b16 %v3182, %v3180
    %v3203 = vpack.c.b16 %v3185, %v3183
    %v3204 = vpack.c.b16 %v3186, %v3184
    %v3205 = vpack.c.b16 %v3189, %v3187
    %v3206 = vpack.c.b16 %v3190, %v3188
    %3223 = vmatpush.bf16.msra.mxu0 %v3205
    %3224 = vmatpush.bf16.msra.mxu0 %v3203
    %3225 = vmatpush.bf16.msra.mxu0 %v3201
    %3226 = vmatpush.bf16.msra.mxu0 %v3199
    %3227 = vmatpush.bf16.msra.mxu0 %v3197
    %3228 = vmatpush.bf16.msra.mxu0 %v3195
    %3229 = vmatpush.bf16.msra.mxu0 %v3193
    %3230 = vmatpush.bf16.msra.mxu0 %v3191
    %3231 = vmatmul.bf16.gmra.mxu0 %v3141
    %v3232 = vpop.f32.mrf.mxu0
    %v3233 = vadd.f32 %v3115, %v3232
    %v3234 = vpop.f32.mrf.mxu0
    %3235 = vdwg.mxu0
    %3236 = vmatpush.bf16.msra.mxu0 %v3206
    %3237 = vmatpush.bf16.msra.mxu0 %v3204
    %3238 = vmatpush.bf16.msra.mxu0 %v3202
    %3239 = vmatpush.bf16.msra.mxu0 %v3200
    %3240 = vmatpush.bf16.msra.mxu0 %v3198
    %3241 = vmatpush.bf16.msra.mxu0 %v3196
    %3242 = vmatpush.bf16.msra.mxu0 %v3194
    %3243 = vmatpush.bf16.msra.mxu0 %v3192
    %3244 = vmatmul.bf16.gmra.mxu0 %v3141
    %v3245 = vpop.f32.mrf.mxu0
    %v3246 = vadd.f32 %v3128, %v3245
    %v3247 = vpop.f32.mrf.mxu0
    %3248 = vdwg.mxu0
    %v3249 = vld [vmem:[%s0 + $0x8] sm:$0x3]
    %v3250 = vld [vmem:[%s63] sm:$0xff]
    %v3251 = vld [vmem:[%s63 + $0x8] sm:$0xff]
    %v3252 = vld [vmem:[%s63 + $0x10] sm:$0xff]
    %v3253 = vld [vmem:[%s63 + $0x18] sm:$0xff]
    %v3254 = vld [vmem:[%s63 + $0x20] sm:$0xff]
    %v3255 = vld [vmem:[%s63 + $0x28] sm:$0xff]
    %v3256 = vld [vmem:[%s63 + $0x30] sm:$0xff]
    %v3257 = vld [vmem:[%s63 + $0x38] sm:$0xff]
    %v3258 = vld [vmem:[%s63 + $0x40] sm:$0xff]
    %v3259 = vld [vmem:[%s63 + $0x48] sm:$0xff]
    %v3260 = vld [vmem:[%s63 + $0x50] sm:$0xff]
    %v3261 = vld [vmem:[%s63 + $0x58] sm:$0xff]
    %v3262 = vld [vmem:[%s63 + $0x60] sm:$0xff]
    %v3263 = vld [vmem:[%s63 + $0x68] sm:$0xff]
    %v3264 = vld [vmem:[%s63 + $0x70] sm:$0xff]
    %v3265 = vld [vmem:[%s63 + $0x78] sm:$0xff]
    %3267 = vst [vmem:[#allocation1] ss:$9 sm:$0xff] %v3249
    %v3268 = vld [vmem:[#allocation1] sm:$0xff]
    %v3270 = vld [vmem:[#allocation1 + $0x9] sm:$0xff]
    %3272 = vrot.lane.b32.xlu0 %v3268, 32
    %v3273 = vpop.permute.xlu0 %3272
    %3274 = vrot.lane.b32.xlu0 %v3270, 32
    %v3275 = vpop.permute.xlu0 %3274
    %v3276 = vsel %vm90, %v3273, %v3275
    %v3294 = vunpack.c.l.b16 %v3250
    %v3295 = vunpack.c.h.b16 %v3250
    %v3296 = vunpack.c.l.b16 %v3251
    %v3297 = vunpack.c.h.b16 %v3251
    %v3298 = vunpack.c.l.b16 %v3252
    %v3299 = vunpack.c.h.b16 %v3252
    %v3300 = vunpack.c.l.b16 %v3253
    %v3301 = vunpack.c.h.b16 %v3253
    %v3302 = vunpack.c.l.b16 %v3254
    %v3303 = vunpack.c.h.b16 %v3254
    %v3304 = vunpack.c.l.b16 %v3255
    %v3305 = vunpack.c.h.b16 %v3255
    %v3306 = vunpack.c.l.b16 %v3256
    %v3307 = vunpack.c.h.b16 %v3256
    %v3308 = vunpack.c.l.b16 %v3257
    %v3309 = vunpack.c.h.b16 %v3257
    %v3310 = vunpack.c.l.b16 %v3258
    %v3311 = vunpack.c.h.b16 %v3258
    %v3312 = vunpack.c.l.b16 %v3259
    %v3313 = vunpack.c.h.b16 %v3259
    %v3314 = vunpack.c.l.b16 %v3260
    %v3315 = vunpack.c.h.b16 %v3260
    %v3316 = vunpack.c.l.b16 %v3261
    %v3317 = vunpack.c.h.b16 %v3261
    %v3318 = vunpack.c.l.b16 %v3262
    %v3319 = vunpack.c.h.b16 %v3262
    %v3320 = vunpack.c.l.b16 %v3263
    %v3321 = vunpack.c.h.b16 %v3263
    %v3322 = vunpack.c.l.b16 %v3264
    %v3323 = vunpack.c.h.b16 %v3264
    %v3324 = vunpack.c.l.b16 %v3265
    %v3325 = vunpack.c.h.b16 %v3265
    %v3326 = vpack.c.b16 %v3296, %v3294
    %v3327 = vpack.c.b16 %v3297, %v3295
    %v3328 = vpack.c.b16 %v3300, %v3298
    %v3329 = vpack.c.b16 %v3301, %v3299
    %v3330 = vpack.c.b16 %v3304, %v3302
    %v3331 = vpack.c.b16 %v3305, %v3303
    %v3332 = vpack.c.b16 %v3308, %v3306
    %v3333 = vpack.c.b16 %v3309, %v3307
    %v3334 = vpack.c.b16 %v3312, %v3310
    %v3335 = vpack.c.b16 %v3313, %v3311
    %v3336 = vpack.c.b16 %v3316, %v3314
    %v3337 = vpack.c.b16 %v3317, %v3315
    %v3338 = vpack.c.b16 %v3320, %v3318
    %v3339 = vpack.c.b16 %v3321, %v3319
    %v3340 = vpack.c.b16 %v3324, %v3322
    %v3341 = vpack.c.b16 %v3325, %v3323
    %3358 = vmatpush.bf16.msra.mxu0 %v3340
    %3359 = vmatpush.bf16.msra.mxu0 %v3338
    %3360 = vmatpush.bf16.msra.mxu0 %v3336
    %3361 = vmatpush.bf16.msra.mxu0 %v3334
    %3362 = vmatpush.bf16.msra.mxu0 %v3332
    %3363 = vmatpush.bf16.msra.mxu0 %v3330
    %3364 = vmatpush.bf16.msra.mxu0 %v3328
    %3365 = vmatpush.bf16.msra.mxu0 %v3326
    %3366 = vmatmul.bf16.gmra.mxu0 %v3276
    %v3367 = vpop.f32.mrf.mxu0
    %v3368 = vadd.f32 0.0, %v3367
    %v3369 = vpop.f32.mrf.mxu0
    %3370 = vdwg.mxu0
    %3371 = vmatpush.bf16.msra.mxu0 %v3341
    %3372 = vmatpush.bf16.msra.mxu0 %v3339
    %3373 = vmatpush.bf16.msra.mxu0 %v3337
    %3374 = vmatpush.bf16.msra.mxu0 %v3335
    %3375 = vmatpush.bf16.msra.mxu0 %v3333
    %3376 = vmatpush.bf16.msra.mxu0 %v3331
    %3377 = vmatpush.bf16.msra.mxu0 %v3329
    %3378 = vmatpush.bf16.msra.mxu0 %v3327
    %3379 = vmatmul.bf16.gmra.mxu0 %v3276
    %v3380 = vpop.f32.mrf.mxu0
    %v3381 = vadd.f32 0.0, %v3380
    %v3382 = vpop.f32.mrf.mxu0
    %3383 = vdwg.mxu0
    %v3384 = vadd.f32 %v3233, %v3368
    %v3385 = vadd.f32 %v3246, %v3381
    %v3386 = vld [vmem:[%s0 + $0xa] sm:$0x3]
    %v3387 = vld [vmem:[%s306] sm:$0xff]
    %v3388 = vld [vmem:[%s306 + $0x8] sm:$0xff]
    %v3389 = vld [vmem:[%s306 + $0x10] sm:$0xff]
    %v3390 = vld [vmem:[%s306 + $0x18] sm:$0xff]
    %v3391 = vld [vmem:[%s306 + $0x20] sm:$0xff]
    %v3392 = vld [vmem:[%s306 + $0x28] sm:$0xff]
    %v3393 = vld [vmem:[%s306 + $0x30] sm:$0xff]
    %v3394 = vld [vmem:[%s306 + $0x38] sm:$0xff]
    %v3395 = vld [vmem:[%s306 + $0x40] sm:$0xff]
    %v3396 = vld [vmem:[%s306 + $0x48] sm:$0xff]
    %v3397 = vld [vmem:[%s306 + $0x50] sm:$0xff]
    %v3398 = vld [vmem:[%s306 + $0x58] sm:$0xff]
    %v3399 = vld [vmem:[%s306 + $0x60] sm:$0xff]
    %v3400 = vld [vmem:[%s306 + $0x68] sm:$0xff]
    %v3401 = vld [vmem:[%s306 + $0x70] sm:$0xff]
    %v3402 = vld [vmem:[%s306 + $0x78] sm:$0xff]
    %3404 = vst [vmem:[#allocation1] ss:$9 sm:$0xff] %v3386
    %v3405 = vld [vmem:[#allocation1] sm:$0xff]
    %v3407 = vld [vmem:[#allocation1 + $0x9] sm:$0xff]
    %3409 = vrot.lane.b32.xlu0 %v3405, 64
    %v3410 = vpop.permute.xlu0 %3409
    %3411 = vrot.lane.b32.xlu0 %v3407, 64
    %v3412 = vpop.permute.xlu0 %3411
    %v3413 = vsel %vm333, %v3410, %v3412
    %v3431 = vunpack.c.l.b16 %v3387
    %v3432 = vunpack.c.h.b16 %v3387
    %v3433 = vunpack.c.l.b16 %v3388
    %v3434 = vunpack.c.h.b16 %v3388
    %v3435 = vunpack.c.l.b16 %v3389
    %v3436 = vunpack.c.h.b16 %v3389
    %v3437 = vunpack.c.l.b16 %v3390
    %v3438 = vunpack.c.h.b16 %v3390
    %v3439 = vunpack.c.l.b16 %v3391
    %v3440 = vunpack.c.h.b16 %v3391
    %v3441 = vunpack.c.l.b16 %v3392
    %v3442 = vunpack.c.h.b16 %v3392
    %v3443 = vunpack.c.l.b16 %v3393
    %v3444 = vunpack.c.h.b16 %v3393
    %v3445 = vunpack.c.l.b16 %v3394
    %v3446 = vunpack.c.h.b16 %v3394
    %v3447 = vunpack.c.l.b16 %v3395
    %v3448 = vunpack.c.h.b16 %v3395
    %v3449 = vunpack.c.l.b16 %v3396
    %v3450 = vunpack.c.h.b16 %v3396
    %v3451 = vunpack.c.l.b16 %v3397
    %v3452 = vunpack.c.h.b16 %v3397
    %v3453 = vunpack.c.l.b16 %v3398
    %v3454 = vunpack.c.h.b16 %v3398
    %v3455 = vunpack.c.l.b16 %v3399
    %v3456 = vunpack.c.h.b16 %v3399
    %v3457 = vunpack.c.l.b16 %v3400
    %v3458 = vunpack.c.h.b16 %v3400
    %v3459 = vunpack.c.l.b16 %v3401
    %v3460 = vunpack.c.h.b16 %v3401
    %v3461 = vunpack.c.l.b16 %v3402
    %v3462 = vunpack.c.h.b16 %v3402
    %v3463 = vpack.c.b16 %v3433, %v3431
    %v3464 = vpack.c.b16 %v3434, %v3432
    %v3465 = vpack.c.b16 %v3437, %v3435
    %v3466 = vpack.c.b16 %v3438, %v3436
    %v3467 = vpack.c.b16 %v3441, %v3439
    %v3468 = vpack.c.b16 %v3442, %v3440
    %v3469 = vpack.c.b16 %v3445, %v3443
    %v3470 = vpack.c.b16 %v3446, %v3444
    %v3471 = vpack.c.b16 %v3449, %v3447
    %v3472 = vpack.c.b16 %v3450, %v3448
    %v3473 = vpack.c.b16 %v3453, %v3451
    %v3474 = vpack.c.b16 %v3454, %v3452
    %v3475 = vpack.c.b16 %v3457, %v3455
    %v3476 = vpack.c.b16 %v3458, %v3456
    %v3477 = vpack.c.b16 %v3461, %v3459
    %v3478 = vpack.c.b16 %v3462, %v3460
    %3495 = vmatpush.bf16.msra.mxu0 %v3477
    %3496 = vmatpush.bf16.msra.mxu0 %v3475
    %3497 = vmatpush.bf16.msra.mxu0 %v3473
    %3498 = vmatpush.bf16.msra.mxu0 %v3471
    %3499 = vmatpush.bf16.msra.mxu0 %v3469
    %3500 = vmatpush.bf16.msra.mxu0 %v3467
    %3501 = vmatpush.bf16.msra.mxu0 %v3465
    %3502 = vmatpush.bf16.msra.mxu0 %v3463
    %3503 = vmatmul.bf16.gmra.mxu0 %v3413
    %v3504 = vpop.f32.mrf.mxu0
    %v3505 = vadd.f32 0.0, %v3504
    %v3506 = vpop.f32.mrf.mxu0
    %3507 = vdwg.mxu0
    %3508 = vmatpush.bf16.msra.mxu0 %v3478
    %3509 = vmatpush.bf16.msra.mxu0 %v3476
    %3510 = vmatpush.bf16.msra.mxu0 %v3474
    %3511 = vmatpush.bf16.msra.mxu0 %v3472
    %3512 = vmatpush.bf16.msra.mxu0 %v3470
    %3513 = vmatpush.bf16.msra.mxu0 %v3468
    %3514 = vmatpush.bf16.msra.mxu0 %v3466
    %3515 = vmatpush.bf16.msra.mxu0 %v3464
    %3516 = vmatmul.bf16.gmra.mxu0 %v3413
    %v3517 = vpop.f32.mrf.mxu0
    %v3518 = vadd.f32 0.0, %v3517
    %v3519 = vpop.f32.mrf.mxu0
    %3520 = vdwg.mxu0
    %v3521 = vadd.f32 %v3384, %v3505
    %v3522 = vadd.f32 %v3385, %v3518
    %3524 = vrot.lane.b32.xlu0 %v3521, 64
    %v3525 = vpop.permute.xlu0 %3524
    %v3527 = vmax.f32 %v3521, %v3525
    %3529 = vrot.lane.b32.xlu0 %v3522, 64
    %v3530 = vpop.permute.xlu0 %3529
    %v3532 = vmax.f32 %v3522, %v3530
    %v3533 = vmax.f32 %v3527, %v3532
    %v3534 = vld [vmem:[%s2] sm:$0x1]
    %v3536 = vperm.slane %v3534, 0
    %v3538 = vadd.f32 %v3533, %v3536
    %v3539 = vmax.f32 %v3538, 0.0
    %v3540 = vpack.c.bf16 %v3539, %v3539
    %3541 = vst.msk [vmem:[#allocation2 + $0x3] sm:$0x1] %vm462, %v3540
    %v3542 = vld [vmem:[%s0 + $0x5] sm:$0x3]
    %v3543 = vld [vmem:[#allocation3] sm:$0xff]
    %v3544 = vld [vmem:[#allocation3 + $0x8] sm:$0xff]
    %v3545 = vld [vmem:[#allocation3 + $0x10] sm:$0xff]
    %v3546 = vld [vmem:[#allocation3 + $0x18] sm:$0xff]
    %v3547 = vld [vmem:[#allocation3 + $0x20] sm:$0xff]
    %v3548 = vld [vmem:[#allocation3 + $0x28] sm:$0xff]
    %v3549 = vld [vmem:[#allocation3 + $0x30] sm:$0xff]
    %v3550 = vld [vmem:[#allocation3 + $0x38] sm:$0xff]
    %v3551 = vld [vmem:[#allocation3 + $0x40] sm:$0xff]
    %v3552 = vld [vmem:[#allocation3 + $0x48] sm:$0xff]
    %v3553 = vld [vmem:[#allocation3 + $0x50] sm:$0xff]
    %v3554 = vld [vmem:[#allocation3 + $0x58] sm:$0xff]
    %v3555 = vld [vmem:[#allocation3 + $0x60] sm:$0xff]
    %v3556 = vld [vmem:[#allocation3 + $0x68] sm:$0xff]
    %v3557 = vld [vmem:[#allocation3 + $0x70] sm:$0xff]
    %v3558 = vld [vmem:[#allocation3 + $0x78] sm:$0xff]
    %v3559 = vld [vmem:[%s0 + $0x7] sm:$0x3]
    %v3560 = vld [vmem:[%s465] sm:$0xff]
    %v3561 = vld [vmem:[%s465 + $0x8] sm:$0xff]
    %v3562 = vld [vmem:[%s465 + $0x10] sm:$0xff]
    %v3563 = vld [vmem:[%s465 + $0x18] sm:$0xff]
    %v3564 = vld [vmem:[%s465 + $0x20] sm:$0xff]
    %v3565 = vld [vmem:[%s465 + $0x28] sm:$0xff]
    %v3566 = vld [vmem:[%s465 + $0x30] sm:$0xff]
    %v3567 = vld [vmem:[%s465 + $0x38] sm:$0xff]
    %v3568 = vld [vmem:[%s465 + $0x40] sm:$0xff]
    %v3569 = vld [vmem:[%s465 + $0x48] sm:$0xff]
    %v3570 = vld [vmem:[%s465 + $0x50] sm:$0xff]
    %v3571 = vld [vmem:[%s465 + $0x58] sm:$0xff]
    %v3572 = vld [vmem:[%s465 + $0x60] sm:$0xff]
    %v3573 = vld [vmem:[%s465 + $0x68] sm:$0xff]
    %v3574 = vld [vmem:[%s465 + $0x70] sm:$0xff]
    %v3575 = vld [vmem:[%s465 + $0x78] sm:$0xff]
    %3577 = vst [vmem:[#allocation1] ss:$9 sm:$0xff] %v3559
    %v3578 = vld [vmem:[#allocation1] sm:$0xff]
    %v3580 = vld [vmem:[#allocation1 + $0x9] sm:$0xff]
    %3582 = vrot.lane.b32.xlu0 %v3578, 96
    %v3583 = vpop.permute.xlu0 %3582
    %3584 = vrot.lane.b32.xlu0 %v3580, 96
    %v3585 = vpop.permute.xlu0 %3584
    %v3586 = vsel %vm616, %v3583, %v3585
    %v3604 = vunpack.c.l.b16 %v3560
    %v3605 = vunpack.c.h.b16 %v3560
    %v3606 = vunpack.c.l.b16 %v3561
    %v3607 = vunpack.c.h.b16 %v3561
    %v3608 = vunpack.c.l.b16 %v3562
    %v3609 = vunpack.c.h.b16 %v3562
    %v3610 = vunpack.c.l.b16 %v3563
    %v3611 = vunpack.c.h.b16 %v3563
    %v3612 = vunpack.c.l.b16 %v3564
    %v3613 = vunpack.c.h.b16 %v3564
    %v3614 = vunpack.c.l.b16 %v3565
    %v3615 = vunpack.c.h.b16 %v3565
    %v3616 = vunpack.c.l.b16 %v3566
    %v3617 = vunpack.c.h.b16 %v3566
    %v3618 = vunpack.c.l.b16 %v3567
    %v3619 = vunpack.c.h.b16 %v3567
    %v3620 = vunpack.c.l.b16 %v3568
    %v3621 = vunpack.c.h.b16 %v3568
    %v3622 = vunpack.c.l.b16 %v3569
    %v3623 = vunpack.c.h.b16 %v3569
    %v3624 = vunpack.c.l.b16 %v3570
    %v3625 = vunpack.c.h.b16 %v3570
    %v3626 = vunpack.c.l.b16 %v3571
    %v3627 = vunpack.c.h.b16 %v3571
    %v3628 = vunpack.c.l.b16 %v3572
    %v3629 = vunpack.c.h.b16 %v3572
    %v3630 = vunpack.c.l.b16 %v3573
    %v3631 = vunpack.c.h.b16 %v3573
    %v3632 = vunpack.c.l.b16 %v3574
    %v3633 = vunpack.c.h.b16 %v3574
    %v3634 = vunpack.c.l.b16 %v3575
    %v3635 = vunpack.c.h.b16 %v3575
    %v3636 = vpack.c.b16 %v3606, %v3604
    %v3637 = vpack.c.b16 %v3607, %v3605
    %v3638 = vpack.c.b16 %v3610, %v3608
    %v3639 = vpack.c.b16 %v3611, %v3609
    %v3640 = vpack.c.b16 %v3614, %v3612
    %v3641 = vpack.c.b16 %v3615, %v3613
    %v3642 = vpack.c.b16 %v3618, %v3616
    %v3643 = vpack.c.b16 %v3619, %v3617
    %v3644 = vpack.c.b16 %v3622, %v3620
    %v3645 = vpack.c.b16 %v3623, %v3621
    %v3646 = vpack.c.b16 %v3626, %v3624
    %v3647 = vpack.c.b16 %v3627, %v3625
    %v3648 = vpack.c.b16 %v3630, %v3628
    %v3649 = vpack.c.b16 %v3631, %v3629
    %v3650 = vpack.c.b16 %v3634, %v3632
    %v3651 = vpack.c.b16 %v3635, %v3633
    %3668 = vmatpush.bf16.msra.mxu0 %v3650
    %3669 = vmatpush.bf16.msra.mxu0 %v3648
    %3670 = vmatpush.bf16.msra.mxu0 %v3646
    %3671 = vmatpush.bf16.msra.mxu0 %v3644
    %3672 = vmatpush.bf16.msra.mxu0 %v3642
    %3673 = vmatpush.bf16.msra.mxu0 %v3640
    %3674 = vmatpush.bf16.msra.mxu0 %v3638
    %3675 = vmatpush.bf16.msra.mxu0 %v3636
    %3676 = vmatmul.bf16.gmra.mxu0 %v3586
    %v3677 = vpop.f32.mrf.mxu0
    %v3678 = vadd.f32 0.0, %v3677
    %v3679 = vpop.f32.mrf.mxu0
    %3680 = vdwg.mxu0
    %3681 = vmatpush.bf16.msra.mxu0 %v3651
    %3682 = vmatpush.bf16.msra.mxu0 %v3649
    %3683 = vmatpush.bf16.msra.mxu0 %v3647
    %3684 = vmatpush.bf16.msra.mxu0 %v3645
    %3685 = vmatpush.bf16.msra.mxu0 %v3643
    %3686 = vmatpush.bf16.msra.mxu0 %v3641
    %3687 = vmatpush.bf16.msra.mxu0 %v3639
    %3688 = vmatpush.bf16.msra.mxu0 %v3637
    %3689 = vmatmul.bf16.gmra.mxu0 %v3586
    %v3690 = vpop.f32.mrf.mxu0
    %v3691 = vadd.f32 0.0, %v3690
    %v3692 = vpop.f32.mrf.mxu0
    %3693 = vdwg.mxu0
    %3695 = vst [vmem:[#allocation1] ss:$9 sm:$0xff] %v3542
    %v3696 = vld [vmem:[#allocation1] sm:$0xff]
    %v3698 = vld [vmem:[#allocation1 + $0x9] sm:$0xff]
    %3700 = vrot.lane.b32.xlu0 %v3696, 64
    %v3701 = vpop.permute.xlu0 %3700
    %3702 = vrot.lane.b32.xlu0 %v3698, 64
    %v3703 = vpop.permute.xlu0 %3702
    %v3704 = vsel %vm333, %v3701, %v3703
    %v3722 = vunpack.c.l.b16 %v3543
    %v3723 = vunpack.c.h.b16 %v3543
    %v3724 = vunpack.c.l.b16 %v3544
    %v3725 = vunpack.c.h.b16 %v3544
    %v3726 = vunpack.c.l.b16 %v3545
    %v3727 = vunpack.c.h.b16 %v3545
    %v3728 = vunpack.c.l.b16 %v3546
    %v3729 = vunpack.c.h.b16 %v3546
    %v3730 = vunpack.c.l.b16 %v3547
    %v3731 = vunpack.c.h.b16 %v3547
    %v3732 = vunpack.c.l.b16 %v3548
    %v3733 = vunpack.c.h.b16 %v3548
    %v3734 = vunpack.c.l.b16 %v3549
    %v3735 = vunpack.c.h.b16 %v3549
    %v3736 = vunpack.c.l.b16 %v3550
    %v3737 = vunpack.c.h.b16 %v3550
    %v3738 = vunpack.c.l.b16 %v3551
    %v3739 = vunpack.c.h.b16 %v3551
    %v3740 = vunpack.c.l.b16 %v3552
    %v3741 = vunpack.c.h.b16 %v3552
    %v3742 = vunpack.c.l.b16 %v3553
    %v3743 = vunpack.c.h.b16 %v3553
    %v3744 = vunpack.c.l.b16 %v3554
    %v3745 = vunpack.c.h.b16 %v3554
    %v3746 = vunpack.c.l.b16 %v3555
    %v3747 = vunpack.c.h.b16 %v3555
    %v3748 = vunpack.c.l.b16 %v3556
    %v3749 = vunpack.c.h.b16 %v3556
    %v3750 = vunpack.c.l.b16 %v3557
    %v3751 = vunpack.c.h.b16 %v3557
    %v3752 = vunpack.c.l.b16 %v3558
    %v3753 = vunpack.c.h.b16 %v3558
    %v3754 = vpack.c.b16 %v3724, %v3722
    %v3755 = vpack.c.b16 %v3725, %v3723
    %v3756 = vpack.c.b16 %v3728, %v3726
    %v3757 = vpack.c.b16 %v3729, %v3727
    %v3758 = vpack.c.b16 %v3732, %v3730
    %v3759 = vpack.c.b16 %v3733, %v3731
    %v3760 = vpack.c.b16 %v3736, %v3734
    %v3761 = vpack.c.b16 %v3737, %v3735
    %v3762 = vpack.c.b16 %v3740, %v3738
    %v3763 = vpack.c.b16 %v3741, %v3739
    %v3764 = vpack.c.b16 %v3744, %v3742
    %v3765 = vpack.c.b16 %v3745, %v3743
    %v3766 = vpack.c.b16 %v3748, %v3746
    %v3767 = vpack.c.b16 %v3749, %v3747
    %v3768 = vpack.c.b16 %v3752, %v3750
    %v3769 = vpack.c.b16 %v3753, %v3751
    %3786 = vmatpush.bf16.msra.mxu0 %v3768
    %3787 = vmatpush.bf16.msra.mxu0 %v3766
    %3788 = vmatpush.bf16.msra.mxu0 %v3764
    %3789 = vmatpush.bf16.msra.mxu0 %v3762
    %3790 = vmatpush.bf16.msra.mxu0 %v3760
    %3791 = vmatpush.bf16.msra.mxu0 %v3758
    %3792 = vmatpush.bf16.msra.mxu0 %v3756
    %3793 = vmatpush.bf16.msra.mxu0 %v3754
    %3794 = vmatmul.bf16.gmra.mxu0 %v3704
    %v3795 = vpop.f32.mrf.mxu0
    %v3796 = vadd.f32 %v3678, %v3795
    %v3797 = vpop.f32.mrf.mxu0
    %3798 = vdwg.mxu0
    %3799 = vmatpush.bf16.msra.mxu0 %v3769
    %3800 = vmatpush.bf16.msra.mxu0 %v3767
    %3801 = vmatpush.bf16.msra.mxu0 %v3765
    %3802 = vmatpush.bf16.msra.mxu0 %v3763
    %3803 = vmatpush.bf16.msra.mxu0 %v3761
    %3804 = vmatpush.bf16.msra.mxu0 %v3759
    %3805 = vmatpush.bf16.msra.mxu0 %v3757
    %3806 = vmatpush.bf16.msra.mxu0 %v3755
    %3807 = vmatmul.bf16.gmra.mxu0 %v3704
    %v3808 = vpop.f32.mrf.mxu0
    %v3809 = vadd.f32 %v3691, %v3808
    %v3810 = vpop.f32.mrf.mxu0
    %3811 = vdwg.mxu0
    %v3812 = vld [vmem:[%s0 + $0x9] sm:$0x1]
    %v3813 = vld [vmem:[%s483] sm:$0xff]
    %v3814 = vld [vmem:[%s483 + $0x8] sm:$0xff]
    %v3815 = vld [vmem:[%s483 + $0x10] sm:$0xff]
    %v3816 = vld [vmem:[%s483 + $0x18] sm:$0xff]
    %v3817 = vld [vmem:[%s483 + $0x20] sm:$0xff]
    %v3818 = vld [vmem:[%s483 + $0x28] sm:$0xff]
    %v3819 = vld [vmem:[%s483 + $0x30] sm:$0xff]
    %v3820 = vld [vmem:[%s483 + $0x38] sm:$0xff]
    %v3821 = vld [vmem:[%s483 + $0x40] sm:$0xff]
    %v3822 = vld [vmem:[%s483 + $0x48] sm:$0xff]
    %v3823 = vld [vmem:[%s483 + $0x50] sm:$0xff]
    %v3824 = vld [vmem:[%s483 + $0x58] sm:$0xff]
    %v3825 = vld [vmem:[%s483 + $0x60] sm:$0xff]
    %v3826 = vld [vmem:[%s483 + $0x68] sm:$0xff]
    %v3827 = vld [vmem:[%s483 + $0x70] sm:$0xff]
    %v3828 = vld [vmem:[%s483 + $0x78] sm:$0xff]
    %v3845 = vunpack.c.l.b16 %v3813
    %v3846 = vunpack.c.h.b16 %v3813
    %v3847 = vunpack.c.l.b16 %v3814
    %v3848 = vunpack.c.h.b16 %v3814
    %v3849 = vunpack.c.l.b16 %v3815
    %v3850 = vunpack.c.h.b16 %v3815
    %v3851 = vunpack.c.l.b16 %v3816
    %v3852 = vunpack.c.h.b16 %v3816
    %v3853 = vunpack.c.l.b16 %v3817
    %v3854 = vunpack.c.h.b16 %v3817
    %v3855 = vunpack.c.l.b16 %v3818
    %v3856 = vunpack.c.h.b16 %v3818
    %v3857 = vunpack.c.l.b16 %v3819
    %v3858 = vunpack.c.h.b16 %v3819
    %v3859 = vunpack.c.l.b16 %v3820
    %v3860 = vunpack.c.h.b16 %v3820
    %v3861 = vunpack.c.l.b16 %v3821
    %v3862 = vunpack.c.h.b16 %v3821
    %v3863 = vunpack.c.l.b16 %v3822
    %v3864 = vunpack.c.h.b16 %v3822
    %v3865 = vunpack.c.l.b16 %v3823
    %v3866 = vunpack.c.h.b16 %v3823
    %v3867 = vunpack.c.l.b16 %v3824
    %v3868 = vunpack.c.h.b16 %v3824
    %v3869 = vunpack.c.l.b16 %v3825
    %v3870 = vunpack.c.h.b16 %v3825
    %v3871 = vunpack.c.l.b16 %v3826
    %v3872 = vunpack.c.h.b16 %v3826
    %v3873 = vunpack.c.l.b16 %v3827
    %v3874 = vunpack.c.h.b16 %v3827
    %v3875 = vunpack.c.l.b16 %v3828
    %v3876 = vunpack.c.h.b16 %v3828
    %v3877 = vpack.c.b16 %v3847, %v3845
    %v3878 = vpack.c.b16 %v3848, %v3846
    %v3879 = vpack.c.b16 %v3851, %v3849
    %v3880 = vpack.c.b16 %v3852, %v3850
    %v3881 = vpack.c.b16 %v3855, %v3853
    %v3882 = vpack.c.b16 %v3856, %v3854
    %v3883 = vpack.c.b16 %v3859, %v3857
    %v3884 = vpack.c.b16 %v3860, %v3858
    %v3885 = vpack.c.b16 %v3863, %v3861
    %v3886 = vpack.c.b16 %v3864, %v3862
    %v3887 = vpack.c.b16 %v3867, %v3865
    %v3888 = vpack.c.b16 %v3868, %v3866
    %v3889 = vpack.c.b16 %v3871, %v3869
    %v3890 = vpack.c.b16 %v3872, %v3870
    %v3891 = vpack.c.b16 %v3875, %v3873
    %v3892 = vpack.c.b16 %v3876, %v3874
    %3909 = vmatpush.bf16.msra.mxu0 %v3891
    %3910 = vmatpush.bf16.msra.mxu0 %v3889
    %3911 = vmatpush.bf16.msra.mxu0 %v3887
    %3912 = vmatpush.bf16.msra.mxu0 %v3885
    %3913 = vmatpush.bf16.msra.mxu0 %v3883
    %3914 = vmatpush.bf16.msra.mxu0 %v3881
    %3915 = vmatpush.bf16.msra.mxu0 %v3879
    %3916 = vmatpush.bf16.msra.mxu0 %v3877
    %3917 = vmatmul.bf16.gmra.mxu0 %v3812
    %v3918 = vpop.f32.mrf.mxu0
    %v3919 = vadd.f32 0.0, %v3918
    %v3920 = vpop.f32.mrf.mxu0
    %3921 = vdwg.mxu0
    %3922 = vmatpush.bf16.msra.mxu0 %v3892
    %3923 = vmatpush.bf16.msra.mxu0 %v3890
    %3924 = vmatpush.bf16.msra.mxu0 %v3888
    %3925 = vmatpush.bf16.msra.mxu0 %v3886
    %3926 = vmatpush.bf16.msra.mxu0 %v3884
    %3927 = vmatpush.bf16.msra.mxu0 %v3882
    %3928 = vmatpush.bf16.msra.mxu0 %v3880
    %3929 = vmatpush.bf16.msra.mxu0 %v3878
    %3930 = vmatmul.bf16.gmra.mxu0 %v3812
    %v3931 = vpop.f32.mrf.mxu0
    %v3932 = vadd.f32 0.0, %v3931
    %v3933 = vpop.f32.mrf.mxu0
    %3934 = vdwg.mxu0
    %v3935 = vadd.f32 %v3796, %v3919
    %v3936 = vadd.f32 %v3809, %v3932
    %v3937 = vld [vmem:[%s0 + $0xa] sm:$0x3]
    %v3938 = vld [vmem:[%s726] sm:$0xff]
    %v3939 = vld [vmem:[%s726 + $0x8] sm:$0xff]
    %v3940 = vld [vmem:[%s726 + $0x10] sm:$0xff]
    %v3941 = vld [vmem:[%s726 + $0x18] sm:$0xff]
    %v3942 = vld [vmem:[%s726 + $0x20] sm:$0xff]
    %v3943 = vld [vmem:[%s726 + $0x28] sm:$0xff]
    %v3944 = vld [vmem:[%s726 + $0x30] sm:$0xff]
    %v3945 = vld [vmem:[%s726 + $0x38] sm:$0xff]
    %v3946 = vld [vmem:[%s726 + $0x40] sm:$0xff]
    %v3947 = vld [vmem:[%s726 + $0x48] sm:$0xff]
    %v3948 = vld [vmem:[%s726 + $0x50] sm:$0xff]
    %v3949 = vld [vmem:[%s726 + $0x58] sm:$0xff]
    %v3950 = vld [vmem:[%s726 + $0x60] sm:$0xff]
    %v3951 = vld [vmem:[%s726 + $0x68] sm:$0xff]
    %v3952 = vld [vmem:[%s726 + $0x70] sm:$0xff]
    %v3953 = vld [vmem:[%s726 + $0x78] sm:$0xff]
    %3955 = vst [vmem:[#allocation1] ss:$9 sm:$0xff] %v3937
    %v3956 = vld [vmem:[#allocation1] sm:$0xff]
    %v3958 = vld [vmem:[#allocation1 + $0x9] sm:$0xff]
    %3960 = vrot.lane.b32.xlu0 %v3956, 32
    %v3961 = vpop.permute.xlu0 %3960
    %3962 = vrot.lane.b32.xlu0 %v3958, 32
    %v3963 = vpop.permute.xlu0 %3962
    %v3964 = vsel %vm90, %v3961, %v3963
    %v3982 = vunpack.c.l.b16 %v3938
    %v3983 = vunpack.c.h.b16 %v3938
    %v3984 = vunpack.c.l.b16 %v3939
    %v3985 = vunpack.c.h.b16 %v3939
    %v3986 = vunpack.c.l.b16 %v3940
    %v3987 = vunpack.c.h.b16 %v3940
    %v3988 = vunpack.c.l.b16 %v3941
    %v3989 = vunpack.c.h.b16 %v3941
    %v3990 = vunpack.c.l.b16 %v3942
    %v3991 = vunpack.c.h.b16 %v3942
    %v3992 = vunpack.c.l.b16 %v3943
    %v3993 = vunpack.c.h.b16 %v3943
    %v3994 = vunpack.c.l.b16 %v3944
    %v3995 = vunpack.c.h.b16 %v3944
    %v3996 = vunpack.c.l.b16 %v3945
    %v3997 = vunpack.c.h.b16 %v3945
    %v3998 = vunpack.c.l.b16 %v3946
    %v3999 = vunpack.c.h.b16 %v3946
    %v4000 = vunpack.c.l.b16 %v3947
    %v4001 = vunpack.c.h.b16 %v3947
    %v4002 = vunpack.c.l.b16 %v3948
    %v4003 = vunpack.c.h.b16 %v3948
    %v4004 = vunpack.c.l.b16 %v3949
    %v4005 = vunpack.c.h.b16 %v3949
    %v4006 = vunpack.c.l.b16 %v3950
    %v4007 = vunpack.c.h.b16 %v3950
    %v4008 = vunpack.c.l.b16 %v3951
    %v4009 = vunpack.c.h.b16 %v3951
    %v4010 = vunpack.c.l.b16 %v3952
    %v4011 = vunpack.c.h.b16 %v3952
    %v4012 = vunpack.c.l.b16 %v3953
    %v4013 = vunpack.c.h.b16 %v3953
    %v4014 = vpack.c.b16 %v3984, %v3982
    %v4015 = vpack.c.b16 %v3985, %v3983
    %v4016 = vpack.c.b16 %v3988, %v3986
    %v4017 = vpack.c.b16 %v3989, %v3987
    %v4018 = vpack.c.b16 %v3992, %v3990
    %v4019 = vpack.c.b16 %v3993, %v3991
    %v4020 = vpack.c.b16 %v3996, %v3994
    %v4021 = vpack.c.b16 %v3997, %v3995
    %v4022 = vpack.c.b16 %v4000, %v3998
    %v4023 = vpack.c.b16 %v4001, %v3999
    %v4024 = vpack.c.b16 %v4004, %v4002
    %v4025 = vpack.c.b16 %v4005, %v4003
    %v4026 = vpack.c.b16 %v4008, %v4006
    %v4027 = vpack.c.b16 %v4009, %v4007
    %v4028 = vpack.c.b16 %v4012, %v4010
    %v4029 = vpack.c.b16 %v4013, %v4011
    %4046 = vmatpush.bf16.msra.mxu0 %v4028
    %4047 = vmatpush.bf16.msra.mxu0 %v4026
    %4048 = vmatpush.bf16.msra.mxu0 %v4024
    %4049 = vmatpush.bf16.msra.mxu0 %v4022
    %4050 = vmatpush.bf16.msra.mxu0 %v4020
    %4051 = vmatpush.bf16.msra.mxu0 %v4018
    %4052 = vmatpush.bf16.msra.mxu0 %v4016
    %4053 = vmatpush.bf16.msra.mxu0 %v4014
    %4054 = vmatmul.bf16.gmra.mxu0 %v3964
    %v4055 = vpop.f32.mrf.mxu0
    %v4056 = vadd.f32 0.0, %v4055
    %v4057 = vpop.f32.mrf.mxu0
    %4058 = vdwg.mxu0
    %4059 = vmatpush.bf16.msra.mxu0 %v4029
    %4060 = vmatpush.bf16.msra.mxu0 %v4027
    %4061 = vmatpush.bf16.msra.mxu0 %v4025
    %4062 = vmatpush.bf16.msra.mxu0 %v4023
    %4063 = vmatpush.bf16.msra.mxu0 %v4021
    %4064 = vmatpush.bf16.msra.mxu0 %v4019
    %4065 = vmatpush.bf16.msra.mxu0 %v4017
    %4066 = vmatpush.bf16.msra.mxu0 %v4015
    %4067 = vmatmul.bf16.gmra.mxu0 %v3964
    %v4068 = vpop.f32.mrf.mxu0
    %v4069 = vadd.f32 0.0, %v4068
    %v4070 = vpop.f32.mrf.mxu0
    %4071 = vdwg.mxu0
    %v4072 = vadd.f32 %v3935, %v4056
    %v4073 = vadd.f32 %v3936, %v4069
    %4075 = vrot.lane.b32.xlu0 %v4072, 64
    %v4076 = vpop.permute.xlu0 %4075
    %v4078 = vmax.f32 %v4072, %v4076
    %4080 = vrot.lane.b32.xlu0 %v4073, 64
    %v4081 = vpop.permute.xlu0 %4080
    %v4083 = vmax.f32 %v4073, %v4081
    %v4084 = vmax.f32 %v4078, %v4083
    %v4085 = vld [vmem:[%s2] sm:$0x1]
    %v4087 = vperm.slane %v4085, 0
    %v4089 = vadd.f32 %v4084, %v4087
    %v4090 = vmax.f32 %v4089, 0.0
    %v4091 = vpack.c.bf16 %v4090, %v4090
    %v4093 = vrot.slane %v4091, 3
    %v4096 = vsel %vm883, %v4091, %v4093
    %4098 = vrot.lane.b32.xlu0 %v4096, 64
    %v4099 = vpop.permute.xlu0 %4098
    %4101 = vst.msk [vmem:[#allocation2 + $0x3] sm:$0x1] %vm891, %v4099
    %v4102 = vld [vmem:[%s0 + $0x6] sm:$0x1]
    %v4103 = vld [vmem:[#allocation3] sm:$0xff]
    %v4104 = vld [vmem:[#allocation3 + $0x8] sm:$0xff]
    %v4105 = vld [vmem:[#allocation3 + $0x10] sm:$0xff]
    %v4106 = vld [vmem:[#allocation3 + $0x18] sm:$0xff]
    %v4107 = vld [vmem:[#allocation3 + $0x20] sm:$0xff]
    %v4108 = vld [vmem:[#allocation3 + $0x28] sm:$0xff]
    %v4109 = vld [vmem:[#allocation3 + $0x30] sm:$0xff]
    %v4110 = vld [vmem:[#allocation3 + $0x38] sm:$0xff]
    %v4111 = vld [vmem:[#allocation3 + $0x40] sm:$0xff]
    %v4112 = vld [vmem:[#allocation3 + $0x48] sm:$0xff]
    %v4113 = vld [vmem:[#allocation3 + $0x50] sm:$0xff]
    %v4114 = vld [vmem:[#allocation3 + $0x58] sm:$0xff]
    %v4115 = vld [vmem:[#allocation3 + $0x60] sm:$0xff]
    %v4116 = vld [vmem:[#allocation3 + $0x68] sm:$0xff]
    %v4117 = vld [vmem:[#allocation3 + $0x70] sm:$0xff]
    %v4118 = vld [vmem:[#allocation3 + $0x78] sm:$0xff]
    %v4119 = vld [vmem:[%s0 + $0x7] sm:$0x3]
    %v4120 = vld [vmem:[%s465] sm:$0xff]
    %v4121 = vld [vmem:[%s465 + $0x8] sm:$0xff]
    %v4122 = vld [vmem:[%s465 + $0x10] sm:$0xff]
    %v4123 = vld [vmem:[%s465 + $0x18] sm:$0xff]
    %v4124 = vld [vmem:[%s465 + $0x20] sm:$0xff]
    %v4125 = vld [vmem:[%s465 + $0x28] sm:$0xff]
    %v4126 = vld [vmem:[%s465 + $0x30] sm:$0xff]
    %v4127 = vld [vmem:[%s465 + $0x38] sm:$0xff]
    %v4128 = vld [vmem:[%s465 + $0x40] sm:$0xff]
    %v4129 = vld [vmem:[%s465 + $0x48] sm:$0xff]
    %v4130 = vld [vmem:[%s465 + $0x50] sm:$0xff]
    %v4131 = vld [vmem:[%s465 + $0x58] sm:$0xff]
    %v4132 = vld [vmem:[%s465 + $0x60] sm:$0xff]
    %v4133 = vld [vmem:[%s465 + $0x68] sm:$0xff]
    %v4134 = vld [vmem:[%s465 + $0x70] sm:$0xff]
    %v4135 = vld [vmem:[%s465 + $0x78] sm:$0xff]
    %4137 = vst [vmem:[#allocation1] ss:$9 sm:$0xff] %v4119
    %v4138 = vld [vmem:[#allocation1] sm:$0xff]
    %v4140 = vld [vmem:[#allocation1 + $0x9] sm:$0xff]
    %4142 = vrot.lane.b32.xlu0 %v4138, 32
    %v4143 = vpop.permute.xlu0 %4142
    %4144 = vrot.lane.b32.xlu0 %v4140, 32
    %v4145 = vpop.permute.xlu0 %4144
    %v4146 = vsel %vm90, %v4143, %v4145
    %v4164 = vunpack.c.l.b16 %v4120
    %v4165 = vunpack.c.h.b16 %v4120
    %v4166 = vunpack.c.l.b16 %v4121
    %v4167 = vunpack.c.h.b16 %v4121
    %v4168 = vunpack.c.l.b16 %v4122
    %v4169 = vunpack.c.h.b16 %v4122
    %v4170 = vunpack.c.l.b16 %v4123
    %v4171 = vunpack.c.h.b16 %v4123
    %v4172 = vunpack.c.l.b16 %v4124
    %v4173 = vunpack.c.h.b16 %v4124
    %v4174 = vunpack.c.l.b16 %v4125
    %v4175 = vunpack.c.h.b16 %v4125
    %v4176 = vunpack.c.l.b16 %v4126
    %v4177 = vunpack.c.h.b16 %v4126
    %v4178 = vunpack.c.l.b16 %v4127
    %v4179 = vunpack.c.h.b16 %v4127
    %v4180 = vunpack.c.l.b16 %v4128
    %v4181 = vunpack.c.h.b16 %v4128
    %v4182 = vunpack.c.l.b16 %v4129
    %v4183 = vunpack.c.h.b16 %v4129
    %v4184 = vunpack.c.l.b16 %v4130
    %v4185 = vunpack.c.h.b16 %v4130
    %v4186 = vunpack.c.l.b16 %v4131
    %v4187 = vunpack.c.h.b16 %v4131
    %v4188 = vunpack.c.l.b16 %v4132
    %v4189 = vunpack.c.h.b16 %v4132
    %v4190 = vunpack.c.l.b16 %v4133
    %v4191 = vunpack.c.h.b16 %v4133
    %v4192 = vunpack.c.l.b16 %v4134
    %v4193 = vunpack.c.h.b16 %v4134
    %v4194 = vunpack.c.l.b16 %v4135
    %v4195 = vunpack.c.h.b16 %v4135
    %v4196 = vpack.c.b16 %v4166, %v4164
    %v4197 = vpack.c.b16 %v4167, %v4165
    %v4198 = vpack.c.b16 %v4170, %v4168
    %v4199 = vpack.c.b16 %v4171, %v4169
    %v4200 = vpack.c.b16 %v4174, %v4172
    %v4201 = vpack.c.b16 %v4175, %v4173
    %v4202 = vpack.c.b16 %v4178, %v4176
    %v4203 = vpack.c.b16 %v4179, %v4177
    %v4204 = vpack.c.b16 %v4182, %v4180
    %v4205 = vpack.c.b16 %v4183, %v4181
    %v4206 = vpack.c.b16 %v4186, %v4184
    %v4207 = vpack.c.b16 %v4187, %v4185
    %v4208 = vpack.c.b16 %v4190, %v4188
    %v4209 = vpack.c.b16 %v4191, %v4189
    %v4210 = vpack.c.b16 %v4194, %v4192
    %v4211 = vpack.c.b16 %v4195, %v4193
    %4228 = vmatpush.bf16.msra.mxu0 %v4210
    %4229 = vmatpush.bf16.msra.mxu0 %v4208
    %4230 = vmatpush.bf16.msra.mxu0 %v4206
    %4231 = vmatpush.bf16.msra.mxu0 %v4204
    %4232 = vmatpush.bf16.msra.mxu0 %v4202
    %4233 = vmatpush.bf16.msra.mxu0 %v4200
    %4234 = vmatpush.bf16.msra.mxu0 %v4198
    %4235 = vmatpush.bf16.msra.mxu0 %v4196
    %4236 = vmatmul.bf16.gmra.mxu0 %v4146
    %v4237 = vpop.f32.mrf.mxu0
    %v4238 = vadd.f32 0.0, %v4237
    %v4239 = vpop.f32.mrf.mxu0
    %4240 = vdwg.mxu0
    %4241 = vmatpush.bf16.msra.mxu0 %v4211
    %4242 = vmatpush.bf16.msra.mxu0 %v4209
    %4243 = vmatpush.bf16.msra.mxu0 %v4207
    %4244 = vmatpush.bf16.msra.mxu0 %v4205
    %4245 = vmatpush.bf16.msra.mxu0 %v4203
    %4246 = vmatpush.bf16.msra.mxu0 %v4201
    %4247 = vmatpush.bf16.msra.mxu0 %v4199
    %4248 = vmatpush.bf16.msra.mxu0 %v4197
    %4249 = vmatmul.bf16.gmra.mxu0 %v4146
    %v4250 = vpop.f32.mrf.mxu0
    %v4251 = vadd.f32 0.0, %v4250
    %v4252 = vpop.f32.mrf.mxu0
    %4253 = vdwg.mxu0
    %v4270 = vunpack.c.l.b16 %v4103
    %v4271 = vunpack.c.h.b16 %v4103
    %v4272 = vunpack.c.l.b16 %v4104
    %v4273 = vunpack.c.h.b16 %v4104
    %v4274 = vunpack.c.l.b16 %v4105
    %v4275 = vunpack.c.h.b16 %v4105
    %v4276 = vunpack.c.l.b16 %v4106
    %v4277 = vunpack.c.h.b16 %v4106
    %v4278 = vunpack.c.l.b16 %v4107
    %v4279 = vunpack.c.h.b16 %v4107
    %v4280 = vunpack.c.l.b16 %v4108
    %v4281 = vunpack.c.h.b16 %v4108
    %v4282 = vunpack.c.l.b16 %v4109
    %v4283 = vunpack.c.h.b16 %v4109
    %v4284 = vunpack.c.l.b16 %v4110
    %v4285 = vunpack.c.h.b16 %v4110
    %v4286 = vunpack.c.l.b16 %v4111
    %v4287 = vunpack.c.h.b16 %v4111
    %v4288 = vunpack.c.l.b16 %v4112
    %v4289 = vunpack.c.h.b16 %v4112
    %v4290 = vunpack.c.l.b16 %v4113
    %v4291 = vunpack.c.h.b16 %v4113
    %v4292 = vunpack.c.l.b16 %v4114
    %v4293 = vunpack.c.h.b16 %v4114
    %v4294 = vunpack.c.l.b16 %v4115
    %v4295 = vunpack.c.h.b16 %v4115
    %v4296 = vunpack.c.l.b16 %v4116
    %v4297 = vunpack.c.h.b16 %v4116
    %v4298 = vunpack.c.l.b16 %v4117
    %v4299 = vunpack.c.h.b16 %v4117
    %v4300 = vunpack.c.l.b16 %v4118
    %v4301 = vunpack.c.h.b16 %v4118
    %v4302 = vpack.c.b16 %v4272, %v4270
    %v4303 = vpack.c.b16 %v4273, %v4271
    %v4304 = vpack.c.b16 %v4276, %v4274
    %v4305 = vpack.c.b16 %v4277, %v4275
    %v4306 = vpack.c.b16 %v4280, %v4278
    %v4307 = vpack.c.b16 %v4281, %v4279
    %v4308 = vpack.c.b16 %v4284, %v4282
    %v4309 = vpack.c.b16 %v4285, %v4283
    %v4310 = vpack.c.b16 %v4288, %v4286
    %v4311 = vpack.c.b16 %v4289, %v4287
    %v4312 = vpack.c.b16 %v4292, %v4290
    %v4313 = vpack.c.b16 %v4293, %v4291
    %v4314 = vpack.c.b16 %v4296, %v4294
    %v4315 = vpack.c.b16 %v4297, %v4295
    %v4316 = vpack.c.b16 %v4300, %v4298
    %v4317 = vpack.c.b16 %v4301, %v4299
    %4334 = vmatpush.bf16.msra.mxu0 %v4316
    %4335 = vmatpush.bf16.msra.mxu0 %v4314
    %4336 = vmatpush.bf16.msra.mxu0 %v4312
    %4337 = vmatpush.bf16.msra.mxu0 %v4310
    %4338 = vmatpush.bf16.msra.mxu0 %v4308
    %4339 = vmatpush.bf16.msra.mxu0 %v4306
    %4340 = vmatpush.bf16.msra.mxu0 %v4304
    %4341 = vmatpush.bf16.msra.mxu0 %v4302
    %4342 = vmatmul.bf16.gmra.mxu0 %v4102
    %v4343 = vpop.f32.mrf.mxu0
    %v4344 = vadd.f32 %v4238, %v4343
    %v4345 = vpop.f32.mrf.mxu0
    %4346 = vdwg.mxu0
    %4347 = vmatpush.bf16.msra.mxu0 %v4317
    %4348 = vmatpush.bf16.msra.mxu0 %v4315
    %4349 = vmatpush.bf16.msra.mxu0 %v4313
    %4350 = vmatpush.bf16.msra.mxu0 %v4311
    %4351 = vmatpush.bf16.msra.mxu0 %v4309
    %4352 = vmatpush.bf16.msra.mxu0 %v4307
    %4353 = vmatpush.bf16.msra.mxu0 %v4305
    %4354 = vmatpush.bf16.msra.mxu0 %v4303
    %4355 = vmatmul.bf16.gmra.mxu0 %v4102
    %v4356 = vpop.f32.mrf.mxu0
    %v4357 = vadd.f32 %v4251, %v4356
    %v4358 = vpop.f32.mrf.mxu0
    %4359 = vdwg.mxu0
    %v4360 = vld [vmem:[%s0 + $0x9] sm:$0x3]
    %v4361 = vld [vmem:[%s483] sm:$0xff]
    %v4362 = vld [vmem:[%s483 + $0x8] sm:$0xff]
    %v4363 = vld [vmem:[%s483 + $0x10] sm:$0xff]
    %v4364 = vld [vmem:[%s483 + $0x18] sm:$0xff]
    %v4365 = vld [vmem:[%s483 + $0x20] sm:$0xff]
    %v4366 = vld [vmem:[%s483 + $0x28] sm:$0xff]
    %v4367 = vld [vmem:[%s483 + $0x30] sm:$0xff]
    %v4368 = vld [vmem:[%s483 + $0x38] sm:$0xff]
    %v4369 = vld [vmem:[%s483 + $0x40] sm:$0xff]
    %v4370 = vld [vmem:[%s483 + $0x48] sm:$0xff]
    %v4371 = vld [vmem:[%s483 + $0x50] sm:$0xff]
    %v4372 = vld [vmem:[%s483 + $0x58] sm:$0xff]
    %v4373 = vld [vmem:[%s483 + $0x60] sm:$0xff]
    %v4374 = vld [vmem:[%s483 + $0x68] sm:$0xff]
    %v4375 = vld [vmem:[%s483 + $0x70] sm:$0xff]
    %v4376 = vld [vmem:[%s483 + $0x78] sm:$0xff]
    %4378 = vst [vmem:[#allocation1] ss:$9 sm:$0xff] %v4360
    %v4379 = vld [vmem:[#allocation1] sm:$0xff]
    %v4381 = vld [vmem:[#allocation1 + $0x9] sm:$0xff]
    %4383 = vrot.lane.b32.xlu0 %v4379, 64
    %v4384 = vpop.permute.xlu0 %4383
    %4385 = vrot.lane.b32.xlu0 %v4381, 64
    %v4386 = vpop.permute.xlu0 %4385
    %v4387 = vsel %vm333, %v4384, %v4386
    %v4405 = vunpack.c.l.b16 %v4361
    %v4406 = vunpack.c.h.b16 %v4361
    %v4407 = vunpack.c.l.b16 %v4362
    %v4408 = vunpack.c.h.b16 %v4362
    %v4409 = vunpack.c.l.b16 %v4363
    %v4410 = vunpack.c.h.b16 %v4363
    %v4411 = vunpack.c.l.b16 %v4364
    %v4412 = vunpack.c.h.b16 %v4364
    %v4413 = vunpack.c.l.b16 %v4365
    %v4414 = vunpack.c.h.b16 %v4365
    %v4415 = vunpack.c.l.b16 %v4366
    %v4416 = vunpack.c.h.b16 %v4366
    %v4417 = vunpack.c.l.b16 %v4367
    %v4418 = vunpack.c.h.b16 %v4367
    %v4419 = vunpack.c.l.b16 %v4368
    %v4420 = vunpack.c.h.b16 %v4368
    %v4421 = vunpack.c.l.b16 %v4369
    %v4422 = vunpack.c.h.b16 %v4369
    %v4423 = vunpack.c.l.b16 %v4370
    %v4424 = vunpack.c.h.b16 %v4370
    %v4425 = vunpack.c.l.b16 %v4371
    %v4426 = vunpack.c.h.b16 %v4371
    %v4427 = vunpack.c.l.b16 %v4372
    %v4428 = vunpack.c.h.b16 %v4372
    %v4429 = vunpack.c.l.b16 %v4373
    %v4430 = vunpack.c.h.b16 %v4373
    %v4431 = vunpack.c.l.b16 %v4374
    %v4432 = vunpack.c.h.b16 %v4374
    %v4433 = vunpack.c.l.b16 %v4375
    %v4434 = vunpack.c.h.b16 %v4375
    %v4435 = vunpack.c.l.b16 %v4376
    %v4436 = vunpack.c.h.b16 %v4376
    %v4437 = vpack.c.b16 %v4407, %v4405
    %v4438 = vpack.c.b16 %v4408, %v4406
    %v4439 = vpack.c.b16 %v4411, %v4409
    %v4440 = vpack.c.b16 %v4412, %v4410
    %v4441 = vpack.c.b16 %v4415, %v4413
    %v4442 = vpack.c.b16 %v4416, %v4414
    %v4443 = vpack.c.b16 %v4419, %v4417
    %v4444 = vpack.c.b16 %v4420, %v4418
    %v4445 = vpack.c.b16 %v4423, %v4421
    %v4446 = vpack.c.b16 %v4424, %v4422
    %v4447 = vpack.c.b16 %v4427, %v4425
    %v4448 = vpack.c.b16 %v4428, %v4426
    %v4449 = vpack.c.b16 %v4431, %v4429
    %v4450 = vpack.c.b16 %v4432, %v4430
    %v4451 = vpack.c.b16 %v4435, %v4433
    %v4452 = vpack.c.b16 %v4436, %v4434
    %4469 = vmatpush.bf16.msra.mxu0 %v4451
    %4470 = vmatpush.bf16.msra.mxu0 %v4449
    %4471 = vmatpush.bf16.msra.mxu0 %v4447
    %4472 = vmatpush.bf16.msra.mxu0 %v4445
    %4473 = vmatpush.bf16.msra.mxu0 %v4443
    %4474 = vmatpush.bf16.msra.mxu0 %v4441
    %4475 = vmatpush.bf16.msra.mxu0 %v4439
    %4476 = vmatpush.bf16.msra.mxu0 %v4437
    %4477 = vmatmul.bf16.gmra.mxu0 %v4387
    %v4478 = vpop.f32.mrf.mxu0
    %v4479 = vadd.f32 0.0, %v4478
    %v4480 = vpop.f32.mrf.mxu0
    %4481 = vdwg.mxu0
    %4482 = vmatpush.bf16.msra.mxu0 %v4452
    %4483 = vmatpush.bf16.msra.mxu0 %v4450
    %4484 = vmatpush.bf16.msra.mxu0 %v4448
    %4485 = vmatpush.bf16.msra.mxu0 %v4446
    %4486 = vmatpush.bf16.msra.mxu0 %v4444
    %4487 = vmatpush.bf16.msra.mxu0 %v4442
    %4488 = vmatpush.bf16.msra.mxu0 %v4440
    %4489 = vmatpush.bf16.msra.mxu0 %v4438
    %4490 = vmatmul.bf16.gmra.mxu0 %v4387
    %v4491 = vpop.f32.mrf.mxu0
    %v4492 = vadd.f32 0.0, %v4491
    %v4493 = vpop.f32.mrf.mxu0
    %4494 = vdwg.mxu0
    %v4495 = vadd.f32 %v4344, %v4479
    %v4496 = vadd.f32 %v4357, %v4492
    %v4497 = vld [vmem:[%s0 + $0xb] sm:$0x3]
    %v4498 = vld [vmem:[%s726] sm:$0xff]
    %v4499 = vld [vmem:[%s726 + $0x8] sm:$0xff]
    %v4500 = vld [vmem:[%s726 + $0x10] sm:$0xff]
    %v4501 = vld [vmem:[%s726 + $0x18] sm:$0xff]
    %v4502 = vld [vmem:[%s726 + $0x20] sm:$0xff]
    %v4503 = vld [vmem:[%s726 + $0x28] sm:$0xff]
    %v4504 = vld [vmem:[%s726 + $0x30] sm:$0xff]
    %v4505 = vld [vmem:[%s726 + $0x38] sm:$0xff]
    %v4506 = vld [vmem:[%s726 + $0x40] sm:$0xff]
    %v4507 = vld [vmem:[%s726 + $0x48] sm:$0xff]
    %v4508 = vld [vmem:[%s726 + $0x50] sm:$0xff]
    %v4509 = vld [vmem:[%s726 + $0x58] sm:$0xff]
    %v4510 = vld [vmem:[%s726 + $0x60] sm:$0xff]
    %v4511 = vld [vmem:[%s726 + $0x68] sm:$0xff]
    %v4512 = vld [vmem:[%s726 + $0x70] sm:$0xff]
    %v4513 = vld [vmem:[%s726 + $0x78] sm:$0xff]
    %4515 = vst [vmem:[#allocation1] ss:$9 sm:$0xff] %v4497
    %v4516 = vld [vmem:[#allocation1] sm:$0xff]
    %v4518 = vld [vmem:[#allocation1 + $0x9] sm:$0xff]
    %4520 = vrot.lane.b32.xlu0 %v4516, 96
    %v4521 = vpop.permute.xlu0 %4520
    %4522 = vrot.lane.b32.xlu0 %v4518, 96
    %v4523 = vpop.permute.xlu0 %4522
    %v4524 = vsel %vm616, %v4521, %v4523
    %v4542 = vunpack.c.l.b16 %v4498
    %v4543 = vunpack.c.h.b16 %v4498
    %v4544 = vunpack.c.l.b16 %v4499
    %v4545 = vunpack.c.h.b16 %v4499
    %v4546 = vunpack.c.l.b16 %v4500
    %v4547 = vunpack.c.h.b16 %v4500
    %v4548 = vunpack.c.l.b16 %v4501
    %v4549 = vunpack.c.h.b16 %v4501
    %v4550 = vunpack.c.l.b16 %v4502
    %v4551 = vunpack.c.h.b16 %v4502
    %v4552 = vunpack.c.l.b16 %v4503
    %v4553 = vunpack.c.h.b16 %v4503
    %v4554 = vunpack.c.l.b16 %v4504
    %v4555 = vunpack.c.h.b16 %v4504
    %v4556 = vunpack.c.l.b16 %v4505
    %v4557 = vunpack.c.h.b16 %v4505
    %v4558 = vunpack.c.l.b16 %v4506
    %v4559 = vunpack.c.h.b16 %v4506
    %v4560 = vunpack.c.l.b16 %v4507
    %v4561 = vunpack.c.h.b16 %v4507
    %v4562 = vunpack.c.l.b16 %v4508
    %v4563 = vunpack.c.h.b16 %v4508
    %v4564 = vunpack.c.l.b16 %v4509
    %v4565 = vunpack.c.h.b16 %v4509
    %v4566 = vunpack.c.l.b16 %v4510
    %v4567 = vunpack.c.h.b16 %v4510
    %v4568 = vunpack.c.l.b16 %v4511
    %v4569 = vunpack.c.h.b16 %v4511
    %v4570 = vunpack.c.l.b16 %v4512
    %v4571 = vunpack.c.h.b16 %v4512
    %v4572 = vunpack.c.l.b16 %v4513
    %v4573 = vunpack.c.h.b16 %v4513
    %v4574 = vpack.c.b16 %v4544, %v4542
    %v4575 = vpack.c.b16 %v4545, %v4543
    %v4576 = vpack.c.b16 %v4548, %v4546
    %v4577 = vpack.c.b16 %v4549, %v4547
    %v4578 = vpack.c.b16 %v4552, %v4550
    %v4579 = vpack.c.b16 %v4553, %v4551
    %v4580 = vpack.c.b16 %v4556, %v4554
    %v4581 = vpack.c.b16 %v4557, %v4555
    %v4582 = vpack.c.b16 %v4560, %v4558
    %v4583 = vpack.c.b16 %v4561, %v4559
    %v4584 = vpack.c.b16 %v4564, %v4562
    %v4585 = vpack.c.b16 %v4565, %v4563
    %v4586 = vpack.c.b16 %v4568, %v4566
    %v4587 = vpack.c.b16 %v4569, %v4567
    %v4588 = vpack.c.b16 %v4572, %v4570
    %v4589 = vpack.c.b16 %v4573, %v4571
    %4606 = vmatpush.bf16.msra.mxu0 %v4588
    %4607 = vmatpush.bf16.msra.mxu0 %v4586
    %4608 = vmatpush.bf16.msra.mxu0 %v4584
    %4609 = vmatpush.bf16.msra.mxu0 %v4582
    %4610 = vmatpush.bf16.msra.mxu0 %v4580
    %4611 = vmatpush.bf16.msra.mxu0 %v4578
    %4612 = vmatpush.bf16.msra.mxu0 %v4576
    %4613 = vmatpush.bf16.msra.mxu0 %v4574
    %4614 = vmatmul.bf16.gmra.mxu0 %v4524
    %v4615 = vpop.f32.mrf.mxu0
    %v4616 = vadd.f32 0.0, %v4615
    %v4617 = vpop.f32.mrf.mxu0
    %4618 = vdwg.mxu0
    %4619 = vmatpush.bf16.msra.mxu0 %v4589
    %4620 = vmatpush.bf16.msra.mxu0 %v4587
    %4621 = vmatpush.bf16.msra.mxu0 %v4585
    %4622 = vmatpush.bf16.msra.mxu0 %v4583
    %4623 = vmatpush.bf16.msra.mxu0 %v4581
    %4624 = vmatpush.bf16.msra.mxu0 %v4579
    %4625 = vmatpush.bf16.msra.mxu0 %v4577
    %4626 = vmatpush.bf16.msra.mxu0 %v4575
    %4627 = vmatmul.bf16.gmra.mxu0 %v4524
    %v4628 = vpop.f32.mrf.mxu0
    %v4629 = vadd.f32 0.0, %v4628
    %v4630 = vpop.f32.mrf.mxu0
    %4631 = vdwg.mxu0
    %v4632 = vadd.f32 %v4495, %v4616
    %v4633 = vadd.f32 %v4496, %v4629
    %4635 = vrot.lane.b32.xlu0 %v4632, 64
    %v4636 = vpop.permute.xlu0 %4635
    %v4638 = vmax.f32 %v4632, %v4636
    %4640 = vrot.lane.b32.xlu0 %v4633, 64
    %v4641 = vpop.permute.xlu0 %4640
    %v4643 = vmax.f32 %v4633, %v4641
    %v4644 = vmax.f32 %v4638, %v4643
    %v4645 = vld [vmem:[%s2] sm:$0x1]
    %v4647 = vperm.slane %v4645, 0
    %v4649 = vadd.f32 %v4644, %v4647
    %v4650 = vmax.f32 %v4649, 0.0
    %v4651 = vpack.c.bf16 %v4650, %v4650
    %4652 = vst.msk [vmem:[#allocation2 + $0x4] sm:$0x1] %vm462, %v4651
    %v4653 = vld [vmem:[#allocation2] sm:$0x1f]
    %v4654 = vld [vmem:[%s3] sm:$0xff]
    %v4655 = vld [vmem:[%s3 + $0x8] sm:$0xff]
    %v4656 = vld [vmem:[%s3 + $0x10] sm:$0xff]
    %v4657 = vld [vmem:[%s3 + $0x18] sm:$0xff]
    %v4658 = vld [vmem:[%s3 + $0x20] sm:$0xff]
    %v4659 = vld [vmem:[%s3 + $0x28] sm:$0xff]
    %v4660 = vld [vmem:[%s3 + $0x30] sm:$0xff]
    %v4661 = vld [vmem:[%s3 + $0x38] sm:$0xff]
    %v4662 = vld [vmem:[%s3 + $0x40] sm:$0xff]
    %v4663 = vld [vmem:[%s3 + $0x48] sm:$0xff]
    %v4664 = vld [vmem:[%s3 + $0x50] sm:$0xff]
    %v4665 = vld [vmem:[%s3 + $0x58] sm:$0xff]
    %v4666 = vld [vmem:[%s3 + $0x60] sm:$0xff]
    %v4667 = vld [vmem:[%s3 + $0x68] sm:$0xff]
    %v4668 = vld [vmem:[%s3 + $0x70] sm:$0xff]
    %v4669 = vld [vmem:[%s3 + $0x78] sm:$0xff]
    %v4670 = vld [vmem:[%s3 + $0x80] sm:$0xff]
    %v4671 = vld [vmem:[%s3 + $0x88] sm:$0xff]
    %v4672 = vld [vmem:[%s3 + $0x90] sm:$0xff]
    %v4673 = vld [vmem:[%s3 + $0x98] sm:$0xff]
    %v4674 = vld [vmem:[%s3 + $0xa0] sm:$0xff]
    %v4675 = vld [vmem:[%s3 + $0xa8] sm:$0xff]
    %v4676 = vld [vmem:[%s3 + $0xb0] sm:$0xff]
    %v4677 = vld [vmem:[%s3 + $0xb8] sm:$0xff]
    %v4678 = vld [vmem:[%s3 + $0xc0] sm:$0xff]
    %v4679 = vld [vmem:[%s3 + $0xc8] sm:$0xff]
    %v4680 = vld [vmem:[%s3 + $0xd0] sm:$0xff]
    %v4681 = vld [vmem:[%s3 + $0xd8] sm:$0xff]
    %v4682 = vld [vmem:[%s3 + $0xe0] sm:$0xff]
    %v4683 = vld [vmem:[%s3 + $0xe8] sm:$0xff]
    %v4684 = vld [vmem:[%s3 + $0xf0] sm:$0xff]
    %v4685 = vld [vmem:[%s3 + $0xf8] sm:$0xff]
    %v4686 = vld [vmem:[%s3 + $0x100] sm:$0xff]
    %v4687 = vld [vmem:[%s3 + $0x108] sm:$0xff]
    %v4688 = vld [vmem:[%s3 + $0x110] sm:$0xff]
    %v4689 = vld [vmem:[%s3 + $0x118] sm:$0xff]
    %v4690 = vld [vmem:[%s3 + $0x120] sm:$0xff]
    %v4691 = vld [vmem:[%s3 + $0x128] sm:$0xff]
    %v4692 = vld [vmem:[%s3 + $0x130] sm:$0xff]
    %v4693 = vld [vmem:[%s3 + $0x138] sm:$0xff]
    %v4694 = vld [vmem:[%s3 + $0x140] sm:$0xff]
    %v4695 = vld [vmem:[%s3 + $0x148] sm:$0xff]
    %v4696 = vld [vmem:[%s3 + $0x150] sm:$0xff]
    %v4697 = vld [vmem:[%s3 + $0x158] sm:$0xff]
    %v4698 = vld [vmem:[%s3 + $0x160] sm:$0xff]
    %v4699 = vld [vmem:[%s3 + $0x168] sm:$0xff]
    %v4700 = vld [vmem:[%s3 + $0x170] sm:$0xff]
    %v4701 = vld [vmem:[%s3 + $0x178] sm:$0xff]
    %v4702 = vld [vmem:[%s3 + $0x180] sm:$0xff]
    %v4703 = vld [vmem:[%s3 + $0x188] sm:$0xff]
    %v4704 = vld [vmem:[%s3 + $0x190] sm:$0xff]
    %v4705 = vld [vmem:[%s3 + $0x198] sm:$0xff]
    %v4706 = vld [vmem:[%s3 + $0x1a0] sm:$0xff]
    %v4707 = vld [vmem:[%s3 + $0x1a8] sm:$0xff]
    %v4708 = vld [vmem:[%s3 + $0x1b0] sm:$0xff]
    %v4709 = vld [vmem:[%s3 + $0x1b8] sm:$0xff]
    %v4710 = vld [vmem:[%s3 + $0x1c0] sm:$0xff]
    %v4711 = vld [vmem:[%s3 + $0x1c8] sm:$0xff]
    %v4712 = vld [vmem:[%s3 + $0x1d0] sm:$0xff]
    %v4713 = vld [vmem:[%s3 + $0x1d8] sm:$0xff]
    %v4714 = vld [vmem:[%s3 + $0x1e0] sm:$0xff]
    %v4715 = vld [vmem:[%s3 + $0x1e8] sm:$0xff]
    %v4716 = vld [vmem:[%s3 + $0x1f0] sm:$0xff]
    %v4717 = vld [vmem:[%s3 + $0x1f8] sm:$0xff]
    %v4718 = vld [vmem:[%s3 + $0x200] sm:$0xff]
    %v4719 = vld [vmem:[%s3 + $0x208] sm:$0xff]
    %v4720 = vld [vmem:[%s3 + $0x210] sm:$0xff]
    %v4721 = vld [vmem:[%s3 + $0x218] sm:$0xff]
    %v4722 = vld [vmem:[%s3 + $0x220] sm:$0xff]
    %v4723 = vld [vmem:[%s3 + $0x228] sm:$0xff]
    %v4724 = vld [vmem:[%s3 + $0x230] sm:$0xff]
    %v4725 = vld [vmem:[%s3 + $0x238] sm:$0xff]
    %v4726 = vld [vmem:[%s3 + $0x240] sm:$0xff]
    %v4727 = vld [vmem:[%s3 + $0x248] sm:$0xff]
    %v4728 = vld [vmem:[%s3 + $0x250] sm:$0xff]
    %v4729 = vld [vmem:[%s3 + $0x258] sm:$0xff]
    %v4730 = vld [vmem:[%s3 + $0x260] sm:$0xff]
    %v4731 = vld [vmem:[%s3 + $0x268] sm:$0xff]
    %v4732 = vld [vmem:[%s3 + $0x270] sm:$0xff]
    %v4733 = vld [vmem:[%s3 + $0x278] sm:$0xff]
    %v4734 = vld [vmem:[%s3 + $0x280] sm:$0xff]
    %v4735 = vld [vmem:[%s3 + $0x288] sm:$0xff]
    %v4736 = vld [vmem:[%s3 + $0x290] sm:$0xff]
    %v4737 = vld [vmem:[%s3 + $0x298] sm:$0xff]
    %v4738 = vld [vmem:[%s3 + $0x2a0] sm:$0xff]
    %v4739 = vld [vmem:[%s3 + $0x2a8] sm:$0xff]
    %v4740 = vld [vmem:[%s3 + $0x2b0] sm:$0xff]
    %v4741 = vld [vmem:[%s3 + $0x2b8] sm:$0xff]
    %v4742 = vld [vmem:[%s3 + $0x2c0] sm:$0xff]
    %v4743 = vld [vmem:[%s3 + $0x2c8] sm:$0xff]
    %v4744 = vld [vmem:[%s3 + $0x2d0] sm:$0xff]
    %v4745 = vld [vmem:[%s3 + $0x2d8] sm:$0xff]
    %v4746 = vld [vmem:[%s3 + $0x2e0] sm:$0xff]
    %v4747 = vld [vmem:[%s3 + $0x2e8] sm:$0xff]
    %v4748 = vld [vmem:[%s3 + $0x2f0] sm:$0xff]
    %v4749 = vld [vmem:[%s3 + $0x2f8] sm:$0xff]
    %v4750 = vld [vmem:[%s3 + $0x300] sm:$0xff]
    %v4751 = vld [vmem:[%s3 + $0x308] sm:$0xff]
    %v4752 = vld [vmem:[%s3 + $0x310] sm:$0xff]
    %v4753 = vld [vmem:[%s3 + $0x318] sm:$0xff]
    %v4754 = vld [vmem:[%s3 + $0x320] sm:$0xff]
    %v4755 = vld [vmem:[%s3 + $0x328] sm:$0xff]
    %v4756 = vld [vmem:[%s3 + $0x330] sm:$0xff]
    %v4757 = vld [vmem:[%s3 + $0x338] sm:$0xff]
    %v4758 = vld [vmem:[%s3 + $0x340] sm:$0xff]
    %v4759 = vld [vmem:[%s3 + $0x348] sm:$0xff]
    %v4760 = vld [vmem:[%s3 + $0x350] sm:$0xff]
    %v4761 = vld [vmem:[%s3 + $0x358] sm:$0xff]
    %v4762 = vld [vmem:[%s3 + $0x360] sm:$0xff]
    %v4763 = vld [vmem:[%s3 + $0x368] sm:$0xff]
    %v4764 = vld [vmem:[%s3 + $0x370] sm:$0xff]
    %v4765 = vld [vmem:[%s3 + $0x378] sm:$0xff]
    %v4766 = vld [vmem:[%s3 + $0x380] sm:$0xff]
    %v4767 = vld [vmem:[%s3 + $0x388] sm:$0xff]
    %v4768 = vld [vmem:[%s3 + $0x390] sm:$0xff]
    %v4769 = vld [vmem:[%s3 + $0x398] sm:$0xff]
    %v4770 = vld [vmem:[%s3 + $0x3a0] sm:$0xff]
    %v4771 = vld [vmem:[%s3 + $0x3a8] sm:$0xff]
    %v4772 = vld [vmem:[%s3 + $0x3b0] sm:$0xff]
    %v4773 = vld [vmem:[%s3 + $0x3b8] sm:$0xff]
    %v4774 = vld [vmem:[%s3 + $0x3c0] sm:$0xff]
    %v4775 = vld [vmem:[%s3 + $0x3c8] sm:$0xff]
    %v4776 = vld [vmem:[%s3 + $0x3d0] sm:$0xff]
    %v4777 = vld [vmem:[%s3 + $0x3d8] sm:$0xff]
    %v4778 = vld [vmem:[%s3 + $0x3e0] sm:$0xff]
    %v4779 = vld [vmem:[%s3 + $0x3e8] sm:$0xff]
    %v4780 = vld [vmem:[%s3 + $0x3f0] sm:$0xff]
    %v4781 = vld [vmem:[%s3 + $0x3f8] sm:$0xff]
    %v4782 = vld [vmem:[%s3 + $0x400] sm:$0xff]
    %v4783 = vld [vmem:[%s3 + $0x408] sm:$0xff]
    %v4784 = vld [vmem:[%s3 + $0x410] sm:$0xff]
    %v4785 = vld [vmem:[%s3 + $0x418] sm:$0xff]
    %v4786 = vld [vmem:[%s3 + $0x420] sm:$0xff]
    %v4787 = vld [vmem:[%s3 + $0x428] sm:$0xff]
    %v4788 = vld [vmem:[%s3 + $0x430] sm:$0xff]
    %v4789 = vld [vmem:[%s3 + $0x438] sm:$0xff]
    %v4790 = vld [vmem:[%s3 + $0x440] sm:$0xff]
    %v4791 = vld [vmem:[%s3 + $0x448] sm:$0xff]
    %v4792 = vld [vmem:[%s3 + $0x450] sm:$0xff]
    %v4793 = vld [vmem:[%s3 + $0x458] sm:$0xff]
    %v4794 = vld [vmem:[%s3 + $0x460] sm:$0xff]
    %v4795 = vld [vmem:[%s3 + $0x468] sm:$0xff]
    %v4796 = vld [vmem:[%s3 + $0x470] sm:$0xff]
    %v4797 = vld [vmem:[%s3 + $0x478] sm:$0xff]
    %v4798 = vld [vmem:[%s4] sm:$0xf]
    %v4800 = vperm.slane %v4798, 0
    %v4801 = vperm.slane %v4798, 1
    %v4802 = vperm.slane %v4798, 2
    %v4803 = vperm.slane %v4798, 3
    %4809 = vst [vmem:[#allocation1] ss:$9 sm:$0xff] %v4653
    %v4810 = vld [vmem:[#allocation1] sm:$0xff]
    %v4811 = vld [vmem:[#allocation1 + $0x9] sm:$0xff]
    %v4812 = vld [vmem:[#allocation1 + $0x12] sm:$0xff]
    %v4813 = vld [vmem:[#allocation1 + $0x1b] sm:$0xff]
    %v4814 = vld [vmem:[#allocation1 + $0x24] sm:$0xff]
    %v4963 = vunpack.c.l.b16 %v4654
    %v4964 = vunpack.c.h.b16 %v4654
    %v4965 = vunpack.c.l.b16 %v4655
    %v4966 = vunpack.c.h.b16 %v4655
    %v4967 = vunpack.c.l.b16 %v4656
    %v4968 = vunpack.c.h.b16 %v4656
    %v4969 = vunpack.c.l.b16 %v4657
    %v4970 = vunpack.c.h.b16 %v4657
    %v4971 = vunpack.c.l.b16 %v4658
    %v4972 = vunpack.c.h.b16 %v4658
    %v4973 = vunpack.c.l.b16 %v4659
    %v4974 = vunpack.c.h.b16 %v4659
    %v4975 = vunpack.c.l.b16 %v4660
    %v4976 = vunpack.c.h.b16 %v4660
    %v4977 = vunpack.c.l.b16 %v4661
    %v4978 = vunpack.c.h.b16 %v4661
    %v4979 = vunpack.c.l.b16 %v4662
    %v4980 = vunpack.c.h.b16 %v4662
    %v4981 = vunpack.c.l.b16 %v4663
    %v4982 = vunpack.c.h.b16 %v4663
    %v4983 = vunpack.c.l.b16 %v4664
    %v4984 = vunpack.c.h.b16 %v4664
    %v4985 = vunpack.c.l.b16 %v4665
    %v4986 = vunpack.c.h.b16 %v4665
    %v4987 = vunpack.c.l.b16 %v4666
    %v4988 = vunpack.c.h.b16 %v4666
    %v4989 = vunpack.c.l.b16 %v4667
    %v4990 = vunpack.c.h.b16 %v4667
    %v4991 = vunpack.c.l.b16 %v4668
    %v4992 = vunpack.c.h.b16 %v4668
    %v4993 = vunpack.c.l.b16 %v4669
    %v4994 = vunpack.c.h.b16 %v4669
    %v4995 = vunpack.c.l.b16 %v4670
    %v4996 = vunpack.c.h.b16 %v4670
    %v4997 = vunpack.c.l.b16 %v4671
    %v4998 = vunpack.c.h.b16 %v4671
    %v4999 = vunpack.c.l.b16 %v4672
    %v5000 = vunpack.c.h.b16 %v4672
    %v5001 = vunpack.c.l.b16 %v4673
    %v5002 = vunpack.c.h.b16 %v4673
    %v5003 = vunpack.c.l.b16 %v4674
    %v5004 = vunpack.c.h.b16 %v4674
    %v5005 = vunpack.c.l.b16 %v4675
    %v5006 = vunpack.c.h.b16 %v4675
    %v5007 = vunpack.c.l.b16 %v4676
    %v5008 = vunpack.c.h.b16 %v4676
    %v5009 = vunpack.c.l.b16 %v4677
    %v5010 = vunpack.c.h.b16 %v4677
    %v5011 = vunpack.c.l.b16 %v4678
    %v5012 = vunpack.c.h.b16 %v4678
    %v5013 = vunpack.c.l.b16 %v4679
    %v5014 = vunpack.c.h.b16 %v4679
    %v5015 = vunpack.c.l.b16 %v4680
    %v5016 = vunpack.c.h.b16 %v4680
    %v5017 = vunpack.c.l.b16 %v4681
    %v5018 = vunpack.c.h.b16 %v4681
    %v5019 = vunpack.c.l.b16 %v4682
    %v5020 = vunpack.c.h.b16 %v4682
    %v5021 = vunpack.c.l.b16 %v4683
    %v5022 = vunpack.c.h.b16 %v4683
    %v5023 = vunpack.c.l.b16 %v4684
    %v5024 = vunpack.c.h.b16 %v4684
    %v5025 = vunpack.c.l.b16 %v4685
    %v5026 = vunpack.c.h.b16 %v4685
    %v5027 = vunpack.c.l.b16 %v4686
    %v5028 = vunpack.c.h.b16 %v4686
    %v5029 = vunpack.c.l.b16 %v4687
    %v5030 = vunpack.c.h.b16 %v4687
    %v5031 = vunpack.c.l.b16 %v4688
    %v5032 = vunpack.c.h.b16 %v4688
    %v5033 = vunpack.c.l.b16 %v4689
    %v5034 = vunpack.c.h.b16 %v4689
    %v5035 = vunpack.c.l.b16 %v4690
    %v5036 = vunpack.c.h.b16 %v4690
    %v5037 = vunpack.c.l.b16 %v4691
    %v5038 = vunpack.c.h.b16 %v4691
    %v5039 = vunpack.c.l.b16 %v4692
    %v5040 = vunpack.c.h.b16 %v4692
    %v5041 = vunpack.c.l.b16 %v4693
    %v5042 = vunpack.c.h.b16 %v4693
    %v5043 = vunpack.c.l.b16 %v4694
    %v5044 = vunpack.c.h.b16 %v4694
    %v5045 = vunpack.c.l.b16 %v4695
    %v5046 = vunpack.c.h.b16 %v4695
    %v5047 = vunpack.c.l.b16 %v4696
    %v5048 = vunpack.c.h.b16 %v4696
    %v5049 = vunpack.c.l.b16 %v4697
    %v5050 = vunpack.c.h.b16 %v4697
    %v5051 = vunpack.c.l.b16 %v4698
    %v5052 = vunpack.c.h.b16 %v4698
    %v5053 = vunpack.c.l.b16 %v4699
    %v5054 = vunpack.c.h.b16 %v4699
    %v5055 = vunpack.c.l.b16 %v4700
    %v5056 = vunpack.c.h.b16 %v4700
    %v5057 = vunpack.c.l.b16 %v4701
    %v5058 = vunpack.c.h.b16 %v4701
    %v5059 = vunpack.c.l.b16 %v4702
    %v5060 = vunpack.c.h.b16 %v4702
    %v5061 = vunpack.c.l.b16 %v4703
    %v5062 = vunpack.c.h.b16 %v4703
    %v5063 = vunpack.c.l.b16 %v4704
    %v5064 = vunpack.c.h.b16 %v4704
    %v5065 = vunpack.c.l.b16 %v4705
    %v5066 = vunpack.c.h.b16 %v4705
    %v5067 = vunpack.c.l.b16 %v4706
    %v5068 = vunpack.c.h.b16 %v4706
    %v5069 = vunpack.c.l.b16 %v4707
    %v5070 = vunpack.c.h.b16 %v4707
    %v5071 = vunpack.c.l.b16 %v4708
    %v5072 = vunpack.c.h.b16 %v4708
    %v5073 = vunpack.c.l.b16 %v4709
    %v5074 = vunpack.c.h.b16 %v4709
    %v5075 = vunpack.c.l.b16 %v4710
    %v5076 = vunpack.c.h.b16 %v4710
    %v5077 = vunpack.c.l.b16 %v4711
    %v5078 = vunpack.c.h.b16 %v4711
    %v5079 = vunpack.c.l.b16 %v4712
    %v5080 = vunpack.c.h.b16 %v4712
    %v5081 = vunpack.c.l.b16 %v4713
    %v5082 = vunpack.c.h.b16 %v4713
    %v5083 = vunpack.c.l.b16 %v4714
    %v5084 = vunpack.c.h.b16 %v4714
    %v5085 = vunpack.c.l.b16 %v4715
    %v5086 = vunpack.c.h.b16 %v4715
    %v5087 = vunpack.c.l.b16 %v4716
    %v5088 = vunpack.c.h.b16 %v4716
    %v5089 = vunpack.c.l.b16 %v4717
    %v5090 = vunpack.c.h.b16 %v4717
    %v5091 = vunpack.c.l.b16 %v4718
    %v5092 = vunpack.c.h.b16 %v4718
    %v5093 = vunpack.c.l.b16 %v4719
    %v5094 = vunpack.c.h.b16 %v4719
    %v5095 = vunpack.c.l.b16 %v4720
    %v5096 = vunpack.c.h.b16 %v4720
    %v5097 = vunpack.c.l.b16 %v4721
    %v5098 = vunpack.c.h.b16 %v4721
    %v5099 = vunpack.c.l.b16 %v4722
    %v5100 = vunpack.c.h.b16 %v4722
    %v5101 = vunpack.c.l.b16 %v4723
    %v5102 = vunpack.c.h.b16 %v4723
    %v5103 = vunpack.c.l.b16 %v4724
    %v5104 = vunpack.c.h.b16 %v4724
    %v5105 = vunpack.c.l.b16 %v4725
    %v5106 = vunpack.c.h.b16 %v4725
    %v5107 = vunpack.c.l.b16 %v4726
    %v5108 = vunpack.c.h.b16 %v4726
    %v5109 = vunpack.c.l.b16 %v4727
    %v5110 = vunpack.c.h.b16 %v4727
    %v5111 = vunpack.c.l.b16 %v4728
    %v5112 = vunpack.c.h.b16 %v4728
    %v5113 = vunpack.c.l.b16 %v4729
    %v5114 = vunpack.c.h.b16 %v4729
    %v5115 = vunpack.c.l.b16 %v4730
    %v5116 = vunpack.c.h.b16 %v4730
    %v5117 = vunpack.c.l.b16 %v4731
    %v5118 = vunpack.c.h.b16 %v4731
    %v5119 = vunpack.c.l.b16 %v4732
    %v5120 = vunpack.c.h.b16 %v4732
    %v5121 = vunpack.c.l.b16 %v4733
    %v5122 = vunpack.c.h.b16 %v4733
    %v5123 = vunpack.c.l.b16 %v4734
    %v5124 = vunpack.c.h.b16 %v4734
    %v5125 = vunpack.c.l.b16 %v4735
    %v5126 = vunpack.c.h.b16 %v4735
    %v5127 = vunpack.c.l.b16 %v4736
    %v5128 = vunpack.c.h.b16 %v4736
    %v5129 = vunpack.c.l.b16 %v4737
    %v5130 = vunpack.c.h.b16 %v4737
    %v5131 = vunpack.c.l.b16 %v4738
    %v5132 = vunpack.c.h.b16 %v4738
    %v5133 = vunpack.c.l.b16 %v4739
    %v5134 = vunpack.c.h.b16 %v4739
    %v5135 = vunpack.c.l.b16 %v4740
    %v5136 = vunpack.c.h.b16 %v4740
    %v5137 = vunpack.c.l.b16 %v4741
    %v5138 = vunpack.c.h.b16 %v4741
    %v5139 = vunpack.c.l.b16 %v4742
    %v5140 = vunpack.c.h.b16 %v4742
    %v5141 = vunpack.c.l.b16 %v4743
    %v5142 = vunpack.c.h.b16 %v4743
    %v5143 = vunpack.c.l.b16 %v4744
    %v5144 = vunpack.c.h.b16 %v4744
    %v5145 = vunpack.c.l.b16 %v4745
    %v5146 = vunpack.c.h.b16 %v4745
    %v5147 = vunpack.c.l.b16 %v4746
    %v5148 = vunpack.c.h.b16 %v4746
    %v5149 = vunpack.c.l.b16 %v4747
    %v5150 = vunpack.c.h.b16 %v4747
    %v5151 = vunpack.c.l.b16 %v4748
    %v5152 = vunpack.c.h.b16 %v4748
    %v5153 = vunpack.c.l.b16 %v4749
    %v5154 = vunpack.c.h.b16 %v4749
    %v5155 = vunpack.c.l.b16 %v4750
    %v5156 = vunpack.c.h.b16 %v4750
    %v5157 = vunpack.c.l.b16 %v4751
    %v5158 = vunpack.c.h.b16 %v4751
    %v5159 = vunpack.c.l.b16 %v4752
    %v5160 = vunpack.c.h.b16 %v4752
    %v5161 = vunpack.c.l.b16 %v4753
    %v5162 = vunpack.c.h.b16 %v4753
    %v5163 = vunpack.c.l.b16 %v4754
    %v5164 = vunpack.c.h.b16 %v4754
    %v5165 = vunpack.c.l.b16 %v4755
    %v5166 = vunpack.c.h.b16 %v4755
    %v5167 = vunpack.c.l.b16 %v4756
    %v5168 = vunpack.c.h.b16 %v4756
    %v5169 = vunpack.c.l.b16 %v4757
    %v5170 = vunpack.c.h.b16 %v4757
    %v5171 = vunpack.c.l.b16 %v4758
    %v5172 = vunpack.c.h.b16 %v4758
    %v5173 = vunpack.c.l.b16 %v4759
    %v5174 = vunpack.c.h.b16 %v4759
    %v5175 = vunpack.c.l.b16 %v4760
    %v5176 = vunpack.c.h.b16 %v4760
    %v5177 = vunpack.c.l.b16 %v4761
    %v5178 = vunpack.c.h.b16 %v4761
    %v5179 = vunpack.c.l.b16 %v4762
    %v5180 = vunpack.c.h.b16 %v4762
    %v5181 = vunpack.c.l.b16 %v4763
    %v5182 = vunpack.c.h.b16 %v4763
    %v5183 = vunpack.c.l.b16 %v4764
    %v5184 = vunpack.c.h.b16 %v4764
    %v5185 = vunpack.c.l.b16 %v4765
    %v5186 = vunpack.c.h.b16 %v4765
    %v5187 = vunpack.c.l.b16 %v4766
    %v5188 = vunpack.c.h.b16 %v4766
    %v5189 = vunpack.c.l.b16 %v4767
    %v5190 = vunpack.c.h.b16 %v4767
    %v5191 = vunpack.c.l.b16 %v4768
    %v5192 = vunpack.c.h.b16 %v4768
    %v5193 = vunpack.c.l.b16 %v4769
    %v5194 = vunpack.c.h.b16 %v4769
    %v5195 = vunpack.c.l.b16 %v4770
    %v5196 = vunpack.c.h.b16 %v4770
    %v5197 = vunpack.c.l.b16 %v4771
    %v5198 = vunpack.c.h.b16 %v4771
    %v5199 = vunpack.c.l.b16 %v4772
    %v5200 = vunpack.c.h.b16 %v4772
    %v5201 = vunpack.c.l.b16 %v4773
    %v5202 = vunpack.c.h.b16 %v4773
    %v5203 = vunpack.c.l.b16 %v4774
    %v5204 = vunpack.c.h.b16 %v4774
    %v5205 = vunpack.c.l.b16 %v4775
    %v5206 = vunpack.c.h.b16 %v4775
    %v5207 = vunpack.c.l.b16 %v4776
    %v5208 = vunpack.c.h.b16 %v4776
    %v5209 = vunpack.c.l.b16 %v4777
    %v5210 = vunpack.c.h.b16 %v4777
    %v5211 = vunpack.c.l.b16 %v4778
    %v5212 = vunpack.c.h.b16 %v4778
    %v5213 = vunpack.c.l.b16 %v4779
    %v5214 = vunpack.c.h.b16 %v4779
    %v5215 = vunpack.c.l.b16 %v4780
    %v5216 = vunpack.c.h.b16 %v4780
    %v5217 = vunpack.c.l.b16 %v4781
    %v5218 = vunpack.c.h.b16 %v4781
    %v5219 = vunpack.c.l.b16 %v4782
    %v5220 = vunpack.c.h.b16 %v4782
    %v5221 = vunpack.c.l.b16 %v4783
    %v5222 = vunpack.c.h.b16 %v4783
    %v5223 = vunpack.c.l.b16 %v4784
    %v5224 = vunpack.c.h.b16 %v4784
    %v5225 = vunpack.c.l.b16 %v4785
    %v5226 = vunpack.c.h.b16 %v4785
    %v5227 = vunpack.c.l.b16 %v4786
    %v5228 = vunpack.c.h.b16 %v4786
    %v5229 = vunpack.c.l.b16 %v4787
    %v5230 = vunpack.c.h.b16 %v4787
    %v5231 = vunpack.c.l.b16 %v4788
    %v5232 = vunpack.c.h.b16 %v4788
    %v5233 = vunpack.c.l.b16 %v4789
    %v5234 = vunpack.c.h.b16 %v4789
    %v5235 = vunpack.c.l.b16 %v4790
    %v5236 = vunpack.c.h.b16 %v4790
    %v5237 = vunpack.c.l.b16 %v4791
    %v5238 = vunpack.c.h.b16 %v4791
    %v5239 = vunpack.c.l.b16 %v4792
    %v5240 = vunpack.c.h.b16 %v4792
    %v5241 = vunpack.c.l.b16 %v4793
    %v5242 = vunpack.c.h.b16 %v4793
    %v5243 = vunpack.c.l.b16 %v4794
    %v5244 = vunpack.c.h.b16 %v4794
    %v5245 = vunpack.c.l.b16 %v4795
    %v5246 = vunpack.c.h.b16 %v4795
    %v5247 = vunpack.c.l.b16 %v4796
    %v5248 = vunpack.c.h.b16 %v4796
    %v5249 = vunpack.c.l.b16 %v4797
    %v5250 = vunpack.c.h.b16 %v4797
    %v5251 = vpack.c.b16 %v4967, %v4963
    %v5252 = vpack.c.b16 %v4968, %v4964
    %v5253 = vpack.c.b16 %v4969, %v4965
    %v5254 = vpack.c.b16 %v4970, %v4966
    %v5255 = vpack.c.b16 %v4975, %v4971
    %v5256 = vpack.c.b16 %v4976, %v4972
    %v5257 = vpack.c.b16 %v4977, %v4973
    %v5258 = vpack.c.b16 %v4978, %v4974
    %v5259 = vpack.c.b16 %v4983, %v4979
    %v5260 = vpack.c.b16 %v4984, %v4980
    %v5261 = vpack.c.b16 %v4985, %v4981
    %v5262 = vpack.c.b16 %v4986, %v4982
    %v5263 = vpack.c.b16 %v4991, %v4987
    %v5264 = vpack.c.b16 %v4992, %v4988
    %v5265 = vpack.c.b16 %v4993, %v4989
    %v5266 = vpack.c.b16 %v4994, %v4990
    %v5267 = vpack.c.b16 %v4999, %v4995
    %v5268 = vpack.c.b16 %v5000, %v4996
    %v5269 = vpack.c.b16 %v5001, %v4997
    %v5270 = vpack.c.b16 %v5002, %v4998
    %v5271 = vpack.c.b16 %v5007, %v5003
    %v5272 = vpack.c.b16 %v5008, %v5004
    %v5273 = vpack.c.b16 %v5009, %v5005
    %v5274 = vpack.c.b16 %v5010, %v5006
    %v5275 = vpack.c.b16 %v5015, %v5011
    %v5276 = vpack.c.b16 %v5016, %v5012
    %v5277 = vpack.c.b16 %v5017, %v5013
    %v5278 = vpack.c.b16 %v5018, %v5014
    %v5279 = vpack.c.b16 %v5023, %v5019
    %v5280 = vpack.c.b16 %v5024, %v5020
    %v5281 = vpack.c.b16 %v5025, %v5021
    %v5282 = vpack.c.b16 %v5026, %v5022
    %v5283 = vpack.c.b16 %v5031, %v5027
    %v5284 = vpack.c.b16 %v5032, %v5028
    %v5285 = vpack.c.b16 %v5033, %v5029
    %v5286 = vpack.c.b16 %v5034, %v5030
    %v5287 = vpack.c.b16 %v5039, %v5035
    %v5288 = vpack.c.b16 %v5040, %v5036
    %v5289 = vpack.c.b16 %v5041, %v5037
    %v5290 = vpack.c.b16 %v5042, %v5038
    %v5291 = vpack.c.b16 %v5047, %v5043
    %v5292 = vpack.c.b16 %v5048, %v5044
    %v5293 = vpack.c.b16 %v5049, %v5045
    %v5294 = vpack.c.b16 %v5050, %v5046
    %v5295 = vpack.c.b16 %v5055, %v5051
    %v5296 = vpack.c.b16 %v5056, %v5052
    %v5297 = vpack.c.b16 %v5057, %v5053
    %v5298 = vpack.c.b16 %v5058, %v5054
    %v5299 = vpack.c.b16 %v5063, %v5059
    %v5300 = vpack.c.b16 %v5064, %v5060
    %v5301 = vpack.c.b16 %v5065, %v5061
    %v5302 = vpack.c.b16 %v5066, %v5062
    %v5303 = vpack.c.b16 %v5071, %v5067
    %v5304 = vpack.c.b16 %v5072, %v5068
    %v5305 = vpack.c.b16 %v5073, %v5069
    %v5306 = vpack.c.b16 %v5074, %v5070
    %v5307 = vpack.c.b16 %v5079, %v5075
    %v5308 = vpack.c.b16 %v5080, %v5076
    %v5309 = vpack.c.b16 %v5081, %v5077
    %v5310 = vpack.c.b16 %v5082, %v5078
    %v5311 = vpack.c.b16 %v5087, %v5083
    %v5312 = vpack.c.b16 %v5088, %v5084
    %v5313 = vpack.c.b16 %v5089, %v5085
    %v5314 = vpack.c.b16 %v5090, %v5086
    %v5315 = vpack.c.b16 %v5095, %v5091
    %v5316 = vpack.c.b16 %v5096, %v5092
    %v5317 = vpack.c.b16 %v5097, %v5093
    %v5318 = vpack.c.b16 %v5098, %v5094
    %v5319 = vpack.c.b16 %v5103, %v5099
    %v5320 = vpack.c.b16 %v5104, %v5100
    %v5321 = vpack.c.b16 %v5105, %v5101
    %v5322 = vpack.c.b16 %v5106, %v5102
    %v5323 = vpack.c.b16 %v5111, %v5107
    %v5324 = vpack.c.b16 %v5112, %v5108
    %v5325 = vpack.c.b16 %v5113, %v5109
    %v5326 = vpack.c.b16 %v5114, %v5110
    %v5327 = vpack.c.b16 %v5119, %v5115
    %v5328 = vpack.c.b16 %v5120, %v5116
    %v5329 = vpack.c.b16 %v5121, %v5117
    %v5330 = vpack.c.b16 %v5122, %v5118
    %v5331 = vpack.c.b16 %v5127, %v5123
    %v5332 = vpack.c.b16 %v5128, %v5124
    %v5333 = vpack.c.b16 %v5129, %v5125
    %v5334 = vpack.c.b16 %v5130, %v5126
    %v5335 = vpack.c.b16 %v5135, %v5131
    %v5336 = vpack.c.b16 %v5136, %v5132
    %v5337 = vpack.c.b16 %v5137, %v5133
    %v5338 = vpack.c.b16 %v5138, %v5134
    %v5339 = vpack.c.b16 %v5143, %v5139
    %v5340 = vpack.c.b16 %v5144, %v5140
    %v5341 = vpack.c.b16 %v5145, %v5141
    %v5342 = vpack.c.b16 %v5146, %v5142
    %v5343 = vpack.c.b16 %v5151, %v5147
    %v5344 = vpack.c.b16 %v5152, %v5148
    %v5345 = vpack.c.b16 %v5153, %v5149
    %v5346 = vpack.c.b16 %v5154, %v5150
    %v5347 = vpack.c.b16 %v5159, %v5155
    %v5348 = vpack.c.b16 %v5160, %v5156
    %v5349 = vpack.c.b16 %v5161, %v5157
    %v5350 = vpack.c.b16 %v5162, %v5158
    %v5351 = vpack.c.b16 %v5167, %v5163
    %v5352 = vpack.c.b16 %v5168, %v5164
    %v5353 = vpack.c.b16 %v5169, %v5165
    %v5354 = vpack.c.b16 %v5170, %v5166
    %v5355 = vpack.c.b16 %v5175, %v5171
    %v5356 = vpack.c.b16 %v5176, %v5172
    %v5357 = vpack.c.b16 %v5177, %v5173
    %v5358 = vpack.c.b16 %v5178, %v5174
    %v5359 = vpack.c.b16 %v5183, %v5179
    %v5360 = vpack.c.b16 %v5184, %v5180
    %v5361 = vpack.c.b16 %v5185, %v5181
    %v5362 = vpack.c.b16 %v5186, %v5182
    %v5363 = vpack.c.b16 %v5191, %v5187
    %v5364 = vpack.c.b16 %v5192, %v5188
    %v5365 = vpack.c.b16 %v5193, %v5189
    %v5366 = vpack.c.b16 %v5194, %v5190
    %v5367 = vpack.c.b16 %v5199, %v5195
    %v5368 = vpack.c.b16 %v5200, %v5196
    %v5369 = vpack.c.b16 %v5201, %v5197
    %v5370 = vpack.c.b16 %v5202, %v5198
    %v5371 = vpack.c.b16 %v5207, %v5203
    %v5372 = vpack.c.b16 %v5208, %v5204
    %v5373 = vpack.c.b16 %v5209, %v5205
    %v5374 = vpack.c.b16 %v5210, %v5206
    %v5375 = vpack.c.b16 %v5215, %v5211
    %v5376 = vpack.c.b16 %v5216, %v5212
    %v5377 = vpack.c.b16 %v5217, %v5213
    %v5378 = vpack.c.b16 %v5218, %v5214
    %v5379 = vpack.c.b16 %v5223, %v5219
    %v5380 = vpack.c.b16 %v5224, %v5220
    %v5381 = vpack.c.b16 %v5225, %v5221
    %v5382 = vpack.c.b16 %v5226, %v5222
    %v5383 = vpack.c.b16 %v5231, %v5227
    %v5384 = vpack.c.b16 %v5232, %v5228
    %v5385 = vpack.c.b16 %v5233, %v5229
    %v5386 = vpack.c.b16 %v5234, %v5230
    %v5387 = vpack.c.b16 %v5239, %v5235
    %v5388 = vpack.c.b16 %v5240, %v5236
    %v5389 = vpack.c.b16 %v5241, %v5237
    %v5390 = vpack.c.b16 %v5242, %v5238
    %v5391 = vpack.c.b16 %v5247, %v5243
    %v5392 = vpack.c.b16 %v5248, %v5244
    %v5393 = vpack.c.b16 %v5249, %v5245
    %v5394 = vpack.c.b16 %v5250, %v5246
    %vm5539 = vcmask 523264
    %v5540 = vsel %vm5539, %v4814, 0
    %5542 = vmatpush.bf16.msra.mxu0 %v5279
    %5543 = vmatpush.bf16.msra.mxu0 %v5275
    %5544 = vmatpush.bf16.msra.mxu0 %v5271
    %5545 = vmatpush.bf16.msra.mxu0 %v5267
    %5546 = vmatpush.bf16.msra.mxu0 %v5263
    %5547 = vmatpush.bf16.msra.mxu0 %v5259
    %5548 = vmatpush.bf16.msra.mxu0 %v5255
    %5549 = vmatpush.bf16.msra.mxu0 %v5251
    %5550 = vmatmul.bf16.gmra.mxu0 %v4810
    %v5551 = vpop.f32.mrf.mxu0
    %v5552 = vadd.f32 %v4800, %v5551
    %v5553 = vpop.f32.mrf.mxu0
    %5554 = vdwg.mxu0
    %5555 = vmatpush.bf16.msra.mxu0 %v5311
    %5556 = vmatpush.bf16.msra.mxu0 %v5307
    %5557 = vmatpush.bf16.msra.mxu0 %v5303
    %5558 = vmatpush.bf16.msra.mxu0 %v5299
    %5559 = vmatpush.bf16.msra.mxu0 %v5295
    %5560 = vmatpush.bf16.msra.mxu0 %v5291
    %5561 = vmatpush.bf16.msra.mxu0 %v5287
    %5562 = vmatpush.bf16.msra.mxu0 %v5283
    %5563 = vmatmul.bf16.gmra.mxu0 %v4811
    %v5564 = vpop.f32.mrf.mxu0
    %v5565 = vadd.f32 %v5552, %v5564
    %v5566 = vpop.f32.mrf.mxu0
    %5567 = vdwg.mxu0
    %5568 = vmatpush.bf16.msra.mxu0 %v5343
    %5569 = vmatpush.bf16.msra.mxu0 %v5339
    %5570 = vmatpush.bf16.msra.mxu0 %v5335
    %5571 = vmatpush.bf16.msra.mxu0 %v5331
    %5572 = vmatpush.bf16.msra.mxu0 %v5327
    %5573 = vmatpush.bf16.msra.mxu0 %v5323
    %5574 = vmatpush.bf16.msra.mxu0 %v5319
    %5575 = vmatpush.bf16.msra.mxu0 %v5315
    %5576 = vmatmul.bf16.gmra.mxu0 %v4812
    %v5577 = vpop.f32.mrf.mxu0
    %v5578 = vadd.f32 %v5565, %v5577
    %v5579 = vpop.f32.mrf.mxu0
    %5580 = vdwg.mxu0
    %5581 = vmatpush.bf16.msra.mxu0 %v5375
    %5582 = vmatpush.bf16.msra.mxu0 %v5371
    %5583 = vmatpush.bf16.msra.mxu0 %v5367
    %5584 = vmatpush.bf16.msra.mxu0 %v5363
    %5585 = vmatpush.bf16.msra.mxu0 %v5359
    %5586 = vmatpush.bf16.msra.mxu0 %v5355
    %5587 = vmatpush.bf16.msra.mxu0 %v5351
    %5588 = vmatpush.bf16.msra.mxu0 %v5347
    %5589 = vmatmul.bf16.gmra.mxu0 %v4813
    %v5590 = vpop.f32.mrf.mxu0
    %v5591 = vadd.f32 %v5578, %v5590
    %v5592 = vpop.f32.mrf.mxu0
    %5593 = vdwg.mxu0
    %5594 = vmatpush.bf16.msra.mxu0 0
    %5595 = vmatpush.bf16.msra.mxu0 0
    %5596 = vmatpush.bf16.msra.mxu0 0
    %5597 = vmatpush.bf16.msra.mxu0 0
    %5598 = vmatpush.bf16.msra.mxu0 %v5391
    %5599 = vmatpush.bf16.msra.mxu0 %v5387
    %5600 = vmatpush.bf16.msra.mxu0 %v5383
    %5601 = vmatpush.bf16.msra.mxu0 %v5379
    %5602 = vmatmul.bf16.gmra.mxu0 %v5540
    %v5603 = vpop.f32.mrf.mxu0
    %v5604 = vadd.f32 %v5591, %v5603
    %v5605 = vpop.f32.mrf.mxu0
    %5606 = vdwg.mxu0
    %5607 = vmatpush.bf16.msra.mxu0 %v5280
    %5608 = vmatpush.bf16.msra.mxu0 %v5276
    %5609 = vmatpush.bf16.msra.mxu0 %v5272
    %5610 = vmatpush.bf16.msra.mxu0 %v5268
    %5611 = vmatpush.bf16.msra.mxu0 %v5264
    %5612 = vmatpush.bf16.msra.mxu0 %v5260
    %5613 = vmatpush.bf16.msra.mxu0 %v5256
    %5614 = vmatpush.bf16.msra.mxu0 %v5252
    %5615 = vmatmul.bf16.gmra.mxu0 %v4810
    %v5616 = vpop.f32.mrf.mxu0
    %v5617 = vadd.f32 %v4801, %v5616
    %v5618 = vpop.f32.mrf.mxu0
    %5619 = vdwg.mxu0
    %5620 = vmatpush.bf16.msra.mxu0 %v5312
    %5621 = vmatpush.bf16.msra.mxu0 %v5308
    %5622 = vmatpush.bf16.msra.mxu0 %v5304
    %5623 = vmatpush.bf16.msra.mxu0 %v5300
    %5624 = vmatpush.bf16.msra.mxu0 %v5296
    %5625 = vmatpush.bf16.msra.mxu0 %v5292
    %5626 = vmatpush.bf16.msra.mxu0 %v5288
    %5627 = vmatpush.bf16.msra.mxu0 %v5284
    %5628 = vmatmul.bf16.gmra.mxu0 %v4811
    %v5629 = vpop.f32.mrf.mxu0
    %v5630 = vadd.f32 %v5617, %v5629
    %v5631 = vpop.f32.mrf.mxu0
    %5632 = vdwg.mxu0
    %5633 = vmatpush.bf16.msra.mxu0 %v5344
    %5634 = vmatpush.bf16.msra.mxu0 %v5340
    %5635 = vmatpush.bf16.msra.mxu0 %v5336
    %5636 = vmatpush.bf16.msra.mxu0 %v5332
    %5637 = vmatpush.bf16.msra.mxu0 %v5328
    %5638 = vmatpush.bf16.msra.mxu0 %v5324
    %5639 = vmatpush.bf16.msra.mxu0 %v5320
    %5640 = vmatpush.bf16.msra.mxu0 %v5316
    %5641 = vmatmul.bf16.gmra.mxu0 %v4812
    %v5642 = vpop.f32.mrf.mxu0
    %v5643 = vadd.f32 %v5630, %v5642
    %v5644 = vpop.f32.mrf.mxu0
    %5645 = vdwg.mxu0
    %5646 = vmatpush.bf16.msra.mxu0 %v5376
    %5647 = vmatpush.bf16.msra.mxu0 %v5372
    %5648 = vmatpush.bf16.msra.mxu0 %v5368
    %5649 = vmatpush.bf16.msra.mxu0 %v5364
    %5650 = vmatpush.bf16.msra.mxu0 %v5360
    %5651 = vmatpush.bf16.msra.mxu0 %v5356
    %5652 = vmatpush.bf16.msra.mxu0 %v5352
    %5653 = vmatpush.bf16.msra.mxu0 %v5348
    %5654 = vmatmul.bf16.gmra.mxu0 %v4813
    %v5655 = vpop.f32.mrf.mxu0
    %v5656 = vadd.f32 %v5643, %v5655
    %v5657 = vpop.f32.mrf.mxu0
    %5658 = vdwg.mxu0
    %5659 = vmatpush.bf16.msra.mxu0 0
    %5660 = vmatpush.bf16.msra.mxu0 0
    %5661 = vmatpush.bf16.msra.mxu0 0
    %5662 = vmatpush.bf16.msra.mxu0 0
    %5663 = vmatpush.bf16.msra.mxu0 %v5392
    %5664 = vmatpush.bf16.msra.mxu0 %v5388
    %5665 = vmatpush.bf16.msra.mxu0 %v5384
    %5666 = vmatpush.bf16.msra.mxu0 %v5380
    %5667 = vmatmul.bf16.gmra.mxu0 %v5540
    %v5668 = vpop.f32.mrf.mxu0
    %v5669 = vadd.f32 %v5656, %v5668
    %v5670 = vpop.f32.mrf.mxu0
    %5671 = vdwg.mxu0
    %5672 = vmatpush.bf16.msra.mxu0 %v5281
    %5673 = vmatpush.bf16.msra.mxu0 %v5277
    %5674 = vmatpush.bf16.msra.mxu0 %v5273
    %5675 = vmatpush.bf16.msra.mxu0 %v5269
    %5676 = vmatpush.bf16.msra.mxu0 %v5265
    %5677 = vmatpush.bf16.msra.mxu0 %v5261
    %5678 = vmatpush.bf16.msra.mxu0 %v5257
    %5679 = vmatpush.bf16.msra.mxu0 %v5253
    %5680 = vmatmul.bf16.gmra.mxu0 %v4810
    %v5681 = vpop.f32.mrf.mxu0
    %v5682 = vadd.f32 %v4802, %v5681
    %v5683 = vpop.f32.mrf.mxu0
    %5684 = vdwg.mxu0
    %5685 = vmatpush.bf16.msra.mxu0 %v5313
    %5686 = vmatpush.bf16.msra.mxu0 %v5309
    %5687 = vmatpush.bf16.msra.mxu0 %v5305
    %5688 = vmatpush.bf16.msra.mxu0 %v5301
    %5689 = vmatpush.bf16.msra.mxu0 %v5297
    %5690 = vmatpush.bf16.msra.mxu0 %v5293
    %5691 = vmatpush.bf16.msra.mxu0 %v5289
    %5692 = vmatpush.bf16.msra.mxu0 %v5285
    %5693 = vmatmul.bf16.gmra.mxu0 %v4811
    %v5694 = vpop.f32.mrf.mxu0
    %v5695 = vadd.f32 %v5682, %v5694
    %v5696 = vpop.f32.mrf.mxu0
    %5697 = vdwg.mxu0
    %5698 = vmatpush.bf16.msra.mxu0 %v5345
    %5699 = vmatpush.bf16.msra.mxu0 %v5341
    %5700 = vmatpush.bf16.msra.mxu0 %v5337
    %5701 = vmatpush.bf16.msra.mxu0 %v5333
    %5702 = vmatpush.bf16.msra.mxu0 %v5329
    %5703 = vmatpush.bf16.msra.mxu0 %v5325
    %5704 = vmatpush.bf16.msra.mxu0 %v5321
    %5705 = vmatpush.bf16.msra.mxu0 %v5317
    %5706 = vmatmul.bf16.gmra.mxu0 %v4812
    %v5707 = vpop.f32.mrf.mxu0
    %v5708 = vadd.f32 %v5695, %v5707
    %v5709 = vpop.f32.mrf.mxu0
    %5710 = vdwg.mxu0
    %5711 = vmatpush.bf16.msra.mxu0 %v5377
    %5712 = vmatpush.bf16.msra.mxu0 %v5373
    %5713 = vmatpush.bf16.msra.mxu0 %v5369
    %5714 = vmatpush.bf16.msra.mxu0 %v5365
    %5715 = vmatpush.bf16.msra.mxu0 %v5361
    %5716 = vmatpush.bf16.msra.mxu0 %v5357
    %5717 = vmatpush.bf16.msra.mxu0 %v5353
    %5718 = vmatpush.bf16.msra.mxu0 %v5349
    %5719 = vmatmul.bf16.gmra.mxu0 %v4813
    %v5720 = vpop.f32.mrf.mxu0
    %v5721 = vadd.f32 %v5708, %v5720
    %v5722 = vpop.f32.mrf.mxu0
    %5723 = vdwg.mxu0
    %5724 = vmatpush.bf16.msra.mxu0 0
    %5725 = vmatpush.bf16.msra.mxu0 0
    %5726 = vmatpush.bf16.msra.mxu0 0
    %5727 = vmatpush.bf16.msra.mxu0 0
    %5728 = vmatpush.bf16.msra.mxu0 %v5393
    %5729 = vmatpush.bf16.msra.mxu0 %v5389
    %5730 = vmatpush.bf16.msra.mxu0 %v5385
    %5731 = vmatpush.bf16.msra.mxu0 %v5381
    %5732 = vmatmul.bf16.gmra.mxu0 %v5540
    %v5733 = vpop.f32.mrf.mxu0
    %v5734 = vadd.f32 %v5721, %v5733
    %v5735 = vpop.f32.mrf.mxu0
    %5736 = vdwg.mxu0
    %5737 = vmatpush.bf16.msra.mxu0 %v5282
    %5738 = vmatpush.bf16.msra.mxu0 %v5278
    %5739 = vmatpush.bf16.msra.mxu0 %v5274
    %5740 = vmatpush.bf16.msra.mxu0 %v5270
    %5741 = vmatpush.bf16.msra.mxu0 %v5266
    %5742 = vmatpush.bf16.msra.mxu0 %v5262
    %5743 = vmatpush.bf16.msra.mxu0 %v5258
    %5744 = vmatpush.bf16.msra.mxu0 %v5254
    %5745 = vmatmul.bf16.gmra.mxu0 %v4810
    %v5746 = vpop.f32.mrf.mxu0
    %v5747 = vadd.f32 %v4803, %v5746
    %v5748 = vpop.f32.mrf.mxu0
    %5749 = vdwg.mxu0
    %5750 = vmatpush.bf16.msra.mxu0 %v5314
    %5751 = vmatpush.bf16.msra.mxu0 %v5310
    %5752 = vmatpush.bf16.msra.mxu0 %v5306
    %5753 = vmatpush.bf16.msra.mxu0 %v5302
    %5754 = vmatpush.bf16.msra.mxu0 %v5298
    %5755 = vmatpush.bf16.msra.mxu0 %v5294
    %5756 = vmatpush.bf16.msra.mxu0 %v5290
    %5757 = vmatpush.bf16.msra.mxu0 %v5286
    %5758 = vmatmul.bf16.gmra.mxu0 %v4811
    %v5759 = vpop.f32.mrf.mxu0
    %v5760 = vadd.f32 %v5747, %v5759
    %v5761 = vpop.f32.mrf.mxu0
    %5762 = vdwg.mxu0
    %5763 = vmatpush.bf16.msra.mxu0 %v5346
    %5764 = vmatpush.bf16.msra.mxu0 %v5342
    %5765 = vmatpush.bf16.msra.mxu0 %v5338
    %5766 = vmatpush.bf16.msra.mxu0 %v5334
    %5767 = vmatpush.bf16.msra.mxu0 %v5330
    %5768 = vmatpush.bf16.msra.mxu0 %v5326
    %5769 = vmatpush.bf16.msra.mxu0 %v5322
    %5770 = vmatpush.bf16.msra.mxu0 %v5318
    %5771 = vmatmul.bf16.gmra.mxu0 %v4812
    %v5772 = vpop.f32.mrf.mxu0
    %v5773 = vadd.f32 %v5760, %v5772
    %v5774 = vpop.f32.mrf.mxu0
    %5775 = vdwg.mxu0
    %5776 = vmatpush.bf16.msra.mxu0 %v5378
    %5777 = vmatpush.bf16.msra.mxu0 %v5374
    %5778 = vmatpush.bf16.msra.mxu0 %v5370
    %5779 = vmatpush.bf16.msra.mxu0 %v5366
    %5780 = vmatpush.bf16.msra.mxu0 %v5362
    %5781 = vmatpush.bf16.msra.mxu0 %v5358
    %5782 = vmatpush.bf16.msra.mxu0 %v5354
    %5783 = vmatpush.bf16.msra.mxu0 %v5350
    %5784 = vmatmul.bf16.gmra.mxu0 %v4813
    %v5785 = vpop.f32.mrf.mxu0
    %v5786 = vadd.f32 %v5773, %v5785
    %v5787 = vpop.f32.mrf.mxu0
    %5788 = vdwg.mxu0
    %5789 = vmatpush.bf16.msra.mxu0 0
    %5790 = vmatpush.bf16.msra.mxu0 0
    %5791 = vmatpush.bf16.msra.mxu0 0
    %5792 = vmatpush.bf16.msra.mxu0 0
    %5793 = vmatpush.bf16.msra.mxu0 %v5394
    %5794 = vmatpush.bf16.msra.mxu0 %v5390
    %5795 = vmatpush.bf16.msra.mxu0 %v5386
    %5796 = vmatpush.bf16.msra.mxu0 %v5382
    %5797 = vmatmul.bf16.gmra.mxu0 %v5540
    %v5798 = vpop.f32.mrf.mxu0
    %v5799 = vadd.f32 %v5786, %v5798
    %v5800 = vpop.f32.mrf.mxu0
    %5801 = vdwg.mxu0
    %v5802 = vmax.f32 %v5604, 0.0
    %v5803 = vmax.f32 %v5669, 0.0
    %v5804 = vmax.f32 %v5734, 0.0
    %v5805 = vmax.f32 %v5799, 0.0
    %v5806 = vpack.c.bf16 %v5802, %v5802
    %v5807 = vpack.c.bf16 %v5803, %v5803
    %v5808 = vpack.c.bf16 %v5804, %v5804
    %v5809 = vpack.c.bf16 %v5805, %v5805
    %v5810 = vld [vmem:[%s5] sm:$0xf]
    %v5811 = vld [vmem:[%s5 + $0x4] sm:$0xf]
    %v5812 = vld [vmem:[%s5 + $0x8] sm:$0xf]
    %v5813 = vld [vmem:[%s5 + $0xc] sm:$0xf]
    %v5814 = vld [vmem:[%s5 + $0x10] sm:$0xf]
    %v5815 = vld [vmem:[%s5 + $0x14] sm:$0xf]
    %v5816 = vld [vmem:[%s5 + $0x18] sm:$0xf]
    %v5817 = vld [vmem:[%s5 + $0x1c] sm:$0xf]
    %v5818 = vld [vmem:[%s5 + $0x20] sm:$0xf]
    %v5819 = vld [vmem:[%s5 + $0x24] sm:$0xf]
    %v5820 = vld [vmem:[%s5 + $0x28] sm:$0xf]
    %v5821 = vld [vmem:[%s5 + $0x2c] sm:$0xf]
    %v5822 = vld [vmem:[%s5 + $0x30] sm:$0xf]
    %v5823 = vld [vmem:[%s5 + $0x34] sm:$0xf]
    %v5824 = vld [vmem:[%s5 + $0x38] sm:$0xf]
    %v5825 = vld [vmem:[%s5 + $0x3c] sm:$0xf]
    %v5826 = vld [vmem:[%s5 + $0x40] sm:$0xf]
    %v5827 = vld [vmem:[%s5 + $0x44] sm:$0xf]
    %v5828 = vld [vmem:[%s5 + $0x48] sm:$0xf]
    %v5829 = vld [vmem:[%s5 + $0x4c] sm:$0xf]
    %v5830 = vld [vmem:[%s5 + $0x50] sm:$0xf]
    %v5831 = vld [vmem:[%s5 + $0x54] sm:$0xf]
    %v5832 = vld [vmem:[%s5 + $0x58] sm:$0xf]
    %v5833 = vld [vmem:[%s5 + $0x5c] sm:$0xf]
    %v5834 = vld [vmem:[%s5 + $0x60] sm:$0xf]
    %v5835 = vld [vmem:[%s5 + $0x64] sm:$0xf]
    %v5836 = vld [vmem:[%s5 + $0x68] sm:$0xf]
    %v5837 = vld [vmem:[%s5 + $0x6c] sm:$0xf]
    %v5838 = vld [vmem:[%s5 + $0x70] sm:$0xf]
    %v5839 = vld [vmem:[%s5 + $0x74] sm:$0xf]
    %v5840 = vld [vmem:[%s5 + $0x78] sm:$0xf]
    %v5841 = vld [vmem:[%s5 + $0x7c] sm:$0xf]
    %v5842 = vld [vmem:[%s5 + $0x80] sm:$0xf]
    %v5843 = vld [vmem:[%s5 + $0x84] sm:$0xf]
    %v5844 = vld [vmem:[%s5 + $0x88] sm:$0xf]
    %v5845 = vld [vmem:[%s5 + $0x8c] sm:$0xf]
    %v5846 = vld [vmem:[%s5 + $0x90] sm:$0xf]
    %v5847 = vld [vmem:[%s5 + $0x94] sm:$0xf]
    %v5848 = vld [vmem:[%s5 + $0x98] sm:$0xf]
    %v5849 = vld [vmem:[%s5 + $0x9c] sm:$0xf]
    %v5850 = vld [vmem:[%s5 + $0xa0] sm:$0xf]
    %v5851 = vld [vmem:[%s5 + $0xa4] sm:$0xf]
    %v5852 = vld [vmem:[%s5 + $0xa8] sm:$0xf]
    %v5853 = vld [vmem:[%s5 + $0xac] sm:$0xf]
    %v5854 = vld [vmem:[%s5 + $0xb0] sm:$0xf]
    %v5855 = vld [vmem:[%s5 + $0xb4] sm:$0xf]
    %v5856 = vld [vmem:[%s5 + $0xb8] sm:$0xf]
    %v5857 = vld [vmem:[%s5 + $0xbc] sm:$0xf]
    %v5858 = vld [vmem:[%s5 + $0xc0] sm:$0xf]
    %v5859 = vld [vmem:[%s5 + $0xc4] sm:$0xf]
    %v5860 = vld [vmem:[%s5 + $0xc8] sm:$0xf]
    %v5861 = vld [vmem:[%s5 + $0xcc] sm:$0xf]
    %v5862 = vld [vmem:[%s5 + $0xd0] sm:$0xf]
    %v5863 = vld [vmem:[%s5 + $0xd4] sm:$0xf]
    %v5864 = vld [vmem:[%s5 + $0xd8] sm:$0xf]
    %v5865 = vld [vmem:[%s5 + $0xdc] sm:$0xf]
    %v5866 = vld [vmem:[%s5 + $0xe0] sm:$0xf]
    %v5867 = vld [vmem:[%s5 + $0xe4] sm:$0xf]
    %v5868 = vld [vmem:[%s5 + $0xe8] sm:$0xf]
    %v5869 = vld [vmem:[%s5 + $0xec] sm:$0xf]
    %v5870 = vld [vmem:[%s5 + $0xf0] sm:$0xf]
    %v5871 = vld [vmem:[%s5 + $0xf4] sm:$0xf]
    %v5872 = vld [vmem:[%s5 + $0xf8] sm:$0xf]
    %v5873 = vld [vmem:[%s5 + $0xfc] sm:$0xf]
    %v5874 = vld [vmem:[%s6] sm:$0x1]
    %v5876 = vperm.slane %v5874, 0
    %v5942 = vunpack.c.l.b16 %v5810
    %v5943 = vunpack.c.l.b16 %v5811
    %v5944 = vunpack.c.l.b16 %v5812
    %v5945 = vunpack.c.l.b16 %v5813
    %v5946 = vunpack.c.l.b16 %v5814
    %v5947 = vunpack.c.l.b16 %v5815
    %v5948 = vunpack.c.l.b16 %v5816
    %v5949 = vunpack.c.l.b16 %v5817
    %v5950 = vunpack.c.l.b16 %v5818
    %v5951 = vunpack.c.l.b16 %v5819
    %v5952 = vunpack.c.l.b16 %v5820
    %v5953 = vunpack.c.l.b16 %v5821
    %v5954 = vunpack.c.l.b16 %v5822
    %v5955 = vunpack.c.l.b16 %v5823
    %v5956 = vunpack.c.l.b16 %v5824
    %v5957 = vunpack.c.l.b16 %v5825
    %v5958 = vunpack.c.l.b16 %v5826
    %v5959 = vunpack.c.l.b16 %v5827
    %v5960 = vunpack.c.l.b16 %v5828
    %v5961 = vunpack.c.l.b16 %v5829
    %v5962 = vunpack.c.l.b16 %v5830
    %v5963 = vunpack.c.l.b16 %v5831
    %v5964 = vunpack.c.l.b16 %v5832
    %v5965 = vunpack.c.l.b16 %v5833
    %v5966 = vunpack.c.l.b16 %v5834
    %v5967 = vunpack.c.l.b16 %v5835
    %v5968 = vunpack.c.l.b16 %v5836
    %v5969 = vunpack.c.l.b16 %v5837
    %v5970 = vunpack.c.l.b16 %v5838
    %v5971 = vunpack.c.l.b16 %v5839
    %v5972 = vunpack.c.l.b16 %v5840
    %v5973 = vunpack.c.l.b16 %v5841
    %v5974 = vunpack.c.l.b16 %v5842
    %v5975 = vunpack.c.l.b16 %v5843
    %v5976 = vunpack.c.l.b16 %v5844
    %v5977 = vunpack.c.l.b16 %v5845
    %v5978 = vunpack.c.l.b16 %v5846
    %v5979 = vunpack.c.l.b16 %v5847
    %v5980 = vunpack.c.l.b16 %v5848
    %v5981 = vunpack.c.l.b16 %v5849
    %v5982 = vunpack.c.l.b16 %v5850
    %v5983 = vunpack.c.l.b16 %v5851
    %v5984 = vunpack.c.l.b16 %v5852
    %v5985 = vunpack.c.l.b16 %v5853
    %v5986 = vunpack.c.l.b16 %v5854
    %v5987 = vunpack.c.l.b16 %v5855
    %v5988 = vunpack.c.l.b16 %v5856
    %v5989 = vunpack.c.l.b16 %v5857
    %v5990 = vunpack.c.l.b16 %v5858
    %v5991 = vunpack.c.l.b16 %v5859
    %v5992 = vunpack.c.l.b16 %v5860
    %v5993 = vunpack.c.l.b16 %v5861
    %v5994 = vunpack.c.l.b16 %v5862
    %v5995 = vunpack.c.l.b16 %v5863
    %v5996 = vunpack.c.l.b16 %v5864
    %v5997 = vunpack.c.l.b16 %v5865
    %v5998 = vunpack.c.l.b16 %v5866
    %v5999 = vunpack.c.l.b16 %v5867
    %v6000 = vunpack.c.l.b16 %v5868
    %v6001 = vunpack.c.l.b16 %v5869
    %v6002 = vunpack.c.l.b16 %v5870
    %v6003 = vunpack.c.l.b16 %v5871
    %v6004 = vunpack.c.l.b16 %v5872
    %v6005 = vunpack.c.l.b16 %v5873
    %v6006 = vpack.c.b16 %v5943, %v5942
    %v6007 = vpack.c.b16 %v5945, %v5944
    %v6008 = vpack.c.b16 %v5947, %v5946
    %v6009 = vpack.c.b16 %v5949, %v5948
    %v6010 = vpack.c.b16 %v5951, %v5950
    %v6011 = vpack.c.b16 %v5953, %v5952
    %v6012 = vpack.c.b16 %v5955, %v5954
    %v6013 = vpack.c.b16 %v5957, %v5956
    %v6014 = vpack.c.b16 %v5959, %v5958
    %v6015 = vpack.c.b16 %v5961, %v5960
    %v6016 = vpack.c.b16 %v5963, %v5962
    %v6017 = vpack.c.b16 %v5965, %v5964
    %v6018 = vpack.c.b16 %v5967, %v5966
    %v6019 = vpack.c.b16 %v5969, %v5968
    %v6020 = vpack.c.b16 %v5971, %v5970
    %v6021 = vpack.c.b16 %v5973, %v5972
    %v6022 = vpack.c.b16 %v5975, %v5974
    %v6023 = vpack.c.b16 %v5977, %v5976
    %v6024 = vpack.c.b16 %v5979, %v5978
    %v6025 = vpack.c.b16 %v5981, %v5980
    %v6026 = vpack.c.b16 %v5983, %v5982
    %v6027 = vpack.c.b16 %v5985, %v5984
    %v6028 = vpack.c.b16 %v5987, %v5986
    %v6029 = vpack.c.b16 %v5989, %v5988
    %v6030 = vpack.c.b16 %v5991, %v5990
    %v6031 = vpack.c.b16 %v5993, %v5992
    %v6032 = vpack.c.b16 %v5995, %v5994
    %v6033 = vpack.c.b16 %v5997, %v5996
    %v6034 = vpack.c.b16 %v5999, %v5998
    %v6035 = vpack.c.b16 %v6001, %v6000
    %v6036 = vpack.c.b16 %v6003, %v6002
    %v6037 = vpack.c.b16 %v6005, %v6004
    %6070 = vmatpush.bf16.msra.mxu0 %v6013
    %6071 = vmatpush.bf16.msra.mxu0 %v6012
    %6072 = vmatpush.bf16.msra.mxu0 %v6011
    %6073 = vmatpush.bf16.msra.mxu0 %v6010
    %6074 = vmatpush.bf16.msra.mxu0 %v6009
    %6075 = vmatpush.bf16.msra.mxu0 %v6008
    %6076 = vmatpush.bf16.msra.mxu0 %v6007
    %6077 = vmatpush.bf16.msra.mxu0 %v6006
    %6078 = vmatmul.bf16.gmra.mxu0 %v5806
    %v6079 = vpop.f32.mrf.mxu0
    %v6080 = vadd.f32 %v5876, %v6079
    %v6081 = vpop.f32.mrf.mxu0
    %6082 = vdwg.mxu0
    %6083 = vmatpush.bf16.msra.mxu0 %v6021
    %6084 = vmatpush.bf16.msra.mxu0 %v6020
    %6085 = vmatpush.bf16.msra.mxu0 %v6019
    %6086 = vmatpush.bf16.msra.mxu0 %v6018
    %6087 = vmatpush.bf16.msra.mxu0 %v6017
    %6088 = vmatpush.bf16.msra.mxu0 %v6016
    %6089 = vmatpush.bf16.msra.mxu0 %v6015
    %6090 = vmatpush.bf16.msra.mxu0 %v6014
    %6091 = vmatmul.bf16.gmra.mxu0 %v5807
    %v6092 = vpop.f32.mrf.mxu0
    %v6093 = vadd.f32 %v6080, %v6092
    %v6094 = vpop.f32.mrf.mxu0
    %6095 = vdwg.mxu0
    %6096 = vmatpush.bf16.msra.mxu0 %v6029
    %6097 = vmatpush.bf16.msra.mxu0 %v6028
    %6098 = vmatpush.bf16.msra.mxu0 %v6027
    %6099 = vmatpush.bf16.msra.mxu0 %v6026
    %6100 = vmatpush.bf16.msra.mxu0 %v6025
    %6101 = vmatpush.bf16.msra.mxu0 %v6024
    %6102 = vmatpush.bf16.msra.mxu0 %v6023
    %6103 = vmatpush.bf16.msra.mxu0 %v6022
    %6104 = vmatmul.bf16.gmra.mxu0 %v5808
    %v6105 = vpop.f32.mrf.mxu0
    %v6106 = vadd.f32 %v6093, %v6105
    %v6107 = vpop.f32.mrf.mxu0
    %6108 = vdwg.mxu0
    %6109 = vmatpush.bf16.msra.mxu0 %v6037
    %6110 = vmatpush.bf16.msra.mxu0 %v6036
    %6111 = vmatpush.bf16.msra.mxu0 %v6035
    %6112 = vmatpush.bf16.msra.mxu0 %v6034
    %6113 = vmatpush.bf16.msra.mxu0 %v6033
    %6114 = vmatpush.bf16.msra.mxu0 %v6032
    %6115 = vmatpush.bf16.msra.mxu0 %v6031
    %6116 = vmatpush.bf16.msra.mxu0 %v6030
    %6117 = vmatmul.bf16.gmra.mxu0 %v5809
    %v6118 = vpop.f32.mrf.mxu0
    %v6119 = vadd.f32 %v6106, %v6118
    %v6120 = vpop.f32.mrf.mxu0
    %6121 = vdwg.mxu0
    %6122 = vst [vmem:[#allocation6] sm:$0x3] %v6119
    // Predicated region
    $region34: #{classifier_forward.3} parent=1 // pred_check
      _
    $region35: #{classifier_forward.3} parent=1 // pred_check_branch
      %6124 = sbr.rel (0) target = $region37
    $region36: #{classifier_forward.3} parent=1 // pred_region
      %6126 = vsyncadd [#allocation5], 0
      %s6128 = sshll.u32 [#allocation6], 4
      %s6129 = int_to_ptr.vmem [resolvable:$true] %s6128
      %s6130 = sshll.u32 %s7, 4
      %s6131 = int_to_ptr.hbm [resolvable:$true] %s6130
      %6133 = dma.vmem_to_hbm [thread:$0]  %s6129, 32, %s6131, [#allocation5]
    $region37: #{classifier_forward.3} parent=1 // pred_fallthru
      _
    // Predicated region
    $region38: #{classifier_forward.3} parent=1 // pred_check
      _
    $region39: #{classifier_forward.3} parent=1 // pred_check_branch
      %6135 = sbr.rel (0) target = $region41
    $region40: #{classifier_forward.3} parent=1 // pred_region
      %6137 = dma.done [#allocation5], 32
    $region41: #{classifier_forward.3} parent=1 // pred_fallthru
      _
    %6138 = vsyncpa [#allocation4], 1
    %6139 = vsyncpa [#allocation5], 1

</llo_original>
